<compile_context>
chip_gen: v5e
topology: v5e:2x2
jax: 0.10.0
libtpu: 0.0.40
codegen_flags: <defaults>
</compile_context>

<pallas_src>
import functools
import math

import jax
import jax.numpy as jnp
from jax.experimental import pallas as pl
from jax.experimental.pallas import tpu as pltpu


# ----------------------------------------------------------------------------
# Fused matmul kernel:  out = epilogue( A @ B )
#   y = (acc [+ residual]) * scale1 + bias1 ; optional ReLU
#   outputs: x = y                      (pre-activation, e.g. residual carry)
#            h = relu(y*scale2 + bias2) (next stage's BN1+ReLU activation)
# ----------------------------------------------------------------------------

def _fused_mm_kernel(*refs, relu1, has_res, out_x, out_h):
    it = iter(refs)
    a_ref = next(it)
    b_ref = next(it)
    s1_ref = next(it)
    c1_ref = next(it)
    s2_ref = c2_ref = r_ref = None
    if out_h:
        s2_ref = next(it)
        c2_ref = next(it)
    if has_res:
        r_ref = next(it)
    out_refs = []
    if out_x:
        out_refs.append(next(it))
    if out_h:
        out_refs.append(next(it))
    acc_ref = next(it)

    @pl.when(pl.program_id(2) == 0)
    def _():
        acc_ref[...] = jnp.zeros_like(acc_ref)

    acc_ref[...] += jnp.dot(a_ref[...], b_ref[...],
                            preferred_element_type=jnp.float32)

    @pl.when(pl.program_id(2) == pl.num_programs(2) - 1)
    def _():
        y = acc_ref[...]
        if has_res:
            y = y + r_ref[...]
        y = y * s1_ref[...] + c1_ref[...]
        if relu1:
            y = jnp.maximum(y, 0.0)
        i = 0
        if out_x:
            out_refs[i][...] = y.astype(out_refs[i].dtype)
            i += 1
        if out_h:
            h = jnp.maximum(y * s2_ref[...] + c2_ref[...], 0.0)
            out_refs[i][...] = h.astype(out_refs[i].dtype)


def _pick_tile(dim, cap, align):
    """Largest `align`-multiple tile <= cap that divides dim (else full dim)."""
    if dim <= cap:
        return dim
    t = (cap // align) * align
    while t >= align:
        if dim % t == 0:
            return t
        t -= align
    return dim


def fused_conv_matmul(a, w, *, scale1=None, bias1=None, relu1=False,
                      scale2=None, bias2=None, residual=None,
                      out_x=False, out_h=False,
                      x_dtype=jnp.float32, h_dtype=jnp.bfloat16):
    """A:(M,K) @ W:(K,N) with fused affine/ReLU/residual epilogue."""
    assert out_x or out_h
    M, K = a.shape
    Kw, Nn = w.shape
    assert K == Kw
    f32 = jnp.float32
    if scale1 is None:
        scale1 = jnp.ones((1, Nn), f32)
    if bias1 is None:
        bias1 = jnp.zeros((1, Nn), f32)
    scale1 = scale1.reshape(1, Nn).astype(f32)
    bias1 = bias1.reshape(1, Nn).astype(f32)

    tm = _pick_tile(M, 256, 8)        # >=2 grid programs along M when M allows
    tn = _pick_tile(Nn, 256, 128)     # lane-dense output tiles
    tk = _pick_tile(K, 512, 128)      # VMEM-safe K tiling for wide configs
    grid = (M // tm, Nn // tn, K // tk)

    has_res = residual is not None

    in_specs = [
        pl.BlockSpec((tm, tk), lambda i, j, k: (i, k)),
        pl.BlockSpec((tk, tn), lambda i, j, k: (k, j)),
        pl.BlockSpec((1, tn), lambda i, j, k: (0, j)),
        pl.BlockSpec((1, tn), lambda i, j, k: (0, j)),
    ]
    inputs = [a.astype(jnp.bfloat16), w.astype(jnp.bfloat16), scale1, bias1]
    if out_h:
        in_specs += [pl.BlockSpec((1, tn), lambda i, j, k: (0, j)),
                     pl.BlockSpec((1, tn), lambda i, j, k: (0, j))]
        inputs += [scale2.reshape(1, Nn).astype(f32),
                   bias2.reshape(1, Nn).astype(f32)]
    if has_res:
        in_specs.append(pl.BlockSpec((tm, tn), lambda i, j, k: (i, j)))
        inputs.append(residual.reshape(M, Nn).astype(f32))

    out_shapes, out_specs = [], []
    if out_x:
        out_shapes.append(jax.ShapeDtypeStruct((M, Nn), x_dtype))
        out_specs.append(pl.BlockSpec((tm, tn), lambda i, j, k: (i, j)))
    if out_h:
        out_shapes.append(jax.ShapeDtypeStruct((M, Nn), h_dtype))
        out_specs.append(pl.BlockSpec((tm, tn), lambda i, j, k: (i, j)))

    kernel = functools.partial(_fused_mm_kernel, relu1=relu1, has_res=has_res,
                               out_x=out_x, out_h=out_h)
    outs = pl.pallas_call(
        kernel,
        out_shape=tuple(out_shapes),
        grid=grid,
        in_specs=in_specs,
        out_specs=tuple(out_specs),
        scratch_shapes=[pltpu.VMEM((tm, tn), f32)],
        compiler_params=pltpu.CompilerParams(
            dimension_semantics=("parallel", "parallel", "arbitrary"),
            vmem_limit_bytes=32 * 1024 * 1024),
    )(*inputs)
    if not isinstance(outs, (list, tuple)):
        outs = (outs,)
    return tuple(outs)


# ----------------------------------------------------------------------------
# Fused global-average-pool + fully-connected head
# ----------------------------------------------------------------------------

def _pool_fc_kernel(x_ref, w_ref, b_ref, o_ref):
    pooled = jnp.mean(x_ref[...].astype(jnp.float32), axis=1)        # (N, C)
    o_ref[...] = (jnp.dot(pooled, w_ref[...],
                          preferred_element_type=jnp.float32) + b_ref[...])


def pallas_pool_fc(x_nhwc, w, b):
    N, H, W, C = x_nhwc.shape
    nc = w.shape[1]
    x3 = x_nhwc.reshape(N, H * W, C)
    return pl.pallas_call(
        _pool_fc_kernel,
        out_shape=jax.ShapeDtypeStruct((N, nc), jnp.float32),
        grid=(1,),
        in_specs=[pl.BlockSpec((N, H * W, C), lambda i: (0, 0, 0)),
                  pl.BlockSpec((C, nc), lambda i: (0, 0)),
                  pl.BlockSpec((1, nc), lambda i: (0, 0))],
        out_specs=pl.BlockSpec((N, nc), lambda i: (0, 0)),
    )(x3, w.astype(jnp.float32), b.reshape(1, nc).astype(jnp.float32))


# ----------------------------------------------------------------------------
# im2col glue (plain JAX; fused by XLA with the adjacent affine / pad)
# ----------------------------------------------------------------------------

def _im2col_3x3(x, stride):
    """x: (N,H,W,C) -> (N*Ho*Wo, 9*C) bf16 patches; padding=1 (zeros)."""
    N, H, W, C = x.shape
    Ho = (H + 2 - 3) // stride + 1
    Wo = (W + 2 - 3) // stride + 1
    xp = jnp.pad(x, ((0, 0), (1, 1), (1, 1), (0, 0)))
    taps = []
    for kh in range(3):
        for kw in range(3):
            taps.append(xp[:, kh:kh + stride * (Ho - 1) + 1:stride,
                           kw:kw + stride * (Wo - 1) + 1:stride, :])
    p = jnp.stack(taps, axis=3)                       # (N, Ho, Wo, 9, C)
    return p.reshape(N * Ho * Wo, 9 * C).astype(jnp.bfloat16), Ho, Wo


# ----------------------------------------------------------------------------
# WideResNet forward
# ----------------------------------------------------------------------------

def wideresnet_forward(params, x_nchw):
    # Accept PyTorch NCHW; compute in NHWC so channels sit on the lane dim.
    x = jnp.transpose(x_nchw, (0, 2, 3, 1)).astype(jnp.float32)
    # NormalizeByChannelMeanStd: tiny affine, fused by XLA into the im2col pad.
    x = x * params["norm_scale"] + params["norm_bias"]

    blocks = params["blocks"]
    N = x.shape[0]
    b0 = blocks[0]

    # Stem conv (3x3, stride 1).  Epilogue also emits block0's pre-activation
    # residual x0 (only if block0 uses the identity shortcut) and
    # h0 = relu(bn1_block0(x0)) in the same pass.
    a, Ho, Wo = _im2col_3x3(x, 1)
    outs = fused_conv_matmul(a, params["stem_w"],
                             scale2=b0["bn1_s"], bias2=b0["bn1_b"],
                             out_x=b0["equal"], out_h=True)
    if b0["equal"]:
        x_res = outs[0].reshape(N, Ho, Wo, -1)
        h = outs[1].reshape(N, Ho, Wo, -1)
    else:
        x_res, h = None, outs[0].reshape(N, Ho, Wo, -1)

    for bi, blk in enumerate(blocks):
        stride = blk["stride"]

        # ---- shortcut branch (identity, or fused 1x1-conv matmul)
        if blk["equal"]:
            residual = x_res.reshape(-1, x_res.shape[-1])
        else:
            # TODO(synk): express the strided subsample via the matmul's A
            #             index_map instead of a JAX-side gather.
            hs = h[:, ::stride, ::stride, :]
            (residual,) = fused_conv_matmul(
                hs.reshape(-1, hs.shape[-1]), blk["shortcut_w"], out_x=True)

        # ---- conv1 (3x3, stride) with fused BN2+ReLU epilogue (bf16 out)
        a1, Ho, Wo = _im2col_3x3(h, stride)
        (hm,) = fused_conv_matmul(a1, blk["conv1_w"],
                                  scale1=blk["bn2_s"], bias1=blk["bn2_b"],
                                  relu1=True, out_x=True,
                                  x_dtype=jnp.bfloat16)
        hm = hm.reshape(N, Ho, Wo, -1)

        # ---- conv2 (3x3, s=1) with fused residual add + next-stage BN+ReLU
        a2, Ho, Wo = _im2col_3x3(hm, 1)
        last = bi == len(blocks) - 1
        if last:
            s2, b2, need_x = params["bn_final_s"], params["bn_final_b"], False
        else:
            nxt = blocks[bi + 1]
            s2, b2, need_x = nxt["bn1_s"], nxt["bn1_b"], nxt["equal"]
        outs = fused_conv_matmul(a2, blk["conv2_w"], residual=residual,
                                 scale2=s2, bias2=b2,
                                 out_x=need_x, out_h=True,
                                 h_dtype=(jnp.float32 if last
                                          else jnp.bfloat16))
        if need_x:
            x_res = outs[0].reshape(N, Ho, Wo, -1)
            h = outs[1].reshape(N, Ho, Wo, -1)
        else:
            x_res, h = None, outs[0].reshape(N, Ho, Wo, -1)

    # h == relu(bn_final(out)); fused global average pool + Linear head.
    return pallas_pool_fc(h, params["fc_w"], params["fc_b"])


# ----------------------------------------------------------------------------
# Parameter construction (PyTorch-equivalent init, eval-mode folded BN),
# pre-transposed / zero-padded to 128-multiple channels, weights in bf16.
# ----------------------------------------------------------------------------

def make_params(key, depth=10, num_classes=10, widen_factor=1,
                color_channels=3, bn_eps=1e-5, cpad=128):
    assert (depth - 4) % 6 == 0
    nb = (depth - 4) // 6
    nch = [16, 16 * widen_factor, 32 * widen_factor, 64 * widen_factor]
    rup = lambda c: ((c + cpad - 1) // cpad) * cpad
    keys = iter(jax.random.split(key, 9 * nb + 8))

    def conv_w(cout, cin, k):
        n = k * k * cout
        return (jax.random.normal(next(keys), (cout, cin, k, k), jnp.float32)
                * jnp.float32(math.sqrt(2.0 / n)))

    def conv3x3_mat(w, cin_pad, cout_pad):
        cout, cin = w.shape[:2]
        wp = jnp.zeros((cout_pad, cin_pad, 3, 3), jnp.float32)
        wp = wp.at[:cout, :cin].set(w)
        return (jnp.transpose(wp, (2, 3, 1, 0))
                .reshape(9 * cin_pad, cout_pad).astype(jnp.bfloat16))

    def conv1x1_mat(w, cin_pad, cout_pad):
        cout, cin = w.shape[:2]
        wp = jnp.zeros((cin_pad, cout_pad), jnp.float32)
        wp = wp.at[:cin, :cout].set(w.reshape(cout, cin).T)
        return wp.astype(jnp.bfloat16)

    def bn_affine(c, c_pad):
        # eval-mode BN folded: gamma=1, beta=0, running_mean=0, running_var=1.
        scale = jnp.ones((c,), jnp.float32) / jnp.sqrt(1.0 + bn_eps)
        bias = jnp.zeros((c,), jnp.float32)
        s = jnp.zeros((1, c_pad), jnp.float32).at[0, :c].set(scale)
        b = jnp.zeros((1, c_pad), jnp.float32).at[0, :c].set(bias)
        return s, b

    params = {
        "stem_w": conv3x3_mat(conv_w(nch[0], color_channels, 3),
                              color_channels, rup(nch[0])),
    }

    blocks = []
    strides = [1, 2, 2]
    for g in range(3):
        for i in range(nb):
            in_planes = nch[g] if i == 0 else nch[g + 1]
            out_planes = nch[g + 1]
            stride = strides[g] if i == 0 else 1
            cin_p, cout_p = rup(in_planes), rup(out_planes)
            equal = in_planes == out_planes
            bn1_s, bn1_b = bn_affine(in_planes, cin_p)
            bn2_s, bn2_b = bn_affine(out_planes, cout_p)
            blocks.append(dict(
                stride=stride, equal=equal,
                bn1_s=bn1_s, bn1_b=bn1_b,
                conv1_w=conv3x3_mat(conv_w(out_planes, in_planes, 3),
                                    cin_p, cout_p),
                bn2_s=bn2_s, bn2_b=bn2_b,
                conv2_w=conv3x3_mat(conv_w(out_planes, out_planes, 3),
                                    cout_p, cout_p),
                shortcut_w=(None if equal else
                            conv1x1_mat(conv_w(out_planes, in_planes, 1),
                                        cin_p, cout_p)),
            ))
    params["blocks"] = blocks

    bnf_s, bnf_b = bn_affine(nch[3], rup(nch[3]))
    params["bn_final_s"] = bnf_s
    params["bn_final_b"] = bnf_b

    # Linear head: synthetic deterministic weights, bias=0 (per module init).
    fcw = (jax.random.normal(next(keys), (nch[3], num_classes), jnp.float32)
           * jnp.float32(1.0 / math.sqrt(nch[3])))
    params["fc_w"] = (jnp.zeros((rup(nch[3]), num_classes), jnp.float32)
                      .at[:nch[3], :].set(fcw))
    params["fc_b"] = jnp.zeros((num_classes,), jnp.float32)

    mean = jnp.array([0.4914, 0.4822, 0.4465], jnp.float32)
    std = jnp.array([0.247, 0.2435, 0.2616], jnp.float32)
    params["norm_scale"] = 1.0 / std
    params["norm_bias"] = -mean / std
    return params


if __name__ == "__main__":
    key = jax.random.PRNGKey(0)
    pkey, xkey = jax.random.split(key)

    # depth=10 -> 1 BasicBlock per group; widen_factor=1 -> channels 16/16/32/64
    params = make_params(pkey, depth=10, num_classes=10, widen_factor=1,
                         color_channels=3)

    # PyTorch-convention NCHW input: (batch=2, color=3, 16, 16)
    x = jax.random.normal(xkey, (2, 3, 16, 16), jnp.float32)

    fwd = jax.jit(lambda xin: wideresnet_forward(params, xin))
    out = jax.block_until_ready(fwd(x))
    assert out.shape == (2, 10) and out.dtype == jnp.float32
    print("KERNEL_OK")
</pallas_src>

<mosaic_0001>
module attributes {stable_mosaic.version = 11 : i64} {
  func.func @_fused_mm_kernel(%arg0: i32, %arg1: i32, %arg2: i32, %arg3: memref<256x27xbf16, #tpu.memory_space<vmem>>, %arg4: memref<27x128xbf16, #tpu.memory_space<vmem>>, %arg5: memref<1x128xf32, #tpu.memory_space<vmem>>, %arg6: memref<1x128xf32, #tpu.memory_space<vmem>>, %arg7: memref<1x128xf32, #tpu.memory_space<vmem>>, %arg8: memref<1x128xf32, #tpu.memory_space<vmem>>, %arg9: memref<256x128xf32, #tpu.memory_space<vmem>>, %arg10: memref<256x128xbf16, #tpu.memory_space<vmem>>, %arg11: memref<256x128xf32, #tpu.memory_space<vmem>>) attributes {dimension_semantics = [#tpu.dimension_semantics<parallel>, #tpu.dimension_semantics<parallel>, #tpu.dimension_semantics<arbitrary>], iteration_bounds = array<i64: 2, 1, 1>, scalar_prefetch = 0 : i64, scratch_operands = 1 : i64, tpu.core_type = #tpu.core_type<tc>, window_params = [{transform_indices = @transform_0, window_bounds = array<i64: 256, 27>}, {transform_indices = @transform_1, window_bounds = array<i64: 27, 128>}, {transform_indices = @transform_2, window_bounds = array<i64: 1, 128>}, {transform_indices = @transform_3, window_bounds = array<i64: 1, 128>}, {transform_indices = @transform_4, window_bounds = array<i64: 1, 128>}, {transform_indices = @transform_5, window_bounds = array<i64: 1, 128>}, {transform_indices = @transform_6, window_bounds = array<i64: 256, 128>}, {transform_indices = @transform_7, window_bounds = array<i64: 256, 128>}]} {
    %c0_i32 = arith.constant 0 : i32
    %0 = arith.cmpi eq, %arg2, %c0_i32 : i32
    %1 = arith.extui %0 : i1 to i32
    %c0_i32_0 = arith.constant 0 : i32
    %2 = arith.cmpi ne, %1, %c0_i32_0 : i32
    scf.if %2 {
      %cst_10 = arith.constant 0.000000e+00 : f32
      %12 = vector.broadcast %cst_10 : f32 to vector<256x128xf32>
      %c0_11 = arith.constant 0 : index
      %c0_12 = arith.constant 0 : index
      %13 = vector.load %arg11[%c0_11, %c0_12] : memref<256x128xf32, #tpu.memory_space<vmem>>, vector<256x128xf32>
      tpu.vector_store %arg11[%c0_11, %c0_12], %12 {strides = array<i32>} : memref<256x128xf32, #tpu.memory_space<vmem>>, vector<256x128xf32>,
    } else {
    }
    %c0 = arith.constant 0 : index
    %c0_1 = arith.constant 0 : index
    %3 = vector.load %arg11[%c0, %c0_1] : memref<256x128xf32, #tpu.memory_space<vmem>>, vector<256x128xf32>
    %c0_2 = arith.constant 0 : index
    %c0_3 = arith.constant 0 : index
    %4 = vector.load %arg3[%c0_2, %c0_3] : memref<256x27xbf16, #tpu.memory_space<vmem>>, vector<256x27xbf16>
    %c0_4 = arith.constant 0 : index
    %c0_5 = arith.constant 0 : index
    %5 = vector.load %arg4[%c0_4, %c0_5] : memref<27x128xbf16, #tpu.memory_space<vmem>>, vector<27x128xbf16>
    %cst = arith.constant dense<0.000000e+00> : vector<256x128xf32>
    %6 = tpu.matmul %4, %5, %cst {dimension_numbers = #tpu.dot_dimension_numbers<[1], [0], [0], [1], [0, 0, 1, 1], [], []>} : vector<256x27xbf16>, vector<27x128xbf16>, vector<256x128xf32> -> vector<256x128xf32>
    %7 = arith.addf %3, %6 : vector<256x128xf32>
    %c0_6 = arith.constant 0 : index
    %c0_7 = arith.constant 0 : index
    %8 = vector.load %arg11[%c0_6, %c0_7] : memref<256x128xf32, #tpu.memory_space<vmem>>, vector<256x128xf32>
    tpu.vector_store %arg11[%c0_6, %c0_7], %7 {strides = array<i32>} : memref<256x128xf32, #tpu.memory_space<vmem>>, vector<256x128xf32>,
    %c0_i32_8 = arith.constant 0 : i32
    %9 = arith.cmpi eq, %arg2, %c0_i32_8 : i32
    %10 = arith.extui %9 : i1 to i32
    %c0_i32_9 = arith.constant 0 : i32
    %11 = arith.cmpi ne, %10, %c0_i32_9 : i32
    scf.if %11 {
      %c0_10 = arith.constant 0 : index
      %c0_11 = arith.constant 0 : index
      %12 = vector.load %arg11[%c0_10, %c0_11] : memref<256x128xf32, #tpu.memory_space<vmem>>, vector<256x128xf32>
      %c0_12 = arith.constant 0 : index
      %c0_13 = arith.constant 0 : index
      %13 = vector.load %arg5[%c0_12, %c0_13] : memref<1x128xf32, #tpu.memory_space<vmem>>, vector<1x128xf32>
      %14 = vector.broadcast %13 : vector<1x128xf32> to vector<256x128xf32>
      %15 = arith.mulf %12, %14 : vector<256x128xf32>
      %c0_14 = arith.constant 0 : index
      %c0_15 = arith.constant 0 : index
      %16 = vector.load %arg6[%c0_14, %c0_15] : memref<1x128xf32, #tpu.memory_space<vmem>>, vector<1x128xf32>
      %17 = vector.broadcast %16 : vector<1x128xf32> to vector<256x128xf32>
      %18 = arith.addf %15, %17 : vector<256x128xf32>
      %c0_16 = arith.constant 0 : index
      %c0_17 = arith.constant 0 : index
      %19 = vector.load %arg9[%c0_16, %c0_17] : memref<256x128xf32, #tpu.memory_space<vmem>>, vector<256x128xf32>
      tpu.vector_store %arg9[%c0_16, %c0_17], %18 {strides = array<i32>} : memref<256x128xf32, #tpu.memory_space<vmem>>, vector<256x128xf32>,
      %c0_18 = arith.constant 0 : index
      %c0_19 = arith.constant 0 : index
      %20 = vector.load %arg7[%c0_18, %c0_19] : memref<1x128xf32, #tpu.memory_space<vmem>>, vector<1x128xf32>
      %21 = vector.broadcast %20 : vector<1x128xf32> to vector<256x128xf32>
      %22 = arith.mulf %18, %21 : vector<256x128xf32>
      %c0_20 = arith.constant 0 : index
      %c0_21 = arith.constant 0 : index
      %23 = vector.load %arg8[%c0_20, %c0_21] : memref<1x128xf32, #tpu.memory_space<vmem>>, vector<1x128xf32>
      %24 = vector.broadcast %23 : vector<1x128xf32> to vector<256x128xf32>
      %25 = arith.addf %22, %24 : vector<256x128xf32>
      %cst_22 = arith.constant 0.000000e+00 : f32
      %26 = vector.broadcast %cst_22 : f32 to vector<256x128xf32>
      %27 = arith.maximumf %25, %26 : vector<256x128xf32>
      %28 = arith.truncf %27 : vector<256x128xf32> to vector<256x128xbf16>
      %c0_23 = arith.constant 0 : index
      %c0_24 = arith.constant 0 : index
      %29 = vector.load %arg10[%c0_23, %c0_24] : memref<256x128xbf16, #tpu.memory_space<vmem>>, vector<256x128xbf16>
      tpu.vector_store %arg10[%c0_23, %c0_24], %28 {strides = array<i32>} : memref<256x128xbf16, #tpu.memory_space<vmem>>, vector<256x128xbf16>,
    } else {
    }
    return
  }
  func.func @transform_0(%arg0: i32, %arg1: i32, %arg2: i32) -> (i32, i32) {
    %c0_i32 = arith.constant 0 : i32
    return %arg0, %arg2 : i32, i32
  }
  func.func @transform_1(%arg0: i32, %arg1: i32, %arg2: i32) -> (i32, i32) {
    %c0_i32 = arith.constant 0 : i32
    return %arg2, %arg1 : i32, i32
  }
  func.func @transform_2(%arg0: i32, %arg1: i32, %arg2: i32) -> (i32, i32) {
    %c0_i32 = arith.constant 0 : i32
    %c0_i32_0 = arith.constant 0 : i32
    return %c0_i32, %arg1 : i32, i32
  }
  func.func @transform_3(%arg0: i32, %arg1: i32, %arg2: i32) -> (i32, i32) {
    %c0_i32 = arith.constant 0 : i32
    %c0_i32_0 = arith.constant 0 : i32
    return %c0_i32, %arg1 : i32, i32
  }
  func.func @transform_4(%arg0: i32, %arg1: i32, %arg2: i32) -> (i32, i32) {
    %c0_i32 = arith.constant 0 : i32
    %c0_i32_0 = arith.constant 0 : i32
    return %c0_i32, %arg1 : i32, i32
  }
  func.func @transform_5(%arg0: i32, %arg1: i32, %arg2: i32) -> (i32, i32) {
    %c0_i32 = arith.constant 0 : i32
    %c0_i32_0 = arith.constant 0 : i32
    return %c0_i32, %arg1 : i32, i32
  }
  func.func @transform_6(%arg0: i32, %arg1: i32, %arg2: i32) -> (i32, i32) {
    %c0_i32 = arith.constant 0 : i32
    return %arg0, %arg1 : i32, i32
  }
  func.func @transform_7(%arg0: i32, %arg1: i32, %arg2: i32) -> (i32, i32) {
    %c0_i32 = arith.constant 0 : i32
    return %arg0, %arg1 : i32, i32
  }
}

module attributes {stable_mosaic.version = 11 : i64} {
  func.func @_fused_mm_kernel(%arg0: i32, %arg1: i32, %arg2: i32, %arg3: memref<256x384xbf16, #tpu.memory_space<vmem>>, %arg4: memref<384x128xbf16, #tpu.memory_space<vmem>>, %arg5: memref<1x128xf32, #tpu.memory_space<vmem>>, %arg6: memref<1x128xf32, #tpu.memory_space<vmem>>, %arg7: memref<256x128xbf16, #tpu.memory_space<vmem>>, %arg8: memref<256x128xf32, #tpu.memory_space<vmem>>) attributes {dimension_semantics = [#tpu.dimension_semantics<parallel>, #tpu.dimension_semantics<parallel>, #tpu.dimension_semantics<arbitrary>], iteration_bounds = array<i64: 2, 1, 3>, scalar_prefetch = 0 : i64, scratch_operands = 1 : i64, tpu.core_type = #tpu.core_type<tc>, window_params = [{transform_indices = @transform_0, window_bounds = array<i64: 256, 384>}, {transform_indices = @transform_1, window_bounds = array<i64: 384, 128>}, {transform_indices = @transform_2, window_bounds = array<i64: 1, 128>}, {transform_indices = @transform_3, window_bounds = array<i64: 1, 128>}, {transform_indices = @transform_4, window_bounds = array<i64: 256, 128>}]} {
    %c0_i32 = arith.constant 0 : i32
    %0 = arith.cmpi eq, %arg2, %c0_i32 : i32
    %1 = arith.extui %0 : i1 to i32
    %c0_i32_0 = arith.constant 0 : i32
    %2 = arith.cmpi ne, %1, %c0_i32_0 : i32
    scf.if %2 {
      %cst_9 = arith.constant 0.000000e+00 : f32
      %12 = vector.broadcast %cst_9 : f32 to vector<256x128xf32>
      %c0_10 = arith.constant 0 : index
      %c0_11 = arith.constant 0 : index
      %13 = vector.load %arg8[%c0_10, %c0_11] : memref<256x128xf32, #tpu.memory_space<vmem>>, vector<256x128xf32>
      tpu.vector_store %arg8[%c0_10, %c0_11], %12 {strides = array<i32>} : memref<256x128xf32, #tpu.memory_space<vmem>>, vector<256x128xf32>,
    } else {
    }
    %c0 = arith.constant 0 : index
    %c0_1 = arith.constant 0 : index
    %3 = vector.load %arg8[%c0, %c0_1] : memref<256x128xf32, #tpu.memory_space<vmem>>, vector<256x128xf32>
    %c0_2 = arith.constant 0 : index
    %c0_3 = arith.constant 0 : index
    %4 = vector.load %arg3[%c0_2, %c0_3] : memref<256x384xbf16, #tpu.memory_space<vmem>>, vector<256x384xbf16>
    %c0_4 = arith.constant 0 : index
    %c0_5 = arith.constant 0 : index
    %5 = vector.load %arg4[%c0_4, %c0_5] : memref<384x128xbf16, #tpu.memory_space<vmem>>, vector<384x128xbf16>
    %cst = arith.constant dense<0.000000e+00> : vector<256x128xf32>
    %6 = tpu.matmul %4, %5, %cst {dimension_numbers = #tpu.dot_dimension_numbers<[1], [0], [0], [1], [0, 0, 1, 1], [], []>} : vector<256x384xbf16>, vector<384x128xbf16>, vector<256x128xf32> -> vector<256x128xf32>
    %7 = arith.addf %3, %6 : vector<256x128xf32>
    %c0_6 = arith.constant 0 : index
    %c0_7 = arith.constant 0 : index
    %8 = vector.load %arg8[%c0_6, %c0_7] : memref<256x128xf32, #tpu.memory_space<vmem>>, vector<256x128xf32>
    tpu.vector_store %arg8[%c0_6, %c0_7], %7 {strides = array<i32>} : memref<256x128xf32, #tpu.memory_space<vmem>>, vector<256x128xf32>,
    %c2_i32 = arith.constant 2 : i32
    %9 = arith.cmpi eq, %arg2, %c2_i32 : i32
    %10 = arith.extui %9 : i1 to i32
    %c0_i32_8 = arith.constant 0 : i32
    %11 = arith.cmpi ne, %10, %c0_i32_8 : i32
    scf.if %11 {
      %c0_9 = arith.constant 0 : index
      %c0_10 = arith.constant 0 : index
      %12 = vector.load %arg8[%c0_9, %c0_10] : memref<256x128xf32, #tpu.memory_space<vmem>>, vector<256x128xf32>
      %c0_11 = arith.constant 0 : index
      %c0_12 = arith.constant 0 : index
      %13 = vector.load %arg5[%c0_11, %c0_12] : memref<1x128xf32, #tpu.memory_space<vmem>>, vector<1x128xf32>
      %14 = vector.broadcast %13 : vector<1x128xf32> to vector<256x128xf32>
      %15 = arith.mulf %12, %14 : vector<256x128xf32>
      %c0_13 = arith.constant 0 : index
      %c0_14 = arith.constant 0 : index
      %16 = vector.load %arg6[%c0_13, %c0_14] : memref<1x128xf32, #tpu.memory_space<vmem>>, vector<1x128xf32>
      %17 = vector.broadcast %16 : vector<1x128xf32> to vector<256x128xf32>
      %18 = arith.addf %15, %17 : vector<256x128xf32>
      %cst_15 = arith.constant 0.000000e+00 : f32
      %19 = vector.broadcast %cst_15 : f32 to vector<256x128xf32>
      %20 = arith.maximumf %18, %19 : vector<256x128xf32>
      %21 = arith.truncf %20 : vector<256x128xf32> to vector<256x128xbf16>
      %c0_16 = arith.constant 0 : index
      %c0_17 = arith.constant 0 : index
      %22 = vector.load %arg7[%c0_16, %c0_17] : memref<256x128xbf16, #tpu.memory_space<vmem>>, vector<256x128xbf16>
      tpu.vector_store %arg7[%c0_16, %c0_17], %21 {strides = array<i32>} : memref<256x128xbf16, #tpu.memory_space<vmem>>, vector<256x128xbf16>,
    } else {
    }
    return
  }
  func.func @transform_0(%arg0: i32, %arg1: i32, %arg2: i32) -> (i32, i32) {
    %c0_i32 = arith.constant 0 : i32
    return %arg0, %arg2 : i32, i32
  }
  func.func @transform_1(%arg0: i32, %arg1: i32, %arg2: i32) -> (i32, i32) {
    %c0_i32 = arith.constant 0 : i32
    return %arg2, %arg1 : i32, i32
  }
  func.func @transform_2(%arg0: i32, %arg1: i32, %arg2: i32) -> (i32, i32) {
    %c0_i32 = arith.constant 0 : i32
    %c0_i32_0 = arith.constant 0 : i32
    return %c0_i32, %arg1 : i32, i32
  }
  func.func @transform_3(%arg0: i32, %arg1: i32, %arg2: i32) -> (i32, i32) {
    %c0_i32 = arith.constant 0 : i32
    %c0_i32_0 = arith.constant 0 : i32
    return %c0_i32, %arg1 : i32, i32
  }
  func.func @transform_4(%arg0: i32, %arg1: i32, %arg2: i32) -> (i32, i32) {
    %c0_i32 = arith.constant 0 : i32
    return %arg0, %arg1 : i32, i32
  }
}

module attributes {stable_mosaic.version = 11 : i64} {
  func.func @_fused_mm_kernel(%arg0: i32, %arg1: i32, %arg2: i32, %arg3: memref<256x384xbf16, #tpu.memory_space<vmem>>, %arg4: memref<384x128xbf16, #tpu.memory_space<vmem>>, %arg5: memref<1x128xf32, #tpu.memory_space<vmem>>, %arg6: memref<1x128xf32, #tpu.memory_space<vmem>>, %arg7: memref<1x128xf32, #tpu.memory_space<vmem>>, %arg8: memref<1x128xf32, #tpu.memory_space<vmem>>, %arg9: memref<256x128xf32, #tpu.memory_space<vmem>>, %arg10: memref<256x128xbf16, #tpu.memory_space<vmem>>, %arg11: memref<256x128xf32, #tpu.memory_space<vmem>>) attributes {dimension_semantics = [#tpu.dimension_semantics<parallel>, #tpu.dimension_semantics<parallel>, #tpu.dimension_semantics<arbitrary>], iteration_bounds = array<i64: 2, 1, 3>, scalar_prefetch = 0 : i64, scratch_operands = 1 : i64, tpu.core_type = #tpu.core_type<tc>, window_params = [{transform_indices = @transform_0, window_bounds = array<i64: 256, 384>}, {transform_indices = @transform_1, window_bounds = array<i64: 384, 128>}, {transform_indices = @transform_2, window_bounds = array<i64: 1, 128>}, {transform_indices = @transform_3, window_bounds = array<i64: 1, 128>}, {transform_indices = @transform_4, window_bounds = array<i64: 1, 128>}, {transform_indices = @transform_5, window_bounds = array<i64: 1, 128>}, {transform_indices = @transform_6, window_bounds = array<i64: 256, 128>}, {transform_indices = @transform_7, window_bounds = array<i64: 256, 128>}]} {
    %c0_i32 = arith.constant 0 : i32
    %0 = arith.cmpi eq, %arg2, %c0_i32 : i32
    %1 = arith.extui %0 : i1 to i32
    %c0_i32_0 = arith.constant 0 : i32
    %2 = arith.cmpi ne, %1, %c0_i32_0 : i32
    scf.if %2 {
      %cst_9 = arith.constant 0.000000e+00 : f32
      %12 = vector.broadcast %cst_9 : f32 to vector<256x128xf32>
      %c0_10 = arith.constant 0 : index
      %c0_11 = arith.constant 0 : index
      %13 = vector.load %arg11[%c0_10, %c0_11] : memref<256x128xf32, #tpu.memory_space<vmem>>, vector<256x128xf32>
      tpu.vector_store %arg11[%c0_10, %c0_11], %12 {strides = array<i32>} : memref<256x128xf32, #tpu.memory_space<vmem>>, vector<256x128xf32>,
    } else {
    }
    %c0 = arith.constant 0 : index
    %c0_1 = arith.constant 0 : index
    %3 = vector.load %arg11[%c0, %c0_1] : memref<256x128xf32, #tpu.memory_space<vmem>>, vector<256x128xf32>
    %c0_2 = arith.constant 0 : index
    %c0_3 = arith.constant 0 : index
    %4 = vector.load %arg3[%c0_2, %c0_3] : memref<256x384xbf16, #tpu.memory_space<vmem>>, vector<256x384xbf16>
    %c0_4 = arith.constant 0 : index
    %c0_5 = arith.constant 0 : index
    %5 = vector.load %arg4[%c0_4, %c0_5] : memref<384x128xbf16, #tpu.memory_space<vmem>>, vector<384x128xbf16>
    %cst = arith.constant dense<0.000000e+00> : vector<256x128xf32>
    %6 = tpu.matmul %4, %5, %cst {dimension_numbers = #tpu.dot_dimension_numbers<[1], [0], [0], [1], [0, 0, 1, 1], [], []>} : vector<256x384xbf16>, vector<384x128xbf16>, vector<256x128xf32> -> vector<256x128xf32>
    %7 = arith.addf %3, %6 : vector<256x128xf32>
    %c0_6 = arith.constant 0 : index
    %c0_7 = arith.constant 0 : index
    %8 = vector.load %arg11[%c0_6, %c0_7] : memref<256x128xf32, #tpu.memory_space<vmem>>, vector<256x128xf32>
    tpu.vector_store %arg11[%c0_6, %c0_7], %7 {strides = array<i32>} : memref<256x128xf32, #tpu.memory_space<vmem>>, vector<256x128xf32>,
    %c2_i32 = arith.constant 2 : i32
    %9 = arith.cmpi eq, %arg2, %c2_i32 : i32
    %10 = arith.extui %9 : i1 to i32
    %c0_i32_8 = arith.constant 0 : i32
    %11 = arith.cmpi ne, %10, %c0_i32_8 : i32
    scf.if %11 {
      %c0_9 = arith.constant 0 : index
      %c0_10 = arith.constant 0 : index
      %12 = vector.load %arg11[%c0_9, %c0_10] : memref<256x128xf32, #tpu.memory_space<vmem>>, vector<256x128xf32>
      %c0_11 = arith.constant 0 : index
      %c0_12 = arith.constant 0 : index
      %13 = vector.load %arg9[%c0_11, %c0_12] : memref<256x128xf32, #tpu.memory_space<vmem>>, vector<256x128xf32>
      %14 = arith.addf %12, %13 : vector<256x128xf32>
      %c0_13 = arith.constant 0 : index
      %c0_14 = arith.constant 0 : index
      %15 = vector.load %arg5[%c0_13, %c0_14] : memref<1x128xf32, #tpu.memory_space<vmem>>, vector<1x128xf32>
      %16 = vector.broadcast %15 : vector<1x128xf32> to vector<256x128xf32>
      %17 = arith.mulf %14, %16 : vector<256x128xf32>
      %c0_15 = arith.constant 0 : index
      %c0_16 = arith.constant 0 : index
      %18 = vector.load %arg6[%c0_15, %c0_16] : memref<1x128xf32, #tpu.memory_space<vmem>>, vector<1x128xf32>
      %19 = vector.broadcast %18 : vector<1x128xf32> to vector<256x128xf32>
      %20 = arith.addf %17, %19 : vector<256x128xf32>
      %c0_17 = arith.constant 0 : index
      %c0_18 = arith.constant 0 : index
      %21 = vector.load %arg7[%c0_17, %c0_18] : memref<1x128xf32, #tpu.memory_space<vmem>>, vector<1x128xf32>
      %22 = vector.broadcast %21 : vector<1x128xf32> to vector<256x128xf32>
      %23 = arith.mulf %20, %22 : vector<256x128xf32>
      %c0_19 = arith.constant 0 : index
      %c0_20 = arith.constant 0 : index
      %24 = vector.load %arg8[%c0_19, %c0_20] : memref<1x128xf32, #tpu.memory_space<vmem>>, vector<1x128xf32>
      %25 = vector.broadcast %24 : vector<1x128xf32> to vector<256x128xf32>
      %26 = arith.addf %23, %25 : vector<256x128xf32>
      %cst_21 = arith.constant 0.000000e+00 : f32
      %27 = vector.broadcast %cst_21 : f32 to vector<256x128xf32>
      %28 = arith.maximumf %26, %27 : vector<256x128xf32>
      %29 = arith.truncf %28 : vector<256x128xf32> to vector<256x128xbf16>
      %c0_22 = arith.constant 0 : index
      %c0_23 = arith.constant 0 : index
      %30 = vector.load %arg10[%c0_22, %c0_23] : memref<256x128xbf16, #tpu.memory_space<vmem>>, vector<256x128xbf16>
      tpu.vector_store %arg10[%c0_22, %c0_23], %29 {strides = array<i32>} : memref<256x128xbf16, #tpu.memory_space<vmem>>, vector<256x128xbf16>,
    } else {
    }
    return
  }
  func.func @transform_0(%arg0: i32, %arg1: i32, %arg2: i32) -> (i32, i32) {
    %c0_i32 = arith.constant 0 : i32
    return %arg0, %arg2 : i32, i32
  }
  func.func @transform_1(%arg0: i32, %arg1: i32, %arg2: i32) -> (i32, i32) {
    %c0_i32 = arith.constant 0 : i32
    return %arg2, %arg1 : i32, i32
  }
  func.func @transform_2(%arg0: i32, %arg1: i32, %arg2: i32) -> (i32, i32) {
    %c0_i32 = arith.constant 0 : i32
    %c0_i32_0 = arith.constant 0 : i32
    return %c0_i32, %arg1 : i32, i32
  }
  func.func @transform_3(%arg0: i32, %arg1: i32, %arg2: i32) -> (i32, i32) {
    %c0_i32 = arith.constant 0 : i32
    %c0_i32_0 = arith.constant 0 : i32
    return %c0_i32, %arg1 : i32, i32
  }
  func.func @transform_4(%arg0: i32, %arg1: i32, %arg2: i32) -> (i32, i32) {
    %c0_i32 = arith.constant 0 : i32
    %c0_i32_0 = arith.constant 0 : i32
    return %c0_i32, %arg1 : i32, i32
  }
  func.func @transform_5(%arg0: i32, %arg1: i32, %arg2: i32) -> (i32, i32) {
    %c0_i32 = arith.constant 0 : i32
    %c0_i32_0 = arith.constant 0 : i32
    return %c0_i32, %arg1 : i32, i32
  }
  func.func @transform_6(%arg0: i32, %arg1: i32, %arg2: i32) -> (i32, i32) {
    %c0_i32 = arith.constant 0 : i32
    return %arg0, %arg1 : i32, i32
  }
  func.func @transform_7(%arg0: i32, %arg1: i32, %arg2: i32) -> (i32, i32) {
    %c0_i32 = arith.constant 0 : i32
    return %arg0, %arg1 : i32, i32
  }
}

module attributes {stable_mosaic.version = 11 : i64} {
  func.func @_fused_mm_kernel(%arg0: i32, %arg1: i32, %arg2: i32, %arg3: memref<128x128xbf16, #tpu.memory_space<vmem>>, %arg4: memref<128x128xbf16, #tpu.memory_space<vmem>>, %arg5: memref<1x128xf32, #tpu.memory_space<vmem>>, %arg6: memref<1x128xf32, #tpu.memory_space<vmem>>, %arg7: memref<128x128xf32, #tpu.memory_space<vmem>>, %arg8: memref<128x128xf32, #tpu.memory_space<vmem>>) attributes {dimension_semantics = [#tpu.dimension_semantics<parallel>, #tpu.dimension_semantics<parallel>, #tpu.dimension_semantics<arbitrary>], iteration_bounds = array<i64: 1, 1, 1>, scalar_prefetch = 0 : i64, scratch_operands = 1 : i64, tpu.core_type = #tpu.core_type<tc>, window_params = [{transform_indices = @transform_0, window_bounds = array<i64: 128, 128>}, {transform_indices = @transform_1, window_bounds = array<i64: 128, 128>}, {transform_indices = @transform_2, window_bounds = array<i64: 1, 128>}, {transform_indices = @transform_3, window_bounds = array<i64: 1, 128>}, {transform_indices = @transform_4, window_bounds = array<i64: 128, 128>}]} {
    %c0_i32 = arith.constant 0 : i32
    %0 = arith.cmpi eq, %arg2, %c0_i32 : i32
    %1 = arith.extui %0 : i1 to i32
    %c0_i32_0 = arith.constant 0 : i32
    %2 = arith.cmpi ne, %1, %c0_i32_0 : i32
    scf.if %2 {
      %cst_10 = arith.constant 0.000000e+00 : f32
      %12 = vector.broadcast %cst_10 : f32 to vector<128x128xf32>
      %c0_11 = arith.constant 0 : index
      %c0_12 = arith.constant 0 : index
      %13 = vector.load %arg8[%c0_11, %c0_12] : memref<128x128xf32, #tpu.memory_space<vmem>>, vector<128x128xf32>
      tpu.vector_store %arg8[%c0_11, %c0_12], %12 {strides = array<i32>} : memref<128x128xf32, #tpu.memory_space<vmem>>, vector<128x128xf32>,
    } else {
    }
    %c0 = arith.constant 0 : index
    %c0_1 = arith.constant 0 : index
    %3 = vector.load %arg8[%c0, %c0_1] : memref<128x128xf32, #tpu.memory_space<vmem>>, vector<128x128xf32>
    %c0_2 = arith.constant 0 : index
    %c0_3 = arith.constant 0 : index
    %4 = vector.load %arg3[%c0_2, %c0_3] : memref<128x128xbf16, #tpu.memory_space<vmem>>, vector<128x128xbf16>
    %c0_4 = arith.constant 0 : index
    %c0_5 = arith.constant 0 : index
    %5 = vector.load %arg4[%c0_4, %c0_5] : memref<128x128xbf16, #tpu.memory_space<vmem>>, vector<128x128xbf16>
    %cst = arith.constant dense<0.000000e+00> : vector<128x128xf32>
    %6 = tpu.matmul %4, %5, %cst {dimension_numbers = #tpu.dot_dimension_numbers<[1], [0], [0], [1], [0, 0, 1, 1], [], []>} : vector<128x128xbf16>, vector<128x128xbf16>, vector<128x128xf32> -> vector<128x128xf32>
    %7 = arith.addf %3, %6 : vector<128x128xf32>
    %c0_6 = arith.constant 0 : index
    %c0_7 = arith.constant 0 : index
    %8 = vector.load %arg8[%c0_6, %c0_7] : memref<128x128xf32, #tpu.memory_space<vmem>>, vector<128x128xf32>
    tpu.vector_store %arg8[%c0_6, %c0_7], %7 {strides = array<i32>} : memref<128x128xf32, #tpu.memory_space<vmem>>, vector<128x128xf32>,
    %c0_i32_8 = arith.constant 0 : i32
    %9 = arith.cmpi eq, %arg2, %c0_i32_8 : i32
    %10 = arith.extui %9 : i1 to i32
    %c0_i32_9 = arith.constant 0 : i32
    %11 = arith.cmpi ne, %10, %c0_i32_9 : i32
    scf.if %11 {
      %c0_10 = arith.constant 0 : index
      %c0_11 = arith.constant 0 : index
      %12 = vector.load %arg8[%c0_10, %c0_11] : memref<128x128xf32, #tpu.memory_space<vmem>>, vector<128x128xf32>
      %c0_12 = arith.constant 0 : index
      %c0_13 = arith.constant 0 : index
      %13 = vector.load %arg5[%c0_12, %c0_13] : memref<1x128xf32, #tpu.memory_space<vmem>>, vector<1x128xf32>
      %14 = vector.broadcast %13 : vector<1x128xf32> to vector<128x128xf32>
      %15 = arith.mulf %12, %14 : vector<128x128xf32>
      %c0_14 = arith.constant 0 : index
      %c0_15 = arith.constant 0 : index
      %16 = vector.load %arg6[%c0_14, %c0_15] : memref<1x128xf32, #tpu.memory_space<vmem>>, vector<1x128xf32>
      %17 = vector.broadcast %16 : vector<1x128xf32> to vector<128x128xf32>
      %18 = arith.addf %15, %17 : vector<128x128xf32>
      %c0_16 = arith.constant 0 : index
      %c0_17 = arith.constant 0 : index
      %19 = vector.load %arg7[%c0_16, %c0_17] : memref<128x128xf32, #tpu.memory_space<vmem>>, vector<128x128xf32>
      tpu.vector_store %arg7[%c0_16, %c0_17], %18 {strides = array<i32>} : memref<128x128xf32, #tpu.memory_space<vmem>>, vector<128x128xf32>,
    } else {
    }
    return
  }
  func.func @transform_0(%arg0: i32, %arg1: i32, %arg2: i32) -> (i32, i32) {
    %c0_i32 = arith.constant 0 : i32
    return %arg0, %arg2 : i32, i32
  }
  func.func @transform_1(%arg0: i32, %arg1: i32, %arg2: i32) -> (i32, i32) {
    %c0_i32 = arith.constant 0 : i32
    return %arg2, %arg1 : i32, i32
  }
  func.func @transform_2(%arg0: i32, %arg1: i32, %arg2: i32) -> (i32, i32) {
    %c0_i32 = arith.constant 0 : i32
    %c0_i32_0 = arith.constant 0 : i32
    return %c0_i32, %arg1 : i32, i32
  }
  func.func @transform_3(%arg0: i32, %arg1: i32, %arg2: i32) -> (i32, i32) {
    %c0_i32 = arith.constant 0 : i32
    %c0_i32_0 = arith.constant 0 : i32
    return %c0_i32, %arg1 : i32, i32
  }
  func.func @transform_4(%arg0: i32, %arg1: i32, %arg2: i32) -> (i32, i32) {
    %c0_i32 = arith.constant 0 : i32
    return %arg0, %arg1 : i32, i32
  }
}

module attributes {stable_mosaic.version = 11 : i64} {
  func.func @_fused_mm_kernel(%arg0: i32, %arg1: i32, %arg2: i32, %arg3: memref<128x384xbf16, #tpu.memory_space<vmem>>, %arg4: memref<384x128xbf16, #tpu.memory_space<vmem>>, %arg5: memref<1x128xf32, #tpu.memory_space<vmem>>, %arg6: memref<1x128xf32, #tpu.memory_space<vmem>>, %arg7: memref<128x128xbf16, #tpu.memory_space<vmem>>, %arg8: memref<128x128xf32, #tpu.memory_space<vmem>>) attributes {dimension_semantics = [#tpu.dimension_semantics<parallel>, #tpu.dimension_semantics<parallel>, #tpu.dimension_semantics<arbitrary>], iteration_bounds = array<i64: 1, 1, 3>, scalar_prefetch = 0 : i64, scratch_operands = 1 : i64, tpu.core_type = #tpu.core_type<tc>, window_params = [{transform_indices = @transform_0, window_bounds = array<i64: 128, 384>}, {transform_indices = @transform_1, window_bounds = array<i64: 384, 128>}, {transform_indices = @transform_2, window_bounds = array<i64: 1, 128>}, {transform_indices = @transform_3, window_bounds = array<i64: 1, 128>}, {transform_indices = @transform_4, window_bounds = array<i64: 128, 128>}]} {
    %c0_i32 = arith.constant 0 : i32
    %0 = arith.cmpi eq, %arg2, %c0_i32 : i32
    %1 = arith.extui %0 : i1 to i32
    %c0_i32_0 = arith.constant 0 : i32
    %2 = arith.cmpi ne, %1, %c0_i32_0 : i32
    scf.if %2 {
      %cst_9 = arith.constant 0.000000e+00 : f32
      %12 = vector.broadcast %cst_9 : f32 to vector<128x128xf32>
      %c0_10 = arith.constant 0 : index
      %c0_11 = arith.constant 0 : index
      %13 = vector.load %arg8[%c0_10, %c0_11] : memref<128x128xf32, #tpu.memory_space<vmem>>, vector<128x128xf32>
      tpu.vector_store %arg8[%c0_10, %c0_11], %12 {strides = array<i32>} : memref<128x128xf32, #tpu.memory_space<vmem>>, vector<128x128xf32>,
    } else {
    }
    %c0 = arith.constant 0 : index
    %c0_1 = arith.constant 0 : index
    %3 = vector.load %arg8[%c0, %c0_1] : memref<128x128xf32, #tpu.memory_space<vmem>>, vector<128x128xf32>
    %c0_2 = arith.constant 0 : index
    %c0_3 = arith.constant 0 : index
    %4 = vector.load %arg3[%c0_2, %c0_3] : memref<128x384xbf16, #tpu.memory_space<vmem>>, vector<128x384xbf16>
    %c0_4 = arith.constant 0 : index
    %c0_5 = arith.constant 0 : index
    %5 = vector.load %arg4[%c0_4, %c0_5] : memref<384x128xbf16, #tpu.memory_space<vmem>>, vector<384x128xbf16>
    %cst = arith.constant dense<0.000000e+00> : vector<128x128xf32>
    %6 = tpu.matmul %4, %5, %cst {dimension_numbers = #tpu.dot_dimension_numbers<[1], [0], [0], [1], [0, 0, 1, 1], [], []>} : vector<128x384xbf16>, vector<384x128xbf16>, vector<128x128xf32> -> vector<128x128xf32>
    %7 = arith.addf %3, %6 : vector<128x128xf32>
    %c0_6 = arith.constant 0 : index
    %c0_7 = arith.constant 0 : index
    %8 = vector.load %arg8[%c0_6, %c0_7] : memref<128x128xf32, #tpu.memory_space<vmem>>, vector<128x128xf32>
    tpu.vector_store %arg8[%c0_6, %c0_7], %7 {strides = array<i32>} : memref<128x128xf32, #tpu.memory_space<vmem>>, vector<128x128xf32>,
    %c2_i32 = arith.constant 2 : i32
    %9 = arith.cmpi eq, %arg2, %c2_i32 : i32
    %10 = arith.extui %9 : i1 to i32
    %c0_i32_8 = arith.constant 0 : i32
    %11 = arith.cmpi ne, %10, %c0_i32_8 : i32
    scf.if %11 {
      %c0_9 = arith.constant 0 : index
      %c0_10 = arith.constant 0 : index
      %12 = vector.load %arg8[%c0_9, %c0_10] : memref<128x128xf32, #tpu.memory_space<vmem>>, vector<128x128xf32>
      %c0_11 = arith.constant 0 : index
      %c0_12 = arith.constant 0 : index
      %13 = vector.load %arg5[%c0_11, %c0_12] : memref<1x128xf32, #tpu.memory_space<vmem>>, vector<1x128xf32>
      %14 = vector.broadcast %13 : vector<1x128xf32> to vector<128x128xf32>
      %15 = arith.mulf %12, %14 : vector<128x128xf32>
      %c0_13 = arith.constant 0 : index
      %c0_14 = arith.constant 0 : index
      %16 = vector.load %arg6[%c0_13, %c0_14] : memref<1x128xf32, #tpu.memory_space<vmem>>, vector<1x128xf32>
      %17 = vector.broadcast %16 : vector<1x128xf32> to vector<128x128xf32>
      %18 = arith.addf %15, %17 : vector<128x128xf32>
      %cst_15 = arith.constant 0.000000e+00 : f32
      %19 = vector.broadcast %cst_15 : f32 to vector<128x128xf32>
      %20 = arith.maximumf %18, %19 : vector<128x128xf32>
      %21 = arith.truncf %20 : vector<128x128xf32> to vector<128x128xbf16>
      %c0_16 = arith.constant 0 : index
      %c0_17 = arith.constant 0 : index
      %22 = vector.load %arg7[%c0_16, %c0_17] : memref<128x128xbf16, #tpu.memory_space<vmem>>, vector<128x128xbf16>
      tpu.vector_store %arg7[%c0_16, %c0_17], %21 {strides = array<i32>} : memref<128x128xbf16, #tpu.memory_space<vmem>>, vector<128x128xbf16>,
    } else {
    }
    return
  }
  func.func @transform_0(%arg0: i32, %arg1: i32, %arg2: i32) -> (i32, i32) {
    %c0_i32 = arith.constant 0 : i32
    return %arg0, %arg2 : i32, i32
  }
  func.func @transform_1(%arg0: i32, %arg1: i32, %arg2: i32) -> (i32, i32) {
    %c0_i32 = arith.constant 0 : i32
    return %arg2, %arg1 : i32, i32
  }
  func.func @transform_2(%arg0: i32, %arg1: i32, %arg2: i32) -> (i32, i32) {
    %c0_i32 = arith.constant 0 : i32
    %c0_i32_0 = arith.constant 0 : i32
    return %c0_i32, %arg1 : i32, i32
  }
  func.func @transform_3(%arg0: i32, %arg1: i32, %arg2: i32) -> (i32, i32) {
    %c0_i32 = arith.constant 0 : i32
    %c0_i32_0 = arith.constant 0 : i32
    return %c0_i32, %arg1 : i32, i32
  }
  func.func @transform_4(%arg0: i32, %arg1: i32, %arg2: i32) -> (i32, i32) {
    %c0_i32 = arith.constant 0 : i32
    return %arg0, %arg1 : i32, i32
  }
}

module attributes {stable_mosaic.version = 11 : i64} {
  func.func @_fused_mm_kernel(%arg0: i32, %arg1: i32, %arg2: i32, %arg3: memref<32x128xbf16, #tpu.memory_space<vmem>>, %arg4: memref<128x128xbf16, #tpu.memory_space<vmem>>, %arg5: memref<1x128xf32, #tpu.memory_space<vmem>>, %arg6: memref<1x128xf32, #tpu.memory_space<vmem>>, %arg7: memref<32x128xf32, #tpu.memory_space<vmem>>, %arg8: memref<32x128xf32, #tpu.memory_space<vmem>>) attributes {dimension_semantics = [#tpu.dimension_semantics<parallel>, #tpu.dimension_semantics<parallel>, #tpu.dimension_semantics<arbitrary>], iteration_bounds = array<i64: 1, 1, 1>, scalar_prefetch = 0 : i64, scratch_operands = 1 : i64, tpu.core_type = #tpu.core_type<tc>, window_params = [{transform_indices = @transform_0, window_bounds = array<i64: 32, 128>}, {transform_indices = @transform_1, window_bounds = array<i64: 128, 128>}, {transform_indices = @transform_2, window_bounds = array<i64: 1, 128>}, {transform_indices = @transform_3, window_bounds = array<i64: 1, 128>}, {transform_indices = @transform_4, window_bounds = array<i64: 32, 128>}]} {
    %c0_i32 = arith.constant 0 : i32
    %0 = arith.cmpi eq, %arg2, %c0_i32 : i32
    %1 = arith.extui %0 : i1 to i32
    %c0_i32_0 = arith.constant 0 : i32
    %2 = arith.cmpi ne, %1, %c0_i32_0 : i32
    scf.if %2 {
      %cst_10 = arith.constant 0.000000e+00 : f32
      %12 = vector.broadcast %cst_10 : f32 to vector<32x128xf32>
      %c0_11 = arith.constant 0 : index
      %c0_12 = arith.constant 0 : index
      %13 = vector.load %arg8[%c0_11, %c0_12] : memref<32x128xf32, #tpu.memory_space<vmem>>, vector<32x128xf32>
      tpu.vector_store %arg8[%c0_11, %c0_12], %12 {strides = array<i32>} : memref<32x128xf32, #tpu.memory_space<vmem>>, vector<32x128xf32>,
    } else {
    }
    %c0 = arith.constant 0 : index
    %c0_1 = arith.constant 0 : index
    %3 = vector.load %arg8[%c0, %c0_1] : memref<32x128xf32, #tpu.memory_space<vmem>>, vector<32x128xf32>
    %c0_2 = arith.constant 0 : index
    %c0_3 = arith.constant 0 : index
    %4 = vector.load %arg3[%c0_2, %c0_3] : memref<32x128xbf16, #tpu.memory_space<vmem>>, vector<32x128xbf16>
    %c0_4 = arith.constant 0 : index
    %c0_5 = arith.constant 0 : index
    %5 = vector.load %arg4[%c0_4, %c0_5] : memref<128x128xbf16, #tpu.memory_space<vmem>>, vector<128x128xbf16>
    %cst = arith.constant dense<0.000000e+00> : vector<32x128xf32>
    %6 = tpu.matmul %4, %5, %cst {dimension_numbers = #tpu.dot_dimension_numbers<[1], [0], [0], [1], [0, 0, 1, 1], [], []>} : vector<32x128xbf16>, vector<128x128xbf16>, vector<32x128xf32> -> vector<32x128xf32>
    %7 = arith.addf %3, %6 : vector<32x128xf32>
    %c0_6 = arith.constant 0 : index
    %c0_7 = arith.constant 0 : index
    %8 = vector.load %arg8[%c0_6, %c0_7] : memref<32x128xf32, #tpu.memory_space<vmem>>, vector<32x128xf32>
    tpu.vector_store %arg8[%c0_6, %c0_7], %7 {strides = array<i32>} : memref<32x128xf32, #tpu.memory_space<vmem>>, vector<32x128xf32>,
    %c0_i32_8 = arith.constant 0 : i32
    %9 = arith.cmpi eq, %arg2, %c0_i32_8 : i32
    %10 = arith.extui %9 : i1 to i32
    %c0_i32_9 = arith.constant 0 : i32
    %11 = arith.cmpi ne, %10, %c0_i32_9 : i32
    scf.if %11 {
      %c0_10 = arith.constant 0 : index
      %c0_11 = arith.constant 0 : index
      %12 = vector.load %arg8[%c0_10, %c0_11] : memref<32x128xf32, #tpu.memory_space<vmem>>, vector<32x128xf32>
      %c0_12 = arith.constant 0 : index
      %c0_13 = arith.constant 0 : index
      %13 = vector.load %arg5[%c0_12, %c0_13] : memref<1x128xf32, #tpu.memory_space<vmem>>, vector<1x128xf32>
      %14 = vector.broadcast %13 : vector<1x128xf32> to vector<32x128xf32>
      %15 = arith.mulf %12, %14 : vector<32x128xf32>
      %c0_14 = arith.constant 0 : index
      %c0_15 = arith.constant 0 : index
      %16 = vector.load %arg6[%c0_14, %c0_15] : memref<1x128xf32, #tpu.memory_space<vmem>>, vector<1x128xf32>
      %17 = vector.broadcast %16 : vector<1x128xf32> to vector<32x128xf32>
      %18 = arith.addf %15, %17 : vector<32x128xf32>
      %c0_16 = arith.constant 0 : index
      %c0_17 = arith.constant 0 : index
      %19 = vector.load %arg7[%c0_16, %c0_17] : memref<32x128xf32, #tpu.memory_space<vmem>>, vector<32x128xf32>
      tpu.vector_store %arg7[%c0_16, %c0_17], %18 {strides = array<i32>} : memref<32x128xf32, #tpu.memory_space<vmem>>, vector<32x128xf32>,
    } else {
    }
    return
  }
  func.func @transform_0(%arg0: i32, %arg1: i32, %arg2: i32) -> (i32, i32) {
    %c0_i32 = arith.constant 0 : i32
    return %arg0, %arg2 : i32, i32
  }
  func.func @transform_1(%arg0: i32, %arg1: i32, %arg2: i32) -> (i32, i32) {
    %c0_i32 = arith.constant 0 : i32
    return %arg2, %arg1 : i32, i32
  }
  func.func @transform_2(%arg0: i32, %arg1: i32, %arg2: i32) -> (i32, i32) {
    %c0_i32 = arith.constant 0 : i32
    %c0_i32_0 = arith.constant 0 : i32
    return %c0_i32, %arg1 : i32, i32
  }
  func.func @transform_3(%arg0: i32, %arg1: i32, %arg2: i32) -> (i32, i32) {
    %c0_i32 = arith.constant 0 : i32
    %c0_i32_0 = arith.constant 0 : i32
    return %c0_i32, %arg1 : i32, i32
  }
  func.func @transform_4(%arg0: i32, %arg1: i32, %arg2: i32) -> (i32, i32) {
    %c0_i32 = arith.constant 0 : i32
    return %arg0, %arg1 : i32, i32
  }
}

module attributes {stable_mosaic.version = 11 : i64} {
  func.func @_fused_mm_kernel(%arg0: i32, %arg1: i32, %arg2: i32, %arg3: memref<128x384xbf16, #tpu.memory_space<vmem>>, %arg4: memref<384x128xbf16, #tpu.memory_space<vmem>>, %arg5: memref<1x128xf32, #tpu.memory_space<vmem>>, %arg6: memref<1x128xf32, #tpu.memory_space<vmem>>, %arg7: memref<1x128xf32, #tpu.memory_space<vmem>>, %arg8: memref<1x128xf32, #tpu.memory_space<vmem>>, %arg9: memref<128x128xf32, #tpu.memory_space<vmem>>, %arg10: memref<128x128xbf16, #tpu.memory_space<vmem>>, %arg11: memref<128x128xf32, #tpu.memory_space<vmem>>) attributes {dimension_semantics = [#tpu.dimension_semantics<parallel>, #tpu.dimension_semantics<parallel>, #tpu.dimension_semantics<arbitrary>], iteration_bounds = array<i64: 1, 1, 3>, scalar_prefetch = 0 : i64, scratch_operands = 1 : i64, tpu.core_type = #tpu.core_type<tc>, window_params = [{transform_indices = @transform_0, window_bounds = array<i64: 128, 384>}, {transform_indices = @transform_1, window_bounds = array<i64: 384, 128>}, {transform_indices = @transform_2, window_bounds = array<i64: 1, 128>}, {transform_indices = @transform_3, window_bounds = array<i64: 1, 128>}, {transform_indices = @transform_4, window_bounds = array<i64: 1, 128>}, {transform_indices = @transform_5, window_bounds = array<i64: 1, 128>}, {transform_indices = @transform_6, window_bounds = array<i64: 128, 128>}, {transform_indices = @transform_7, window_bounds = array<i64: 128, 128>}]} {
    %c0_i32 = arith.constant 0 : i32
    %0 = arith.cmpi eq, %arg2, %c0_i32 : i32
    %1 = arith.extui %0 : i1 to i32
    %c0_i32_0 = arith.constant 0 : i32
    %2 = arith.cmpi ne, %1, %c0_i32_0 : i32
    scf.if %2 {
      %cst_9 = arith.constant 0.000000e+00 : f32
      %12 = vector.broadcast %cst_9 : f32 to vector<128x128xf32>
      %c0_10 = arith.constant 0 : index
      %c0_11 = arith.constant 0 : index
      %13 = vector.load %arg11[%c0_10, %c0_11] : memref<128x128xf32, #tpu.memory_space<vmem>>, vector<128x128xf32>
      tpu.vector_store %arg11[%c0_10, %c0_11], %12 {strides = array<i32>} : memref<128x128xf32, #tpu.memory_space<vmem>>, vector<128x128xf32>,
    } else {
    }
    %c0 = arith.constant 0 : index
    %c0_1 = arith.constant 0 : index
    %3 = vector.load %arg11[%c0, %c0_1] : memref<128x128xf32, #tpu.memory_space<vmem>>, vector<128x128xf32>
    %c0_2 = arith.constant 0 : index
    %c0_3 = arith.constant 0 : index
    %4 = vector.load %arg3[%c0_2, %c0_3] : memref<128x384xbf16, #tpu.memory_space<vmem>>, vector<128x384xbf16>
    %c0_4 = arith.constant 0 : index
    %c0_5 = arith.constant 0 : index
    %5 = vector.load %arg4[%c0_4, %c0_5] : memref<384x128xbf16, #tpu.memory_space<vmem>>, vector<384x128xbf16>
    %cst = arith.constant dense<0.000000e+00> : vector<128x128xf32>
    %6 = tpu.matmul %4, %5, %cst {dimension_numbers = #tpu.dot_dimension_numbers<[1], [0], [0], [1], [0, 0, 1, 1], [], []>} : vector<128x384xbf16>, vector<384x128xbf16>, vector<128x128xf32> -> vector<128x128xf32>
    %7 = arith.addf %3, %6 : vector<128x128xf32>
    %c0_6 = arith.constant 0 : index
    %c0_7 = arith.constant 0 : index
    %8 = vector.load %arg11[%c0_6, %c0_7] : memref<128x128xf32, #tpu.memory_space<vmem>>, vector<128x128xf32>
    tpu.vector_store %arg11[%c0_6, %c0_7], %7 {strides = array<i32>} : memref<128x128xf32, #tpu.memory_space<vmem>>, vector<128x128xf32>,
    %c2_i32 = arith.constant 2 : i32
    %9 = arith.cmpi eq, %arg2, %c2_i32 : i32
    %10 = arith.extui %9 : i1 to i32
    %c0_i32_8 = arith.constant 0 : i32
    %11 = arith.cmpi ne, %10, %c0_i32_8 : i32
    scf.if %11 {
      %c0_9 = arith.constant 0 : index
      %c0_10 = arith.constant 0 : index
      %12 = vector.load %arg11[%c0_9, %c0_10] : memref<128x128xf32, #tpu.memory_space<vmem>>, vector<128x128xf32>
      %c0_11 = arith.constant 0 : index
      %c0_12 = arith.constant 0 : index
      %13 = vector.load %arg9[%c0_11, %c0_12] : memref<128x128xf32, #tpu.memory_space<vmem>>, vector<128x128xf32>
      %14 = arith.addf %12, %13 : vector<128x128xf32>
      %c0_13 = arith.constant 0 : index
      %c0_14 = arith.constant 0 : index
      %15 = vector.load %arg5[%c0_13, %c0_14] : memref<1x128xf32, #tpu.memory_space<vmem>>, vector<1x128xf32>
      %16 = vector.broadcast %15 : vector<1x128xf32> to vector<128x128xf32>
      %17 = arith.mulf %14, %16 : vector<128x128xf32>
      %c0_15 = arith.constant 0 : index
      %c0_16 = arith.constant 0 : index
      %18 = vector.load %arg6[%c0_15, %c0_16] : memref<1x128xf32, #tpu.memory_space<vmem>>, vector<1x128xf32>
      %19 = vector.broadcast %18 : vector<1x128xf32> to vector<128x128xf32>
      %20 = arith.addf %17, %19 : vector<128x128xf32>
      %c0_17 = arith.constant 0 : index
      %c0_18 = arith.constant 0 : index
      %21 = vector.load %arg7[%c0_17, %c0_18] : memref<1x128xf32, #tpu.memory_space<vmem>>, vector<1x128xf32>
      %22 = vector.broadcast %21 : vector<1x128xf32> to vector<128x128xf32>
      %23 = arith.mulf %20, %22 : vector<128x128xf32>
      %c0_19 = arith.constant 0 : index
      %c0_20 = arith.constant 0 : index
      %24 = vector.load %arg8[%c0_19, %c0_20] : memref<1x128xf32, #tpu.memory_space<vmem>>, vector<1x128xf32>
      %25 = vector.broadcast %24 : vector<1x128xf32> to vector<128x128xf32>
      %26 = arith.addf %23, %25 : vector<128x128xf32>
      %cst_21 = arith.constant 0.000000e+00 : f32
      %27 = vector.broadcast %cst_21 : f32 to vector<128x128xf32>
      %28 = arith.maximumf %26, %27 : vector<128x128xf32>
      %29 = arith.truncf %28 : vector<128x128xf32> to vector<128x128xbf16>
      %c0_22 = arith.constant 0 : index
      %c0_23 = arith.constant 0 : index
      %30 = vector.load %arg10[%c0_22, %c0_23] : memref<128x128xbf16, #tpu.memory_space<vmem>>, vector<128x128xbf16>
      tpu.vector_store %arg10[%c0_22, %c0_23], %29 {strides = array<i32>} : memref<128x128xbf16, #tpu.memory_space<vmem>>, vector<128x128xbf16>,
    } else {
    }
    return
  }
  func.func @transform_0(%arg0: i32, %arg1: i32, %arg2: i32) -> (i32, i32) {
    %c0_i32 = arith.constant 0 : i32
    return %arg0, %arg2 : i32, i32
  }
  func.func @transform_1(%arg0: i32, %arg1: i32, %arg2: i32) -> (i32, i32) {
    %c0_i32 = arith.constant 0 : i32
    return %arg2, %arg1 : i32, i32
  }
  func.func @transform_2(%arg0: i32, %arg1: i32, %arg2: i32) -> (i32, i32) {
    %c0_i32 = arith.constant 0 : i32
    %c0_i32_0 = arith.constant 0 : i32
    return %c0_i32, %arg1 : i32, i32
  }
  func.func @transform_3(%arg0: i32, %arg1: i32, %arg2: i32) -> (i32, i32) {
    %c0_i32 = arith.constant 0 : i32
    %c0_i32_0 = arith.constant 0 : i32
    return %c0_i32, %arg1 : i32, i32
  }
  func.func @transform_4(%arg0: i32, %arg1: i32, %arg2: i32) -> (i32, i32) {
    %c0_i32 = arith.constant 0 : i32
    %c0_i32_0 = arith.constant 0 : i32
    return %c0_i32, %arg1 : i32, i32
  }
  func.func @transform_5(%arg0: i32, %arg1: i32, %arg2: i32) -> (i32, i32) {
    %c0_i32 = arith.constant 0 : i32
    %c0_i32_0 = arith.constant 0 : i32
    return %c0_i32, %arg1 : i32, i32
  }
  func.func @transform_6(%arg0: i32, %arg1: i32, %arg2: i32) -> (i32, i32) {
    %c0_i32 = arith.constant 0 : i32
    return %arg0, %arg1 : i32, i32
  }
  func.func @transform_7(%arg0: i32, %arg1: i32, %arg2: i32) -> (i32, i32) {
    %c0_i32 = arith.constant 0 : i32
    return %arg0, %arg1 : i32, i32
  }
}

module attributes {stable_mosaic.version = 11 : i64} {
  func.func @_fused_mm_kernel(%arg0: i32, %arg1: i32, %arg2: i32, %arg3: memref<32x384xbf16, #tpu.memory_space<vmem>>, %arg4: memref<384x128xbf16, #tpu.memory_space<vmem>>, %arg5: memref<1x128xf32, #tpu.memory_space<vmem>>, %arg6: memref<1x128xf32, #tpu.memory_space<vmem>>, %arg7: memref<32x128xbf16, #tpu.memory_space<vmem>>, %arg8: memref<32x128xf32, #tpu.memory_space<vmem>>) attributes {dimension_semantics = [#tpu.dimension_semantics<parallel>, #tpu.dimension_semantics<parallel>, #tpu.dimension_semantics<arbitrary>], iteration_bounds = array<i64: 1, 1, 3>, scalar_prefetch = 0 : i64, scratch_operands = 1 : i64, tpu.core_type = #tpu.core_type<tc>, window_params = [{transform_indices = @transform_0, window_bounds = array<i64: 32, 384>}, {transform_indices = @transform_1, window_bounds = array<i64: 384, 128>}, {transform_indices = @transform_2, window_bounds = array<i64: 1, 128>}, {transform_indices = @transform_3, window_bounds = array<i64: 1, 128>}, {transform_indices = @transform_4, window_bounds = array<i64: 32, 128>}]} {
    %c0_i32 = arith.constant 0 : i32
    %0 = arith.cmpi eq, %arg2, %c0_i32 : i32
    %1 = arith.extui %0 : i1 to i32
    %c0_i32_0 = arith.constant 0 : i32
    %2 = arith.cmpi ne, %1, %c0_i32_0 : i32
    scf.if %2 {
      %cst_9 = arith.constant 0.000000e+00 : f32
      %12 = vector.broadcast %cst_9 : f32 to vector<32x128xf32>
      %c0_10 = arith.constant 0 : index
      %c0_11 = arith.constant 0 : index
      %13 = vector.load %arg8[%c0_10, %c0_11] : memref<32x128xf32, #tpu.memory_space<vmem>>, vector<32x128xf32>
      tpu.vector_store %arg8[%c0_10, %c0_11], %12 {strides = array<i32>} : memref<32x128xf32, #tpu.memory_space<vmem>>, vector<32x128xf32>,
    } else {
    }
    %c0 = arith.constant 0 : index
    %c0_1 = arith.constant 0 : index
    %3 = vector.load %arg8[%c0, %c0_1] : memref<32x128xf32, #tpu.memory_space<vmem>>, vector<32x128xf32>
    %c0_2 = arith.constant 0 : index
    %c0_3 = arith.constant 0 : index
    %4 = vector.load %arg3[%c0_2, %c0_3] : memref<32x384xbf16, #tpu.memory_space<vmem>>, vector<32x384xbf16>
    %c0_4 = arith.constant 0 : index
    %c0_5 = arith.constant 0 : index
    %5 = vector.load %arg4[%c0_4, %c0_5] : memref<384x128xbf16, #tpu.memory_space<vmem>>, vector<384x128xbf16>
    %cst = arith.constant dense<0.000000e+00> : vector<32x128xf32>
    %6 = tpu.matmul %4, %5, %cst {dimension_numbers = #tpu.dot_dimension_numbers<[1], [0], [0], [1], [0, 0, 1, 1], [], []>} : vector<32x384xbf16>, vector<384x128xbf16>, vector<32x128xf32> -> vector<32x128xf32>
    %7 = arith.addf %3, %6 : vector<32x128xf32>
    %c0_6 = arith.constant 0 : index
    %c0_7 = arith.constant 0 : index
    %8 = vector.load %arg8[%c0_6, %c0_7] : memref<32x128xf32, #tpu.memory_space<vmem>>, vector<32x128xf32>
    tpu.vector_store %arg8[%c0_6, %c0_7], %7 {strides = array<i32>} : memref<32x128xf32, #tpu.memory_space<vmem>>, vector<32x128xf32>,
    %c2_i32 = arith.constant 2 : i32
    %9 = arith.cmpi eq, %arg2, %c2_i32 : i32
    %10 = arith.extui %9 : i1 to i32
    %c0_i32_8 = arith.constant 0 : i32
    %11 = arith.cmpi ne, %10, %c0_i32_8 : i32
    scf.if %11 {
      %c0_9 = arith.constant 0 : index
      %c0_10 = arith.constant 0 : index
      %12 = vector.load %arg8[%c0_9, %c0_10] : memref<32x128xf32, #tpu.memory_space<vmem>>, vector<32x128xf32>
      %c0_11 = arith.constant 0 : index
      %c0_12 = arith.constant 0 : index
      %13 = vector.load %arg5[%c0_11, %c0_12] : memref<1x128xf32, #tpu.memory_space<vmem>>, vector<1x128xf32>
      %14 = vector.broadcast %13 : vector<1x128xf32> to vector<32x128xf32>
      %15 = arith.mulf %12, %14 : vector<32x128xf32>
      %c0_13 = arith.constant 0 : index
      %c0_14 = arith.constant 0 : index
      %16 = vector.load %arg6[%c0_13, %c0_14] : memref<1x128xf32, #tpu.memory_space<vmem>>, vector<1x128xf32>
      %17 = vector.broadcast %16 : vector<1x128xf32> to vector<32x128xf32>
      %18 = arith.addf %15, %17 : vector<32x128xf32>
      %cst_15 = arith.constant 0.000000e+00 : f32
      %19 = vector.broadcast %cst_15 : f32 to vector<32x128xf32>
      %20 = arith.maximumf %18, %19 : vector<32x128xf32>
      %21 = arith.truncf %20 : vector<32x128xf32> to vector<32x128xbf16>
      %c0_16 = arith.constant 0 : index
      %c0_17 = arith.constant 0 : index
      %22 = vector.load %arg7[%c0_16, %c0_17] : memref<32x128xbf16, #tpu.memory_space<vmem>>, vector<32x128xbf16>
      tpu.vector_store %arg7[%c0_16, %c0_17], %21 {strides = array<i32>} : memref<32x128xbf16, #tpu.memory_space<vmem>>, vector<32x128xbf16>,
    } else {
    }
    return
  }
  func.func @transform_0(%arg0: i32, %arg1: i32, %arg2: i32) -> (i32, i32) {
    %c0_i32 = arith.constant 0 : i32
    return %arg0, %arg2 : i32, i32
  }
  func.func @transform_1(%arg0: i32, %arg1: i32, %arg2: i32) -> (i32, i32) {
    %c0_i32 = arith.constant 0 : i32
    return %arg2, %arg1 : i32, i32
  }
  func.func @transform_2(%arg0: i32, %arg1: i32, %arg2: i32) -> (i32, i32) {
    %c0_i32 = arith.constant 0 : i32
    %c0_i32_0 = arith.constant 0 : i32
    return %c0_i32, %arg1 : i32, i32
  }
  func.func @transform_3(%arg0: i32, %arg1: i32, %arg2: i32) -> (i32, i32) {
    %c0_i32 = arith.constant 0 : i32
    %c0_i32_0 = arith.constant 0 : i32
    return %c0_i32, %arg1 : i32, i32
  }
  func.func @transform_4(%arg0: i32, %arg1: i32, %arg2: i32) -> (i32, i32) {
    %c0_i32 = arith.constant 0 : i32
    return %arg0, %arg1 : i32, i32
  }
}

module attributes {stable_mosaic.version = 11 : i64} {
  func.func @_fused_mm_kernel(%arg0: i32, %arg1: i32, %arg2: i32, %arg3: memref<32x384xbf16, #tpu.memory_space<vmem>>, %arg4: memref<384x128xbf16, #tpu.memory_space<vmem>>, %arg5: memref<1x128xf32, #tpu.memory_space<vmem>>, %arg6: memref<1x128xf32, #tpu.memory_space<vmem>>, %arg7: memref<1x128xf32, #tpu.memory_space<vmem>>, %arg8: memref<1x128xf32, #tpu.memory_space<vmem>>, %arg9: memref<32x128xf32, #tpu.memory_space<vmem>>, %arg10: memref<32x128xf32, #tpu.memory_space<vmem>>, %arg11: memref<32x128xf32, #tpu.memory_space<vmem>>) attributes {dimension_semantics = [#tpu.dimension_semantics<parallel>, #tpu.dimension_semantics<parallel>, #tpu.dimension_semantics<arbitrary>], iteration_bounds = array<i64: 1, 1, 3>, scalar_prefetch = 0 : i64, scratch_operands = 1 : i64, tpu.core_type = #tpu.core_type<tc>, window_params = [{transform_indices = @transform_0, window_bounds = array<i64: 32, 384>}, {transform_indices = @transform_1, window_bounds = array<i64: 384, 128>}, {transform_indices = @transform_2, window_bounds = array<i64: 1, 128>}, {transform_indices = @transform_3, window_bounds = array<i64: 1, 128>}, {transform_indices = @transform_4, window_bounds = array<i64: 1, 128>}, {transform_indices = @transform_5, window_bounds = array<i64: 1, 128>}, {transform_indices = @transform_6, window_bounds = array<i64: 32, 128>}, {transform_indices = @transform_7, window_bounds = array<i64: 32, 128>}]} {
    %c0_i32 = arith.constant 0 : i32
    %0 = arith.cmpi eq, %arg2, %c0_i32 : i32
    %1 = arith.extui %0 : i1 to i32
    %c0_i32_0 = arith.constant 0 : i32
    %2 = arith.cmpi ne, %1, %c0_i32_0 : i32
    scf.if %2 {
      %cst_9 = arith.constant 0.000000e+00 : f32
      %12 = vector.broadcast %cst_9 : f32 to vector<32x128xf32>
      %c0_10 = arith.constant 0 : index
      %c0_11 = arith.constant 0 : index
      %13 = vector.load %arg11[%c0_10, %c0_11] : memref<32x128xf32, #tpu.memory_space<vmem>>, vector<32x128xf32>
      tpu.vector_store %arg11[%c0_10, %c0_11], %12 {strides = array<i32>} : memref<32x128xf32, #tpu.memory_space<vmem>>, vector<32x128xf32>,
    } else {
    }
    %c0 = arith.constant 0 : index
    %c0_1 = arith.constant 0 : index
    %3 = vector.load %arg11[%c0, %c0_1] : memref<32x128xf32, #tpu.memory_space<vmem>>, vector<32x128xf32>
    %c0_2 = arith.constant 0 : index
    %c0_3 = arith.constant 0 : index
    %4 = vector.load %arg3[%c0_2, %c0_3] : memref<32x384xbf16, #tpu.memory_space<vmem>>, vector<32x384xbf16>
    %c0_4 = arith.constant 0 : index
    %c0_5 = arith.constant 0 : index
    %5 = vector.load %arg4[%c0_4, %c0_5] : memref<384x128xbf16, #tpu.memory_space<vmem>>, vector<384x128xbf16>
    %cst = arith.constant dense<0.000000e+00> : vector<32x128xf32>
    %6 = tpu.matmul %4, %5, %cst {dimension_numbers = #tpu.dot_dimension_numbers<[1], [0], [0], [1], [0, 0, 1, 1], [], []>} : vector<32x384xbf16>, vector<384x128xbf16>, vector<32x128xf32> -> vector<32x128xf32>
    %7 = arith.addf %3, %6 : vector<32x128xf32>
    %c0_6 = arith.constant 0 : index
    %c0_7 = arith.constant 0 : index
    %8 = vector.load %arg11[%c0_6, %c0_7] : memref<32x128xf32, #tpu.memory_space<vmem>>, vector<32x128xf32>
    tpu.vector_store %arg11[%c0_6, %c0_7], %7 {strides = array<i32>} : memref<32x128xf32, #tpu.memory_space<vmem>>, vector<32x128xf32>,
    %c2_i32 = arith.constant 2 : i32
    %9 = arith.cmpi eq, %arg2, %c2_i32 : i32
    %10 = arith.extui %9 : i1 to i32
    %c0_i32_8 = arith.constant 0 : i32
    %11 = arith.cmpi ne, %10, %c0_i32_8 : i32
    scf.if %11 {
      %c0_9 = arith.constant 0 : index
      %c0_10 = arith.constant 0 : index
      %12 = vector.load %arg11[%c0_9, %c0_10] : memref<32x128xf32, #tpu.memory_space<vmem>>, vector<32x128xf32>
      %c0_11 = arith.constant 0 : index
      %c0_12 = arith.constant 0 : index
      %13 = vector.load %arg9[%c0_11, %c0_12] : memref<32x128xf32, #tpu.memory_space<vmem>>, vector<32x128xf32>
      %14 = arith.addf %12, %13 : vector<32x128xf32>
      %c0_13 = arith.constant 0 : index
      %c0_14 = arith.constant 0 : index
      %15 = vector.load %arg5[%c0_13, %c0_14] : memref<1x128xf32, #tpu.memory_space<vmem>>, vector<1x128xf32>
      %16 = vector.broadcast %15 : vector<1x128xf32> to vector<32x128xf32>
      %17 = arith.mulf %14, %16 : vector<32x128xf32>
      %c0_15 = arith.constant 0 : index
      %c0_16 = arith.constant 0 : index
      %18 = vector.load %arg6[%c0_15, %c0_16] : memref<1x128xf32, #tpu.memory_space<vmem>>, vector<1x128xf32>
      %19 = vector.broadcast %18 : vector<1x128xf32> to vector<32x128xf32>
      %20 = arith.addf %17, %19 : vector<32x128xf32>
      %c0_17 = arith.constant 0 : index
      %c0_18 = arith.constant 0 : index
      %21 = vector.load %arg7[%c0_17, %c0_18] : memref<1x128xf32, #tpu.memory_space<vmem>>, vector<1x128xf32>
      %22 = vector.broadcast %21 : vector<1x128xf32> to vector<32x128xf32>
      %23 = arith.mulf %20, %22 : vector<32x128xf32>
      %c0_19 = arith.constant 0 : index
      %c0_20 = arith.constant 0 : index
      %24 = vector.load %arg8[%c0_19, %c0_20] : memref<1x128xf32, #tpu.memory_space<vmem>>, vector<1x128xf32>
      %25 = vector.broadcast %24 : vector<1x128xf32> to vector<32x128xf32>
      %26 = arith.addf %23, %25 : vector<32x128xf32>
      %cst_21 = arith.constant 0.000000e+00 : f32
      %27 = vector.broadcast %cst_21 : f32 to vector<32x128xf32>
      %28 = arith.maximumf %26, %27 : vector<32x128xf32>
      %c0_22 = arith.constant 0 : index
      %c0_23 = arith.constant 0 : index
      %29 = vector.load %arg10[%c0_22, %c0_23] : memref<32x128xf32, #tpu.memory_space<vmem>>, vector<32x128xf32>
      tpu.vector_store %arg10[%c0_22, %c0_23], %28 {strides = array<i32>} : memref<32x128xf32, #tpu.memory_space<vmem>>, vector<32x128xf32>,
    } else {
    }
    return
  }
  func.func @transform_0(%arg0: i32, %arg1: i32, %arg2: i32) -> (i32, i32) {
    %c0_i32 = arith.constant 0 : i32
    return %arg0, %arg2 : i32, i32
  }
  func.func @transform_1(%arg0: i32, %arg1: i32, %arg2: i32) -> (i32, i32) {
    %c0_i32 = arith.constant 0 : i32
    return %arg2, %arg1 : i32, i32
  }
  func.func @transform_2(%arg0: i32, %arg1: i32, %arg2: i32) -> (i32, i32) {
    %c0_i32 = arith.constant 0 : i32
    %c0_i32_0 = arith.constant 0 : i32
    return %c0_i32, %arg1 : i32, i32
  }
  func.func @transform_3(%arg0: i32, %arg1: i32, %arg2: i32) -> (i32, i32) {
    %c0_i32 = arith.constant 0 : i32
    %c0_i32_0 = arith.constant 0 : i32
    return %c0_i32, %arg1 : i32, i32
  }
  func.func @transform_4(%arg0: i32, %arg1: i32, %arg2: i32) -> (i32, i32) {
    %c0_i32 = arith.constant 0 : i32
    %c0_i32_0 = arith.constant 0 : i32
    return %c0_i32, %arg1 : i32, i32
  }
  func.func @transform_5(%arg0: i32, %arg1: i32, %arg2: i32) -> (i32, i32) {
    %c0_i32 = arith.constant 0 : i32
    %c0_i32_0 = arith.constant 0 : i32
    return %c0_i32, %arg1 : i32, i32
  }
  func.func @transform_6(%arg0: i32, %arg1: i32, %arg2: i32) -> (i32, i32) {
    %c0_i32 = arith.constant 0 : i32
    return %arg0, %arg1 : i32, i32
  }
  func.func @transform_7(%arg0: i32, %arg1: i32, %arg2: i32) -> (i32, i32) {
    %c0_i32 = arith.constant 0 : i32
    return %arg0, %arg1 : i32, i32
  }
}

module attributes {stable_mosaic.version = 11 : i64} {
  func.func @_pool_fc_kernel(%arg0: i32, %arg1: memref<2x16x128xf32, #tpu.memory_space<vmem>>, %arg2: memref<128x10xf32, #tpu.memory_space<vmem>>, %arg3: memref<1x10xf32, #tpu.memory_space<vmem>>, %arg4: memref<2x10xf32, #tpu.memory_space<vmem>>) attributes {dimension_semantics = [#tpu.dimension_semantics<arbitrary>], iteration_bounds = array<i64: 1>, scalar_prefetch = 0 : i64, scratch_operands = 0 : i64, tpu.core_type = #tpu.core_type<tc>, window_params = [{pipeline_mode = #tpu.pipeline_mode<synchronous>, transform_indices = @transform_0, window_bounds = array<i64: 2, 16, 128>}, {pipeline_mode = #tpu.pipeline_mode<synchronous>, transform_indices = @transform_1, window_bounds = array<i64: 128, 10>}, {pipeline_mode = #tpu.pipeline_mode<synchronous>, transform_indices = @transform_2, window_bounds = array<i64: 1, 10>}, {pipeline_mode = #tpu.pipeline_mode<synchronous>, transform_indices = @transform_3, window_bounds = array<i64: 2, 10>}]} {
    %c0 = arith.constant 0 : index
    %c0_0 = arith.constant 0 : index
    %c0_1 = arith.constant 0 : index
    %0 = vector.load %arg1[%c0, %c0_0, %c0_1] : memref<2x16x128xf32, #tpu.memory_space<vmem>>, vector<2x16x128xf32>
    %cst = arith.constant dense<0.000000e+00> : vector<2x128xf32>
    %1 = vector.multi_reduction <add>, %0, %cst [1] : vector<2x16x128xf32> to vector<2x128xf32>
    %cst_2 = arith.constant 1.600000e+01 : f32
    %2 = vector.broadcast %cst_2 : f32 to vector<2x128xf32>
    %3 = arith.divf %1, %2 : vector<2x128xf32>
    %c0_3 = arith.constant 0 : index
    %c0_4 = arith.constant 0 : index
    %4 = vector.load %arg2[%c0_3, %c0_4] : memref<128x10xf32, #tpu.memory_space<vmem>>, vector<128x10xf32>
    %cst_5 = arith.constant dense<0.000000e+00> : vector<2x10xf32>
    %5 = tpu.matmul %3, %4, %cst_5 {dimension_numbers = #tpu.dot_dimension_numbers<[1], [0], [0], [1], [0, 0, 1, 1], [], []>} : vector<2x128xf32>, vector<128x10xf32>, vector<2x10xf32> -> vector<2x10xf32>
    %c0_6 = arith.constant 0 : index
    %c0_7 = arith.constant 0 : index
    %6 = vector.load %arg3[%c0_6, %c0_7] : memref<1x10xf32, #tpu.memory_space<vmem>>, vector<1x10xf32>
    %7 = vector.broadcast %6 : vector<1x10xf32> to vector<2x10xf32>
    %8 = arith.addf %5, %7 : vector<2x10xf32>
    %c0_8 = arith.constant 0 : index
    %c0_9 = arith.constant 0 : index
    %9 = vector.load %arg4[%c0_8, %c0_9] : memref<2x10xf32, #tpu.memory_space<vmem>>, vector<2x10xf32>
    tpu.vector_store %arg4[%c0_8, %c0_9], %8 {strides = array<i32>} : memref<2x10xf32, #tpu.memory_space<vmem>>, vector<2x10xf32>,
    return
  }
  func.func @transform_0(%arg0: i32) -> (i32, i32, i32) {
    %c0_i32 = arith.constant 0 : i32
    %c0_i32_0 = arith.constant 0 : i32
    %c0_i32_1 = arith.constant 0 : i32
    %c0_i32_2 = arith.constant 0 : i32
    return %c0_i32, %c0_i32_0, %c0_i32_1 : i32, i32, i32
  }
  func.func @transform_1(%arg0: i32) -> (i32, i32) {
    %c0_i32 = arith.constant 0 : i32
    %c0_i32_0 = arith.constant 0 : i32
    %c0_i32_1 = arith.constant 0 : i32
    return %c0_i32, %c0_i32_0 : i32, i32
  }
  func.func @transform_2(%arg0: i32) -> (i32, i32) {
    %c0_i32 = arith.constant 0 : i32
    %c0_i32_0 = arith.constant 0 : i32
    %c0_i32_1 = arith.constant 0 : i32
    return %c0_i32, %c0_i32_0 : i32, i32
  }
  func.func @transform_3(%arg0: i32) -> (i32, i32) {
    %c0_i32 = arith.constant 0 : i32
    %c0_i32_0 = arith.constant 0 : i32
    %c0_i32_1 = arith.constant 0 : i32
    return %c0_i32, %c0_i32_0 : i32, i32
  }
}

</mosaic_0001>

<llo_original>
// kernel: _lambda_.10
$region0: #{_lambda_.10}
  #allocation0 [shape = 'u32[]', space=smem, size = 0x4, offset = 0x4, fixed_abs, tag = 'smem constant byte address 0x4 - core index']
  #allocation1 [shape = 'u32[72,128]{1,0:T(1,128)}', space=vmem, size = 0x9000, scoped, tag = 'internal scratch']
  #allocation2 [shape = 'f32[256,128]{1,0:T(8,128)}', space=vmem, size = 0x20000, scoped, tag = 'scratch operand']
  %s0 = inlined_call_operand.vmem [shape: bf16[512,27], index: 0, kind: input, shape index: {}]
  %s1 = inlined_call_operand.vmem [shape: bf16[27,128], index: 1, kind: input, shape index: {}]
  %s2 = inlined_call_operand.vmem [shape: f32[1,128], index: 2, kind: input, shape index: {}]
  %s3 = inlined_call_operand.vmem [shape: f32[1,128], index: 3, kind: input, shape index: {}, may-alias: {3,5}]
  %s4 = inlined_call_operand.vmem [shape: f32[1,128], index: 4, kind: input, shape index: {}]
  %s5 = inlined_call_operand.vmem [shape: f32[1,128], index: 5, kind: input, shape index: {}, may-alias: {3,5}]
  %s6 = inlined_call_operand.vmem [shape: f32[512,128], index: 6, kind: output, shape index: {0}]
  %s7 = inlined_call_operand.vmem [shape: bf16[512,128], index: 7, kind: output, shape index: {1}]
  %8 = xla_tuple %s6, %s7
  %s9 = sld [smem:[#allocation0]]
  $region73: #{_lambda_.10} parent=0
    _
  %s11 = ssub.s32 1, %s9
  %s12 = scalar_select 0, %s11, %s9
  loop: start=0, step=1, limit=4
  $region2: #{_lambda_.10} parent=0 // loop_pre_header
    _
  $region3: #{_lambda_.10} parent=0 // loop_header
    %s14 = sphi 0, %s18
    %p15 = scmp.ge.s32.totalorder %s14, 4
    %s21 = sphi 0, %s40
    %s22 = sphi 0, %s36
    %s23 = sphi 0, %s32
    %s24 = sphi 0, %s21
    %s25 = sphi 0, %s22
    %s26 = sphi 0, %s23
    %s27 = sphi 0, %s24
    %s28 = sphi 0, %s25
    %s29 = sphi 0, %s26
    %s45 = sphi 0, %s47
    %s48 = sphi 0, %s45
    %s49 = sphi 0, %s48
    %s65 = sphi 0, %s49
    %s73 = sphi 0, %s75
    %s76 = sphi 0, %s73
    %s77 = sphi 0, %s76
    %s93 = sphi 0, %s77
    %s99 = sphi 0, %s101
    %s102 = sphi 0, %s99
    %s103 = sphi 0, %s102
    %s119 = sphi 0, %s103
    %s125 = sphi 0, %s127
    %s128 = sphi 0, %s125
    %s129 = sphi 0, %s128
    %s145 = sphi 0, %s129
    %s151 = sphi 0, %s153
    %s154 = sphi 0, %s151
    %s155 = sphi 0, %s154
    %s171 = sphi 0, %s155
    %s177 = sphi 0, %s179
    %s180 = sphi 0, %s177
    %s181 = sphi 0, %s180
    %s197 = sphi 0, %s181
    %s205 = sphi 0, %s207
    %s208 = sphi 0, %s205
    %s209 = sphi 0, %s208
    %s225 = sphi 0, %s209
    %s233 = sphi 0, %s235
    %s236 = sphi 0, %s233
    %s237 = sphi 0, %s236
    %s253 = sphi 0, %s237
  $region4: #{_lambda_.10} parent=0 // loop_header_branch
    %17 = sbr.rel (%p15) target = $region8
  $region5: #{_lambda_.10} parent=0 // loop_body
    %s19 = ssub.s32 %s14, 1
    %s20 = ssub.s32 %s14, 2
    %s30 = sadd.s32 1, %s23
    %p31 = scmp.ge.s32.totalorder %s30, 1
    %s32 = scalar_select %p31, 0, %s30
    %s33 = sadd.s32 1, %s22
    %s34 = scalar_select %p31, %s33, %s22
    %p35 = scmp.ge.s32.totalorder %s34, 1
    %s36 = scalar_select %p35, 0, %s34
    %s37 = sadd.s32 1, %s21
    %s38 = scalar_select %p35, %s37, %s21
    %p39 = scmp.ge.s32.totalorder %s38, 2
    %s40 = scalar_select %p39, 0, %s38
    %s41 = ssub.s32 %s21, %s40
    %s42 = ssub.s32 %s23, %s32
    %s43 = sor.u32 %s41, %s42
    %p44 = scmp.eq.s32.totalorder %s43, 0
    %s46 = sadd.s32 %s45, 1
    %s47 = scalar_select %p44, %s45, %s46
    %p50 = pneg %p44
    %p51 = scmp.eq.s32.totalorder %s14, 1
    %p52 = por %p50, %p51
    %p53 = scmp.ne.s32.totalorder %s45, %s48
    %p54 = scmp.eq.s32.totalorder %s14, 0
    %p55 = por %p53, %p54
    %p56 = scmp.ne.s32.totalorder %s45, %s48
    %p57 = scmp.eq.s32.totalorder %s19, 1
    %p58 = por %p56, %p57
    %p59 = scmp.ne.s32.totalorder %s48, %s49
    %p60 = scmp.eq.s32.totalorder %s19, 0
    %p61 = por %p59, %p60
    %p62 = scmp.ne.s32.totalorder %s48, %s49
    %p63 = scmp.eq.s32.totalorder %s20, 1
    %p64 = por %p62, %p63
    %p66 = scmp.ne.s32.totalorder %s49, %s65
    %p67 = scmp.eq.s32.totalorder %s20, 0
    %p68 = por %p66, %p67
    %s69 = ssub.s32 %s23, %s32
    %s70 = ssub.s32 %s22, %s36
    %s71 = sor.u32 %s69, %s70
    %p72 = scmp.eq.s32.totalorder %s71, 0
    %s74 = sadd.s32 %s73, 1
    %s75 = scalar_select %p72, %s73, %s74
    %p78 = pneg %p72
    %p79 = scmp.eq.s32.totalorder %s14, 1
    %p80 = por %p78, %p79
    %p81 = scmp.ne.s32.totalorder %s73, %s76
    %p82 = scmp.eq.s32.totalorder %s14, 0
    %p83 = por %p81, %p82
    %p84 = scmp.ne.s32.totalorder %s73, %s76
    %p85 = scmp.eq.s32.totalorder %s19, 1
    %p86 = por %p84, %p85
    %p87 = scmp.ne.s32.totalorder %s76, %s77
    %p88 = scmp.eq.s32.totalorder %s19, 0
    %p89 = por %p87, %p88
    %p90 = scmp.ne.s32.totalorder %s76, %s77
    %p91 = scmp.eq.s32.totalorder %s20, 1
    %p92 = por %p90, %p91
    %p94 = scmp.ne.s32.totalorder %s77, %s93
    %p95 = scmp.eq.s32.totalorder %s20, 0
    %p96 = por %p94, %p95
    %s97 = ssub.s32 %s22, %s36
    %p98 = scmp.eq.s32.totalorder %s97, 0
    %s100 = sadd.s32 %s99, 1
    %s101 = scalar_select %p98, %s99, %s100
    %p104 = pneg %p98
    %p105 = scmp.eq.s32.totalorder %s14, 1
    %p106 = por %p104, %p105
    %p107 = scmp.ne.s32.totalorder %s99, %s102
    %p108 = scmp.eq.s32.totalorder %s14, 0
    %p109 = por %p107, %p108
    %p110 = scmp.ne.s32.totalorder %s99, %s102
    %p111 = scmp.eq.s32.totalorder %s19, 1
    %p112 = por %p110, %p111
    %p113 = scmp.ne.s32.totalorder %s102, %s103
    %p114 = scmp.eq.s32.totalorder %s19, 0
    %p115 = por %p113, %p114
    %p116 = scmp.ne.s32.totalorder %s102, %s103
    %p117 = scmp.eq.s32.totalorder %s20, 1
    %p118 = por %p116, %p117
    %p120 = scmp.ne.s32.totalorder %s103, %s119
    %p121 = scmp.eq.s32.totalorder %s20, 0
    %p122 = por %p120, %p121
    %s123 = ssub.s32 %s22, %s36
    %p124 = scmp.eq.s32.totalorder %s123, 0
    %s126 = sadd.s32 %s125, 1
    %s127 = scalar_select %p124, %s125, %s126
    %p130 = pneg %p124
    %p131 = scmp.eq.s32.totalorder %s14, 1
    %p132 = por %p130, %p131
    %p133 = scmp.ne.s32.totalorder %s125, %s128
    %p134 = scmp.eq.s32.totalorder %s14, 0
    %p135 = por %p133, %p134
    %p136 = scmp.ne.s32.totalorder %s125, %s128
    %p137 = scmp.eq.s32.totalorder %s19, 1
    %p138 = por %p136, %p137
    %p139 = scmp.ne.s32.totalorder %s128, %s129
    %p140 = scmp.eq.s32.totalorder %s19, 0
    %p141 = por %p139, %p140
    %p142 = scmp.ne.s32.totalorder %s128, %s129
    %p143 = scmp.eq.s32.totalorder %s20, 1
    %p144 = por %p142, %p143
    %p146 = scmp.ne.s32.totalorder %s129, %s145
    %p147 = scmp.eq.s32.totalorder %s20, 0
    %p148 = por %p146, %p147
    %s149 = ssub.s32 %s22, %s36
    %p150 = scmp.eq.s32.totalorder %s149, 0
    %s152 = sadd.s32 %s151, 1
    %s153 = scalar_select %p150, %s151, %s152
    %p156 = pneg %p150
    %p157 = scmp.eq.s32.totalorder %s14, 1
    %p158 = por %p156, %p157
    %p159 = scmp.ne.s32.totalorder %s151, %s154
    %p160 = scmp.eq.s32.totalorder %s14, 0
    %p161 = por %p159, %p160
    %p162 = scmp.ne.s32.totalorder %s151, %s154
    %p163 = scmp.eq.s32.totalorder %s19, 1
    %p164 = por %p162, %p163
    %p165 = scmp.ne.s32.totalorder %s154, %s155
    %p166 = scmp.eq.s32.totalorder %s19, 0
    %p167 = por %p165, %p166
    %p168 = scmp.ne.s32.totalorder %s154, %s155
    %p169 = scmp.eq.s32.totalorder %s20, 1
    %p170 = por %p168, %p169
    %p172 = scmp.ne.s32.totalorder %s155, %s171
    %p173 = scmp.eq.s32.totalorder %s20, 0
    %p174 = por %p172, %p173
    %s175 = ssub.s32 %s22, %s36
    %p176 = scmp.eq.s32.totalorder %s175, 0
    %s178 = sadd.s32 %s177, 1
    %s179 = scalar_select %p176, %s177, %s178
    %p182 = pneg %p176
    %p183 = scmp.eq.s32.totalorder %s14, 1
    %p184 = por %p182, %p183
    %p185 = scmp.ne.s32.totalorder %s177, %s180
    %p186 = scmp.eq.s32.totalorder %s14, 0
    %p187 = por %p185, %p186
    %p188 = scmp.ne.s32.totalorder %s177, %s180
    %p189 = scmp.eq.s32.totalorder %s19, 1
    %p190 = por %p188, %p189
    %p191 = scmp.ne.s32.totalorder %s180, %s181
    %p192 = scmp.eq.s32.totalorder %s19, 0
    %p193 = por %p191, %p192
    %p194 = scmp.ne.s32.totalorder %s180, %s181
    %p195 = scmp.eq.s32.totalorder %s20, 1
    %p196 = por %p194, %p195
    %p198 = scmp.ne.s32.totalorder %s181, %s197
    %p199 = scmp.eq.s32.totalorder %s20, 0
    %p200 = por %p198, %p199
    %s201 = ssub.s32 %s21, %s40
    %s202 = ssub.s32 %s22, %s36
    %s203 = sor.u32 %s201, %s202
    %p204 = scmp.eq.s32.totalorder %s203, 0
    %s206 = sadd.s32 %s205, 1
    %s207 = scalar_select %p204, %s205, %s206
    %p210 = pneg %p204
    %p211 = scmp.eq.s32.totalorder %s14, 1
    %p212 = por %p210, %p211
    %p213 = scmp.ne.s32.totalorder %s205, %s208
    %p214 = scmp.eq.s32.totalorder %s14, 0
    %p215 = por %p213, %p214
    %p216 = scmp.ne.s32.totalorder %s205, %s208
    %p217 = scmp.eq.s32.totalorder %s19, 1
    %p218 = por %p216, %p217
    %p219 = scmp.ne.s32.totalorder %s208, %s209
    %p220 = scmp.eq.s32.totalorder %s19, 0
    %p221 = por %p219, %p220
    %p222 = scmp.ne.s32.totalorder %s208, %s209
    %p223 = scmp.eq.s32.totalorder %s20, 1
    %p224 = por %p222, %p223
    %p226 = scmp.ne.s32.totalorder %s209, %s225
    %p227 = scmp.eq.s32.totalorder %s20, 0
    %p228 = por %p226, %p227
    %s229 = ssub.s32 %s21, %s40
    %s230 = ssub.s32 %s22, %s36
    %s231 = sor.u32 %s229, %s230
    %p232 = scmp.eq.s32.totalorder %s231, 0
    %s234 = sadd.s32 %s233, 1
    %s235 = scalar_select %p232, %s233, %s234
    %p238 = pneg %p232
    %p239 = scmp.eq.s32.totalorder %s14, 1
    %p240 = por %p238, %p239
    %p241 = scmp.ne.s32.totalorder %s233, %s236
    %p242 = scmp.eq.s32.totalorder %s14, 0
    %p243 = por %p241, %p242
    %p244 = scmp.ne.s32.totalorder %s233, %s236
    %p245 = scmp.eq.s32.totalorder %s19, 1
    %p246 = por %p244, %p245
    %p247 = scmp.ne.s32.totalorder %s236, %s237
    %p248 = scmp.eq.s32.totalorder %s19, 0
    %p249 = por %p247, %p248
    %p250 = scmp.ne.s32.totalorder %s236, %s237
    %p251 = scmp.eq.s32.totalorder %s20, 1
    %p252 = por %p250, %p251
    %p254 = scmp.ne.s32.totalorder %s237, %s253
    %p255 = scmp.eq.s32.totalorder %s20, 0
    %p256 = por %p254, %p255
    %p257 = scmp.le.s32.totalorder 1, %s14
    %p258 = scmp.lt.s32.totalorder %s14, 3
    %p259 = pnand %p257, %p258
    %p260 = pneg %p259
    // Predicated region
    $region9: #{_lambda_.10} parent=5 // pred_check
      _
    $region10: #{_lambda_.10} parent=5 // pred_check_branch
      %262 = sbr.rel (%p259) target = $region12
    $region11: #{_lambda_.10} parent=5 // pred_region
      %s263 = ssub.s32 %s14, 1
      // Predicated region
      $region13: #{_lambda_.10} parent=11 // pred_check
        %p264 = pneg %p89
      $region14: #{_lambda_.10} parent=11 // pred_check_branch
        %266 = sbr.rel (%p264) target = $region16
      $region15: #{_lambda_.10} parent=11 // pred_region
        %s267 = smul.u32 4, %s26
        %p268 = scmp.lt.s32.totalorder %s267, 3
        %s269 = scalar_select %p268, %s267, 3
        %p270 = scmp.lt.s32.totalorder %s25, 0
        %s271 = scalar_select %p270, %s25, 0
        %s272 = sadd.s32 %s271, %s269
        %s273 = smul.addr %s272, 4
        %s274 = scalar_lea.vmem %s1, %s273
        %s275 = smul.u32 4, %s26
      $region16: #{_lambda_.10} parent=11 // pred_fallthru
        _
      // Predicated region
      $region17: #{_lambda_.10} parent=11 // pred_check
        %p276 = pneg %p115
      $region18: #{_lambda_.10} parent=11 // pred_check_branch
        %278 = sbr.rel (%p276) target = $region20
      $region19: #{_lambda_.10} parent=11 // pred_region
        %p279 = scmp.lt.s32.totalorder %s25, 0
        %s280 = scalar_select %p279, %s25, 0
        %s281 = scalar_lea.vmem %s2, %s280
      $region20: #{_lambda_.10} parent=11 // pred_fallthru
        _
      // Predicated region
      $region21: #{_lambda_.10} parent=11 // pred_check
        %p282 = pneg %p141
      $region22: #{_lambda_.10} parent=11 // pred_check_branch
        %284 = sbr.rel (%p282) target = $region24
      $region23: #{_lambda_.10} parent=11 // pred_region
        %p285 = scmp.lt.s32.totalorder %s25, 0
        %s286 = scalar_select %p285, %s25, 0
        %s287 = scalar_lea.vmem %s3, %s286
      $region24: #{_lambda_.10} parent=11 // pred_fallthru
        _
      // Predicated region
      $region25: #{_lambda_.10} parent=11 // pred_check
        %p288 = pneg %p167
      $region26: #{_lambda_.10} parent=11 // pred_check_branch
        %290 = sbr.rel (%p288) target = $region28
      $region27: #{_lambda_.10} parent=11 // pred_region
        %p291 = scmp.lt.s32.totalorder %s25, 0
        %s292 = scalar_select %p291, %s25, 0
        %s293 = scalar_lea.vmem %s4, %s292
      $region28: #{_lambda_.10} parent=11 // pred_fallthru
        _
      // Predicated region
      $region29: #{_lambda_.10} parent=11 // pred_check
        %p294 = pneg %p193
      $region30: #{_lambda_.10} parent=11 // pred_check_branch
        %296 = sbr.rel (%p294) target = $region32
      $region31: #{_lambda_.10} parent=11 // pred_region
        %p297 = scmp.lt.s32.totalorder %s25, 0
        %s298 = scalar_select %p297, %s25, 0
        %s299 = scalar_lea.vmem %s5, %s298
      $region32: #{_lambda_.10} parent=11 // pred_fallthru
        _
    $region12: #{_lambda_.10} parent=5 // pred_fallthru
      _
    %p300 = scmp.lt.s32.totalorder %s14, 2
    // Predicated region
    $region33: #{_lambda_.10} parent=5 // pred_check
      %p301 = pneg %p300
    $region34: #{_lambda_.10} parent=5 // pred_check_branch
      %303 = sbr.rel (%p301) target = $region36
    $region35: #{_lambda_.10} parent=5 // pred_region
      // Predicated region
      $region37: #{_lambda_.10} parent=35 // pred_check
        %p304 = pneg %p55
      $region38: #{_lambda_.10} parent=35 // pred_check_branch
        %306 = sbr.rel (%p304) target = $region40
      $region39: #{_lambda_.10} parent=35 // pred_region
        %s307 = smul.u32 32, %s21
        %p308 = scmp.lt.s32.totalorder %s307, 63
        %s309 = scalar_select %p308, %s307, 63
        %p310 = scmp.lt.s32.totalorder %s23, 0
        %s311 = scalar_select %p310, %s23, 0
        %s312 = sadd.s32 %s311, %s309
        %s313 = smul.addr %s312, 4
        %s314 = scalar_lea.vmem %s0, %s313
        %s315 = smul.u32 32, %s21
      $region40: #{_lambda_.10} parent=35 // pred_fallthru
        _
    $region36: #{_lambda_.10} parent=5 // pred_fallthru
      _
    %p316 = scmp.le.s32.totalorder 1, %s14
    %p317 = scmp.lt.s32.totalorder %s14, 3
    %p318 = pnand %p316, %p317
    %p319 = pneg %p318
    // Predicated region
    $region41: #{_lambda_.10} parent=5 // pred_check
      _
    $region42: #{_lambda_.10} parent=5 // pred_check_branch
      %321 = sbr.rel (%p318) target = $region44
    $region43: #{_lambda_.10} parent=5 // pred_region
      %s322 = ssub.s32 %s14, 1
      %s323 = smul.u32 32, %s24
      %p324 = scmp.lt.s32.totalorder %s323, 63
      %s325 = scalar_select %p324, %s323, 63
      %p326 = scmp.lt.s32.totalorder %s26, 0
      %s327 = scalar_select %p326, %s26, 0
      %s328 = sadd.s32 %s327, %s325
      %s329 = smul.addr %s328, 4
      %s330 = scalar_lea.vmem %s0, %s329
      %p331 = pneg %p61
      %p332 = pneg %p58
      %s333 = smul.u32 4, %s26
      %p334 = scmp.lt.s32.totalorder %s333, 3
      %s335 = scalar_select %p334, %s333, 3
      %p336 = scmp.lt.s32.totalorder %s25, 0
      %s337 = scalar_select %p336, %s25, 0
      %s338 = sadd.s32 %s337, %s335
      %s339 = smul.addr %s338, 4
      %s340 = scalar_lea.vmem %s1, %s339
      %p341 = pneg %p89
      %p342 = pneg %p86
      %p343 = scmp.lt.s32.totalorder %s25, 0
      %s344 = scalar_select %p343, %s25, 0
      %s345 = scalar_lea.vmem %s2, %s344
      %p346 = pneg %p115
      %p347 = pneg %p112
      %p348 = scmp.lt.s32.totalorder %s25, 0
      %s349 = scalar_select %p348, %s25, 0
      %s350 = scalar_lea.vmem %s3, %s349
      %p351 = pneg %p141
      %p352 = pneg %p138
      %p353 = scmp.lt.s32.totalorder %s25, 0
      %s354 = scalar_select %p353, %s25, 0
      %s355 = scalar_lea.vmem %s4, %s354
      %p356 = pneg %p167
      %p357 = pneg %p164
      %p358 = scmp.lt.s32.totalorder %s25, 0
      %s359 = scalar_select %p358, %s25, 0
      %s360 = scalar_lea.vmem %s5, %s359
      %p361 = pneg %p193
      %p362 = pneg %p190
      %p363 = pneg %p221
      %p364 = pneg %p218
      %s365 = smul.u32 32, %s24
      %p366 = scmp.lt.s32.totalorder %s365, 63
      %s367 = scalar_select %p366, %s365, 63
      %p368 = scmp.lt.s32.totalorder %s25, 0
      %s369 = scalar_select %p368, %s25, 0
      %s370 = sadd.s32 %s369, %s367
      %s371 = smul.addr %s370, 8
      %s372 = scalar_lea.vmem %s6, %s371
      %p373 = pneg %p249
      %p374 = pneg %p246
      %s375 = smul.u32 32, %s24
      %p376 = scmp.lt.s32.totalorder %s375, 63
      %s377 = scalar_select %p376, %s375, 63
      %p378 = scmp.lt.s32.totalorder %s25, 0
      %s379 = scalar_select %p378, %s25, 0
      %s380 = sadd.s32 %s379, %s377
      %s381 = smul.addr %s380, 4
      %s382 = scalar_lea.vmem %s7, %s381
      %s383 = smul.u32 32, %s24
      %p384 = scmp.lt.s32.totalorder %s383, 63
      %s385 = scalar_select %p384, %s383, 63
      %p386 = scmp.lt.s32.totalorder %s26, 0
      %s387 = scalar_select %p386, %s26, 0
      %s388 = sadd.s32 %s387, %s385
      %s389 = smul.addr %s388, 4
      %s390 = scalar_lea.vmem %s0, %s389
      %s391 = smul.u32 32, %s24
      %s392 = smul.u32 4, %s26
      %p393 = scmp.lt.s32.totalorder %s392, 3
      %s394 = scalar_select %p393, %s392, 3
      %p395 = scmp.lt.s32.totalorder %s25, 0
      %s396 = scalar_select %p395, %s25, 0
      %s397 = sadd.s32 %s396, %s394
      %s398 = smul.addr %s397, 4
      %s399 = scalar_lea.vmem %s1, %s398
      %s400 = smul.u32 4, %s26
      %p401 = scmp.lt.s32.totalorder %s25, 0
      %s402 = scalar_select %p401, %s25, 0
      %s403 = scalar_lea.vmem %s2, %s402
      %p404 = scmp.lt.s32.totalorder %s25, 0
      %s405 = scalar_select %p404, %s25, 0
      %s406 = scalar_lea.vmem %s3, %s405
      %p407 = scmp.lt.s32.totalorder %s25, 0
      %s408 = scalar_select %p407, %s25, 0
      %s409 = scalar_lea.vmem %s4, %s408
      %p410 = scmp.lt.s32.totalorder %s25, 0
      %s411 = scalar_select %p410, %s25, 0
      %s412 = scalar_lea.vmem %s5, %s411
      %s413 = smul.u32 32, %s24
      %p414 = scmp.lt.s32.totalorder %s413, 63
      %s415 = scalar_select %p414, %s413, 63
      %p416 = scmp.lt.s32.totalorder %s25, 0
      %s417 = scalar_select %p416, %s25, 0
      %s418 = sadd.s32 %s417, %s415
      %s419 = smul.addr %s418, 8
      %s420 = scalar_lea.vmem %s6, %s419
      %s421 = smul.u32 32, %s24
      %s422 = smul.u32 32, %s24
      %p423 = scmp.lt.s32.totalorder %s422, 63
      %s424 = scalar_select %p423, %s422, 63
      %p425 = scmp.lt.s32.totalorder %s25, 0
      %s426 = scalar_select %p425, %s25, 0
      %s427 = sadd.s32 %s426, %s424
      %s428 = smul.addr %s427, 4
      %s429 = scalar_lea.vmem %s7, %s428
      %s430 = smul.u32 32, %s24
      %p432 = scmp.eq.s32.totalorder %s26, 0
      // Predicated region
      $region45: #{_lambda_.10} parent=43 // pred_check
        %p433 = pneg %p432
      $region46: #{_lambda_.10} parent=43 // pred_check_branch
        %435 = sbr.rel (%p433) target = $region48
      $region47: #{_lambda_.10} parent=43 // pred_region
        %436 = vst [vmem:[#allocation2] sm:$0xff] 0.0
        %437 = vst [vmem:[#allocation2 + $0x8] sm:$0xff] 0.0
        %438 = vst [vmem:[#allocation2 + $0x10] sm:$0xff] 0.0
        %439 = vst [vmem:[#allocation2 + $0x18] sm:$0xff] 0.0
        %440 = vst [vmem:[#allocation2 + $0x20] sm:$0xff] 0.0
        %441 = vst [vmem:[#allocation2 + $0x28] sm:$0xff] 0.0
        %442 = vst [vmem:[#allocation2 + $0x30] sm:$0xff] 0.0
        %443 = vst [vmem:[#allocation2 + $0x38] sm:$0xff] 0.0
        %444 = vst [vmem:[#allocation2 + $0x40] sm:$0xff] 0.0
        %445 = vst [vmem:[#allocation2 + $0x48] sm:$0xff] 0.0
        %446 = vst [vmem:[#allocation2 + $0x50] sm:$0xff] 0.0
        %447 = vst [vmem:[#allocation2 + $0x58] sm:$0xff] 0.0
        %448 = vst [vmem:[#allocation2 + $0x60] sm:$0xff] 0.0
        %449 = vst [vmem:[#allocation2 + $0x68] sm:$0xff] 0.0
        %450 = vst [vmem:[#allocation2 + $0x70] sm:$0xff] 0.0
        %451 = vst [vmem:[#allocation2 + $0x78] sm:$0xff] 0.0
        %452 = vst [vmem:[#allocation2 + $0x80] sm:$0xff] 0.0
        %453 = vst [vmem:[#allocation2 + $0x88] sm:$0xff] 0.0
        %454 = vst [vmem:[#allocation2 + $0x90] sm:$0xff] 0.0
        %455 = vst [vmem:[#allocation2 + $0x98] sm:$0xff] 0.0
        %456 = vst [vmem:[#allocation2 + $0xa0] sm:$0xff] 0.0
        %457 = vst [vmem:[#allocation2 + $0xa8] sm:$0xff] 0.0
        %458 = vst [vmem:[#allocation2 + $0xb0] sm:$0xff] 0.0
        %459 = vst [vmem:[#allocation2 + $0xb8] sm:$0xff] 0.0
        %460 = vst [vmem:[#allocation2 + $0xc0] sm:$0xff] 0.0
        %461 = vst [vmem:[#allocation2 + $0xc8] sm:$0xff] 0.0
        %462 = vst [vmem:[#allocation2 + $0xd0] sm:$0xff] 0.0
        %463 = vst [vmem:[#allocation2 + $0xd8] sm:$0xff] 0.0
        %464 = vst [vmem:[#allocation2 + $0xe0] sm:$0xff] 0.0
        %465 = vst [vmem:[#allocation2 + $0xe8] sm:$0xff] 0.0
        %466 = vst [vmem:[#allocation2 + $0xf0] sm:$0xff] 0.0
        %467 = vst [vmem:[#allocation2 + $0xf8] sm:$0xff] 0.0
      $region48: #{_lambda_.10} parent=43 // pred_fallthru
        _
      %v468 = vld [vmem:[#allocation2] sm:$0xff]
      %v469 = vld [vmem:[#allocation2 + $0x8] sm:$0xff]
      %v470 = vld [vmem:[#allocation2 + $0x10] sm:$0xff]
      %v471 = vld [vmem:[#allocation2 + $0x18] sm:$0xff]
      %v472 = vld [vmem:[#allocation2 + $0x20] sm:$0xff]
      %v473 = vld [vmem:[#allocation2 + $0x28] sm:$0xff]
      %v474 = vld [vmem:[#allocation2 + $0x30] sm:$0xff]
      %v475 = vld [vmem:[#allocation2 + $0x38] sm:$0xff]
      %v476 = vld [vmem:[#allocation2 + $0x40] sm:$0xff]
      %v477 = vld [vmem:[#allocation2 + $0x48] sm:$0xff]
      %v478 = vld [vmem:[#allocation2 + $0x50] sm:$0xff]
      %v479 = vld [vmem:[#allocation2 + $0x58] sm:$0xff]
      %v480 = vld [vmem:[#allocation2 + $0x60] sm:$0xff]
      %v481 = vld [vmem:[#allocation2 + $0x68] sm:$0xff]
      %v482 = vld [vmem:[#allocation2 + $0x70] sm:$0xff]
      %v483 = vld [vmem:[#allocation2 + $0x78] sm:$0xff]
      %v484 = vld [vmem:[#allocation2 + $0x80] sm:$0xff]
      %v485 = vld [vmem:[#allocation2 + $0x88] sm:$0xff]
      %v486 = vld [vmem:[#allocation2 + $0x90] sm:$0xff]
      %v487 = vld [vmem:[#allocation2 + $0x98] sm:$0xff]
      %v488 = vld [vmem:[#allocation2 + $0xa0] sm:$0xff]
      %v489 = vld [vmem:[#allocation2 + $0xa8] sm:$0xff]
      %v490 = vld [vmem:[#allocation2 + $0xb0] sm:$0xff]
      %v491 = vld [vmem:[#allocation2 + $0xb8] sm:$0xff]
      %v492 = vld [vmem:[#allocation2 + $0xc0] sm:$0xff]
      %v493 = vld [vmem:[#allocation2 + $0xc8] sm:$0xff]
      %v494 = vld [vmem:[#allocation2 + $0xd0] sm:$0xff]
      %v495 = vld [vmem:[#allocation2 + $0xd8] sm:$0xff]
      %v496 = vld [vmem:[#allocation2 + $0xe0] sm:$0xff]
      %v497 = vld [vmem:[#allocation2 + $0xe8] sm:$0xff]
      %v498 = vld [vmem:[#allocation2 + $0xf0] sm:$0xff]
      %v499 = vld [vmem:[#allocation2 + $0xf8] sm:$0xff]
      %v500 = vld [vmem:[%s390] sm:$0xf]
      %v501 = vld [vmem:[%s390 + $0x4] sm:$0xf]
      %v502 = vld [vmem:[%s390 + $0x8] sm:$0xf]
      %v503 = vld [vmem:[%s390 + $0xc] sm:$0xf]
      %v504 = vld [vmem:[%s390 + $0x10] sm:$0xf]
      %v505 = vld [vmem:[%s390 + $0x14] sm:$0xf]
      %v506 = vld [vmem:[%s390 + $0x18] sm:$0xf]
      %v507 = vld [vmem:[%s390 + $0x1c] sm:$0xf]
      %v508 = vld [vmem:[%s390 + $0x20] sm:$0xf]
      %v509 = vld [vmem:[%s390 + $0x24] sm:$0xf]
      %v510 = vld [vmem:[%s390 + $0x28] sm:$0xf]
      %v511 = vld [vmem:[%s390 + $0x2c] sm:$0xf]
      %v512 = vld [vmem:[%s390 + $0x30] sm:$0xf]
      %v513 = vld [vmem:[%s390 + $0x34] sm:$0xf]
      %v514 = vld [vmem:[%s390 + $0x38] sm:$0xf]
      %v515 = vld [vmem:[%s390 + $0x3c] sm:$0xf]
      %v516 = vld [vmem:[%s390 + $0x40] sm:$0xf]
      %v517 = vld [vmem:[%s390 + $0x44] sm:$0xf]
      %v518 = vld [vmem:[%s390 + $0x48] sm:$0xf]
      %v519 = vld [vmem:[%s390 + $0x4c] sm:$0xf]
      %v520 = vld [vmem:[%s390 + $0x50] sm:$0xf]
      %v521 = vld [vmem:[%s390 + $0x54] sm:$0xf]
      %v522 = vld [vmem:[%s390 + $0x58] sm:$0xf]
      %v523 = vld [vmem:[%s390 + $0x5c] sm:$0xf]
      %v524 = vld [vmem:[%s390 + $0x60] sm:$0xf]
      %v525 = vld [vmem:[%s390 + $0x64] sm:$0xf]
      %v526 = vld [vmem:[%s390 + $0x68] sm:$0xf]
      %v527 = vld [vmem:[%s390 + $0x6c] sm:$0xf]
      %v528 = vld [vmem:[%s390 + $0x70] sm:$0xf]
      %v529 = vld [vmem:[%s390 + $0x74] sm:$0xf]
      %v530 = vld [vmem:[%s390 + $0x78] sm:$0xf]
      %v531 = vld [vmem:[%s390 + $0x7c] sm:$0xf]
      %v532 = vld [vmem:[%s399] sm:$0xf]
      %v533 = vld [vmem:[%s399 + $0x4] sm:$0xf]
      %v534 = vld [vmem:[%s399 + $0x8] sm:$0xf]
      %v535 = vld [vmem:[%s399 + $0xc] sm:$0x3]
      %v568 = vunpack.c.l.b16 %v500
      %v569 = vunpack.c.l.b16 %v501
      %v570 = vunpack.c.l.b16 %v502
      %v571 = vunpack.c.l.b16 %v503
      %v572 = vunpack.c.l.b16 %v504
      %v573 = vunpack.c.l.b16 %v505
      %v574 = vunpack.c.l.b16 %v506
      %v575 = vunpack.c.l.b16 %v507
      %v576 = vunpack.c.l.b16 %v508
      %v577 = vunpack.c.l.b16 %v509
      %v578 = vunpack.c.l.b16 %v510
      %v579 = vunpack.c.l.b16 %v511
      %v580 = vunpack.c.l.b16 %v512
      %v581 = vunpack.c.l.b16 %v513
      %v582 = vunpack.c.l.b16 %v514
      %v583 = vunpack.c.l.b16 %v515
      %v584 = vunpack.c.l.b16 %v516
      %v585 = vunpack.c.l.b16 %v517
      %v586 = vunpack.c.l.b16 %v518
      %v587 = vunpack.c.l.b16 %v519
      %v588 = vunpack.c.l.b16 %v520
      %v589 = vunpack.c.l.b16 %v521
      %v590 = vunpack.c.l.b16 %v522
      %v591 = vunpack.c.l.b16 %v523
      %v592 = vunpack.c.l.b16 %v524
      %v593 = vunpack.c.l.b16 %v525
      %v594 = vunpack.c.l.b16 %v526
      %v595 = vunpack.c.l.b16 %v527
      %v596 = vunpack.c.l.b16 %v528
      %v597 = vunpack.c.l.b16 %v529
      %v598 = vunpack.c.l.b16 %v530
      %v599 = vunpack.c.l.b16 %v531
      %v600 = vpack.c.b16 %v569, %v568
      %v601 = vpack.c.b16 %v571, %v570
      %v602 = vpack.c.b16 %v573, %v572
      %v603 = vpack.c.b16 %v575, %v574
      %v604 = vpack.c.b16 %v577, %v576
      %v605 = vpack.c.b16 %v579, %v578
      %v606 = vpack.c.b16 %v581, %v580
      %v607 = vpack.c.b16 %v583, %v582
      %v608 = vpack.c.b16 %v585, %v584
      %v609 = vpack.c.b16 %v587, %v586
      %v610 = vpack.c.b16 %v589, %v588
      %v611 = vpack.c.b16 %v591, %v590
      %v612 = vpack.c.b16 %v593, %v592
      %v613 = vpack.c.b16 %v595, %v594
      %v614 = vpack.c.b16 %v597, %v596
      %v615 = vpack.c.b16 %v599, %v598
      %v620 = vunpack.c.l.b16 %v532
      %v621 = vunpack.c.l.b16 %v533
      %v622 = vunpack.c.l.b16 %v534
      %v623 = vunpack.c.l.b16 %v535
      %v624 = vpack.c.b16 %v621, %v620
      %v625 = vpack.c.b16 %v623, %v622
      %vm627 = vcmask 220160
      %v629 = vsel %vm627, %v600, 0
      %v632 = vsel %vm627, %v601, 0
      %v635 = vsel %vm627, %v602, 0
      %v638 = vsel %vm627, %v603, 0
      %v641 = vsel %vm627, %v604, 0
      %v644 = vsel %vm627, %v605, 0
      %v647 = vsel %vm627, %v606, 0
      %v650 = vsel %vm627, %v607, 0
      %v653 = vsel %vm627, %v608, 0
      %v656 = vsel %vm627, %v609, 0
      %v659 = vsel %vm627, %v610, 0
      %v662 = vsel %vm627, %v611, 0
      %v665 = vsel %vm627, %v612, 0
      %v668 = vsel %vm627, %v613, 0
      %v671 = vsel %vm627, %v614, 0
      %v674 = vsel %vm627, %v615, 0
      %vm676 = vcmask 1044480
      %vm677 = vcmask 1045504
      %v678 = vsel %vm676, 4294967295, 65535
      %v679 = vsel %vm677, %v678, 0
      %v681 = vand.u32 %v625, %v679
      %683 = vmatpush.bf16.msra.mxu0 0
      %684 = vmatpush.bf16.msra.mxu0 0
      %685 = vmatpush.bf16.msra.mxu0 0
      %686 = vmatpush.bf16.msra.mxu0 0
      %687 = vmatpush.bf16.msra.mxu0 0
      %688 = vmatpush.bf16.msra.mxu0 0
      %689 = vmatpush.bf16.msra.mxu0 %v681
      %690 = vmatpush.bf16.msra.mxu0 %v624
      %691 = vmatmul.bf16.gmra.mxu0 %v629
      %v692 = vpop.f32.mrf.mxu0
      %v693 = vadd.f32 0.0, %v692
      %v694 = vpop.f32.mrf.mxu0
      %v695 = vadd.f32 0.0, %v694
      %696 = vmatmul.bf16.gmra.mxu0 %v632
      %v697 = vpop.f32.mrf.mxu0
      %v698 = vadd.f32 0.0, %v697
      %v699 = vpop.f32.mrf.mxu0
      %v700 = vadd.f32 0.0, %v699
      %701 = vmatmul.bf16.gmra.mxu0 %v635
      %v702 = vpop.f32.mrf.mxu0
      %v703 = vadd.f32 0.0, %v702
      %v704 = vpop.f32.mrf.mxu0
      %v705 = vadd.f32 0.0, %v704
      %706 = vmatmul.bf16.gmra.mxu0 %v638
      %v707 = vpop.f32.mrf.mxu0
      %v708 = vadd.f32 0.0, %v707
      %v709 = vpop.f32.mrf.mxu0
      %v710 = vadd.f32 0.0, %v709
      %711 = vmatmul.bf16.gmra.mxu0 %v641
      %v712 = vpop.f32.mrf.mxu0
      %v713 = vadd.f32 0.0, %v712
      %v714 = vpop.f32.mrf.mxu0
      %v715 = vadd.f32 0.0, %v714
      %716 = vmatmul.bf16.gmra.mxu0 %v644
      %v717 = vpop.f32.mrf.mxu0
      %v718 = vadd.f32 0.0, %v717
      %v719 = vpop.f32.mrf.mxu0
      %v720 = vadd.f32 0.0, %v719
      %721 = vmatmul.bf16.gmra.mxu0 %v647
      %v722 = vpop.f32.mrf.mxu0
      %v723 = vadd.f32 0.0, %v722
      %v724 = vpop.f32.mrf.mxu0
      %v725 = vadd.f32 0.0, %v724
      %726 = vmatmul.bf16.gmra.mxu0 %v650
      %v727 = vpop.f32.mrf.mxu0
      %v728 = vadd.f32 0.0, %v727
      %v729 = vpop.f32.mrf.mxu0
      %v730 = vadd.f32 0.0, %v729
      %731 = vmatmul.bf16.gmra.mxu0 %v653
      %v732 = vpop.f32.mrf.mxu0
      %v733 = vadd.f32 0.0, %v732
      %v734 = vpop.f32.mrf.mxu0
      %v735 = vadd.f32 0.0, %v734
      %736 = vmatmul.bf16.gmra.mxu0 %v656
      %v737 = vpop.f32.mrf.mxu0
      %v738 = vadd.f32 0.0, %v737
      %v739 = vpop.f32.mrf.mxu0
      %v740 = vadd.f32 0.0, %v739
      %741 = vmatmul.bf16.gmra.mxu0 %v659
      %v742 = vpop.f32.mrf.mxu0
      %v743 = vadd.f32 0.0, %v742
      %v744 = vpop.f32.mrf.mxu0
      %v745 = vadd.f32 0.0, %v744
      %746 = vmatmul.bf16.gmra.mxu0 %v662
      %v747 = vpop.f32.mrf.mxu0
      %v748 = vadd.f32 0.0, %v747
      %v749 = vpop.f32.mrf.mxu0
      %v750 = vadd.f32 0.0, %v749
      %751 = vmatmul.bf16.gmra.mxu0 %v665
      %v752 = vpop.f32.mrf.mxu0
      %v753 = vadd.f32 0.0, %v752
      %v754 = vpop.f32.mrf.mxu0
      %v755 = vadd.f32 0.0, %v754
      %756 = vmatmul.bf16.gmra.mxu0 %v668
      %v757 = vpop.f32.mrf.mxu0
      %v758 = vadd.f32 0.0, %v757
      %v759 = vpop.f32.mrf.mxu0
      %v760 = vadd.f32 0.0, %v759
      %761 = vmatmul.bf16.gmra.mxu0 %v671
      %v762 = vpop.f32.mrf.mxu0
      %v763 = vadd.f32 0.0, %v762
      %v764 = vpop.f32.mrf.mxu0
      %v765 = vadd.f32 0.0, %v764
      %766 = vmatmul.bf16.gmra.mxu0 %v674
      %v767 = vpop.f32.mrf.mxu0
      %v768 = vadd.f32 0.0, %v767
      %v769 = vpop.f32.mrf.mxu0
      %v770 = vadd.f32 0.0, %v769
      %771 = vdwg.mxu0
      %v772 = vadd.f32 %v468, %v693
      %v773 = vadd.f32 %v469, %v695
      %v774 = vadd.f32 %v470, %v698
      %v775 = vadd.f32 %v471, %v700
      %v776 = vadd.f32 %v472, %v703
      %v777 = vadd.f32 %v473, %v705
      %v778 = vadd.f32 %v474, %v708
      %v779 = vadd.f32 %v475, %v710
      %v780 = vadd.f32 %v476, %v713
      %v781 = vadd.f32 %v477, %v715
      %v782 = vadd.f32 %v478, %v718
      %v783 = vadd.f32 %v479, %v720
      %v784 = vadd.f32 %v480, %v723
      %v785 = vadd.f32 %v481, %v725
      %v786 = vadd.f32 %v482, %v728
      %v787 = vadd.f32 %v483, %v730
      %v788 = vadd.f32 %v484, %v733
      %v789 = vadd.f32 %v485, %v735
      %v790 = vadd.f32 %v486, %v738
      %v791 = vadd.f32 %v487, %v740
      %v792 = vadd.f32 %v488, %v743
      %v793 = vadd.f32 %v489, %v745
      %v794 = vadd.f32 %v490, %v748
      %v795 = vadd.f32 %v491, %v750
      %v796 = vadd.f32 %v492, %v753
      %v797 = vadd.f32 %v493, %v755
      %v798 = vadd.f32 %v494, %v758
      %v799 = vadd.f32 %v495, %v760
      %v800 = vadd.f32 %v496, %v763
      %v801 = vadd.f32 %v497, %v765
      %v802 = vadd.f32 %v498, %v768
      %v803 = vadd.f32 %v499, %v770
      %804 = vst [vmem:[#allocation2] sm:$0xff] %v772
      %805 = vst [vmem:[#allocation2 + $0x8] sm:$0xff] %v773
      %806 = vst [vmem:[#allocation2 + $0x10] sm:$0xff] %v774
      %807 = vst [vmem:[#allocation2 + $0x18] sm:$0xff] %v775
      %808 = vst [vmem:[#allocation2 + $0x20] sm:$0xff] %v776
      %809 = vst [vmem:[#allocation2 + $0x28] sm:$0xff] %v777
      %810 = vst [vmem:[#allocation2 + $0x30] sm:$0xff] %v778
      %811 = vst [vmem:[#allocation2 + $0x38] sm:$0xff] %v779
      %812 = vst [vmem:[#allocation2 + $0x40] sm:$0xff] %v780
      %813 = vst [vmem:[#allocation2 + $0x48] sm:$0xff] %v781
      %814 = vst [vmem:[#allocation2 + $0x50] sm:$0xff] %v782
      %815 = vst [vmem:[#allocation2 + $0x58] sm:$0xff] %v783
      %816 = vst [vmem:[#allocation2 + $0x60] sm:$0xff] %v784
      %817 = vst [vmem:[#allocation2 + $0x68] sm:$0xff] %v785
      %818 = vst [vmem:[#allocation2 + $0x70] sm:$0xff] %v786
      %819 = vst [vmem:[#allocation2 + $0x78] sm:$0xff] %v787
      %820 = vst [vmem:[#allocation2 + $0x80] sm:$0xff] %v788
      %821 = vst [vmem:[#allocation2 + $0x88] sm:$0xff] %v789
      %822 = vst [vmem:[#allocation2 + $0x90] sm:$0xff] %v790
      %823 = vst [vmem:[#allocation2 + $0x98] sm:$0xff] %v791
      %824 = vst [vmem:[#allocation2 + $0xa0] sm:$0xff] %v792
      %825 = vst [vmem:[#allocation2 + $0xa8] sm:$0xff] %v793
      %826 = vst [vmem:[#allocation2 + $0xb0] sm:$0xff] %v794
      %827 = vst [vmem:[#allocation2 + $0xb8] sm:$0xff] %v795
      %828 = vst [vmem:[#allocation2 + $0xc0] sm:$0xff] %v796
      %829 = vst [vmem:[#allocation2 + $0xc8] sm:$0xff] %v797
      %830 = vst [vmem:[#allocation2 + $0xd0] sm:$0xff] %v798
      %831 = vst [vmem:[#allocation2 + $0xd8] sm:$0xff] %v799
      %832 = vst [vmem:[#allocation2 + $0xe0] sm:$0xff] %v800
      %833 = vst [vmem:[#allocation2 + $0xe8] sm:$0xff] %v801
      %834 = vst [vmem:[#allocation2 + $0xf0] sm:$0xff] %v802
      %835 = vst [vmem:[#allocation2 + $0xf8] sm:$0xff] %v803
      // Predicated region
      $region49: #{_lambda_.10} parent=43 // pred_check
        %p836 = pneg %p432
      $region50: #{_lambda_.10} parent=43 // pred_check_branch
        %838 = sbr.rel (%p836) target = $region52
      $region51: #{_lambda_.10} parent=43 // pred_region
        %v839 = vld [vmem:[#allocation2] sm:$0xff]
        %v840 = vld [vmem:[#allocation2 + $0x8] sm:$0xff]
        %v841 = vld [vmem:[#allocation2 + $0x10] sm:$0xff]
        %v842 = vld [vmem:[#allocation2 + $0x18] sm:$0xff]
        %v843 = vld [vmem:[#allocation2 + $0x20] sm:$0xff]
        %v844 = vld [vmem:[#allocation2 + $0x28] sm:$0xff]
        %v845 = vld [vmem:[#allocation2 + $0x30] sm:$0xff]
        %v846 = vld [vmem:[#allocation2 + $0x38] sm:$0xff]
        %v847 = vld [vmem:[#allocation2 + $0x40] sm:$0xff]
        %v848 = vld [vmem:[#allocation2 + $0x48] sm:$0xff]
        %v849 = vld [vmem:[#allocation2 + $0x50] sm:$0xff]
        %v850 = vld [vmem:[#allocation2 + $0x58] sm:$0xff]
        %v851 = vld [vmem:[#allocation2 + $0x60] sm:$0xff]
        %v852 = vld [vmem:[#allocation2 + $0x68] sm:$0xff]
        %v853 = vld [vmem:[#allocation2 + $0x70] sm:$0xff]
        %v854 = vld [vmem:[#allocation2 + $0x78] sm:$0xff]
        %v855 = vld [vmem:[#allocation2 + $0x80] sm:$0xff]
        %v856 = vld [vmem:[#allocation2 + $0x88] sm:$0xff]
        %v857 = vld [vmem:[#allocation2 + $0x90] sm:$0xff]
        %v858 = vld [vmem:[#allocation2 + $0x98] sm:$0xff]
        %v859 = vld [vmem:[#allocation2 + $0xa0] sm:$0xff]
        %v860 = vld [vmem:[#allocation2 + $0xa8] sm:$0xff]
        %v861 = vld [vmem:[#allocation2 + $0xb0] sm:$0xff]
        %v862 = vld [vmem:[#allocation2 + $0xb8] sm:$0xff]
        %v863 = vld [vmem:[#allocation2 + $0xc0] sm:$0xff]
        %v864 = vld [vmem:[#allocation2 + $0xc8] sm:$0xff]
        %v865 = vld [vmem:[#allocation2 + $0xd0] sm:$0xff]
        %v866 = vld [vmem:[#allocation2 + $0xd8] sm:$0xff]
        %v867 = vld [vmem:[#allocation2 + $0xe0] sm:$0xff]
        %v868 = vld [vmem:[#allocation2 + $0xe8] sm:$0xff]
        %v869 = vld [vmem:[#allocation2 + $0xf0] sm:$0xff]
        %v870 = vld [vmem:[#allocation2 + $0xf8] sm:$0xff]
        %v871 = vld [vmem:[%s403] sm:$0x1]
        %v873 = vperm.slane %v871, 0
        %v875 = vmul.f32 %v839, %v873
        %v876 = vmul.f32 %v840, %v873
        %v877 = vmul.f32 %v841, %v873
        %v878 = vmul.f32 %v842, %v873
        %v879 = vmul.f32 %v843, %v873
        %v880 = vmul.f32 %v844, %v873
        %v881 = vmul.f32 %v845, %v873
        %v882 = vmul.f32 %v846, %v873
        %v883 = vmul.f32 %v847, %v873
        %v884 = vmul.f32 %v848, %v873
        %v885 = vmul.f32 %v849, %v873
        %v886 = vmul.f32 %v850, %v873
        %v887 = vmul.f32 %v851, %v873
        %v888 = vmul.f32 %v852, %v873
        %v889 = vmul.f32 %v853, %v873
        %v890 = vmul.f32 %v854, %v873
        %v891 = vmul.f32 %v855, %v873
        %v892 = vmul.f32 %v856, %v873
        %v893 = vmul.f32 %v857, %v873
        %v894 = vmul.f32 %v858, %v873
        %v895 = vmul.f32 %v859, %v873
        %v896 = vmul.f32 %v860, %v873
        %v897 = vmul.f32 %v861, %v873
        %v898 = vmul.f32 %v862, %v873
        %v899 = vmul.f32 %v863, %v873
        %v900 = vmul.f32 %v864, %v873
        %v901 = vmul.f32 %v865, %v873
        %v902 = vmul.f32 %v866, %v873
        %v903 = vmul.f32 %v867, %v873
        %v904 = vmul.f32 %v868, %v873
        %v905 = vmul.f32 %v869, %v873
        %v906 = vmul.f32 %v870, %v873
        %v907 = vld [vmem:[%s406] sm:$0x1]
        %v909 = vperm.slane %v907, 0
        %v911 = vadd.f32 %v875, %v909
        %v912 = vadd.f32 %v876, %v909
        %v913 = vadd.f32 %v877, %v909
        %v914 = vadd.f32 %v878, %v909
        %v915 = vadd.f32 %v879, %v909
        %v916 = vadd.f32 %v880, %v909
        %v917 = vadd.f32 %v881, %v909
        %v918 = vadd.f32 %v882, %v909
        %v919 = vadd.f32 %v883, %v909
        %v920 = vadd.f32 %v884, %v909
        %v921 = vadd.f32 %v885, %v909
        %v922 = vadd.f32 %v886, %v909
        %v923 = vadd.f32 %v887, %v909
        %v924 = vadd.f32 %v888, %v909
        %v925 = vadd.f32 %v889, %v909
        %v926 = vadd.f32 %v890, %v909
        %v927 = vadd.f32 %v891, %v909
        %v928 = vadd.f32 %v892, %v909
        %v929 = vadd.f32 %v893, %v909
        %v930 = vadd.f32 %v894, %v909
        %v931 = vadd.f32 %v895, %v909
        %v932 = vadd.f32 %v896, %v909
        %v933 = vadd.f32 %v897, %v909
        %v934 = vadd.f32 %v898, %v909
        %v935 = vadd.f32 %v899, %v909
        %v936 = vadd.f32 %v900, %v909
        %v937 = vadd.f32 %v901, %v909
        %v938 = vadd.f32 %v902, %v909
        %v939 = vadd.f32 %v903, %v909
        %v940 = vadd.f32 %v904, %v909
        %v941 = vadd.f32 %v905, %v909
        %v942 = vadd.f32 %v906, %v909
        %943 = vst [vmem:[%s420] sm:$0xff] %v911
        %944 = vst [vmem:[%s420 + $0x8] sm:$0xff] %v912
        %945 = vst [vmem:[%s420 + $0x10] sm:$0xff] %v913
        %946 = vst [vmem:[%s420 + $0x18] sm:$0xff] %v914
        %947 = vst [vmem:[%s420 + $0x20] sm:$0xff] %v915
        %948 = vst [vmem:[%s420 + $0x28] sm:$0xff] %v916
        %949 = vst [vmem:[%s420 + $0x30] sm:$0xff] %v917
        %950 = vst [vmem:[%s420 + $0x38] sm:$0xff] %v918
        %951 = vst [vmem:[%s420 + $0x40] sm:$0xff] %v919
        %952 = vst [vmem:[%s420 + $0x48] sm:$0xff] %v920
        %953 = vst [vmem:[%s420 + $0x50] sm:$0xff] %v921
        %954 = vst [vmem:[%s420 + $0x58] sm:$0xff] %v922
        %955 = vst [vmem:[%s420 + $0x60] sm:$0xff] %v923
        %956 = vst [vmem:[%s420 + $0x68] sm:$0xff] %v924
        %957 = vst [vmem:[%s420 + $0x70] sm:$0xff] %v925
        %958 = vst [vmem:[%s420 + $0x78] sm:$0xff] %v926
        %959 = vst [vmem:[%s420 + $0x80] sm:$0xff] %v927
        %960 = vst [vmem:[%s420 + $0x88] sm:$0xff] %v928
        %961 = vst [vmem:[%s420 + $0x90] sm:$0xff] %v929
        %962 = vst [vmem:[%s420 + $0x98] sm:$0xff] %v930
        %963 = vst [vmem:[%s420 + $0xa0] sm:$0xff] %v931
        %964 = vst [vmem:[%s420 + $0xa8] sm:$0xff] %v932
        %965 = vst [vmem:[%s420 + $0xb0] sm:$0xff] %v933
        %966 = vst [vmem:[%s420 + $0xb8] sm:$0xff] %v934
        %967 = vst [vmem:[%s420 + $0xc0] sm:$0xff] %v935
        %968 = vst [vmem:[%s420 + $0xc8] sm:$0xff] %v936
        %969 = vst [vmem:[%s420 + $0xd0] sm:$0xff] %v937
        %970 = vst [vmem:[%s420 + $0xd8] sm:$0xff] %v938
        %971 = vst [vmem:[%s420 + $0xe0] sm:$0xff] %v939
        %972 = vst [vmem:[%s420 + $0xe8] sm:$0xff] %v940
        %973 = vst [vmem:[%s420 + $0xf0] sm:$0xff] %v941
        %974 = vst [vmem:[%s420 + $0xf8] sm:$0xff] %v942
        %v975 = vld [vmem:[%s409] sm:$0x1]
        %v977 = vperm.slane %v975, 0
        %v979 = vmul.f32 %v911, %v977
        %v980 = vmul.f32 %v912, %v977
        %v981 = vmul.f32 %v913, %v977
        %v982 = vmul.f32 %v914, %v977
        %v983 = vmul.f32 %v915, %v977
        %v984 = vmul.f32 %v916, %v977
        %v985 = vmul.f32 %v917, %v977
        %v986 = vmul.f32 %v918, %v977
        %v987 = vmul.f32 %v919, %v977
        %v988 = vmul.f32 %v920, %v977
        %v989 = vmul.f32 %v921, %v977
        %v990 = vmul.f32 %v922, %v977
        %v991 = vmul.f32 %v923, %v977
        %v992 = vmul.f32 %v924, %v977
        %v993 = vmul.f32 %v925, %v977
        %v994 = vmul.f32 %v926, %v977
        %v995 = vmul.f32 %v927, %v977
        %v996 = vmul.f32 %v928, %v977
        %v997 = vmul.f32 %v929, %v977
        %v998 = vmul.f32 %v930, %v977
        %v999 = vmul.f32 %v931, %v977
        %v1000 = vmul.f32 %v932, %v977
        %v1001 = vmul.f32 %v933, %v977
        %v1002 = vmul.f32 %v934, %v977
        %v1003 = vmul.f32 %v935, %v977
        %v1004 = vmul.f32 %v936, %v977
        %v1005 = vmul.f32 %v937, %v977
        %v1006 = vmul.f32 %v938, %v977
        %v1007 = vmul.f32 %v939, %v977
        %v1008 = vmul.f32 %v940, %v977
        %v1009 = vmul.f32 %v941, %v977
        %v1010 = vmul.f32 %v942, %v977
        %v1011 = vld [vmem:[%s412] sm:$0x1]
        %v1013 = vperm.slane %v1011, 0
        %v1015 = vadd.f32 %v979, %v1013
        %v1016 = vadd.f32 %v980, %v1013
        %v1017 = vadd.f32 %v981, %v1013
        %v1018 = vadd.f32 %v982, %v1013
        %v1019 = vadd.f32 %v983, %v1013
        %v1020 = vadd.f32 %v984, %v1013
        %v1021 = vadd.f32 %v985, %v1013
        %v1022 = vadd.f32 %v986, %v1013
        %v1023 = vadd.f32 %v987, %v1013
        %v1024 = vadd.f32 %v988, %v1013
        %v1025 = vadd.f32 %v989, %v1013
        %v1026 = vadd.f32 %v990, %v1013
        %v1027 = vadd.f32 %v991, %v1013
        %v1028 = vadd.f32 %v992, %v1013
        %v1029 = vadd.f32 %v993, %v1013
        %v1030 = vadd.f32 %v994, %v1013
        %v1031 = vadd.f32 %v995, %v1013
        %v1032 = vadd.f32 %v996, %v1013
        %v1033 = vadd.f32 %v997, %v1013
        %v1034 = vadd.f32 %v998, %v1013
        %v1035 = vadd.f32 %v999, %v1013
        %v1036 = vadd.f32 %v1000, %v1013
        %v1037 = vadd.f32 %v1001, %v1013
        %v1038 = vadd.f32 %v1002, %v1013
        %v1039 = vadd.f32 %v1003, %v1013
        %v1040 = vadd.f32 %v1004, %v1013
        %v1041 = vadd.f32 %v1005, %v1013
        %v1042 = vadd.f32 %v1006, %v1013
        %v1043 = vadd.f32 %v1007, %v1013
        %v1044 = vadd.f32 %v1008, %v1013
        %v1045 = vadd.f32 %v1009, %v1013
        %v1046 = vadd.f32 %v1010, %v1013
        %v1047 = vmax.f32 %v1015, 0.0
        %v1048 = vmax.f32 %v1016, 0.0
        %v1049 = vmax.f32 %v1017, 0.0
        %v1050 = vmax.f32 %v1018, 0.0
        %v1051 = vmax.f32 %v1019, 0.0
        %v1052 = vmax.f32 %v1020, 0.0
        %v1053 = vmax.f32 %v1021, 0.0
        %v1054 = vmax.f32 %v1022, 0.0
        %v1055 = vmax.f32 %v1023, 0.0
        %v1056 = vmax.f32 %v1024, 0.0
        %v1057 = vmax.f32 %v1025, 0.0
        %v1058 = vmax.f32 %v1026, 0.0
        %v1059 = vmax.f32 %v1027, 0.0
        %v1060 = vmax.f32 %v1028, 0.0
        %v1061 = vmax.f32 %v1029, 0.0
        %v1062 = vmax.f32 %v1030, 0.0
        %v1063 = vmax.f32 %v1031, 0.0
        %v1064 = vmax.f32 %v1032, 0.0
        %v1065 = vmax.f32 %v1033, 0.0
        %v1066 = vmax.f32 %v1034, 0.0
        %v1067 = vmax.f32 %v1035, 0.0
        %v1068 = vmax.f32 %v1036, 0.0
        %v1069 = vmax.f32 %v1037, 0.0
        %v1070 = vmax.f32 %v1038, 0.0
        %v1071 = vmax.f32 %v1039, 0.0
        %v1072 = vmax.f32 %v1040, 0.0
        %v1073 = vmax.f32 %v1041, 0.0
        %v1074 = vmax.f32 %v1042, 0.0
        %v1075 = vmax.f32 %v1043, 0.0
        %v1076 = vmax.f32 %v1044, 0.0
        %v1077 = vmax.f32 %v1045, 0.0
        %v1078 = vmax.f32 %v1046, 0.0
        %v1079 = vpack.c.bf16 %v1047, %v1047
        %v1080 = vpack.c.bf16 %v1048, %v1048
        %v1081 = vpack.c.bf16 %v1049, %v1049
        %v1082 = vpack.c.bf16 %v1050, %v1050
        %v1083 = vpack.c.bf16 %v1051, %v1051
        %v1084 = vpack.c.bf16 %v1052, %v1052
        %v1085 = vpack.c.bf16 %v1053, %v1053
        %v1086 = vpack.c.bf16 %v1054, %v1054
        %v1087 = vpack.c.bf16 %v1055, %v1055
        %v1088 = vpack.c.bf16 %v1056, %v1056
        %v1089 = vpack.c.bf16 %v1057, %v1057
        %v1090 = vpack.c.bf16 %v1058, %v1058
        %v1091 = vpack.c.bf16 %v1059, %v1059
        %v1092 = vpack.c.bf16 %v1060, %v1060
        %v1093 = vpack.c.bf16 %v1061, %v1061
        %v1094 = vpack.c.bf16 %v1062, %v1062
        %v1095 = vpack.c.bf16 %v1063, %v1063
        %v1096 = vpack.c.bf16 %v1064, %v1064
        %v1097 = vpack.c.bf16 %v1065, %v1065
        %v1098 = vpack.c.bf16 %v1066, %v1066
        %v1099 = vpack.c.bf16 %v1067, %v1067
        %v1100 = vpack.c.bf16 %v1068, %v1068
        %v1101 = vpack.c.bf16 %v1069, %v1069
        %v1102 = vpack.c.bf16 %v1070, %v1070
        %v1103 = vpack.c.bf16 %v1071, %v1071
        %v1104 = vpack.c.bf16 %v1072, %v1072
        %v1105 = vpack.c.bf16 %v1073, %v1073
        %v1106 = vpack.c.bf16 %v1074, %v1074
        %v1107 = vpack.c.bf16 %v1075, %v1075
        %v1108 = vpack.c.bf16 %v1076, %v1076
        %v1109 = vpack.c.bf16 %v1077, %v1077
        %v1110 = vpack.c.bf16 %v1078, %v1078
        %1111 = vst [vmem:[%s429] sm:$0xf] %v1079
        %1112 = vst [vmem:[%s429 + $0x4] sm:$0xf] %v1080
        %1113 = vst [vmem:[%s429 + $0x8] sm:$0xf] %v1081
        %1114 = vst [vmem:[%s429 + $0xc] sm:$0xf] %v1082
        %1115 = vst [vmem:[%s429 + $0x10] sm:$0xf] %v1083
        %1116 = vst [vmem:[%s429 + $0x14] sm:$0xf] %v1084
        %1117 = vst [vmem:[%s429 + $0x18] sm:$0xf] %v1085
        %1118 = vst [vmem:[%s429 + $0x1c] sm:$0xf] %v1086
        %1119 = vst [vmem:[%s429 + $0x20] sm:$0xf] %v1087
        %1120 = vst [vmem:[%s429 + $0x24] sm:$0xf] %v1088
        %1121 = vst [vmem:[%s429 + $0x28] sm:$0xf] %v1089
        %1122 = vst [vmem:[%s429 + $0x2c] sm:$0xf] %v1090
        %1123 = vst [vmem:[%s429 + $0x30] sm:$0xf] %v1091
        %1124 = vst [vmem:[%s429 + $0x34] sm:$0xf] %v1092
        %1125 = vst [vmem:[%s429 + $0x38] sm:$0xf] %v1093
        %1126 = vst [vmem:[%s429 + $0x3c] sm:$0xf] %v1094
        %1127 = vst [vmem:[%s429 + $0x40] sm:$0xf] %v1095
        %1128 = vst [vmem:[%s429 + $0x44] sm:$0xf] %v1096
        %1129 = vst [vmem:[%s429 + $0x48] sm:$0xf] %v1097
        %1130 = vst [vmem:[%s429 + $0x4c] sm:$0xf] %v1098
        %1131 = vst [vmem:[%s429 + $0x50] sm:$0xf] %v1099
        %1132 = vst [vmem:[%s429 + $0x54] sm:$0xf] %v1100
        %1133 = vst [vmem:[%s429 + $0x58] sm:$0xf] %v1101
        %1134 = vst [vmem:[%s429 + $0x5c] sm:$0xf] %v1102
        %1135 = vst [vmem:[%s429 + $0x60] sm:$0xf] %v1103
        %1136 = vst [vmem:[%s429 + $0x64] sm:$0xf] %v1104
        %1137 = vst [vmem:[%s429 + $0x68] sm:$0xf] %v1105
        %1138 = vst [vmem:[%s429 + $0x6c] sm:$0xf] %v1106
        %1139 = vst [vmem:[%s429 + $0x70] sm:$0xf] %v1107
        %1140 = vst [vmem:[%s429 + $0x74] sm:$0xf] %v1108
        %1141 = vst [vmem:[%s429 + $0x78] sm:$0xf] %v1109
        %1142 = vst [vmem:[%s429 + $0x7c] sm:$0xf] %v1110
      $region52: #{_lambda_.10} parent=43 // pred_fallthru
        _
      %s1143 = smul.u32 32, %s24
      %p1144 = scmp.lt.s32.totalorder %s1143, 63
      %s1145 = scalar_select %p1144, %s1143, 63
      %p1146 = scmp.lt.s32.totalorder %s25, 0
      %s1147 = scalar_select %p1146, %s25, 0
      %s1148 = sadd.s32 %s1147, %s1145
      %s1149 = smul.addr %s1148, 8
      %s1150 = scalar_lea.vmem %s6, %s1149
      %s1151 = smul.u32 32, %s24
      %p1152 = scmp.lt.s32.totalorder %s1151, 63
      %s1153 = scalar_select %p1152, %s1151, 63
      %p1154 = scmp.lt.s32.totalorder %s25, 0
      %s1155 = scalar_select %p1154, %s25, 0
      %s1156 = sadd.s32 %s1155, %s1153
      %s1157 = smul.addr %s1156, 4
      %s1158 = scalar_lea.vmem %s7, %s1157
      // Predicated region
      $region53: #{_lambda_.10} parent=43 // pred_check
        %p1159 = pneg %p218
      $region54: #{_lambda_.10} parent=43 // pred_check_branch
        %1161 = sbr.rel (%p1159) target = $region56
      $region55: #{_lambda_.10} parent=43 // pred_region
        %s1162 = smul.u32 32, %s24
      $region56: #{_lambda_.10} parent=43 // pred_fallthru
        _
      // Predicated region
      $region57: #{_lambda_.10} parent=43 // pred_check
        %p1163 = pneg %p246
      $region58: #{_lambda_.10} parent=43 // pred_check_branch
        %1165 = sbr.rel (%p1163) target = $region60
      $region59: #{_lambda_.10} parent=43 // pred_region
        %s1166 = smul.u32 32, %s24
      $region60: #{_lambda_.10} parent=43 // pred_fallthru
        _
    $region44: #{_lambda_.10} parent=5 // pred_fallthru
      _
    %p1167 = scmp.le.s32.totalorder 2, %s14
    // Predicated region
    $region61: #{_lambda_.10} parent=5 // pred_check
      %p1168 = pneg %p1167
    $region62: #{_lambda_.10} parent=5 // pred_check_branch
      %1170 = sbr.rel (%p1168) target = $region64
    $region63: #{_lambda_.10} parent=5 // pred_region
      %s1171 = ssub.s32 %s14, 2
      // Predicated region
      $region65: #{_lambda_.10} parent=63 // pred_check
        %p1172 = pneg %p224
      $region66: #{_lambda_.10} parent=63 // pred_check_branch
        %1174 = sbr.rel (%p1172) target = $region68
      $region67: #{_lambda_.10} parent=63 // pred_region
        %s1175 = smul.u32 32, %s27
        %p1176 = scmp.lt.s32.totalorder %s1175, 63
        %s1177 = scalar_select %p1176, %s1175, 63
        %p1178 = scmp.lt.s32.totalorder %s28, 0
        %s1179 = scalar_select %p1178, %s28, 0
        %s1180 = sadd.s32 %s1179, %s1177
        %s1181 = smul.addr %s1180, 8
        %s1182 = scalar_lea.vmem %s6, %s1181
      $region68: #{_lambda_.10} parent=63 // pred_fallthru
        _
      // Predicated region
      $region69: #{_lambda_.10} parent=63 // pred_check
        %p1183 = pneg %p252
      $region70: #{_lambda_.10} parent=63 // pred_check_branch
        %1185 = sbr.rel (%p1183) target = $region72
      $region71: #{_lambda_.10} parent=63 // pred_region
        %s1186 = smul.u32 32, %s27
        %p1187 = scmp.lt.s32.totalorder %s1186, 63
        %s1188 = scalar_select %p1187, %s1186, 63
        %p1189 = scmp.lt.s32.totalorder %s28, 0
        %s1190 = scalar_select %p1189, %s28, 0
        %s1191 = sadd.s32 %s1190, %s1188
        %s1192 = smul.addr %s1191, 4
        %s1193 = scalar_lea.vmem %s7, %s1192
      $region72: #{_lambda_.10} parent=63 // pred_fallthru
        _
    $region64: #{_lambda_.10} parent=5 // pred_fallthru
      _
  $region6: #{_lambda_.10} parent=0 // loop_footer
    %s18 = sadd.s32 1, %s14
  $region7: #{_lambda_.10} parent=0 // loop_footer_branch
    %13 = sbr.rel target = $region3
  $region8: #{_lambda_.10} parent=0 // loop_exit
    _

// kernel: _lambda_.11
$region0: #{_lambda_.11}
  #allocation0 [shape = 'u32[]', space=smem, size = 0x4, offset = 0x4, fixed_abs, tag = 'smem constant byte address 0x4 - core index']
  #allocation1 [shape = 'u32[72,128]{1,0:T(1,128)}', space=vmem, size = 0x9000, scoped, tag = 'internal scratch']
  #allocation2 [shape = 'f32[256,128]{1,0:T(8,128)}', space=vmem, size = 0x20000, scoped, tag = 'scratch operand']
  %s0 = inlined_call_operand.vmem [shape: bf16[512,1152], index: 0, kind: input, shape index: {}]
  %s1 = inlined_call_operand.vmem [shape: bf16[1152,128], index: 1, kind: input, shape index: {}]
  %s2 = inlined_call_operand.vmem [shape: f32[1,128], index: 2, kind: input, shape index: {}]
  %s3 = inlined_call_operand.vmem [shape: f32[1,128], index: 3, kind: input, shape index: {}]
  %s4 = inlined_call_operand.vmem [shape: bf16[512,128], index: 4, kind: output, shape index: {}]
  %s5 = sld [smem:[#allocation0]]
  $region83: #{_lambda_.11} parent=0
    _
  %s7 = ssub.s32 1, %s5
  %s8 = scalar_select 0, %s7, %s5
  $region1: #{_lambda_.11} parent=0
    #allocation3 [shape = 'u8[393216]{0}', space=vmem, size = 0x60000, scoped, tag = 'input window, operand 0']
    loop: start=0, step=1, limit=8
    $region2: #{_lambda_.11} parent=1 // loop_pre_header
      _
    $region3: #{_lambda_.11} parent=1 // loop_header
      %s10 = sphi 0, %s14
      %p11 = scmp.ge.s32.totalorder %s10, 8
      %s17 = sphi 0, %s36
      %s18 = sphi 0, %s32
      %s19 = sphi 0, %s28
      %s20 = sphi 0, %s17
      %s21 = sphi 0, %s18
      %s22 = sphi 0, %s19
      %s23 = sphi 0, %s20
      %s24 = sphi 0, %s21
      %s25 = sphi 0, %s22
      %s41 = sphi 0, %s43
      %s44 = sphi 0, %s41
      %s45 = sphi 0, %s44
      %s61 = sphi 0, %s45
      %s69 = sphi 0, %s71
      %s72 = sphi 0, %s69
      %s73 = sphi 0, %s72
      %s89 = sphi 0, %s73
      %s95 = sphi 0, %s97
      %s98 = sphi 0, %s95
      %s99 = sphi 0, %s98
      %s115 = sphi 0, %s99
      %s121 = sphi 0, %s123
      %s124 = sphi 0, %s121
      %s125 = sphi 0, %s124
      %s141 = sphi 0, %s125
      %s149 = sphi 0, %s151
      %s152 = sphi 0, %s149
      %s153 = sphi 0, %s152
      %s169 = sphi 0, %s153
    $region4: #{_lambda_.11} parent=1 // loop_header_branch
      %13 = sbr.rel (%p11) target = $region8
    $region5: #{_lambda_.11} parent=1 // loop_body
      %s15 = ssub.s32 %s10, 1
      %s16 = ssub.s32 %s10, 2
      %s26 = sadd.s32 1, %s19
      %p27 = scmp.ge.s32.totalorder %s26, 3
      %s28 = scalar_select %p27, 0, %s26
      %s29 = sadd.s32 1, %s18
      %s30 = scalar_select %p27, %s29, %s18
      %p31 = scmp.ge.s32.totalorder %s30, 1
      %s32 = scalar_select %p31, 0, %s30
      %s33 = sadd.s32 1, %s17
      %s34 = scalar_select %p31, %s33, %s17
      %p35 = scmp.ge.s32.totalorder %s34, 2
      %s36 = scalar_select %p35, 0, %s34
      %s37 = ssub.s32 %s17, %s36
      %s38 = ssub.s32 %s19, %s28
      %s39 = sor.u32 %s37, %s38
      %p40 = scmp.eq.s32.totalorder %s39, 0
      %s42 = sadd.s32 %s41, 1
      %s43 = scalar_select %p40, %s41, %s42
      %p46 = pneg %p40
      %p47 = scmp.eq.s32.totalorder %s10, 5
      %p48 = por %p46, %p47
      %p49 = scmp.ne.s32.totalorder %s41, %s44
      %p50 = scmp.eq.s32.totalorder %s10, 0
      %p51 = por %p49, %p50
      %p52 = scmp.ne.s32.totalorder %s41, %s44
      %p53 = scmp.eq.s32.totalorder %s15, 5
      %p54 = por %p52, %p53
      %p55 = scmp.ne.s32.totalorder %s44, %s45
      %p56 = scmp.eq.s32.totalorder %s15, 0
      %p57 = por %p55, %p56
      %p58 = scmp.ne.s32.totalorder %s44, %s45
      %p59 = scmp.eq.s32.totalorder %s16, 5
      %p60 = por %p58, %p59
      %p62 = scmp.ne.s32.totalorder %s45, %s61
      %p63 = scmp.eq.s32.totalorder %s16, 0
      %p64 = por %p62, %p63
      %s65 = ssub.s32 %s19, %s28
      %s66 = ssub.s32 %s18, %s32
      %s67 = sor.u32 %s65, %s66
      %p68 = scmp.eq.s32.totalorder %s67, 0
      %s70 = sadd.s32 %s69, 1
      %s71 = scalar_select %p68, %s69, %s70
      %p74 = pneg %p68
      %p75 = scmp.eq.s32.totalorder %s10, 5
      %p76 = por %p74, %p75
      %p77 = scmp.ne.s32.totalorder %s69, %s72
      %p78 = scmp.eq.s32.totalorder %s10, 0
      %p79 = por %p77, %p78
      %p80 = scmp.ne.s32.totalorder %s69, %s72
      %p81 = scmp.eq.s32.totalorder %s15, 5
      %p82 = por %p80, %p81
      %p83 = scmp.ne.s32.totalorder %s72, %s73
      %p84 = scmp.eq.s32.totalorder %s15, 0
      %p85 = por %p83, %p84
      %p86 = scmp.ne.s32.totalorder %s72, %s73
      %p87 = scmp.eq.s32.totalorder %s16, 5
      %p88 = por %p86, %p87
      %p90 = scmp.ne.s32.totalorder %s73, %s89
      %p91 = scmp.eq.s32.totalorder %s16, 0
      %p92 = por %p90, %p91
      %s93 = ssub.s32 %s18, %s32
      %p94 = scmp.eq.s32.totalorder %s93, 0
      %s96 = sadd.s32 %s95, 1
      %s97 = scalar_select %p94, %s95, %s96
      %p100 = pneg %p94
      %p101 = scmp.eq.s32.totalorder %s10, 5
      %p102 = por %p100, %p101
      %p103 = scmp.ne.s32.totalorder %s95, %s98
      %p104 = scmp.eq.s32.totalorder %s10, 0
      %p105 = por %p103, %p104
      %p106 = scmp.ne.s32.totalorder %s95, %s98
      %p107 = scmp.eq.s32.totalorder %s15, 5
      %p108 = por %p106, %p107
      %p109 = scmp.ne.s32.totalorder %s98, %s99
      %p110 = scmp.eq.s32.totalorder %s15, 0
      %p111 = por %p109, %p110
      %p112 = scmp.ne.s32.totalorder %s98, %s99
      %p113 = scmp.eq.s32.totalorder %s16, 5
      %p114 = por %p112, %p113
      %p116 = scmp.ne.s32.totalorder %s99, %s115
      %p117 = scmp.eq.s32.totalorder %s16, 0
      %p118 = por %p116, %p117
      %s119 = ssub.s32 %s18, %s32
      %p120 = scmp.eq.s32.totalorder %s119, 0
      %s122 = sadd.s32 %s121, 1
      %s123 = scalar_select %p120, %s121, %s122
      %p126 = pneg %p120
      %p127 = scmp.eq.s32.totalorder %s10, 5
      %p128 = por %p126, %p127
      %p129 = scmp.ne.s32.totalorder %s121, %s124
      %p130 = scmp.eq.s32.totalorder %s10, 0
      %p131 = por %p129, %p130
      %p132 = scmp.ne.s32.totalorder %s121, %s124
      %p133 = scmp.eq.s32.totalorder %s15, 5
      %p134 = por %p132, %p133
      %p135 = scmp.ne.s32.totalorder %s124, %s125
      %p136 = scmp.eq.s32.totalorder %s15, 0
      %p137 = por %p135, %p136
      %p138 = scmp.ne.s32.totalorder %s124, %s125
      %p139 = scmp.eq.s32.totalorder %s16, 5
      %p140 = por %p138, %p139
      %p142 = scmp.ne.s32.totalorder %s125, %s141
      %p143 = scmp.eq.s32.totalorder %s16, 0
      %p144 = por %p142, %p143
      %s145 = ssub.s32 %s17, %s36
      %s146 = ssub.s32 %s18, %s32
      %s147 = sor.u32 %s145, %s146
      %p148 = scmp.eq.s32.totalorder %s147, 0
      %s150 = sadd.s32 %s149, 1
      %s151 = scalar_select %p148, %s149, %s150
      %p154 = pneg %p148
      %p155 = scmp.eq.s32.totalorder %s10, 5
      %p156 = por %p154, %p155
      %p157 = scmp.ne.s32.totalorder %s149, %s152
      %p158 = scmp.eq.s32.totalorder %s10, 0
      %p159 = por %p157, %p158
      %p160 = scmp.ne.s32.totalorder %s149, %s152
      %p161 = scmp.eq.s32.totalorder %s15, 5
      %p162 = por %p160, %p161
      %p163 = scmp.ne.s32.totalorder %s152, %s153
      %p164 = scmp.eq.s32.totalorder %s15, 0
      %p165 = por %p163, %p164
      %p166 = scmp.ne.s32.totalorder %s152, %s153
      %p167 = scmp.eq.s32.totalorder %s16, 5
      %p168 = por %p166, %p167
      %p170 = scmp.ne.s32.totalorder %s153, %s169
      %p171 = scmp.eq.s32.totalorder %s16, 0
      %p172 = por %p170, %p171
      %p173 = scmp.le.s32.totalorder 1, %s10
      %p174 = scmp.lt.s32.totalorder %s10, 7
      %p175 = pnand %p173, %p174
      %p176 = pneg %p175
      // Predicated region
      $region9: #{_lambda_.11} parent=5 // pred_check
        _
      $region10: #{_lambda_.11} parent=5 // pred_check_branch
        %178 = sbr.rel (%p175) target = $region12
      $region11: #{_lambda_.11} parent=5 // pred_region
        %s179 = ssub.s32 %s10, 1
        // Predicated region
        $region13: #{_lambda_.11} parent=11 // pred_check
          %p180 = pneg %p111
        $region14: #{_lambda_.11} parent=11 // pred_check_branch
          %182 = sbr.rel (%p180) target = $region16
        $region15: #{_lambda_.11} parent=11 // pred_region
          %p183 = scmp.lt.s32.totalorder %s21, 0
          %s184 = scalar_select %p183, %s21, 0
          %s185 = scalar_lea.vmem %s2, %s184
        $region16: #{_lambda_.11} parent=11 // pred_fallthru
          _
        // Predicated region
        $region17: #{_lambda_.11} parent=11 // pred_check
          %p186 = pneg %p137
        $region18: #{_lambda_.11} parent=11 // pred_check_branch
          %188 = sbr.rel (%p186) target = $region20
        $region19: #{_lambda_.11} parent=11 // pred_region
          %p189 = scmp.lt.s32.totalorder %s21, 0
          %s190 = scalar_select %p189, %s21, 0
          %s191 = scalar_lea.vmem %s3, %s190
        $region20: #{_lambda_.11} parent=11 // pred_fallthru
          _
      $region12: #{_lambda_.11} parent=5 // pred_fallthru
        _
      %p192 = scmp.lt.s32.totalorder %s10, 6
      // Predicated region
      $region21: #{_lambda_.11} parent=5 // pred_check
        %p193 = pneg %p192
      $region22: #{_lambda_.11} parent=5 // pred_check_branch
        %195 = sbr.rel (%p193) target = $region24
      $region23: #{_lambda_.11} parent=5 // pred_region
        // Predicated region
        $region25: #{_lambda_.11} parent=23 // pred_check
          %p196 = pneg %p51
        $region26: #{_lambda_.11} parent=23 // pred_check_branch
          %198 = sbr.rel (%p196) target = $region28
        $region27: #{_lambda_.11} parent=23 // pred_region
          %s199 = sand.u32 %s41, 1
          %s200 = sand.u32 %s41, 1
          %s201 = smul.addr %s200, 384
          %s202 = scalar_lea.vmem [#allocation3], %s201
          %s203 = smul.u32 32, %s17
          %s204 = smul.u32 3, %s19
          %s205 = smul.addr %s203, 9
          %s206 = sadd.s32 %s204, %s205
          %s207 = smul.addr %s206, 4
          %s208 = scalar_lea.vmem %s0, %s207
          // Predicated region
          $region29: #{_lambda_.11} parent=27 // pred_check
            _
          $region30: #{_lambda_.11} parent=27 // pred_check_branch
            %210 = sbr.rel (0) target = $region32
          $region31: #{_lambda_.11} parent=27 // pred_region
            // Predicated region
            $region33: #{_lambda_.11} parent=31 // pred_check
              _
            $region34: #{_lambda_.11} parent=31 // pred_check_branch
              %212 = sbr.rel (0) target = $region36
            $region35: #{_lambda_.11} parent=31 // pred_region
              %s213 = scalar_lea.vmem %s208, 8
              %s214 = scalar_lea.vmem %s202, 8 [#allocation3]
              loop: start=0, step=1, limit=1
              $region37: #{_lambda_.11} parent=35 // loop_pre_header
                _
              $region38: #{_lambda_.11} parent=35 // loop_header
                %s216 = sphi 0, %s220
                %p217 = scmp.ge.s32.totalorder %s216, 1
                %s221 = sphi %s208, %s208
                %s222 = sphi %s202, %s202
              $region39: #{_lambda_.11} parent=35 // loop_header_branch
                %219 = sbr.rel (%p217) target = $region43
              $region40: #{_lambda_.11} parent=35 // loop_body
                %v223 = vld [vmem:[%s221] sm:$0xff]
                %224 = vst [vmem:[%s222] sm:$0xff] %v223
                %v225 = vld [vmem:[%s221 + $0x24] sm:$0xff]
                %226 = vst [vmem:[%s222 + $0xc] sm:$0xff] %v225
                %v227 = vld [vmem:[%s221 + $0x48] sm:$0xff]
                %228 = vst [vmem:[%s222 + $0x18] sm:$0xff] %v227
                %v229 = vld [vmem:[%s221 + $0x6c] sm:$0xff]
                %230 = vst [vmem:[%s222 + $0x24] sm:$0xff] %v229
                %v231 = vld [vmem:[%s221 + $0x90] sm:$0xff]
                %232 = vst [vmem:[%s222 + $0x30] sm:$0xff] %v231
                %v233 = vld [vmem:[%s221 + $0xb4] sm:$0xff]
                %234 = vst [vmem:[%s222 + $0x3c] sm:$0xff] %v233
                %v235 = vld [vmem:[%s221 + $0xd8] sm:$0xff]
                %236 = vst [vmem:[%s222 + $0x48] sm:$0xff] %v235
                %v237 = vld [vmem:[%s221 + $0xfc] sm:$0xff]
                %238 = vst [vmem:[%s222 + $0x54] sm:$0xff] %v237
                %v239 = vld [vmem:[%s221 + $0x120] sm:$0xff]
                %240 = vst [vmem:[%s222 + $0x60] sm:$0xff] %v239
                %v241 = vld [vmem:[%s221 + $0x144] sm:$0xff]
                %242 = vst [vmem:[%s222 + $0x6c] sm:$0xff] %v241
                %v243 = vld [vmem:[%s221 + $0x168] sm:$0xff]
                %244 = vst [vmem:[%s222 + $0x78] sm:$0xff] %v243
                %v245 = vld [vmem:[%s221 + $0x18c] sm:$0xff]
                %246 = vst [vmem:[%s222 + $0x84] sm:$0xff] %v245
                %v247 = vld [vmem:[%s221 + $0x1b0] sm:$0xff]
                %248 = vst [vmem:[%s222 + $0x90] sm:$0xff] %v247
                %v249 = vld [vmem:[%s221 + $0x1d4] sm:$0xff]
                %250 = vst [vmem:[%s222 + $0x9c] sm:$0xff] %v249
                %v251 = vld [vmem:[%s221 + $0x1f8] sm:$0xff]
                %252 = vst [vmem:[%s222 + $0xa8] sm:$0xff] %v251
                %v253 = vld [vmem:[%s221 + $0x21c] sm:$0xff]
                %254 = vst [vmem:[%s222 + $0xb4] sm:$0xff] %v253
                %v255 = vld [vmem:[%s221 + $0x240] sm:$0xff]
                %256 = vst [vmem:[%s222 + $0xc0] sm:$0xff] %v255
                %v257 = vld [vmem:[%s221 + $0x264] sm:$0xff]
                %258 = vst [vmem:[%s222 + $0xcc] sm:$0xff] %v257
                %v259 = vld [vmem:[%s221 + $0x288] sm:$0xff]
                %260 = vst [vmem:[%s222 + $0xd8] sm:$0xff] %v259
                %v261 = vld [vmem:[%s221 + $0x2ac] sm:$0xff]
                %262 = vst [vmem:[%s222 + $0xe4] sm:$0xff] %v261
                %v263 = vld [vmem:[%s221 + $0x2d0] sm:$0xff]
                %264 = vst [vmem:[%s222 + $0xf0] sm:$0xff] %v263
                %v265 = vld [vmem:[%s221 + $0x2f4] sm:$0xff]
                %266 = vst [vmem:[%s222 + $0xfc] sm:$0xff] %v265
                %v267 = vld [vmem:[%s221 + $0x318] sm:$0xff]
                %268 = vst [vmem:[%s222 + $0x108] sm:$0xff] %v267
                %v269 = vld [vmem:[%s221 + $0x33c] sm:$0xff]
                %270 = vst [vmem:[%s222 + $0x114] sm:$0xff] %v269
                %v271 = vld [vmem:[%s221 + $0x360] sm:$0xff]
                %272 = vst [vmem:[%s222 + $0x120] sm:$0xff] %v271
                %v273 = vld [vmem:[%s221 + $0x384] sm:$0xff]
                %274 = vst [vmem:[%s222 + $0x12c] sm:$0xff] %v273
                %v275 = vld [vmem:[%s221 + $0x3a8] sm:$0xff]
                %276 = vst [vmem:[%s222 + $0x138] sm:$0xff] %v275
                %v277 = vld [vmem:[%s221 + $0x3cc] sm:$0xff]
                %278 = vst [vmem:[%s222 + $0x144] sm:$0xff] %v277
                %v279 = vld [vmem:[%s221 + $0x3f0] sm:$0xff]
                %280 = vst [vmem:[%s222 + $0x150] sm:$0xff] %v279
                %v281 = vld [vmem:[%s221 + $0x414] sm:$0xff]
                %282 = vst [vmem:[%s222 + $0x15c] sm:$0xff] %v281
                %v283 = vld [vmem:[%s221 + $0x438] sm:$0xff]
                %284 = vst [vmem:[%s222 + $0x168] sm:$0xff] %v283
                %v285 = vld [vmem:[%s221 + $0x45c] sm:$0xff]
                %286 = vst [vmem:[%s222 + $0x174] sm:$0xff] %v285
              $region41: #{_lambda_.11} parent=35 // loop_footer
                %s220 = sadd.s32 1, %s216
              $region42: #{_lambda_.11} parent=35 // loop_footer_branch
                %215 = sbr.rel target = $region38
              $region43: #{_lambda_.11} parent=35 // loop_exit
                _
              %s288 = ssub.s32 16, 1
              loop: start=0, step=1, limit=1
              $region44: #{_lambda_.11} parent=35 // loop_pre_header
                _
              $region45: #{_lambda_.11} parent=35 // loop_header
                %s290 = sphi 0, %s294
                %p291 = scmp.ge.s32.totalorder %s290, 1
                %s295 = sphi %s213, %s213
                %s296 = sphi %s214, %s214
              $region46: #{_lambda_.11} parent=35 // loop_header_branch
                %293 = sbr.rel (%p291) target = $region50
              $region47: #{_lambda_.11} parent=35 // loop_body
                %v297 = vld [vmem:[%s295] sm:%s288]
                %298 = vst [vmem:[%s296] sm:%s288] %v297
                %v299 = vld [vmem:[%s295 + $0x24] sm:%s288]
                %300 = vst [vmem:[%s296 + $0xc] sm:%s288] %v299
                %v301 = vld [vmem:[%s295 + $0x48] sm:%s288]
                %302 = vst [vmem:[%s296 + $0x18] sm:%s288] %v301
                %v303 = vld [vmem:[%s295 + $0x6c] sm:%s288]
                %304 = vst [vmem:[%s296 + $0x24] sm:%s288] %v303
                %v305 = vld [vmem:[%s295 + $0x90] sm:%s288]
                %306 = vst [vmem:[%s296 + $0x30] sm:%s288] %v305
                %v307 = vld [vmem:[%s295 + $0xb4] sm:%s288]
                %308 = vst [vmem:[%s296 + $0x3c] sm:%s288] %v307
                %v309 = vld [vmem:[%s295 + $0xd8] sm:%s288]
                %310 = vst [vmem:[%s296 + $0x48] sm:%s288] %v309
                %v311 = vld [vmem:[%s295 + $0xfc] sm:%s288]
                %312 = vst [vmem:[%s296 + $0x54] sm:%s288] %v311
                %v313 = vld [vmem:[%s295 + $0x120] sm:%s288]
                %314 = vst [vmem:[%s296 + $0x60] sm:%s288] %v313
                %v315 = vld [vmem:[%s295 + $0x144] sm:%s288]
                %316 = vst [vmem:[%s296 + $0x6c] sm:%s288] %v315
                %v317 = vld [vmem:[%s295 + $0x168] sm:%s288]
                %318 = vst [vmem:[%s296 + $0x78] sm:%s288] %v317
                %v319 = vld [vmem:[%s295 + $0x18c] sm:%s288]
                %320 = vst [vmem:[%s296 + $0x84] sm:%s288] %v319
                %v321 = vld [vmem:[%s295 + $0x1b0] sm:%s288]
                %322 = vst [vmem:[%s296 + $0x90] sm:%s288] %v321
                %v323 = vld [vmem:[%s295 + $0x1d4] sm:%s288]
                %324 = vst [vmem:[%s296 + $0x9c] sm:%s288] %v323
                %v325 = vld [vmem:[%s295 + $0x1f8] sm:%s288]
                %326 = vst [vmem:[%s296 + $0xa8] sm:%s288] %v325
                %v327 = vld [vmem:[%s295 + $0x21c] sm:%s288]
                %328 = vst [vmem:[%s296 + $0xb4] sm:%s288] %v327
                %v329 = vld [vmem:[%s295 + $0x240] sm:%s288]
                %330 = vst [vmem:[%s296 + $0xc0] sm:%s288] %v329
                %v331 = vld [vmem:[%s295 + $0x264] sm:%s288]
                %332 = vst [vmem:[%s296 + $0xcc] sm:%s288] %v331
                %v333 = vld [vmem:[%s295 + $0x288] sm:%s288]
                %334 = vst [vmem:[%s296 + $0xd8] sm:%s288] %v333
                %v335 = vld [vmem:[%s295 + $0x2ac] sm:%s288]
                %336 = vst [vmem:[%s296 + $0xe4] sm:%s288] %v335
                %v337 = vld [vmem:[%s295 + $0x2d0] sm:%s288]
                %338 = vst [vmem:[%s296 + $0xf0] sm:%s288] %v337
                %v339 = vld [vmem:[%s295 + $0x2f4] sm:%s288]
                %340 = vst [vmem:[%s296 + $0xfc] sm:%s288] %v339
                %v341 = vld [vmem:[%s295 + $0x318] sm:%s288]
                %342 = vst [vmem:[%s296 + $0x108] sm:%s288] %v341
                %v343 = vld [vmem:[%s295 + $0x33c] sm:%s288]
                %344 = vst [vmem:[%s296 + $0x114] sm:%s288] %v343
                %v345 = vld [vmem:[%s295 + $0x360] sm:%s288]
                %346 = vst [vmem:[%s296 + $0x120] sm:%s288] %v345
                %v347 = vld [vmem:[%s295 + $0x384] sm:%s288]
                %348 = vst [vmem:[%s296 + $0x12c] sm:%s288] %v347
                %v349 = vld [vmem:[%s295 + $0x3a8] sm:%s288]
                %350 = vst [vmem:[%s296 + $0x138] sm:%s288] %v349
                %v351 = vld [vmem:[%s295 + $0x3cc] sm:%s288]
                %352 = vst [vmem:[%s296 + $0x144] sm:%s288] %v351
                %v353 = vld [vmem:[%s295 + $0x3f0] sm:%s288]
                %354 = vst [vmem:[%s296 + $0x150] sm:%s288] %v353
                %v355 = vld [vmem:[%s295 + $0x414] sm:%s288]
                %356 = vst [vmem:[%s296 + $0x15c] sm:%s288] %v355
                %v357 = vld [vmem:[%s295 + $0x438] sm:%s288]
                %358 = vst [vmem:[%s296 + $0x168] sm:%s288] %v357
                %v359 = vld [vmem:[%s295 + $0x45c] sm:%s288]
                %360 = vst [vmem:[%s296 + $0x174] sm:%s288] %v359
              $region48: #{_lambda_.11} parent=35 // loop_footer
                %s294 = sadd.s32 1, %s290
              $region49: #{_lambda_.11} parent=35 // loop_footer_branch
                %289 = sbr.rel target = $region45
              $region50: #{_lambda_.11} parent=35 // loop_exit
                _
            $region36: #{_lambda_.11} parent=31 // pred_fallthru
              _
          $region32: #{_lambda_.11} parent=27 // pred_fallthru
            _
          %361 = vnop
        $region28: #{_lambda_.11} parent=23 // pred_fallthru
          _
        // Predicated region
        $region51: #{_lambda_.11} parent=23 // pred_check
          %p362 = pneg %p79
        $region52: #{_lambda_.11} parent=23 // pred_check_branch
          %364 = sbr.rel (%p362) target = $region54
        $region53: #{_lambda_.11} parent=23 // pred_region
          %s365 = smul.u32 48, %s19
          %p366 = scmp.lt.s32.totalorder %s365, 143
          %s367 = scalar_select %p366, %s365, 143
          %p368 = scmp.lt.s32.totalorder %s18, 0
          %s369 = scalar_select %p368, %s18, 0
          %s370 = sadd.s32 %s369, %s367
          %s371 = smul.addr %s370, 4
          %s372 = scalar_lea.vmem %s1, %s371
          %s373 = smul.u32 48, %s19
        $region54: #{_lambda_.11} parent=23 // pred_fallthru
          _
      $region24: #{_lambda_.11} parent=5 // pred_fallthru
        _
      %p374 = scmp.le.s32.totalorder 1, %s10
      %p375 = scmp.lt.s32.totalorder %s10, 7
      %p376 = pnand %p374, %p375
      %p377 = pneg %p376
      // Predicated region
      $region55: #{_lambda_.11} parent=5 // pred_check
        _
      $region56: #{_lambda_.11} parent=5 // pred_check_branch
        %379 = sbr.rel (%p376) target = $region58
      $region57: #{_lambda_.11} parent=5 // pred_region
        %s380 = ssub.s32 %s10, 1
        %s381 = sand.u32 %s44, 1
        %s382 = sand.u32 %s44, 1
        %s383 = smul.addr %s382, 384
        %s384 = scalar_lea.vmem [#allocation3], %s383
        // Predicated region
        $region59: #{_lambda_.11} parent=57 // pred_check
          %p385 = pneg %p57
        $region60: #{_lambda_.11} parent=57 // pred_check_branch
          %387 = sbr.rel (%p385) target = $region62
        $region61: #{_lambda_.11} parent=57 // pred_region
          _
        $region62: #{_lambda_.11} parent=57 // pred_fallthru
          _
        %s388 = sand.u32 %s44, 1
        %s389 = sand.u32 %s44, 1
        %s390 = smul.addr %s389, 384
        %s391 = scalar_lea.vmem [#allocation3], %s390
        %p392 = pneg %p57
        %p393 = pneg %p54
        %s394 = smul.u32 48, %s22
        %p395 = scmp.lt.s32.totalorder %s394, 143
        %s396 = scalar_select %p395, %s394, 143
        %p397 = scmp.lt.s32.totalorder %s21, 0
        %s398 = scalar_select %p397, %s21, 0
        %s399 = sadd.s32 %s398, %s396
        %s400 = smul.addr %s399, 4
        %s401 = scalar_lea.vmem %s1, %s400
        %p402 = pneg %p85
        %p403 = pneg %p82
        %p404 = scmp.lt.s32.totalorder %s21, 0
        %s405 = scalar_select %p404, %s21, 0
        %s406 = scalar_lea.vmem %s2, %s405
        %p407 = pneg %p111
        %p408 = pneg %p108
        %p409 = scmp.lt.s32.totalorder %s21, 0
        %s410 = scalar_select %p409, %s21, 0
        %s411 = scalar_lea.vmem %s3, %s410
        %p412 = pneg %p137
        %p413 = pneg %p134
        %p414 = pneg %p165
        %p415 = pneg %p162
        %s416 = smul.u32 32, %s20
        %p417 = scmp.lt.s32.totalorder %s416, 63
        %s418 = scalar_select %p417, %s416, 63
        %p419 = scmp.lt.s32.totalorder %s21, 0
        %s420 = scalar_select %p419, %s21, 0
        %s421 = sadd.s32 %s420, %s418
        %s422 = smul.addr %s421, 4
        %s423 = scalar_lea.vmem %s4, %s422
        %s424 = smul.u32 32, %s20
        %s425 = smul.u32 3, %s22
        %s426 = smul.u32 48, %s22
        %p427 = scmp.lt.s32.totalorder %s426, 143
        %s428 = scalar_select %p427, %s426, 143
        %p429 = scmp.lt.s32.totalorder %s21, 0
        %s430 = scalar_select %p429, %s21, 0
        %s431 = sadd.s32 %s430, %s428
        %s432 = smul.addr %s431, 4
        %s433 = scalar_lea.vmem %s1, %s432
        %s434 = smul.u32 48, %s22
        %p435 = scmp.lt.s32.totalorder %s21, 0
        %s436 = scalar_select %p435, %s21, 0
        %s437 = scalar_lea.vmem %s2, %s436
        %p438 = scmp.lt.s32.totalorder %s21, 0
        %s439 = scalar_select %p438, %s21, 0
        %s440 = scalar_lea.vmem %s3, %s439
        %s441 = smul.u32 32, %s20
        %p442 = scmp.lt.s32.totalorder %s441, 63
        %s443 = scalar_select %p442, %s441, 63
        %p444 = scmp.lt.s32.totalorder %s21, 0
        %s445 = scalar_select %p444, %s21, 0
        %s446 = sadd.s32 %s445, %s443
        %s447 = smul.addr %s446, 4
        %s448 = scalar_lea.vmem %s4, %s447
        %s449 = smul.u32 32, %s20
        %p450 = scmp.eq.s32.totalorder %s22, 0
        // Predicated region
        $region63: #{_lambda_.11} parent=57 // pred_check
          %p451 = pneg %p450
        $region64: #{_lambda_.11} parent=57 // pred_check_branch
          %453 = sbr.rel (%p451) target = $region66
        $region65: #{_lambda_.11} parent=57 // pred_region
          %454 = vst [vmem:[#allocation2] sm:$0xff] 0.0
          %455 = vst [vmem:[#allocation2 + $0x8] sm:$0xff] 0.0
          %456 = vst [vmem:[#allocation2 + $0x10] sm:$0xff] 0.0
          %457 = vst [vmem:[#allocation2 + $0x18] sm:$0xff] 0.0
          %458 = vst [vmem:[#allocation2 + $0x20] sm:$0xff] 0.0
          %459 = vst [vmem:[#allocation2 + $0x28] sm:$0xff] 0.0
          %460 = vst [vmem:[#allocation2 + $0x30] sm:$0xff] 0.0
          %461 = vst [vmem:[#allocation2 + $0x38] sm:$0xff] 0.0
          %462 = vst [vmem:[#allocation2 + $0x40] sm:$0xff] 0.0
          %463 = vst [vmem:[#allocation2 + $0x48] sm:$0xff] 0.0
          %464 = vst [vmem:[#allocation2 + $0x50] sm:$0xff] 0.0
          %465 = vst [vmem:[#allocation2 + $0x58] sm:$0xff] 0.0
          %466 = vst [vmem:[#allocation2 + $0x60] sm:$0xff] 0.0
          %467 = vst [vmem:[#allocation2 + $0x68] sm:$0xff] 0.0
          %468 = vst [vmem:[#allocation2 + $0x70] sm:$0xff] 0.0
          %469 = vst [vmem:[#allocation2 + $0x78] sm:$0xff] 0.0
          %470 = vst [vmem:[#allocation2 + $0x80] sm:$0xff] 0.0
          %471 = vst [vmem:[#allocation2 + $0x88] sm:$0xff] 0.0
          %472 = vst [vmem:[#allocation2 + $0x90] sm:$0xff] 0.0
          %473 = vst [vmem:[#allocation2 + $0x98] sm:$0xff] 0.0
          %474 = vst [vmem:[#allocation2 + $0xa0] sm:$0xff] 0.0
          %475 = vst [vmem:[#allocation2 + $0xa8] sm:$0xff] 0.0
          %476 = vst [vmem:[#allocation2 + $0xb0] sm:$0xff] 0.0
          %477 = vst [vmem:[#allocation2 + $0xb8] sm:$0xff] 0.0
          %478 = vst [vmem:[#allocation2 + $0xc0] sm:$0xff] 0.0
          %479 = vst [vmem:[#allocation2 + $0xc8] sm:$0xff] 0.0
          %480 = vst [vmem:[#allocation2 + $0xd0] sm:$0xff] 0.0
          %481 = vst [vmem:[#allocation2 + $0xd8] sm:$0xff] 0.0
          %482 = vst [vmem:[#allocation2 + $0xe0] sm:$0xff] 0.0
          %483 = vst [vmem:[#allocation2 + $0xe8] sm:$0xff] 0.0
          %484 = vst [vmem:[#allocation2 + $0xf0] sm:$0xff] 0.0
          %485 = vst [vmem:[#allocation2 + $0xf8] sm:$0xff] 0.0
        $region66: #{_lambda_.11} parent=57 // pred_fallthru
          _
        %v486 = vld [vmem:[#allocation2] sm:$0xff]
        %v487 = vld [vmem:[#allocation2 + $0x8] sm:$0xff]
        %v488 = vld [vmem:[#allocation2 + $0x10] sm:$0xff]
        %v489 = vld [vmem:[#allocation2 + $0x18] sm:$0xff]
        %v490 = vld [vmem:[#allocation2 + $0x20] sm:$0xff]
        %v491 = vld [vmem:[#allocation2 + $0x28] sm:$0xff]
        %v492 = vld [vmem:[#allocation2 + $0x30] sm:$0xff]
        %v493 = vld [vmem:[#allocation2 + $0x38] sm:$0xff]
        %v494 = vld [vmem:[#allocation2 + $0x40] sm:$0xff]
        %v495 = vld [vmem:[#allocation2 + $0x48] sm:$0xff]
        %v496 = vld [vmem:[#allocation2 + $0x50] sm:$0xff]
        %v497 = vld [vmem:[#allocation2 + $0x58] sm:$0xff]
        %v498 = vld [vmem:[#allocation2 + $0x60] sm:$0xff]
        %v499 = vld [vmem:[#allocation2 + $0x68] sm:$0xff]
        %v500 = vld [vmem:[#allocation2 + $0x70] sm:$0xff]
        %v501 = vld [vmem:[#allocation2 + $0x78] sm:$0xff]
        %v502 = vld [vmem:[#allocation2 + $0x80] sm:$0xff]
        %v503 = vld [vmem:[#allocation2 + $0x88] sm:$0xff]
        %v504 = vld [vmem:[#allocation2 + $0x90] sm:$0xff]
        %v505 = vld [vmem:[#allocation2 + $0x98] sm:$0xff]
        %v506 = vld [vmem:[#allocation2 + $0xa0] sm:$0xff]
        %v507 = vld [vmem:[#allocation2 + $0xa8] sm:$0xff]
        %v508 = vld [vmem:[#allocation2 + $0xb0] sm:$0xff]
        %v509 = vld [vmem:[#allocation2 + $0xb8] sm:$0xff]
        %v510 = vld [vmem:[#allocation2 + $0xc0] sm:$0xff]
        %v511 = vld [vmem:[#allocation2 + $0xc8] sm:$0xff]
        %v512 = vld [vmem:[#allocation2 + $0xd0] sm:$0xff]
        %v513 = vld [vmem:[#allocation2 + $0xd8] sm:$0xff]
        %v514 = vld [vmem:[#allocation2 + $0xe0] sm:$0xff]
        %v515 = vld [vmem:[#allocation2 + $0xe8] sm:$0xff]
        %v516 = vld [vmem:[#allocation2 + $0xf0] sm:$0xff]
        %v517 = vld [vmem:[#allocation2 + $0xf8] sm:$0xff]
        %v518 = vld [vmem:[%s384] sm:$0xff]
        %v519 = vld [vmem:[%s384 + $0x8] sm:$0xf]
        %v520 = vld [vmem:[%s384 + $0xc] sm:$0xff]
        %v521 = vld [vmem:[%s384 + $0x14] sm:$0xf]
        %v522 = vld [vmem:[%s384 + $0x18] sm:$0xff]
        %v523 = vld [vmem:[%s384 + $0x20] sm:$0xf]
        %v524 = vld [vmem:[%s384 + $0x24] sm:$0xff]
        %v525 = vld [vmem:[%s384 + $0x2c] sm:$0xf]
        %v526 = vld [vmem:[%s384 + $0x30] sm:$0xff]
        %v527 = vld [vmem:[%s384 + $0x38] sm:$0xf]
        %v528 = vld [vmem:[%s384 + $0x3c] sm:$0xff]
        %v529 = vld [vmem:[%s384 + $0x44] sm:$0xf]
        %v530 = vld [vmem:[%s384 + $0x48] sm:$0xff]
        %v531 = vld [vmem:[%s384 + $0x50] sm:$0xf]
        %v532 = vld [vmem:[%s384 + $0x54] sm:$0xff]
        %v533 = vld [vmem:[%s384 + $0x5c] sm:$0xf]
        %v534 = vld [vmem:[%s384 + $0x60] sm:$0xff]
        %v535 = vld [vmem:[%s384 + $0x68] sm:$0xf]
        %v536 = vld [vmem:[%s384 + $0x6c] sm:$0xff]
        %v537 = vld [vmem:[%s384 + $0x74] sm:$0xf]
        %v538 = vld [vmem:[%s384 + $0x78] sm:$0xff]
        %v539 = vld [vmem:[%s384 + $0x80] sm:$0xf]
        %v540 = vld [vmem:[%s384 + $0x84] sm:$0xff]
        %v541 = vld [vmem:[%s384 + $0x8c] sm:$0xf]
        %v542 = vld [vmem:[%s384 + $0x90] sm:$0xff]
        %v543 = vld [vmem:[%s384 + $0x98] sm:$0xf]
        %v544 = vld [vmem:[%s384 + $0x9c] sm:$0xff]
        %v545 = vld [vmem:[%s384 + $0xa4] sm:$0xf]
        %v546 = vld [vmem:[%s384 + $0xa8] sm:$0xff]
        %v547 = vld [vmem:[%s384 + $0xb0] sm:$0xf]
        %v548 = vld [vmem:[%s384 + $0xb4] sm:$0xff]
        %v549 = vld [vmem:[%s384 + $0xbc] sm:$0xf]
        %v550 = vld [vmem:[%s384 + $0xc0] sm:$0xff]
        %v551 = vld [vmem:[%s384 + $0xc8] sm:$0xf]
        %v552 = vld [vmem:[%s384 + $0xcc] sm:$0xff]
        %v553 = vld [vmem:[%s384 + $0xd4] sm:$0xf]
        %v554 = vld [vmem:[%s384 + $0xd8] sm:$0xff]
        %v555 = vld [vmem:[%s384 + $0xe0] sm:$0xf]
        %v556 = vld [vmem:[%s384 + $0xe4] sm:$0xff]
        %v557 = vld [vmem:[%s384 + $0xec] sm:$0xf]
        %v558 = vld [vmem:[%s384 + $0xf0] sm:$0xff]
        %v559 = vld [vmem:[%s384 + $0xf8] sm:$0xf]
        %v560 = vld [vmem:[%s384 + $0xfc] sm:$0xff]
        %v561 = vld [vmem:[%s384 + $0x104] sm:$0xf]
        %v562 = vld [vmem:[%s384 + $0x108] sm:$0xff]
        %v563 = vld [vmem:[%s384 + $0x110] sm:$0xf]
        %v564 = vld [vmem:[%s384 + $0x114] sm:$0xff]
        %v565 = vld [vmem:[%s384 + $0x11c] sm:$0xf]
        %v566 = vld [vmem:[%s384 + $0x120] sm:$0xff]
        %v567 = vld [vmem:[%s384 + $0x128] sm:$0xf]
        %v568 = vld [vmem:[%s384 + $0x12c] sm:$0xff]
        %v569 = vld [vmem:[%s384 + $0x134] sm:$0xf]
        %v570 = vld [vmem:[%s384 + $0x138] sm:$0xff]
        %v571 = vld [vmem:[%s384 + $0x140] sm:$0xf]
        %v572 = vld [vmem:[%s384 + $0x144] sm:$0xff]
        %v573 = vld [vmem:[%s384 + $0x14c] sm:$0xf]
        %v574 = vld [vmem:[%s384 + $0x150] sm:$0xff]
        %v575 = vld [vmem:[%s384 + $0x158] sm:$0xf]
        %v576 = vld [vmem:[%s384 + $0x15c] sm:$0xff]
        %v577 = vld [vmem:[%s384 + $0x164] sm:$0xf]
        %v578 = vld [vmem:[%s384 + $0x168] sm:$0xff]
        %v579 = vld [vmem:[%s384 + $0x170] sm:$0xf]
        %v580 = vld [vmem:[%s384 + $0x174] sm:$0xff]
        %v581 = vld [vmem:[%s384 + $0x17c] sm:$0xf]
        %v582 = vld [vmem:[%s433] sm:$0xf]
        %v583 = vld [vmem:[%s433 + $0x4] sm:$0xf]
        %v584 = vld [vmem:[%s433 + $0x8] sm:$0xf]
        %v585 = vld [vmem:[%s433 + $0xc] sm:$0xf]
        %v586 = vld [vmem:[%s433 + $0x10] sm:$0xf]
        %v587 = vld [vmem:[%s433 + $0x14] sm:$0xf]
        %v588 = vld [vmem:[%s433 + $0x18] sm:$0xf]
        %v589 = vld [vmem:[%s433 + $0x1c] sm:$0xf]
        %v590 = vld [vmem:[%s433 + $0x20] sm:$0xf]
        %v591 = vld [vmem:[%s433 + $0x24] sm:$0xf]
        %v592 = vld [vmem:[%s433 + $0x28] sm:$0xf]
        %v593 = vld [vmem:[%s433 + $0x2c] sm:$0xf]
        %v594 = vld [vmem:[%s433 + $0x30] sm:$0xf]
        %v595 = vld [vmem:[%s433 + $0x34] sm:$0xf]
        %v596 = vld [vmem:[%s433 + $0x38] sm:$0xf]
        %v597 = vld [vmem:[%s433 + $0x3c] sm:$0xf]
        %v598 = vld [vmem:[%s433 + $0x40] sm:$0xf]
        %v599 = vld [vmem:[%s433 + $0x44] sm:$0xf]
        %v600 = vld [vmem:[%s433 + $0x48] sm:$0xf]
        %v601 = vld [vmem:[%s433 + $0x4c] sm:$0xf]
        %v602 = vld [vmem:[%s433 + $0x50] sm:$0xf]
        %v603 = vld [vmem:[%s433 + $0x54] sm:$0xf]
        %v604 = vld [vmem:[%s433 + $0x58] sm:$0xf]
        %v605 = vld [vmem:[%s433 + $0x5c] sm:$0xf]
        %v606 = vld [vmem:[%s433 + $0x60] sm:$0xf]
        %v607 = vld [vmem:[%s433 + $0x64] sm:$0xf]
        %v608 = vld [vmem:[%s433 + $0x68] sm:$0xf]
        %v609 = vld [vmem:[%s433 + $0x6c] sm:$0xf]
        %v610 = vld [vmem:[%s433 + $0x70] sm:$0xf]
        %v611 = vld [vmem:[%s433 + $0x74] sm:$0xf]
        %v612 = vld [vmem:[%s433 + $0x78] sm:$0xf]
        %v613 = vld [vmem:[%s433 + $0x7c] sm:$0xf]
        %v614 = vld [vmem:[%s433 + $0x80] sm:$0xf]
        %v615 = vld [vmem:[%s433 + $0x84] sm:$0xf]
        %v616 = vld [vmem:[%s433 + $0x88] sm:$0xf]
        %v617 = vld [vmem:[%s433 + $0x8c] sm:$0xf]
        %v618 = vld [vmem:[%s433 + $0x90] sm:$0xf]
        %v619 = vld [vmem:[%s433 + $0x94] sm:$0xf]
        %v620 = vld [vmem:[%s433 + $0x98] sm:$0xf]
        %v621 = vld [vmem:[%s433 + $0x9c] sm:$0xf]
        %v622 = vld [vmem:[%s433 + $0xa0] sm:$0xf]
        %v623 = vld [vmem:[%s433 + $0xa4] sm:$0xf]
        %v624 = vld [vmem:[%s433 + $0xa8] sm:$0xf]
        %v625 = vld [vmem:[%s433 + $0xac] sm:$0xf]
        %v626 = vld [vmem:[%s433 + $0xb0] sm:$0xf]
        %v627 = vld [vmem:[%s433 + $0xb4] sm:$0xf]
        %v628 = vld [vmem:[%s433 + $0xb8] sm:$0xf]
        %v629 = vld [vmem:[%s433 + $0xbc] sm:$0xf]
        %v694 = vunpack.c.l.b16 %v518
        %v695 = vunpack.c.h.b16 %v518
        %v696 = vunpack.c.l.b16 %v519
        %v697 = vunpack.c.l.b16 %v520
        %v698 = vunpack.c.h.b16 %v520
        %v699 = vunpack.c.l.b16 %v521
        %v700 = vunpack.c.l.b16 %v522
        %v701 = vunpack.c.h.b16 %v522
        %v702 = vunpack.c.l.b16 %v523
        %v703 = vunpack.c.l.b16 %v524
        %v704 = vunpack.c.h.b16 %v524
        %v705 = vunpack.c.l.b16 %v525
        %v706 = vunpack.c.l.b16 %v526
        %v707 = vunpack.c.h.b16 %v526
        %v708 = vunpack.c.l.b16 %v527
        %v709 = vunpack.c.l.b16 %v528
        %v710 = vunpack.c.h.b16 %v528
        %v711 = vunpack.c.l.b16 %v529
        %v712 = vunpack.c.l.b16 %v530
        %v713 = vunpack.c.h.b16 %v530
        %v714 = vunpack.c.l.b16 %v531
        %v715 = vunpack.c.l.b16 %v532
        %v716 = vunpack.c.h.b16 %v532
        %v717 = vunpack.c.l.b16 %v533
        %v718 = vunpack.c.l.b16 %v534
        %v719 = vunpack.c.h.b16 %v534
        %v720 = vunpack.c.l.b16 %v535
        %v721 = vunpack.c.l.b16 %v536
        %v722 = vunpack.c.h.b16 %v536
        %v723 = vunpack.c.l.b16 %v537
        %v724 = vunpack.c.l.b16 %v538
        %v725 = vunpack.c.h.b16 %v538
        %v726 = vunpack.c.l.b16 %v539
        %v727 = vunpack.c.l.b16 %v540
        %v728 = vunpack.c.h.b16 %v540
        %v729 = vunpack.c.l.b16 %v541
        %v730 = vunpack.c.l.b16 %v542
        %v731 = vunpack.c.h.b16 %v542
        %v732 = vunpack.c.l.b16 %v543
        %v733 = vunpack.c.l.b16 %v544
        %v734 = vunpack.c.h.b16 %v544
        %v735 = vunpack.c.l.b16 %v545
        %v736 = vunpack.c.l.b16 %v546
        %v737 = vunpack.c.h.b16 %v546
        %v738 = vunpack.c.l.b16 %v547
        %v739 = vunpack.c.l.b16 %v548
        %v740 = vunpack.c.h.b16 %v548
        %v741 = vunpack.c.l.b16 %v549
        %v742 = vunpack.c.l.b16 %v550
        %v743 = vunpack.c.h.b16 %v550
        %v744 = vunpack.c.l.b16 %v551
        %v745 = vunpack.c.l.b16 %v552
        %v746 = vunpack.c.h.b16 %v552
        %v747 = vunpack.c.l.b16 %v553
        %v748 = vunpack.c.l.b16 %v554
        %v749 = vunpack.c.h.b16 %v554
        %v750 = vunpack.c.l.b16 %v555
        %v751 = vunpack.c.l.b16 %v556
        %v752 = vunpack.c.h.b16 %v556
        %v753 = vunpack.c.l.b16 %v557
        %v754 = vunpack.c.l.b16 %v558
        %v755 = vunpack.c.h.b16 %v558
        %v756 = vunpack.c.l.b16 %v559
        %v757 = vunpack.c.l.b16 %v560
        %v758 = vunpack.c.h.b16 %v560
        %v759 = vunpack.c.l.b16 %v561
        %v760 = vunpack.c.l.b16 %v562
        %v761 = vunpack.c.h.b16 %v562
        %v762 = vunpack.c.l.b16 %v563
        %v763 = vunpack.c.l.b16 %v564
        %v764 = vunpack.c.h.b16 %v564
        %v765 = vunpack.c.l.b16 %v565
        %v766 = vunpack.c.l.b16 %v566
        %v767 = vunpack.c.h.b16 %v566
        %v768 = vunpack.c.l.b16 %v567
        %v769 = vunpack.c.l.b16 %v568
        %v770 = vunpack.c.h.b16 %v568
        %v771 = vunpack.c.l.b16 %v569
        %v772 = vunpack.c.l.b16 %v570
        %v773 = vunpack.c.h.b16 %v570
        %v774 = vunpack.c.l.b16 %v571
        %v775 = vunpack.c.l.b16 %v572
        %v776 = vunpack.c.h.b16 %v572
        %v777 = vunpack.c.l.b16 %v573
        %v778 = vunpack.c.l.b16 %v574
        %v779 = vunpack.c.h.b16 %v574
        %v780 = vunpack.c.l.b16 %v575
        %v781 = vunpack.c.l.b16 %v576
        %v782 = vunpack.c.h.b16 %v576
        %v783 = vunpack.c.l.b16 %v577
        %v784 = vunpack.c.l.b16 %v578
        %v785 = vunpack.c.h.b16 %v578
        %v786 = vunpack.c.l.b16 %v579
        %v787 = vunpack.c.l.b16 %v580
        %v788 = vunpack.c.h.b16 %v580
        %v789 = vunpack.c.l.b16 %v581
        %v790 = vpack.c.b16 %v697, %v694
        %v791 = vpack.c.b16 %v698, %v695
        %v792 = vpack.c.b16 %v699, %v696
        %v793 = vpack.c.b16 %v703, %v700
        %v794 = vpack.c.b16 %v704, %v701
        %v795 = vpack.c.b16 %v705, %v702
        %v796 = vpack.c.b16 %v709, %v706
        %v797 = vpack.c.b16 %v710, %v707
        %v798 = vpack.c.b16 %v711, %v708
        %v799 = vpack.c.b16 %v715, %v712
        %v800 = vpack.c.b16 %v716, %v713
        %v801 = vpack.c.b16 %v717, %v714
        %v802 = vpack.c.b16 %v721, %v718
        %v803 = vpack.c.b16 %v722, %v719
        %v804 = vpack.c.b16 %v723, %v720
        %v805 = vpack.c.b16 %v727, %v724
        %v806 = vpack.c.b16 %v728, %v725
        %v807 = vpack.c.b16 %v729, %v726
        %v808 = vpack.c.b16 %v733, %v730
        %v809 = vpack.c.b16 %v734, %v731
        %v810 = vpack.c.b16 %v735, %v732
        %v811 = vpack.c.b16 %v739, %v736
        %v812 = vpack.c.b16 %v740, %v737
        %v813 = vpack.c.b16 %v741, %v738
        %v814 = vpack.c.b16 %v745, %v742
        %v815 = vpack.c.b16 %v746, %v743
        %v816 = vpack.c.b16 %v747, %v744
        %v817 = vpack.c.b16 %v751, %v748
        %v818 = vpack.c.b16 %v752, %v749
        %v819 = vpack.c.b16 %v753, %v750
        %v820 = vpack.c.b16 %v757, %v754
        %v821 = vpack.c.b16 %v758, %v755
        %v822 = vpack.c.b16 %v759, %v756
        %v823 = vpack.c.b16 %v763, %v760
        %v824 = vpack.c.b16 %v764, %v761
        %v825 = vpack.c.b16 %v765, %v762
        %v826 = vpack.c.b16 %v769, %v766
        %v827 = vpack.c.b16 %v770, %v767
        %v828 = vpack.c.b16 %v771, %v768
        %v829 = vpack.c.b16 %v775, %v772
        %v830 = vpack.c.b16 %v776, %v773
        %v831 = vpack.c.b16 %v777, %v774
        %v832 = vpack.c.b16 %v781, %v778
        %v833 = vpack.c.b16 %v782, %v779
        %v834 = vpack.c.b16 %v783, %v780
        %v835 = vpack.c.b16 %v787, %v784
        %v836 = vpack.c.b16 %v788, %v785
        %v837 = vpack.c.b16 %v789, %v786
        %v934 = vunpack.c.l.b16 %v582
        %v935 = vunpack.c.l.b16 %v583
        %v936 = vunpack.c.l.b16 %v584
        %v937 = vunpack.c.l.b16 %v585
        %v938 = vunpack.c.l.b16 %v586
        %v939 = vunpack.c.l.b16 %v587
        %v940 = vunpack.c.l.b16 %v588
        %v941 = vunpack.c.l.b16 %v589
        %v942 = vunpack.c.l.b16 %v590
        %v943 = vunpack.c.l.b16 %v591
        %v944 = vunpack.c.l.b16 %v592
        %v945 = vunpack.c.l.b16 %v593
        %v946 = vunpack.c.l.b16 %v594
        %v947 = vunpack.c.l.b16 %v595
        %v948 = vunpack.c.l.b16 %v596
        %v949 = vunpack.c.l.b16 %v597
        %v950 = vunpack.c.l.b16 %v598
        %v951 = vunpack.c.l.b16 %v599
        %v952 = vunpack.c.l.b16 %v600
        %v953 = vunpack.c.l.b16 %v601
        %v954 = vunpack.c.l.b16 %v602
        %v955 = vunpack.c.l.b16 %v603
        %v956 = vunpack.c.l.b16 %v604
        %v957 = vunpack.c.l.b16 %v605
        %v958 = vunpack.c.l.b16 %v606
        %v959 = vunpack.c.l.b16 %v607
        %v960 = vunpack.c.l.b16 %v608
        %v961 = vunpack.c.l.b16 %v609
        %v962 = vunpack.c.l.b16 %v610
        %v963 = vunpack.c.l.b16 %v611
        %v964 = vunpack.c.l.b16 %v612
        %v965 = vunpack.c.l.b16 %v613
        %v966 = vunpack.c.l.b16 %v614
        %v967 = vunpack.c.l.b16 %v615
        %v968 = vunpack.c.l.b16 %v616
        %v969 = vunpack.c.l.b16 %v617
        %v970 = vunpack.c.l.b16 %v618
        %v971 = vunpack.c.l.b16 %v619
        %v972 = vunpack.c.l.b16 %v620
        %v973 = vunpack.c.l.b16 %v621
        %v974 = vunpack.c.l.b16 %v622
        %v975 = vunpack.c.l.b16 %v623
        %v976 = vunpack.c.l.b16 %v624
        %v977 = vunpack.c.l.b16 %v625
        %v978 = vunpack.c.l.b16 %v626
        %v979 = vunpack.c.l.b16 %v627
        %v980 = vunpack.c.l.b16 %v628
        %v981 = vunpack.c.l.b16 %v629
        %v982 = vpack.c.b16 %v935, %v934
        %v983 = vpack.c.b16 %v937, %v936
        %v984 = vpack.c.b16 %v939, %v938
        %v985 = vpack.c.b16 %v941, %v940
        %v986 = vpack.c.b16 %v943, %v942
        %v987 = vpack.c.b16 %v945, %v944
        %v988 = vpack.c.b16 %v947, %v946
        %v989 = vpack.c.b16 %v949, %v948
        %v990 = vpack.c.b16 %v951, %v950
        %v991 = vpack.c.b16 %v953, %v952
        %v992 = vpack.c.b16 %v955, %v954
        %v993 = vpack.c.b16 %v957, %v956
        %v994 = vpack.c.b16 %v959, %v958
        %v995 = vpack.c.b16 %v961, %v960
        %v996 = vpack.c.b16 %v963, %v962
        %v997 = vpack.c.b16 %v965, %v964
        %v998 = vpack.c.b16 %v967, %v966
        %v999 = vpack.c.b16 %v969, %v968
        %v1000 = vpack.c.b16 %v971, %v970
        %v1001 = vpack.c.b16 %v973, %v972
        %v1002 = vpack.c.b16 %v975, %v974
        %v1003 = vpack.c.b16 %v977, %v976
        %v1004 = vpack.c.b16 %v979, %v978
        %v1005 = vpack.c.b16 %v981, %v980
        %1030 = vmatpush.bf16.msra.mxu0 %v989
        %1031 = vmatpush.bf16.msra.mxu0 %v988
        %1032 = vmatpush.bf16.msra.mxu0 %v987
        %1033 = vmatpush.bf16.msra.mxu0 %v986
        %1034 = vmatpush.bf16.msra.mxu0 %v985
        %1035 = vmatpush.bf16.msra.mxu0 %v984
        %1036 = vmatpush.bf16.msra.mxu0 %v983
        %1037 = vmatpush.bf16.msra.mxu0 %v982
        %1038 = vmatmul.bf16.gmra.mxu0 %v790
        %v1039 = vpop.f32.mrf.mxu0
        %v1040 = vadd.f32 0.0, %v1039
        %v1041 = vpop.f32.mrf.mxu0
        %v1042 = vadd.f32 0.0, %v1041
        %1043 = vmatmul.bf16.gmra.mxu0 %v793
        %v1044 = vpop.f32.mrf.mxu0
        %v1045 = vadd.f32 0.0, %v1044
        %v1046 = vpop.f32.mrf.mxu0
        %v1047 = vadd.f32 0.0, %v1046
        %1048 = vmatmul.bf16.gmra.mxu0 %v796
        %v1049 = vpop.f32.mrf.mxu0
        %v1050 = vadd.f32 0.0, %v1049
        %v1051 = vpop.f32.mrf.mxu0
        %v1052 = vadd.f32 0.0, %v1051
        %1053 = vmatmul.bf16.gmra.mxu0 %v799
        %v1054 = vpop.f32.mrf.mxu0
        %v1055 = vadd.f32 0.0, %v1054
        %v1056 = vpop.f32.mrf.mxu0
        %v1057 = vadd.f32 0.0, %v1056
        %1058 = vmatmul.bf16.gmra.mxu0 %v802
        %v1059 = vpop.f32.mrf.mxu0
        %v1060 = vadd.f32 0.0, %v1059
        %v1061 = vpop.f32.mrf.mxu0
        %v1062 = vadd.f32 0.0, %v1061
        %1063 = vmatmul.bf16.gmra.mxu0 %v805
        %v1064 = vpop.f32.mrf.mxu0
        %v1065 = vadd.f32 0.0, %v1064
        %v1066 = vpop.f32.mrf.mxu0
        %v1067 = vadd.f32 0.0, %v1066
        %1068 = vmatmul.bf16.gmra.mxu0 %v808
        %v1069 = vpop.f32.mrf.mxu0
        %v1070 = vadd.f32 0.0, %v1069
        %v1071 = vpop.f32.mrf.mxu0
        %v1072 = vadd.f32 0.0, %v1071
        %1073 = vmatmul.bf16.gmra.mxu0 %v811
        %v1074 = vpop.f32.mrf.mxu0
        %v1075 = vadd.f32 0.0, %v1074
        %v1076 = vpop.f32.mrf.mxu0
        %v1077 = vadd.f32 0.0, %v1076
        %1078 = vmatmul.bf16.gmra.mxu0 %v814
        %v1079 = vpop.f32.mrf.mxu0
        %v1080 = vadd.f32 0.0, %v1079
        %v1081 = vpop.f32.mrf.mxu0
        %v1082 = vadd.f32 0.0, %v1081
        %1083 = vmatmul.bf16.gmra.mxu0 %v817
        %v1084 = vpop.f32.mrf.mxu0
        %v1085 = vadd.f32 0.0, %v1084
        %v1086 = vpop.f32.mrf.mxu0
        %v1087 = vadd.f32 0.0, %v1086
        %1088 = vmatmul.bf16.gmra.mxu0 %v820
        %v1089 = vpop.f32.mrf.mxu0
        %v1090 = vadd.f32 0.0, %v1089
        %v1091 = vpop.f32.mrf.mxu0
        %v1092 = vadd.f32 0.0, %v1091
        %1093 = vmatmul.bf16.gmra.mxu0 %v823
        %v1094 = vpop.f32.mrf.mxu0
        %v1095 = vadd.f32 0.0, %v1094
        %v1096 = vpop.f32.mrf.mxu0
        %v1097 = vadd.f32 0.0, %v1096
        %1098 = vmatmul.bf16.gmra.mxu0 %v826
        %v1099 = vpop.f32.mrf.mxu0
        %v1100 = vadd.f32 0.0, %v1099
        %v1101 = vpop.f32.mrf.mxu0
        %v1102 = vadd.f32 0.0, %v1101
        %1103 = vmatmul.bf16.gmra.mxu0 %v829
        %v1104 = vpop.f32.mrf.mxu0
        %v1105 = vadd.f32 0.0, %v1104
        %v1106 = vpop.f32.mrf.mxu0
        %v1107 = vadd.f32 0.0, %v1106
        %1108 = vmatmul.bf16.gmra.mxu0 %v832
        %v1109 = vpop.f32.mrf.mxu0
        %v1110 = vadd.f32 0.0, %v1109
        %v1111 = vpop.f32.mrf.mxu0
        %v1112 = vadd.f32 0.0, %v1111
        %1113 = vmatmul.bf16.gmra.mxu0 %v835
        %v1114 = vpop.f32.mrf.mxu0
        %v1115 = vadd.f32 0.0, %v1114
        %v1116 = vpop.f32.mrf.mxu0
        %v1117 = vadd.f32 0.0, %v1116
        %1118 = vdwg.mxu0
        %1119 = vmatpush.bf16.msra.mxu0 %v997
        %1120 = vmatpush.bf16.msra.mxu0 %v996
        %1121 = vmatpush.bf16.msra.mxu0 %v995
        %1122 = vmatpush.bf16.msra.mxu0 %v994
        %1123 = vmatpush.bf16.msra.mxu0 %v993
        %1124 = vmatpush.bf16.msra.mxu0 %v992
        %1125 = vmatpush.bf16.msra.mxu0 %v991
        %1126 = vmatpush.bf16.msra.mxu0 %v990
        %1127 = vmatmul.bf16.gmra.mxu0 %v791
        %v1128 = vpop.f32.mrf.mxu0
        %v1129 = vadd.f32 %v1040, %v1128
        %v1130 = vpop.f32.mrf.mxu0
        %v1131 = vadd.f32 %v1042, %v1130
        %1132 = vmatmul.bf16.gmra.mxu0 %v794
        %v1133 = vpop.f32.mrf.mxu0
        %v1134 = vadd.f32 %v1045, %v1133
        %v1135 = vpop.f32.mrf.mxu0
        %v1136 = vadd.f32 %v1047, %v1135
        %1137 = vmatmul.bf16.gmra.mxu0 %v797
        %v1138 = vpop.f32.mrf.mxu0
        %v1139 = vadd.f32 %v1050, %v1138
        %v1140 = vpop.f32.mrf.mxu0
        %v1141 = vadd.f32 %v1052, %v1140
        %1142 = vmatmul.bf16.gmra.mxu0 %v800
        %v1143 = vpop.f32.mrf.mxu0
        %v1144 = vadd.f32 %v1055, %v1143
        %v1145 = vpop.f32.mrf.mxu0
        %v1146 = vadd.f32 %v1057, %v1145
        %1147 = vmatmul.bf16.gmra.mxu0 %v803
        %v1148 = vpop.f32.mrf.mxu0
        %v1149 = vadd.f32 %v1060, %v1148
        %v1150 = vpop.f32.mrf.mxu0
        %v1151 = vadd.f32 %v1062, %v1150
        %1152 = vmatmul.bf16.gmra.mxu0 %v806
        %v1153 = vpop.f32.mrf.mxu0
        %v1154 = vadd.f32 %v1065, %v1153
        %v1155 = vpop.f32.mrf.mxu0
        %v1156 = vadd.f32 %v1067, %v1155
        %1157 = vmatmul.bf16.gmra.mxu0 %v809
        %v1158 = vpop.f32.mrf.mxu0
        %v1159 = vadd.f32 %v1070, %v1158
        %v1160 = vpop.f32.mrf.mxu0
        %v1161 = vadd.f32 %v1072, %v1160
        %1162 = vmatmul.bf16.gmra.mxu0 %v812
        %v1163 = vpop.f32.mrf.mxu0
        %v1164 = vadd.f32 %v1075, %v1163
        %v1165 = vpop.f32.mrf.mxu0
        %v1166 = vadd.f32 %v1077, %v1165
        %1167 = vmatmul.bf16.gmra.mxu0 %v815
        %v1168 = vpop.f32.mrf.mxu0
        %v1169 = vadd.f32 %v1080, %v1168
        %v1170 = vpop.f32.mrf.mxu0
        %v1171 = vadd.f32 %v1082, %v1170
        %1172 = vmatmul.bf16.gmra.mxu0 %v818
        %v1173 = vpop.f32.mrf.mxu0
        %v1174 = vadd.f32 %v1085, %v1173
        %v1175 = vpop.f32.mrf.mxu0
        %v1176 = vadd.f32 %v1087, %v1175
        %1177 = vmatmul.bf16.gmra.mxu0 %v821
        %v1178 = vpop.f32.mrf.mxu0
        %v1179 = vadd.f32 %v1090, %v1178
        %v1180 = vpop.f32.mrf.mxu0
        %v1181 = vadd.f32 %v1092, %v1180
        %1182 = vmatmul.bf16.gmra.mxu0 %v824
        %v1183 = vpop.f32.mrf.mxu0
        %v1184 = vadd.f32 %v1095, %v1183
        %v1185 = vpop.f32.mrf.mxu0
        %v1186 = vadd.f32 %v1097, %v1185
        %1187 = vmatmul.bf16.gmra.mxu0 %v827
        %v1188 = vpop.f32.mrf.mxu0
        %v1189 = vadd.f32 %v1100, %v1188
        %v1190 = vpop.f32.mrf.mxu0
        %v1191 = vadd.f32 %v1102, %v1190
        %1192 = vmatmul.bf16.gmra.mxu0 %v830
        %v1193 = vpop.f32.mrf.mxu0
        %v1194 = vadd.f32 %v1105, %v1193
        %v1195 = vpop.f32.mrf.mxu0
        %v1196 = vadd.f32 %v1107, %v1195
        %1197 = vmatmul.bf16.gmra.mxu0 %v833
        %v1198 = vpop.f32.mrf.mxu0
        %v1199 = vadd.f32 %v1110, %v1198
        %v1200 = vpop.f32.mrf.mxu0
        %v1201 = vadd.f32 %v1112, %v1200
        %1202 = vmatmul.bf16.gmra.mxu0 %v836
        %v1203 = vpop.f32.mrf.mxu0
        %v1204 = vadd.f32 %v1115, %v1203
        %v1205 = vpop.f32.mrf.mxu0
        %v1206 = vadd.f32 %v1117, %v1205
        %1207 = vdwg.mxu0
        %1208 = vmatpush.bf16.msra.mxu0 %v1005
        %1209 = vmatpush.bf16.msra.mxu0 %v1004
        %1210 = vmatpush.bf16.msra.mxu0 %v1003
        %1211 = vmatpush.bf16.msra.mxu0 %v1002
        %1212 = vmatpush.bf16.msra.mxu0 %v1001
        %1213 = vmatpush.bf16.msra.mxu0 %v1000
        %1214 = vmatpush.bf16.msra.mxu0 %v999
        %1215 = vmatpush.bf16.msra.mxu0 %v998
        %1216 = vmatmul.bf16.gmra.mxu0 %v792
        %v1217 = vpop.f32.mrf.mxu0
        %v1218 = vadd.f32 %v1129, %v1217
        %v1219 = vpop.f32.mrf.mxu0
        %v1220 = vadd.f32 %v1131, %v1219
        %1221 = vmatmul.bf16.gmra.mxu0 %v795
        %v1222 = vpop.f32.mrf.mxu0
        %v1223 = vadd.f32 %v1134, %v1222
        %v1224 = vpop.f32.mrf.mxu0
        %v1225 = vadd.f32 %v1136, %v1224
        %1226 = vmatmul.bf16.gmra.mxu0 %v798
        %v1227 = vpop.f32.mrf.mxu0
        %v1228 = vadd.f32 %v1139, %v1227
        %v1229 = vpop.f32.mrf.mxu0
        %v1230 = vadd.f32 %v1141, %v1229
        %1231 = vmatmul.bf16.gmra.mxu0 %v801
        %v1232 = vpop.f32.mrf.mxu0
        %v1233 = vadd.f32 %v1144, %v1232
        %v1234 = vpop.f32.mrf.mxu0
        %v1235 = vadd.f32 %v1146, %v1234
        %1236 = vmatmul.bf16.gmra.mxu0 %v804
        %v1237 = vpop.f32.mrf.mxu0
        %v1238 = vadd.f32 %v1149, %v1237
        %v1239 = vpop.f32.mrf.mxu0
        %v1240 = vadd.f32 %v1151, %v1239
        %1241 = vmatmul.bf16.gmra.mxu0 %v807
        %v1242 = vpop.f32.mrf.mxu0
        %v1243 = vadd.f32 %v1154, %v1242
        %v1244 = vpop.f32.mrf.mxu0
        %v1245 = vadd.f32 %v1156, %v1244
        %1246 = vmatmul.bf16.gmra.mxu0 %v810
        %v1247 = vpop.f32.mrf.mxu0
        %v1248 = vadd.f32 %v1159, %v1247
        %v1249 = vpop.f32.mrf.mxu0
        %v1250 = vadd.f32 %v1161, %v1249
        %1251 = vmatmul.bf16.gmra.mxu0 %v813
        %v1252 = vpop.f32.mrf.mxu0
        %v1253 = vadd.f32 %v1164, %v1252
        %v1254 = vpop.f32.mrf.mxu0
        %v1255 = vadd.f32 %v1166, %v1254
        %1256 = vmatmul.bf16.gmra.mxu0 %v816
        %v1257 = vpop.f32.mrf.mxu0
        %v1258 = vadd.f32 %v1169, %v1257
        %v1259 = vpop.f32.mrf.mxu0
        %v1260 = vadd.f32 %v1171, %v1259
        %1261 = vmatmul.bf16.gmra.mxu0 %v819
        %v1262 = vpop.f32.mrf.mxu0
        %v1263 = vadd.f32 %v1174, %v1262
        %v1264 = vpop.f32.mrf.mxu0
        %v1265 = vadd.f32 %v1176, %v1264
        %1266 = vmatmul.bf16.gmra.mxu0 %v822
        %v1267 = vpop.f32.mrf.mxu0
        %v1268 = vadd.f32 %v1179, %v1267
        %v1269 = vpop.f32.mrf.mxu0
        %v1270 = vadd.f32 %v1181, %v1269
        %1271 = vmatmul.bf16.gmra.mxu0 %v825
        %v1272 = vpop.f32.mrf.mxu0
        %v1273 = vadd.f32 %v1184, %v1272
        %v1274 = vpop.f32.mrf.mxu0
        %v1275 = vadd.f32 %v1186, %v1274
        %1276 = vmatmul.bf16.gmra.mxu0 %v828
        %v1277 = vpop.f32.mrf.mxu0
        %v1278 = vadd.f32 %v1189, %v1277
        %v1279 = vpop.f32.mrf.mxu0
        %v1280 = vadd.f32 %v1191, %v1279
        %1281 = vmatmul.bf16.gmra.mxu0 %v831
        %v1282 = vpop.f32.mrf.mxu0
        %v1283 = vadd.f32 %v1194, %v1282
        %v1284 = vpop.f32.mrf.mxu0
        %v1285 = vadd.f32 %v1196, %v1284
        %1286 = vmatmul.bf16.gmra.mxu0 %v834
        %v1287 = vpop.f32.mrf.mxu0
        %v1288 = vadd.f32 %v1199, %v1287
        %v1289 = vpop.f32.mrf.mxu0
        %v1290 = vadd.f32 %v1201, %v1289
        %1291 = vmatmul.bf16.gmra.mxu0 %v837
        %v1292 = vpop.f32.mrf.mxu0
        %v1293 = vadd.f32 %v1204, %v1292
        %v1294 = vpop.f32.mrf.mxu0
        %v1295 = vadd.f32 %v1206, %v1294
        %1296 = vdwg.mxu0
        %v1297 = vadd.f32 %v486, %v1218
        %v1298 = vadd.f32 %v487, %v1220
        %v1299 = vadd.f32 %v488, %v1223
        %v1300 = vadd.f32 %v489, %v1225
        %v1301 = vadd.f32 %v490, %v1228
        %v1302 = vadd.f32 %v491, %v1230
        %v1303 = vadd.f32 %v492, %v1233
        %v1304 = vadd.f32 %v493, %v1235
        %v1305 = vadd.f32 %v494, %v1238
        %v1306 = vadd.f32 %v495, %v1240
        %v1307 = vadd.f32 %v496, %v1243
        %v1308 = vadd.f32 %v497, %v1245
        %v1309 = vadd.f32 %v498, %v1248
        %v1310 = vadd.f32 %v499, %v1250
        %v1311 = vadd.f32 %v500, %v1253
        %v1312 = vadd.f32 %v501, %v1255
        %v1313 = vadd.f32 %v502, %v1258
        %v1314 = vadd.f32 %v503, %v1260
        %v1315 = vadd.f32 %v504, %v1263
        %v1316 = vadd.f32 %v505, %v1265
        %v1317 = vadd.f32 %v506, %v1268
        %v1318 = vadd.f32 %v507, %v1270
        %v1319 = vadd.f32 %v508, %v1273
        %v1320 = vadd.f32 %v509, %v1275
        %v1321 = vadd.f32 %v510, %v1278
        %v1322 = vadd.f32 %v511, %v1280
        %v1323 = vadd.f32 %v512, %v1283
        %v1324 = vadd.f32 %v513, %v1285
        %v1325 = vadd.f32 %v514, %v1288
        %v1326 = vadd.f32 %v515, %v1290
        %v1327 = vadd.f32 %v516, %v1293
        %v1328 = vadd.f32 %v517, %v1295
        %1329 = vst [vmem:[#allocation2] sm:$0xff] %v1297
        %1330 = vst [vmem:[#allocation2 + $0x8] sm:$0xff] %v1298
        %1331 = vst [vmem:[#allocation2 + $0x10] sm:$0xff] %v1299
        %1332 = vst [vmem:[#allocation2 + $0x18] sm:$0xff] %v1300
        %1333 = vst [vmem:[#allocation2 + $0x20] sm:$0xff] %v1301
        %1334 = vst [vmem:[#allocation2 + $0x28] sm:$0xff] %v1302
        %1335 = vst [vmem:[#allocation2 + $0x30] sm:$0xff] %v1303
        %1336 = vst [vmem:[#allocation2 + $0x38] sm:$0xff] %v1304
        %1337 = vst [vmem:[#allocation2 + $0x40] sm:$0xff] %v1305
        %1338 = vst [vmem:[#allocation2 + $0x48] sm:$0xff] %v1306
        %1339 = vst [vmem:[#allocation2 + $0x50] sm:$0xff] %v1307
        %1340 = vst [vmem:[#allocation2 + $0x58] sm:$0xff] %v1308
        %1341 = vst [vmem:[#allocation2 + $0x60] sm:$0xff] %v1309
        %1342 = vst [vmem:[#allocation2 + $0x68] sm:$0xff] %v1310
        %1343 = vst [vmem:[#allocation2 + $0x70] sm:$0xff] %v1311
        %1344 = vst [vmem:[#allocation2 + $0x78] sm:$0xff] %v1312
        %1345 = vst [vmem:[#allocation2 + $0x80] sm:$0xff] %v1313
        %1346 = vst [vmem:[#allocation2 + $0x88] sm:$0xff] %v1314
        %1347 = vst [vmem:[#allocation2 + $0x90] sm:$0xff] %v1315
        %1348 = vst [vmem:[#allocation2 + $0x98] sm:$0xff] %v1316
        %1349 = vst [vmem:[#allocation2 + $0xa0] sm:$0xff] %v1317
        %1350 = vst [vmem:[#allocation2 + $0xa8] sm:$0xff] %v1318
        %1351 = vst [vmem:[#allocation2 + $0xb0] sm:$0xff] %v1319
        %1352 = vst [vmem:[#allocation2 + $0xb8] sm:$0xff] %v1320
        %1353 = vst [vmem:[#allocation2 + $0xc0] sm:$0xff] %v1321
        %1354 = vst [vmem:[#allocation2 + $0xc8] sm:$0xff] %v1322
        %1355 = vst [vmem:[#allocation2 + $0xd0] sm:$0xff] %v1323
        %1356 = vst [vmem:[#allocation2 + $0xd8] sm:$0xff] %v1324
        %1357 = vst [vmem:[#allocation2 + $0xe0] sm:$0xff] %v1325
        %1358 = vst [vmem:[#allocation2 + $0xe8] sm:$0xff] %v1326
        %1359 = vst [vmem:[#allocation2 + $0xf0] sm:$0xff] %v1327
        %1360 = vst [vmem:[#allocation2 + $0xf8] sm:$0xff] %v1328
        %p1361 = scmp.eq.s32.totalorder %s22, 2
        // Predicated region
        $region67: #{_lambda_.11} parent=57 // pred_check
          %p1362 = pneg %p1361
        $region68: #{_lambda_.11} parent=57 // pred_check_branch
          %1364 = sbr.rel (%p1362) target = $region70
        $region69: #{_lambda_.11} parent=57 // pred_region
          %v1365 = vld [vmem:[#allocation2] sm:$0xff]
          %v1366 = vld [vmem:[#allocation2 + $0x8] sm:$0xff]
          %v1367 = vld [vmem:[#allocation2 + $0x10] sm:$0xff]
          %v1368 = vld [vmem:[#allocation2 + $0x18] sm:$0xff]
          %v1369 = vld [vmem:[#allocation2 + $0x20] sm:$0xff]
          %v1370 = vld [vmem:[#allocation2 + $0x28] sm:$0xff]
          %v1371 = vld [vmem:[#allocation2 + $0x30] sm:$0xff]
          %v1372 = vld [vmem:[#allocation2 + $0x38] sm:$0xff]
          %v1373 = vld [vmem:[#allocation2 + $0x40] sm:$0xff]
          %v1374 = vld [vmem:[#allocation2 + $0x48] sm:$0xff]
          %v1375 = vld [vmem:[#allocation2 + $0x50] sm:$0xff]
          %v1376 = vld [vmem:[#allocation2 + $0x58] sm:$0xff]
          %v1377 = vld [vmem:[#allocation2 + $0x60] sm:$0xff]
          %v1378 = vld [vmem:[#allocation2 + $0x68] sm:$0xff]
          %v1379 = vld [vmem:[#allocation2 + $0x70] sm:$0xff]
          %v1380 = vld [vmem:[#allocation2 + $0x78] sm:$0xff]
          %v1381 = vld [vmem:[#allocation2 + $0x80] sm:$0xff]
          %v1382 = vld [vmem:[#allocation2 + $0x88] sm:$0xff]
          %v1383 = vld [vmem:[#allocation2 + $0x90] sm:$0xff]
          %v1384 = vld [vmem:[#allocation2 + $0x98] sm:$0xff]
          %v1385 = vld [vmem:[#allocation2 + $0xa0] sm:$0xff]
          %v1386 = vld [vmem:[#allocation2 + $0xa8] sm:$0xff]
          %v1387 = vld [vmem:[#allocation2 + $0xb0] sm:$0xff]
          %v1388 = vld [vmem:[#allocation2 + $0xb8] sm:$0xff]
          %v1389 = vld [vmem:[#allocation2 + $0xc0] sm:$0xff]
          %v1390 = vld [vmem:[#allocation2 + $0xc8] sm:$0xff]
          %v1391 = vld [vmem:[#allocation2 + $0xd0] sm:$0xff]
          %v1392 = vld [vmem:[#allocation2 + $0xd8] sm:$0xff]
          %v1393 = vld [vmem:[#allocation2 + $0xe0] sm:$0xff]
          %v1394 = vld [vmem:[#allocation2 + $0xe8] sm:$0xff]
          %v1395 = vld [vmem:[#allocation2 + $0xf0] sm:$0xff]
          %v1396 = vld [vmem:[#allocation2 + $0xf8] sm:$0xff]
          %v1397 = vld [vmem:[%s437] sm:$0x1]
          %v1399 = vperm.slane %v1397, 0
          %v1401 = vmul.f32 %v1365, %v1399
          %v1402 = vmul.f32 %v1366, %v1399
          %v1403 = vmul.f32 %v1367, %v1399
          %v1404 = vmul.f32 %v1368, %v1399
          %v1405 = vmul.f32 %v1369, %v1399
          %v1406 = vmul.f32 %v1370, %v1399
          %v1407 = vmul.f32 %v1371, %v1399
          %v1408 = vmul.f32 %v1372, %v1399
          %v1409 = vmul.f32 %v1373, %v1399
          %v1410 = vmul.f32 %v1374, %v1399
          %v1411 = vmul.f32 %v1375, %v1399
          %v1412 = vmul.f32 %v1376, %v1399
          %v1413 = vmul.f32 %v1377, %v1399
          %v1414 = vmul.f32 %v1378, %v1399
          %v1415 = vmul.f32 %v1379, %v1399
          %v1416 = vmul.f32 %v1380, %v1399
          %v1417 = vmul.f32 %v1381, %v1399
          %v1418 = vmul.f32 %v1382, %v1399
          %v1419 = vmul.f32 %v1383, %v1399
          %v1420 = vmul.f32 %v1384, %v1399
          %v1421 = vmul.f32 %v1385, %v1399
          %v1422 = vmul.f32 %v1386, %v1399
          %v1423 = vmul.f32 %v1387, %v1399
          %v1424 = vmul.f32 %v1388, %v1399
          %v1425 = vmul.f32 %v1389, %v1399
          %v1426 = vmul.f32 %v1390, %v1399
          %v1427 = vmul.f32 %v1391, %v1399
          %v1428 = vmul.f32 %v1392, %v1399
          %v1429 = vmul.f32 %v1393, %v1399
          %v1430 = vmul.f32 %v1394, %v1399
          %v1431 = vmul.f32 %v1395, %v1399
          %v1432 = vmul.f32 %v1396, %v1399
          %v1433 = vld [vmem:[%s440] sm:$0x1]
          %v1435 = vperm.slane %v1433, 0
          %v1437 = vadd.f32 %v1401, %v1435
          %v1438 = vadd.f32 %v1402, %v1435
          %v1439 = vadd.f32 %v1403, %v1435
          %v1440 = vadd.f32 %v1404, %v1435
          %v1441 = vadd.f32 %v1405, %v1435
          %v1442 = vadd.f32 %v1406, %v1435
          %v1443 = vadd.f32 %v1407, %v1435
          %v1444 = vadd.f32 %v1408, %v1435
          %v1445 = vadd.f32 %v1409, %v1435
          %v1446 = vadd.f32 %v1410, %v1435
          %v1447 = vadd.f32 %v1411, %v1435
          %v1448 = vadd.f32 %v1412, %v1435
          %v1449 = vadd.f32 %v1413, %v1435
          %v1450 = vadd.f32 %v1414, %v1435
          %v1451 = vadd.f32 %v1415, %v1435
          %v1452 = vadd.f32 %v1416, %v1435
          %v1453 = vadd.f32 %v1417, %v1435
          %v1454 = vadd.f32 %v1418, %v1435
          %v1455 = vadd.f32 %v1419, %v1435
          %v1456 = vadd.f32 %v1420, %v1435
          %v1457 = vadd.f32 %v1421, %v1435
          %v1458 = vadd.f32 %v1422, %v1435
          %v1459 = vadd.f32 %v1423, %v1435
          %v1460 = vadd.f32 %v1424, %v1435
          %v1461 = vadd.f32 %v1425, %v1435
          %v1462 = vadd.f32 %v1426, %v1435
          %v1463 = vadd.f32 %v1427, %v1435
          %v1464 = vadd.f32 %v1428, %v1435
          %v1465 = vadd.f32 %v1429, %v1435
          %v1466 = vadd.f32 %v1430, %v1435
          %v1467 = vadd.f32 %v1431, %v1435
          %v1468 = vadd.f32 %v1432, %v1435
          %v1469 = vmax.f32 %v1437, 0.0
          %v1470 = vmax.f32 %v1438, 0.0
          %v1471 = vmax.f32 %v1439, 0.0
          %v1472 = vmax.f32 %v1440, 0.0
          %v1473 = vmax.f32 %v1441, 0.0
          %v1474 = vmax.f32 %v1442, 0.0
          %v1475 = vmax.f32 %v1443, 0.0
          %v1476 = vmax.f32 %v1444, 0.0
          %v1477 = vmax.f32 %v1445, 0.0
          %v1478 = vmax.f32 %v1446, 0.0
          %v1479 = vmax.f32 %v1447, 0.0
          %v1480 = vmax.f32 %v1448, 0.0
          %v1481 = vmax.f32 %v1449, 0.0
          %v1482 = vmax.f32 %v1450, 0.0
          %v1483 = vmax.f32 %v1451, 0.0
          %v1484 = vmax.f32 %v1452, 0.0
          %v1485 = vmax.f32 %v1453, 0.0
          %v1486 = vmax.f32 %v1454, 0.0
          %v1487 = vmax.f32 %v1455, 0.0
          %v1488 = vmax.f32 %v1456, 0.0
          %v1489 = vmax.f32 %v1457, 0.0
          %v1490 = vmax.f32 %v1458, 0.0
          %v1491 = vmax.f32 %v1459, 0.0
          %v1492 = vmax.f32 %v1460, 0.0
          %v1493 = vmax.f32 %v1461, 0.0
          %v1494 = vmax.f32 %v1462, 0.0
          %v1495 = vmax.f32 %v1463, 0.0
          %v1496 = vmax.f32 %v1464, 0.0
          %v1497 = vmax.f32 %v1465, 0.0
          %v1498 = vmax.f32 %v1466, 0.0
          %v1499 = vmax.f32 %v1467, 0.0
          %v1500 = vmax.f32 %v1468, 0.0
          %v1501 = vpack.c.bf16 %v1469, %v1469
          %v1502 = vpack.c.bf16 %v1470, %v1470
          %v1503 = vpack.c.bf16 %v1471, %v1471
          %v1504 = vpack.c.bf16 %v1472, %v1472
          %v1505 = vpack.c.bf16 %v1473, %v1473
          %v1506 = vpack.c.bf16 %v1474, %v1474
          %v1507 = vpack.c.bf16 %v1475, %v1475
          %v1508 = vpack.c.bf16 %v1476, %v1476
          %v1509 = vpack.c.bf16 %v1477, %v1477
          %v1510 = vpack.c.bf16 %v1478, %v1478
          %v1511 = vpack.c.bf16 %v1479, %v1479
          %v1512 = vpack.c.bf16 %v1480, %v1480
          %v1513 = vpack.c.bf16 %v1481, %v1481
          %v1514 = vpack.c.bf16 %v1482, %v1482
          %v1515 = vpack.c.bf16 %v1483, %v1483
          %v1516 = vpack.c.bf16 %v1484, %v1484
          %v1517 = vpack.c.bf16 %v1485, %v1485
          %v1518 = vpack.c.bf16 %v1486, %v1486
          %v1519 = vpack.c.bf16 %v1487, %v1487
          %v1520 = vpack.c.bf16 %v1488, %v1488
          %v1521 = vpack.c.bf16 %v1489, %v1489
          %v1522 = vpack.c.bf16 %v1490, %v1490
          %v1523 = vpack.c.bf16 %v1491, %v1491
          %v1524 = vpack.c.bf16 %v1492, %v1492
          %v1525 = vpack.c.bf16 %v1493, %v1493
          %v1526 = vpack.c.bf16 %v1494, %v1494
          %v1527 = vpack.c.bf16 %v1495, %v1495
          %v1528 = vpack.c.bf16 %v1496, %v1496
          %v1529 = vpack.c.bf16 %v1497, %v1497
          %v1530 = vpack.c.bf16 %v1498, %v1498
          %v1531 = vpack.c.bf16 %v1499, %v1499
          %v1532 = vpack.c.bf16 %v1500, %v1500
          %1533 = vst [vmem:[%s448] sm:$0xf] %v1501
          %1534 = vst [vmem:[%s448 + $0x4] sm:$0xf] %v1502
          %1535 = vst [vmem:[%s448 + $0x8] sm:$0xf] %v1503
          %1536 = vst [vmem:[%s448 + $0xc] sm:$0xf] %v1504
          %1537 = vst [vmem:[%s448 + $0x10] sm:$0xf] %v1505
          %1538 = vst [vmem:[%s448 + $0x14] sm:$0xf] %v1506
          %1539 = vst [vmem:[%s448 + $0x18] sm:$0xf] %v1507
          %1540 = vst [vmem:[%s448 + $0x1c] sm:$0xf] %v1508
          %1541 = vst [vmem:[%s448 + $0x20] sm:$0xf] %v1509
          %1542 = vst [vmem:[%s448 + $0x24] sm:$0xf] %v1510
          %1543 = vst [vmem:[%s448 + $0x28] sm:$0xf] %v1511
          %1544 = vst [vmem:[%s448 + $0x2c] sm:$0xf] %v1512
          %1545 = vst [vmem:[%s448 + $0x30] sm:$0xf] %v1513
          %1546 = vst [vmem:[%s448 + $0x34] sm:$0xf] %v1514
          %1547 = vst [vmem:[%s448 + $0x38] sm:$0xf] %v1515
          %1548 = vst [vmem:[%s448 + $0x3c] sm:$0xf] %v1516
          %1549 = vst [vmem:[%s448 + $0x40] sm:$0xf] %v1517
          %1550 = vst [vmem:[%s448 + $0x44] sm:$0xf] %v1518
          %1551 = vst [vmem:[%s448 + $0x48] sm:$0xf] %v1519
          %1552 = vst [vmem:[%s448 + $0x4c] sm:$0xf] %v1520
          %1553 = vst [vmem:[%s448 + $0x50] sm:$0xf] %v1521
          %1554 = vst [vmem:[%s448 + $0x54] sm:$0xf] %v1522
          %1555 = vst [vmem:[%s448 + $0x58] sm:$0xf] %v1523
          %1556 = vst [vmem:[%s448 + $0x5c] sm:$0xf] %v1524
          %1557 = vst [vmem:[%s448 + $0x60] sm:$0xf] %v1525
          %1558 = vst [vmem:[%s448 + $0x64] sm:$0xf] %v1526
          %1559 = vst [vmem:[%s448 + $0x68] sm:$0xf] %v1527
          %1560 = vst [vmem:[%s448 + $0x6c] sm:$0xf] %v1528
          %1561 = vst [vmem:[%s448 + $0x70] sm:$0xf] %v1529
          %1562 = vst [vmem:[%s448 + $0x74] sm:$0xf] %v1530
          %1563 = vst [vmem:[%s448 + $0x78] sm:$0xf] %v1531
          %1564 = vst [vmem:[%s448 + $0x7c] sm:$0xf] %v1532
        $region70: #{_lambda_.11} parent=57 // pred_fallthru
          _
        %s1565 = smul.u32 32, %s20
        %p1566 = scmp.lt.s32.totalorder %s1565, 63
        %s1567 = scalar_select %p1566, %s1565, 63
        %p1568 = scmp.lt.s32.totalorder %s21, 0
        %s1569 = scalar_select %p1568, %s21, 0
        %s1570 = sadd.s32 %s1569, %s1567
        %s1571 = smul.addr %s1570, 4
        %s1572 = scalar_lea.vmem %s4, %s1571
        // Predicated region
        $region71: #{_lambda_.11} parent=57 // pred_check
          %p1573 = pneg %p162
        $region72: #{_lambda_.11} parent=57 // pred_check_branch
          %1575 = sbr.rel (%p1573) target = $region74
        $region73: #{_lambda_.11} parent=57 // pred_region
          %s1576 = smul.u32 32, %s20
        $region74: #{_lambda_.11} parent=57 // pred_fallthru
          _
      $region58: #{_lambda_.11} parent=5 // pred_fallthru
        _
      %p1577 = scmp.le.s32.totalorder 2, %s10
      // Predicated region
      $region75: #{_lambda_.11} parent=5 // pred_check
        %p1578 = pneg %p1577
      $region76: #{_lambda_.11} parent=5 // pred_check_branch
        %1580 = sbr.rel (%p1578) target = $region78
      $region77: #{_lambda_.11} parent=5 // pred_region
        %s1581 = ssub.s32 %s10, 2
        // Predicated region
        $region79: #{_lambda_.11} parent=77 // pred_check
          %p1582 = pneg %p168
        $region80: #{_lambda_.11} parent=77 // pred_check_branch
          %1584 = sbr.rel (%p1582) target = $region82
        $region81: #{_lambda_.11} parent=77 // pred_region
          %s1585 = smul.u32 32, %s23
          %p1586 = scmp.lt.s32.totalorder %s1585, 63
          %s1587 = scalar_select %p1586, %s1585, 63
          %p1588 = scmp.lt.s32.totalorder %s24, 0
          %s1589 = scalar_select %p1588, %s24, 0
          %s1590 = sadd.s32 %s1589, %s1587
          %s1591 = smul.addr %s1590, 4
          %s1592 = scalar_lea.vmem %s4, %s1591
        $region82: #{_lambda_.11} parent=77 // pred_fallthru
          _
      $region78: #{_lambda_.11} parent=5 // pred_fallthru
        _
    $region6: #{_lambda_.11} parent=1 // loop_footer
      %s14 = sadd.s32 1, %s10
    $region7: #{_lambda_.11} parent=1 // loop_footer_branch
      %9 = sbr.rel target = $region3
    $region8: #{_lambda_.11} parent=1 // loop_exit
      _

// kernel: _lambda_.12
$region0: #{_lambda_.12}
  #allocation0 [shape = 'u32[]', space=smem, size = 0x4, offset = 0x4, fixed_abs, tag = 'smem constant byte address 0x4 - core index']
  #allocation1 [shape = 'u32[72,128]{1,0:T(1,128)}', space=vmem, size = 0x9000, scoped, tag = 'internal scratch']
  #allocation2 [shape = 'f32[256,128]{1,0:T(8,128)}', space=vmem, size = 0x20000, scoped, tag = 'scratch operand']
  %s0 = inlined_call_operand.vmem [shape: bf16[512,1152], index: 0, kind: input, shape index: {}]
  %s1 = inlined_call_operand.vmem [shape: bf16[1152,128], index: 1, kind: input, shape index: {}]
  %s2 = inlined_call_operand.vmem [shape: f32[1,128], index: 2, kind: input, shape index: {}]
  %s3 = inlined_call_operand.vmem [shape: f32[1,128], index: 3, kind: input, shape index: {}, may-alias: {3,5}]
  %s4 = inlined_call_operand.vmem [shape: f32[1,128], index: 4, kind: input, shape index: {}]
  %s5 = inlined_call_operand.vmem [shape: f32[1,128], index: 5, kind: input, shape index: {}, may-alias: {3,5}]
  %s6 = inlined_call_operand.vmem [shape: f32[512,128], index: 6, kind: input, shape index: {}]
  %s7 = inlined_call_operand.vmem [shape: bf16[512,128], index: 7, kind: output, shape index: {}]
  %s8 = sld [smem:[#allocation0]]
  $region95: #{_lambda_.12} parent=0
    _
  %s10 = ssub.s32 1, %s8
  %s11 = scalar_select 0, %s10, %s8
  $region1: #{_lambda_.12} parent=0
    #allocation3 [shape = 'u8[393216]{0}', space=vmem, size = 0x60000, scoped, tag = 'input window, operand 0']
    loop: start=0, step=1, limit=8
    $region2: #{_lambda_.12} parent=1 // loop_pre_header
      _
    $region3: #{_lambda_.12} parent=1 // loop_header
      %s13 = sphi 0, %s17
      %p14 = scmp.ge.s32.totalorder %s13, 8
      %s20 = sphi 0, %s39
      %s21 = sphi 0, %s35
      %s22 = sphi 0, %s31
      %s23 = sphi 0, %s20
      %s24 = sphi 0, %s21
      %s25 = sphi 0, %s22
      %s26 = sphi 0, %s23
      %s27 = sphi 0, %s24
      %s28 = sphi 0, %s25
      %s44 = sphi 0, %s46
      %s47 = sphi 0, %s44
      %s48 = sphi 0, %s47
      %s64 = sphi 0, %s48
      %s72 = sphi 0, %s74
      %s75 = sphi 0, %s72
      %s76 = sphi 0, %s75
      %s92 = sphi 0, %s76
      %s98 = sphi 0, %s100
      %s101 = sphi 0, %s98
      %s102 = sphi 0, %s101
      %s118 = sphi 0, %s102
      %s124 = sphi 0, %s126
      %s127 = sphi 0, %s124
      %s128 = sphi 0, %s127
      %s144 = sphi 0, %s128
      %s150 = sphi 0, %s152
      %s153 = sphi 0, %s150
      %s154 = sphi 0, %s153
      %s170 = sphi 0, %s154
      %s176 = sphi 0, %s178
      %s179 = sphi 0, %s176
      %s180 = sphi 0, %s179
      %s196 = sphi 0, %s180
      %s204 = sphi 0, %s206
      %s207 = sphi 0, %s204
      %s208 = sphi 0, %s207
      %s224 = sphi 0, %s208
      %s232 = sphi 0, %s234
      %s235 = sphi 0, %s232
      %s236 = sphi 0, %s235
      %s252 = sphi 0, %s236
    $region4: #{_lambda_.12} parent=1 // loop_header_branch
      %16 = sbr.rel (%p14) target = $region8
    $region5: #{_lambda_.12} parent=1 // loop_body
      %s18 = ssub.s32 %s13, 1
      %s19 = ssub.s32 %s13, 2
      %s29 = sadd.s32 1, %s22
      %p30 = scmp.ge.s32.totalorder %s29, 3
      %s31 = scalar_select %p30, 0, %s29
      %s32 = sadd.s32 1, %s21
      %s33 = scalar_select %p30, %s32, %s21
      %p34 = scmp.ge.s32.totalorder %s33, 1
      %s35 = scalar_select %p34, 0, %s33
      %s36 = sadd.s32 1, %s20
      %s37 = scalar_select %p34, %s36, %s20
      %p38 = scmp.ge.s32.totalorder %s37, 2
      %s39 = scalar_select %p38, 0, %s37
      %s40 = ssub.s32 %s20, %s39
      %s41 = ssub.s32 %s22, %s31
      %s42 = sor.u32 %s40, %s41
      %p43 = scmp.eq.s32.totalorder %s42, 0
      %s45 = sadd.s32 %s44, 1
      %s46 = scalar_select %p43, %s44, %s45
      %p49 = pneg %p43
      %p50 = scmp.eq.s32.totalorder %s13, 5
      %p51 = por %p49, %p50
      %p52 = scmp.ne.s32.totalorder %s44, %s47
      %p53 = scmp.eq.s32.totalorder %s13, 0
      %p54 = por %p52, %p53
      %p55 = scmp.ne.s32.totalorder %s44, %s47
      %p56 = scmp.eq.s32.totalorder %s18, 5
      %p57 = por %p55, %p56
      %p58 = scmp.ne.s32.totalorder %s47, %s48
      %p59 = scmp.eq.s32.totalorder %s18, 0
      %p60 = por %p58, %p59
      %p61 = scmp.ne.s32.totalorder %s47, %s48
      %p62 = scmp.eq.s32.totalorder %s19, 5
      %p63 = por %p61, %p62
      %p65 = scmp.ne.s32.totalorder %s48, %s64
      %p66 = scmp.eq.s32.totalorder %s19, 0
      %p67 = por %p65, %p66
      %s68 = ssub.s32 %s22, %s31
      %s69 = ssub.s32 %s21, %s35
      %s70 = sor.u32 %s68, %s69
      %p71 = scmp.eq.s32.totalorder %s70, 0
      %s73 = sadd.s32 %s72, 1
      %s74 = scalar_select %p71, %s72, %s73
      %p77 = pneg %p71
      %p78 = scmp.eq.s32.totalorder %s13, 5
      %p79 = por %p77, %p78
      %p80 = scmp.ne.s32.totalorder %s72, %s75
      %p81 = scmp.eq.s32.totalorder %s13, 0
      %p82 = por %p80, %p81
      %p83 = scmp.ne.s32.totalorder %s72, %s75
      %p84 = scmp.eq.s32.totalorder %s18, 5
      %p85 = por %p83, %p84
      %p86 = scmp.ne.s32.totalorder %s75, %s76
      %p87 = scmp.eq.s32.totalorder %s18, 0
      %p88 = por %p86, %p87
      %p89 = scmp.ne.s32.totalorder %s75, %s76
      %p90 = scmp.eq.s32.totalorder %s19, 5
      %p91 = por %p89, %p90
      %p93 = scmp.ne.s32.totalorder %s76, %s92
      %p94 = scmp.eq.s32.totalorder %s19, 0
      %p95 = por %p93, %p94
      %s96 = ssub.s32 %s21, %s35
      %p97 = scmp.eq.s32.totalorder %s96, 0
      %s99 = sadd.s32 %s98, 1
      %s100 = scalar_select %p97, %s98, %s99
      %p103 = pneg %p97
      %p104 = scmp.eq.s32.totalorder %s13, 5
      %p105 = por %p103, %p104
      %p106 = scmp.ne.s32.totalorder %s98, %s101
      %p107 = scmp.eq.s32.totalorder %s13, 0
      %p108 = por %p106, %p107
      %p109 = scmp.ne.s32.totalorder %s98, %s101
      %p110 = scmp.eq.s32.totalorder %s18, 5
      %p111 = por %p109, %p110
      %p112 = scmp.ne.s32.totalorder %s101, %s102
      %p113 = scmp.eq.s32.totalorder %s18, 0
      %p114 = por %p112, %p113
      %p115 = scmp.ne.s32.totalorder %s101, %s102
      %p116 = scmp.eq.s32.totalorder %s19, 5
      %p117 = por %p115, %p116
      %p119 = scmp.ne.s32.totalorder %s102, %s118
      %p120 = scmp.eq.s32.totalorder %s19, 0
      %p121 = por %p119, %p120
      %s122 = ssub.s32 %s21, %s35
      %p123 = scmp.eq.s32.totalorder %s122, 0
      %s125 = sadd.s32 %s124, 1
      %s126 = scalar_select %p123, %s124, %s125
      %p129 = pneg %p123
      %p130 = scmp.eq.s32.totalorder %s13, 5
      %p131 = por %p129, %p130
      %p132 = scmp.ne.s32.totalorder %s124, %s127
      %p133 = scmp.eq.s32.totalorder %s13, 0
      %p134 = por %p132, %p133
      %p135 = scmp.ne.s32.totalorder %s124, %s127
      %p136 = scmp.eq.s32.totalorder %s18, 5
      %p137 = por %p135, %p136
      %p138 = scmp.ne.s32.totalorder %s127, %s128
      %p139 = scmp.eq.s32.totalorder %s18, 0
      %p140 = por %p138, %p139
      %p141 = scmp.ne.s32.totalorder %s127, %s128
      %p142 = scmp.eq.s32.totalorder %s19, 5
      %p143 = por %p141, %p142
      %p145 = scmp.ne.s32.totalorder %s128, %s144
      %p146 = scmp.eq.s32.totalorder %s19, 0
      %p147 = por %p145, %p146
      %s148 = ssub.s32 %s21, %s35
      %p149 = scmp.eq.s32.totalorder %s148, 0
      %s151 = sadd.s32 %s150, 1
      %s152 = scalar_select %p149, %s150, %s151
      %p155 = pneg %p149
      %p156 = scmp.eq.s32.totalorder %s13, 5
      %p157 = por %p155, %p156
      %p158 = scmp.ne.s32.totalorder %s150, %s153
      %p159 = scmp.eq.s32.totalorder %s13, 0
      %p160 = por %p158, %p159
      %p161 = scmp.ne.s32.totalorder %s150, %s153
      %p162 = scmp.eq.s32.totalorder %s18, 5
      %p163 = por %p161, %p162
      %p164 = scmp.ne.s32.totalorder %s153, %s154
      %p165 = scmp.eq.s32.totalorder %s18, 0
      %p166 = por %p164, %p165
      %p167 = scmp.ne.s32.totalorder %s153, %s154
      %p168 = scmp.eq.s32.totalorder %s19, 5
      %p169 = por %p167, %p168
      %p171 = scmp.ne.s32.totalorder %s154, %s170
      %p172 = scmp.eq.s32.totalorder %s19, 0
      %p173 = por %p171, %p172
      %s174 = ssub.s32 %s21, %s35
      %p175 = scmp.eq.s32.totalorder %s174, 0
      %s177 = sadd.s32 %s176, 1
      %s178 = scalar_select %p175, %s176, %s177
      %p181 = pneg %p175
      %p182 = scmp.eq.s32.totalorder %s13, 5
      %p183 = por %p181, %p182
      %p184 = scmp.ne.s32.totalorder %s176, %s179
      %p185 = scmp.eq.s32.totalorder %s13, 0
      %p186 = por %p184, %p185
      %p187 = scmp.ne.s32.totalorder %s176, %s179
      %p188 = scmp.eq.s32.totalorder %s18, 5
      %p189 = por %p187, %p188
      %p190 = scmp.ne.s32.totalorder %s179, %s180
      %p191 = scmp.eq.s32.totalorder %s18, 0
      %p192 = por %p190, %p191
      %p193 = scmp.ne.s32.totalorder %s179, %s180
      %p194 = scmp.eq.s32.totalorder %s19, 5
      %p195 = por %p193, %p194
      %p197 = scmp.ne.s32.totalorder %s180, %s196
      %p198 = scmp.eq.s32.totalorder %s19, 0
      %p199 = por %p197, %p198
      %s200 = ssub.s32 %s20, %s39
      %s201 = ssub.s32 %s21, %s35
      %s202 = sor.u32 %s200, %s201
      %p203 = scmp.eq.s32.totalorder %s202, 0
      %s205 = sadd.s32 %s204, 1
      %s206 = scalar_select %p203, %s204, %s205
      %p209 = pneg %p203
      %p210 = scmp.eq.s32.totalorder %s13, 5
      %p211 = por %p209, %p210
      %p212 = scmp.ne.s32.totalorder %s204, %s207
      %p213 = scmp.eq.s32.totalorder %s13, 0
      %p214 = por %p212, %p213
      %p215 = scmp.ne.s32.totalorder %s204, %s207
      %p216 = scmp.eq.s32.totalorder %s18, 5
      %p217 = por %p215, %p216
      %p218 = scmp.ne.s32.totalorder %s207, %s208
      %p219 = scmp.eq.s32.totalorder %s18, 0
      %p220 = por %p218, %p219
      %p221 = scmp.ne.s32.totalorder %s207, %s208
      %p222 = scmp.eq.s32.totalorder %s19, 5
      %p223 = por %p221, %p222
      %p225 = scmp.ne.s32.totalorder %s208, %s224
      %p226 = scmp.eq.s32.totalorder %s19, 0
      %p227 = por %p225, %p226
      %s228 = ssub.s32 %s20, %s39
      %s229 = ssub.s32 %s21, %s35
      %s230 = sor.u32 %s228, %s229
      %p231 = scmp.eq.s32.totalorder %s230, 0
      %s233 = sadd.s32 %s232, 1
      %s234 = scalar_select %p231, %s232, %s233
      %p237 = pneg %p231
      %p238 = scmp.eq.s32.totalorder %s13, 5
      %p239 = por %p237, %p238
      %p240 = scmp.ne.s32.totalorder %s232, %s235
      %p241 = scmp.eq.s32.totalorder %s13, 0
      %p242 = por %p240, %p241
      %p243 = scmp.ne.s32.totalorder %s232, %s235
      %p244 = scmp.eq.s32.totalorder %s18, 5
      %p245 = por %p243, %p244
      %p246 = scmp.ne.s32.totalorder %s235, %s236
      %p247 = scmp.eq.s32.totalorder %s18, 0
      %p248 = por %p246, %p247
      %p249 = scmp.ne.s32.totalorder %s235, %s236
      %p250 = scmp.eq.s32.totalorder %s19, 5
      %p251 = por %p249, %p250
      %p253 = scmp.ne.s32.totalorder %s236, %s252
      %p254 = scmp.eq.s32.totalorder %s19, 0
      %p255 = por %p253, %p254
      %p256 = scmp.le.s32.totalorder 1, %s13
      %p257 = scmp.lt.s32.totalorder %s13, 7
      %p258 = pnand %p256, %p257
      %p259 = pneg %p258
      // Predicated region
      $region9: #{_lambda_.12} parent=5 // pred_check
        _
      $region10: #{_lambda_.12} parent=5 // pred_check_branch
        %261 = sbr.rel (%p258) target = $region12
      $region11: #{_lambda_.12} parent=5 // pred_region
        %s262 = ssub.s32 %s13, 1
        // Predicated region
        $region13: #{_lambda_.12} parent=11 // pred_check
          %p263 = pneg %p114
        $region14: #{_lambda_.12} parent=11 // pred_check_branch
          %265 = sbr.rel (%p263) target = $region16
        $region15: #{_lambda_.12} parent=11 // pred_region
          %p266 = scmp.lt.s32.totalorder %s24, 0
          %s267 = scalar_select %p266, %s24, 0
          %s268 = scalar_lea.vmem %s2, %s267
        $region16: #{_lambda_.12} parent=11 // pred_fallthru
          _
        // Predicated region
        $region17: #{_lambda_.12} parent=11 // pred_check
          %p269 = pneg %p140
        $region18: #{_lambda_.12} parent=11 // pred_check_branch
          %271 = sbr.rel (%p269) target = $region20
        $region19: #{_lambda_.12} parent=11 // pred_region
          %p272 = scmp.lt.s32.totalorder %s24, 0
          %s273 = scalar_select %p272, %s24, 0
          %s274 = scalar_lea.vmem %s3, %s273
        $region20: #{_lambda_.12} parent=11 // pred_fallthru
          _
        // Predicated region
        $region21: #{_lambda_.12} parent=11 // pred_check
          %p275 = pneg %p166
        $region22: #{_lambda_.12} parent=11 // pred_check_branch
          %277 = sbr.rel (%p275) target = $region24
        $region23: #{_lambda_.12} parent=11 // pred_region
          %p278 = scmp.lt.s32.totalorder %s24, 0
          %s279 = scalar_select %p278, %s24, 0
          %s280 = scalar_lea.vmem %s4, %s279
        $region24: #{_lambda_.12} parent=11 // pred_fallthru
          _
        // Predicated region
        $region25: #{_lambda_.12} parent=11 // pred_check
          %p281 = pneg %p192
        $region26: #{_lambda_.12} parent=11 // pred_check_branch
          %283 = sbr.rel (%p281) target = $region28
        $region27: #{_lambda_.12} parent=11 // pred_region
          %p284 = scmp.lt.s32.totalorder %s24, 0
          %s285 = scalar_select %p284, %s24, 0
          %s286 = scalar_lea.vmem %s5, %s285
        $region28: #{_lambda_.12} parent=11 // pred_fallthru
          _
      $region12: #{_lambda_.12} parent=5 // pred_fallthru
        _
      %p287 = scmp.lt.s32.totalorder %s13, 6
      // Predicated region
      $region29: #{_lambda_.12} parent=5 // pred_check
        %p288 = pneg %p287
      $region30: #{_lambda_.12} parent=5 // pred_check_branch
        %290 = sbr.rel (%p288) target = $region32
      $region31: #{_lambda_.12} parent=5 // pred_region
        // Predicated region
        $region33: #{_lambda_.12} parent=31 // pred_check
          %p291 = pneg %p54
        $region34: #{_lambda_.12} parent=31 // pred_check_branch
          %293 = sbr.rel (%p291) target = $region36
        $region35: #{_lambda_.12} parent=31 // pred_region
          %s294 = sand.u32 %s44, 1
          %s295 = sand.u32 %s44, 1
          %s296 = smul.addr %s295, 384
          %s297 = scalar_lea.vmem [#allocation3], %s296
          %s298 = smul.u32 32, %s20
          %s299 = smul.u32 3, %s22
          %s300 = smul.addr %s298, 9
          %s301 = sadd.s32 %s299, %s300
          %s302 = smul.addr %s301, 4
          %s303 = scalar_lea.vmem %s0, %s302
          // Predicated region
          $region37: #{_lambda_.12} parent=35 // pred_check
            _
          $region38: #{_lambda_.12} parent=35 // pred_check_branch
            %305 = sbr.rel (0) target = $region40
          $region39: #{_lambda_.12} parent=35 // pred_region
            // Predicated region
            $region41: #{_lambda_.12} parent=39 // pred_check
              _
            $region42: #{_lambda_.12} parent=39 // pred_check_branch
              %307 = sbr.rel (0) target = $region44
            $region43: #{_lambda_.12} parent=39 // pred_region
              %s308 = scalar_lea.vmem %s303, 8
              %s309 = scalar_lea.vmem %s297, 8 [#allocation3]
              loop: start=0, step=1, limit=1
              $region45: #{_lambda_.12} parent=43 // loop_pre_header
                _
              $region46: #{_lambda_.12} parent=43 // loop_header
                %s311 = sphi 0, %s315
                %p312 = scmp.ge.s32.totalorder %s311, 1
                %s316 = sphi %s303, %s303
                %s317 = sphi %s297, %s297
              $region47: #{_lambda_.12} parent=43 // loop_header_branch
                %314 = sbr.rel (%p312) target = $region51
              $region48: #{_lambda_.12} parent=43 // loop_body
                %v318 = vld [vmem:[%s316] sm:$0xff]
                %319 = vst [vmem:[%s317] sm:$0xff] %v318
                %v320 = vld [vmem:[%s316 + $0x24] sm:$0xff]
                %321 = vst [vmem:[%s317 + $0xc] sm:$0xff] %v320
                %v322 = vld [vmem:[%s316 + $0x48] sm:$0xff]
                %323 = vst [vmem:[%s317 + $0x18] sm:$0xff] %v322
                %v324 = vld [vmem:[%s316 + $0x6c] sm:$0xff]
                %325 = vst [vmem:[%s317 + $0x24] sm:$0xff] %v324
                %v326 = vld [vmem:[%s316 + $0x90] sm:$0xff]
                %327 = vst [vmem:[%s317 + $0x30] sm:$0xff] %v326
                %v328 = vld [vmem:[%s316 + $0xb4] sm:$0xff]
                %329 = vst [vmem:[%s317 + $0x3c] sm:$0xff] %v328
                %v330 = vld [vmem:[%s316 + $0xd8] sm:$0xff]
                %331 = vst [vmem:[%s317 + $0x48] sm:$0xff] %v330
                %v332 = vld [vmem:[%s316 + $0xfc] sm:$0xff]
                %333 = vst [vmem:[%s317 + $0x54] sm:$0xff] %v332
                %v334 = vld [vmem:[%s316 + $0x120] sm:$0xff]
                %335 = vst [vmem:[%s317 + $0x60] sm:$0xff] %v334
                %v336 = vld [vmem:[%s316 + $0x144] sm:$0xff]
                %337 = vst [vmem:[%s317 + $0x6c] sm:$0xff] %v336
                %v338 = vld [vmem:[%s316 + $0x168] sm:$0xff]
                %339 = vst [vmem:[%s317 + $0x78] sm:$0xff] %v338
                %v340 = vld [vmem:[%s316 + $0x18c] sm:$0xff]
                %341 = vst [vmem:[%s317 + $0x84] sm:$0xff] %v340
                %v342 = vld [vmem:[%s316 + $0x1b0] sm:$0xff]
                %343 = vst [vmem:[%s317 + $0x90] sm:$0xff] %v342
                %v344 = vld [vmem:[%s316 + $0x1d4] sm:$0xff]
                %345 = vst [vmem:[%s317 + $0x9c] sm:$0xff] %v344
                %v346 = vld [vmem:[%s316 + $0x1f8] sm:$0xff]
                %347 = vst [vmem:[%s317 + $0xa8] sm:$0xff] %v346
                %v348 = vld [vmem:[%s316 + $0x21c] sm:$0xff]
                %349 = vst [vmem:[%s317 + $0xb4] sm:$0xff] %v348
                %v350 = vld [vmem:[%s316 + $0x240] sm:$0xff]
                %351 = vst [vmem:[%s317 + $0xc0] sm:$0xff] %v350
                %v352 = vld [vmem:[%s316 + $0x264] sm:$0xff]
                %353 = vst [vmem:[%s317 + $0xcc] sm:$0xff] %v352
                %v354 = vld [vmem:[%s316 + $0x288] sm:$0xff]
                %355 = vst [vmem:[%s317 + $0xd8] sm:$0xff] %v354
                %v356 = vld [vmem:[%s316 + $0x2ac] sm:$0xff]
                %357 = vst [vmem:[%s317 + $0xe4] sm:$0xff] %v356
                %v358 = vld [vmem:[%s316 + $0x2d0] sm:$0xff]
                %359 = vst [vmem:[%s317 + $0xf0] sm:$0xff] %v358
                %v360 = vld [vmem:[%s316 + $0x2f4] sm:$0xff]
                %361 = vst [vmem:[%s317 + $0xfc] sm:$0xff] %v360
                %v362 = vld [vmem:[%s316 + $0x318] sm:$0xff]
                %363 = vst [vmem:[%s317 + $0x108] sm:$0xff] %v362
                %v364 = vld [vmem:[%s316 + $0x33c] sm:$0xff]
                %365 = vst [vmem:[%s317 + $0x114] sm:$0xff] %v364
                %v366 = vld [vmem:[%s316 + $0x360] sm:$0xff]
                %367 = vst [vmem:[%s317 + $0x120] sm:$0xff] %v366
                %v368 = vld [vmem:[%s316 + $0x384] sm:$0xff]
                %369 = vst [vmem:[%s317 + $0x12c] sm:$0xff] %v368
                %v370 = vld [vmem:[%s316 + $0x3a8] sm:$0xff]
                %371 = vst [vmem:[%s317 + $0x138] sm:$0xff] %v370
                %v372 = vld [vmem:[%s316 + $0x3cc] sm:$0xff]
                %373 = vst [vmem:[%s317 + $0x144] sm:$0xff] %v372
                %v374 = vld [vmem:[%s316 + $0x3f0] sm:$0xff]
                %375 = vst [vmem:[%s317 + $0x150] sm:$0xff] %v374
                %v376 = vld [vmem:[%s316 + $0x414] sm:$0xff]
                %377 = vst [vmem:[%s317 + $0x15c] sm:$0xff] %v376
                %v378 = vld [vmem:[%s316 + $0x438] sm:$0xff]
                %379 = vst [vmem:[%s317 + $0x168] sm:$0xff] %v378
                %v380 = vld [vmem:[%s316 + $0x45c] sm:$0xff]
                %381 = vst [vmem:[%s317 + $0x174] sm:$0xff] %v380
              $region49: #{_lambda_.12} parent=43 // loop_footer
                %s315 = sadd.s32 1, %s311
              $region50: #{_lambda_.12} parent=43 // loop_footer_branch
                %310 = sbr.rel target = $region46
              $region51: #{_lambda_.12} parent=43 // loop_exit
                _
              %s383 = ssub.s32 16, 1
              loop: start=0, step=1, limit=1
              $region52: #{_lambda_.12} parent=43 // loop_pre_header
                _
              $region53: #{_lambda_.12} parent=43 // loop_header
                %s385 = sphi 0, %s389
                %p386 = scmp.ge.s32.totalorder %s385, 1
                %s390 = sphi %s308, %s308
                %s391 = sphi %s309, %s309
              $region54: #{_lambda_.12} parent=43 // loop_header_branch
                %388 = sbr.rel (%p386) target = $region58
              $region55: #{_lambda_.12} parent=43 // loop_body
                %v392 = vld [vmem:[%s390] sm:%s383]
                %393 = vst [vmem:[%s391] sm:%s383] %v392
                %v394 = vld [vmem:[%s390 + $0x24] sm:%s383]
                %395 = vst [vmem:[%s391 + $0xc] sm:%s383] %v394
                %v396 = vld [vmem:[%s390 + $0x48] sm:%s383]
                %397 = vst [vmem:[%s391 + $0x18] sm:%s383] %v396
                %v398 = vld [vmem:[%s390 + $0x6c] sm:%s383]
                %399 = vst [vmem:[%s391 + $0x24] sm:%s383] %v398
                %v400 = vld [vmem:[%s390 + $0x90] sm:%s383]
                %401 = vst [vmem:[%s391 + $0x30] sm:%s383] %v400
                %v402 = vld [vmem:[%s390 + $0xb4] sm:%s383]
                %403 = vst [vmem:[%s391 + $0x3c] sm:%s383] %v402
                %v404 = vld [vmem:[%s390 + $0xd8] sm:%s383]
                %405 = vst [vmem:[%s391 + $0x48] sm:%s383] %v404
                %v406 = vld [vmem:[%s390 + $0xfc] sm:%s383]
                %407 = vst [vmem:[%s391 + $0x54] sm:%s383] %v406
                %v408 = vld [vmem:[%s390 + $0x120] sm:%s383]
                %409 = vst [vmem:[%s391 + $0x60] sm:%s383] %v408
                %v410 = vld [vmem:[%s390 + $0x144] sm:%s383]
                %411 = vst [vmem:[%s391 + $0x6c] sm:%s383] %v410
                %v412 = vld [vmem:[%s390 + $0x168] sm:%s383]
                %413 = vst [vmem:[%s391 + $0x78] sm:%s383] %v412
                %v414 = vld [vmem:[%s390 + $0x18c] sm:%s383]
                %415 = vst [vmem:[%s391 + $0x84] sm:%s383] %v414
                %v416 = vld [vmem:[%s390 + $0x1b0] sm:%s383]
                %417 = vst [vmem:[%s391 + $0x90] sm:%s383] %v416
                %v418 = vld [vmem:[%s390 + $0x1d4] sm:%s383]
                %419 = vst [vmem:[%s391 + $0x9c] sm:%s383] %v418
                %v420 = vld [vmem:[%s390 + $0x1f8] sm:%s383]
                %421 = vst [vmem:[%s391 + $0xa8] sm:%s383] %v420
                %v422 = vld [vmem:[%s390 + $0x21c] sm:%s383]
                %423 = vst [vmem:[%s391 + $0xb4] sm:%s383] %v422
                %v424 = vld [vmem:[%s390 + $0x240] sm:%s383]
                %425 = vst [vmem:[%s391 + $0xc0] sm:%s383] %v424
                %v426 = vld [vmem:[%s390 + $0x264] sm:%s383]
                %427 = vst [vmem:[%s391 + $0xcc] sm:%s383] %v426
                %v428 = vld [vmem:[%s390 + $0x288] sm:%s383]
                %429 = vst [vmem:[%s391 + $0xd8] sm:%s383] %v428
                %v430 = vld [vmem:[%s390 + $0x2ac] sm:%s383]
                %431 = vst [vmem:[%s391 + $0xe4] sm:%s383] %v430
                %v432 = vld [vmem:[%s390 + $0x2d0] sm:%s383]
                %433 = vst [vmem:[%s391 + $0xf0] sm:%s383] %v432
                %v434 = vld [vmem:[%s390 + $0x2f4] sm:%s383]
                %435 = vst [vmem:[%s391 + $0xfc] sm:%s383] %v434
                %v436 = vld [vmem:[%s390 + $0x318] sm:%s383]
                %437 = vst [vmem:[%s391 + $0x108] sm:%s383] %v436
                %v438 = vld [vmem:[%s390 + $0x33c] sm:%s383]
                %439 = vst [vmem:[%s391 + $0x114] sm:%s383] %v438
                %v440 = vld [vmem:[%s390 + $0x360] sm:%s383]
                %441 = vst [vmem:[%s391 + $0x120] sm:%s383] %v440
                %v442 = vld [vmem:[%s390 + $0x384] sm:%s383]
                %443 = vst [vmem:[%s391 + $0x12c] sm:%s383] %v442
                %v444 = vld [vmem:[%s390 + $0x3a8] sm:%s383]
                %445 = vst [vmem:[%s391 + $0x138] sm:%s383] %v444
                %v446 = vld [vmem:[%s390 + $0x3cc] sm:%s383]
                %447 = vst [vmem:[%s391 + $0x144] sm:%s383] %v446
                %v448 = vld [vmem:[%s390 + $0x3f0] sm:%s383]
                %449 = vst [vmem:[%s391 + $0x150] sm:%s383] %v448
                %v450 = vld [vmem:[%s390 + $0x414] sm:%s383]
                %451 = vst [vmem:[%s391 + $0x15c] sm:%s383] %v450
                %v452 = vld [vmem:[%s390 + $0x438] sm:%s383]
                %453 = vst [vmem:[%s391 + $0x168] sm:%s383] %v452
                %v454 = vld [vmem:[%s390 + $0x45c] sm:%s383]
                %455 = vst [vmem:[%s391 + $0x174] sm:%s383] %v454
              $region56: #{_lambda_.12} parent=43 // loop_footer
                %s389 = sadd.s32 1, %s385
              $region57: #{_lambda_.12} parent=43 // loop_footer_branch
                %384 = sbr.rel target = $region53
              $region58: #{_lambda_.12} parent=43 // loop_exit
                _
            $region44: #{_lambda_.12} parent=39 // pred_fallthru
              _
          $region40: #{_lambda_.12} parent=35 // pred_fallthru
            _
          %456 = vnop
        $region36: #{_lambda_.12} parent=31 // pred_fallthru
          _
        // Predicated region
        $region59: #{_lambda_.12} parent=31 // pred_check
          %p457 = pneg %p82
        $region60: #{_lambda_.12} parent=31 // pred_check_branch
          %459 = sbr.rel (%p457) target = $region62
        $region61: #{_lambda_.12} parent=31 // pred_region
          %s460 = smul.u32 48, %s22
          %p461 = scmp.lt.s32.totalorder %s460, 143
          %s462 = scalar_select %p461, %s460, 143
          %p463 = scmp.lt.s32.totalorder %s21, 0
          %s464 = scalar_select %p463, %s21, 0
          %s465 = sadd.s32 %s464, %s462
          %s466 = smul.addr %s465, 4
          %s467 = scalar_lea.vmem %s1, %s466
          %s468 = smul.u32 48, %s22
        $region62: #{_lambda_.12} parent=31 // pred_fallthru
          _
        // Predicated region
        $region63: #{_lambda_.12} parent=31 // pred_check
          %p469 = pneg %p214
        $region64: #{_lambda_.12} parent=31 // pred_check_branch
          %471 = sbr.rel (%p469) target = $region66
        $region65: #{_lambda_.12} parent=31 // pred_region
          %s472 = smul.u32 32, %s20
          %p473 = scmp.lt.s32.totalorder %s472, 63
          %s474 = scalar_select %p473, %s472, 63
          %p475 = scmp.lt.s32.totalorder %s21, 0
          %s476 = scalar_select %p475, %s21, 0
          %s477 = sadd.s32 %s476, %s474
          %s478 = smul.addr %s477, 8
          %s479 = scalar_lea.vmem %s6, %s478
          %s480 = smul.u32 32, %s20
        $region66: #{_lambda_.12} parent=31 // pred_fallthru
          _
      $region32: #{_lambda_.12} parent=5 // pred_fallthru
        _
      %p481 = scmp.le.s32.totalorder 1, %s13
      %p482 = scmp.lt.s32.totalorder %s13, 7
      %p483 = pnand %p481, %p482
      %p484 = pneg %p483
      // Predicated region
      $region67: #{_lambda_.12} parent=5 // pred_check
        _
      $region68: #{_lambda_.12} parent=5 // pred_check_branch
        %486 = sbr.rel (%p483) target = $region70
      $region69: #{_lambda_.12} parent=5 // pred_region
        %s487 = ssub.s32 %s13, 1
        %s488 = sand.u32 %s47, 1
        %s489 = sand.u32 %s47, 1
        %s490 = smul.addr %s489, 384
        %s491 = scalar_lea.vmem [#allocation3], %s490
        // Predicated region
        $region71: #{_lambda_.12} parent=69 // pred_check
          %p492 = pneg %p60
        $region72: #{_lambda_.12} parent=69 // pred_check_branch
          %494 = sbr.rel (%p492) target = $region74
        $region73: #{_lambda_.12} parent=69 // pred_region
          _
        $region74: #{_lambda_.12} parent=69 // pred_fallthru
          _
        %s495 = sand.u32 %s47, 1
        %s496 = sand.u32 %s47, 1
        %s497 = smul.addr %s496, 384
        %s498 = scalar_lea.vmem [#allocation3], %s497
        %p499 = pneg %p60
        %p500 = pneg %p57
        %s501 = smul.u32 48, %s25
        %p502 = scmp.lt.s32.totalorder %s501, 143
        %s503 = scalar_select %p502, %s501, 143
        %p504 = scmp.lt.s32.totalorder %s24, 0
        %s505 = scalar_select %p504, %s24, 0
        %s506 = sadd.s32 %s505, %s503
        %s507 = smul.addr %s506, 4
        %s508 = scalar_lea.vmem %s1, %s507
        %p509 = pneg %p88
        %p510 = pneg %p85
        %p511 = scmp.lt.s32.totalorder %s24, 0
        %s512 = scalar_select %p511, %s24, 0
        %s513 = scalar_lea.vmem %s2, %s512
        %p514 = pneg %p114
        %p515 = pneg %p111
        %p516 = scmp.lt.s32.totalorder %s24, 0
        %s517 = scalar_select %p516, %s24, 0
        %s518 = scalar_lea.vmem %s3, %s517
        %p519 = pneg %p140
        %p520 = pneg %p137
        %p521 = scmp.lt.s32.totalorder %s24, 0
        %s522 = scalar_select %p521, %s24, 0
        %s523 = scalar_lea.vmem %s4, %s522
        %p524 = pneg %p166
        %p525 = pneg %p163
        %p526 = scmp.lt.s32.totalorder %s24, 0
        %s527 = scalar_select %p526, %s24, 0
        %s528 = scalar_lea.vmem %s5, %s527
        %p529 = pneg %p192
        %p530 = pneg %p189
        %s531 = smul.u32 32, %s23
        %p532 = scmp.lt.s32.totalorder %s531, 63
        %s533 = scalar_select %p532, %s531, 63
        %p534 = scmp.lt.s32.totalorder %s24, 0
        %s535 = scalar_select %p534, %s24, 0
        %s536 = sadd.s32 %s535, %s533
        %s537 = smul.addr %s536, 8
        %s538 = scalar_lea.vmem %s6, %s537
        %p539 = pneg %p220
        %p540 = pneg %p217
        %p541 = pneg %p248
        %p542 = pneg %p245
        %s543 = smul.u32 32, %s23
        %p544 = scmp.lt.s32.totalorder %s543, 63
        %s545 = scalar_select %p544, %s543, 63
        %p546 = scmp.lt.s32.totalorder %s24, 0
        %s547 = scalar_select %p546, %s24, 0
        %s548 = sadd.s32 %s547, %s545
        %s549 = smul.addr %s548, 4
        %s550 = scalar_lea.vmem %s7, %s549
        %s551 = smul.u32 32, %s23
        %s552 = smul.u32 3, %s25
        %s553 = smul.u32 48, %s25
        %p554 = scmp.lt.s32.totalorder %s553, 143
        %s555 = scalar_select %p554, %s553, 143
        %p556 = scmp.lt.s32.totalorder %s24, 0
        %s557 = scalar_select %p556, %s24, 0
        %s558 = sadd.s32 %s557, %s555
        %s559 = smul.addr %s558, 4
        %s560 = scalar_lea.vmem %s1, %s559
        %s561 = smul.u32 48, %s25
        %p562 = scmp.lt.s32.totalorder %s24, 0
        %s563 = scalar_select %p562, %s24, 0
        %s564 = scalar_lea.vmem %s2, %s563
        %p565 = scmp.lt.s32.totalorder %s24, 0
        %s566 = scalar_select %p565, %s24, 0
        %s567 = scalar_lea.vmem %s3, %s566
        %p568 = scmp.lt.s32.totalorder %s24, 0
        %s569 = scalar_select %p568, %s24, 0
        %s570 = scalar_lea.vmem %s4, %s569
        %p571 = scmp.lt.s32.totalorder %s24, 0
        %s572 = scalar_select %p571, %s24, 0
        %s573 = scalar_lea.vmem %s5, %s572
        %s574 = smul.u32 32, %s23
        %p575 = scmp.lt.s32.totalorder %s574, 63
        %s576 = scalar_select %p575, %s574, 63
        %p577 = scmp.lt.s32.totalorder %s24, 0
        %s578 = scalar_select %p577, %s24, 0
        %s579 = sadd.s32 %s578, %s576
        %s580 = smul.addr %s579, 8
        %s581 = scalar_lea.vmem %s6, %s580
        %s582 = smul.u32 32, %s23
        %s583 = smul.u32 32, %s23
        %p584 = scmp.lt.s32.totalorder %s583, 63
        %s585 = scalar_select %p584, %s583, 63
        %p586 = scmp.lt.s32.totalorder %s24, 0
        %s587 = scalar_select %p586, %s24, 0
        %s588 = sadd.s32 %s587, %s585
        %s589 = smul.addr %s588, 4
        %s590 = scalar_lea.vmem %s7, %s589
        %s591 = smul.u32 32, %s23
        %p592 = scmp.eq.s32.totalorder %s25, 0
        // Predicated region
        $region75: #{_lambda_.12} parent=69 // pred_check
          %p593 = pneg %p592
        $region76: #{_lambda_.12} parent=69 // pred_check_branch
          %595 = sbr.rel (%p593) target = $region78
        $region77: #{_lambda_.12} parent=69 // pred_region
          %596 = vst [vmem:[#allocation2] sm:$0xff] 0.0
          %597 = vst [vmem:[#allocation2 + $0x8] sm:$0xff] 0.0
          %598 = vst [vmem:[#allocation2 + $0x10] sm:$0xff] 0.0
          %599 = vst [vmem:[#allocation2 + $0x18] sm:$0xff] 0.0
          %600 = vst [vmem:[#allocation2 + $0x20] sm:$0xff] 0.0
          %601 = vst [vmem:[#allocation2 + $0x28] sm:$0xff] 0.0
          %602 = vst [vmem:[#allocation2 + $0x30] sm:$0xff] 0.0
          %603 = vst [vmem:[#allocation2 + $0x38] sm:$0xff] 0.0
          %604 = vst [vmem:[#allocation2 + $0x40] sm:$0xff] 0.0
          %605 = vst [vmem:[#allocation2 + $0x48] sm:$0xff] 0.0
          %606 = vst [vmem:[#allocation2 + $0x50] sm:$0xff] 0.0
          %607 = vst [vmem:[#allocation2 + $0x58] sm:$0xff] 0.0
          %608 = vst [vmem:[#allocation2 + $0x60] sm:$0xff] 0.0
          %609 = vst [vmem:[#allocation2 + $0x68] sm:$0xff] 0.0
          %610 = vst [vmem:[#allocation2 + $0x70] sm:$0xff] 0.0
          %611 = vst [vmem:[#allocation2 + $0x78] sm:$0xff] 0.0
          %612 = vst [vmem:[#allocation2 + $0x80] sm:$0xff] 0.0
          %613 = vst [vmem:[#allocation2 + $0x88] sm:$0xff] 0.0
          %614 = vst [vmem:[#allocation2 + $0x90] sm:$0xff] 0.0
          %615 = vst [vmem:[#allocation2 + $0x98] sm:$0xff] 0.0
          %616 = vst [vmem:[#allocation2 + $0xa0] sm:$0xff] 0.0
          %617 = vst [vmem:[#allocation2 + $0xa8] sm:$0xff] 0.0
          %618 = vst [vmem:[#allocation2 + $0xb0] sm:$0xff] 0.0
          %619 = vst [vmem:[#allocation2 + $0xb8] sm:$0xff] 0.0
          %620 = vst [vmem:[#allocation2 + $0xc0] sm:$0xff] 0.0
          %621 = vst [vmem:[#allocation2 + $0xc8] sm:$0xff] 0.0
          %622 = vst [vmem:[#allocation2 + $0xd0] sm:$0xff] 0.0
          %623 = vst [vmem:[#allocation2 + $0xd8] sm:$0xff] 0.0
          %624 = vst [vmem:[#allocation2 + $0xe0] sm:$0xff] 0.0
          %625 = vst [vmem:[#allocation2 + $0xe8] sm:$0xff] 0.0
          %626 = vst [vmem:[#allocation2 + $0xf0] sm:$0xff] 0.0
          %627 = vst [vmem:[#allocation2 + $0xf8] sm:$0xff] 0.0
        $region78: #{_lambda_.12} parent=69 // pred_fallthru
          _
        %v628 = vld [vmem:[#allocation2] sm:$0xff]
        %v629 = vld [vmem:[#allocation2 + $0x8] sm:$0xff]
        %v630 = vld [vmem:[#allocation2 + $0x10] sm:$0xff]
        %v631 = vld [vmem:[#allocation2 + $0x18] sm:$0xff]
        %v632 = vld [vmem:[#allocation2 + $0x20] sm:$0xff]
        %v633 = vld [vmem:[#allocation2 + $0x28] sm:$0xff]
        %v634 = vld [vmem:[#allocation2 + $0x30] sm:$0xff]
        %v635 = vld [vmem:[#allocation2 + $0x38] sm:$0xff]
        %v636 = vld [vmem:[#allocation2 + $0x40] sm:$0xff]
        %v637 = vld [vmem:[#allocation2 + $0x48] sm:$0xff]
        %v638 = vld [vmem:[#allocation2 + $0x50] sm:$0xff]
        %v639 = vld [vmem:[#allocation2 + $0x58] sm:$0xff]
        %v640 = vld [vmem:[#allocation2 + $0x60] sm:$0xff]
        %v641 = vld [vmem:[#allocation2 + $0x68] sm:$0xff]
        %v642 = vld [vmem:[#allocation2 + $0x70] sm:$0xff]
        %v643 = vld [vmem:[#allocation2 + $0x78] sm:$0xff]
        %v644 = vld [vmem:[#allocation2 + $0x80] sm:$0xff]
        %v645 = vld [vmem:[#allocation2 + $0x88] sm:$0xff]
        %v646 = vld [vmem:[#allocation2 + $0x90] sm:$0xff]
        %v647 = vld [vmem:[#allocation2 + $0x98] sm:$0xff]
        %v648 = vld [vmem:[#allocation2 + $0xa0] sm:$0xff]
        %v649 = vld [vmem:[#allocation2 + $0xa8] sm:$0xff]
        %v650 = vld [vmem:[#allocation2 + $0xb0] sm:$0xff]
        %v651 = vld [vmem:[#allocation2 + $0xb8] sm:$0xff]
        %v652 = vld [vmem:[#allocation2 + $0xc0] sm:$0xff]
        %v653 = vld [vmem:[#allocation2 + $0xc8] sm:$0xff]
        %v654 = vld [vmem:[#allocation2 + $0xd0] sm:$0xff]
        %v655 = vld [vmem:[#allocation2 + $0xd8] sm:$0xff]
        %v656 = vld [vmem:[#allocation2 + $0xe0] sm:$0xff]
        %v657 = vld [vmem:[#allocation2 + $0xe8] sm:$0xff]
        %v658 = vld [vmem:[#allocation2 + $0xf0] sm:$0xff]
        %v659 = vld [vmem:[#allocation2 + $0xf8] sm:$0xff]
        %v660 = vld [vmem:[%s491] sm:$0xff]
        %v661 = vld [vmem:[%s491 + $0x8] sm:$0xf]
        %v662 = vld [vmem:[%s491 + $0xc] sm:$0xff]
        %v663 = vld [vmem:[%s491 + $0x14] sm:$0xf]
        %v664 = vld [vmem:[%s491 + $0x18] sm:$0xff]
        %v665 = vld [vmem:[%s491 + $0x20] sm:$0xf]
        %v666 = vld [vmem:[%s491 + $0x24] sm:$0xff]
        %v667 = vld [vmem:[%s491 + $0x2c] sm:$0xf]
        %v668 = vld [vmem:[%s491 + $0x30] sm:$0xff]
        %v669 = vld [vmem:[%s491 + $0x38] sm:$0xf]
        %v670 = vld [vmem:[%s491 + $0x3c] sm:$0xff]
        %v671 = vld [vmem:[%s491 + $0x44] sm:$0xf]
        %v672 = vld [vmem:[%s491 + $0x48] sm:$0xff]
        %v673 = vld [vmem:[%s491 + $0x50] sm:$0xf]
        %v674 = vld [vmem:[%s491 + $0x54] sm:$0xff]
        %v675 = vld [vmem:[%s491 + $0x5c] sm:$0xf]
        %v676 = vld [vmem:[%s491 + $0x60] sm:$0xff]
        %v677 = vld [vmem:[%s491 + $0x68] sm:$0xf]
        %v678 = vld [vmem:[%s491 + $0x6c] sm:$0xff]
        %v679 = vld [vmem:[%s491 + $0x74] sm:$0xf]
        %v680 = vld [vmem:[%s491 + $0x78] sm:$0xff]
        %v681 = vld [vmem:[%s491 + $0x80] sm:$0xf]
        %v682 = vld [vmem:[%s491 + $0x84] sm:$0xff]
        %v683 = vld [vmem:[%s491 + $0x8c] sm:$0xf]
        %v684 = vld [vmem:[%s491 + $0x90] sm:$0xff]
        %v685 = vld [vmem:[%s491 + $0x98] sm:$0xf]
        %v686 = vld [vmem:[%s491 + $0x9c] sm:$0xff]
        %v687 = vld [vmem:[%s491 + $0xa4] sm:$0xf]
        %v688 = vld [vmem:[%s491 + $0xa8] sm:$0xff]
        %v689 = vld [vmem:[%s491 + $0xb0] sm:$0xf]
        %v690 = vld [vmem:[%s491 + $0xb4] sm:$0xff]
        %v691 = vld [vmem:[%s491 + $0xbc] sm:$0xf]
        %v692 = vld [vmem:[%s491 + $0xc0] sm:$0xff]
        %v693 = vld [vmem:[%s491 + $0xc8] sm:$0xf]
        %v694 = vld [vmem:[%s491 + $0xcc] sm:$0xff]
        %v695 = vld [vmem:[%s491 + $0xd4] sm:$0xf]
        %v696 = vld [vmem:[%s491 + $0xd8] sm:$0xff]
        %v697 = vld [vmem:[%s491 + $0xe0] sm:$0xf]
        %v698 = vld [vmem:[%s491 + $0xe4] sm:$0xff]
        %v699 = vld [vmem:[%s491 + $0xec] sm:$0xf]
        %v700 = vld [vmem:[%s491 + $0xf0] sm:$0xff]
        %v701 = vld [vmem:[%s491 + $0xf8] sm:$0xf]
        %v702 = vld [vmem:[%s491 + $0xfc] sm:$0xff]
        %v703 = vld [vmem:[%s491 + $0x104] sm:$0xf]
        %v704 = vld [vmem:[%s491 + $0x108] sm:$0xff]
        %v705 = vld [vmem:[%s491 + $0x110] sm:$0xf]
        %v706 = vld [vmem:[%s491 + $0x114] sm:$0xff]
        %v707 = vld [vmem:[%s491 + $0x11c] sm:$0xf]
        %v708 = vld [vmem:[%s491 + $0x120] sm:$0xff]
        %v709 = vld [vmem:[%s491 + $0x128] sm:$0xf]
        %v710 = vld [vmem:[%s491 + $0x12c] sm:$0xff]
        %v711 = vld [vmem:[%s491 + $0x134] sm:$0xf]
        %v712 = vld [vmem:[%s491 + $0x138] sm:$0xff]
        %v713 = vld [vmem:[%s491 + $0x140] sm:$0xf]
        %v714 = vld [vmem:[%s491 + $0x144] sm:$0xff]
        %v715 = vld [vmem:[%s491 + $0x14c] sm:$0xf]
        %v716 = vld [vmem:[%s491 + $0x150] sm:$0xff]
        %v717 = vld [vmem:[%s491 + $0x158] sm:$0xf]
        %v718 = vld [vmem:[%s491 + $0x15c] sm:$0xff]
        %v719 = vld [vmem:[%s491 + $0x164] sm:$0xf]
        %v720 = vld [vmem:[%s491 + $0x168] sm:$0xff]
        %v721 = vld [vmem:[%s491 + $0x170] sm:$0xf]
        %v722 = vld [vmem:[%s491 + $0x174] sm:$0xff]
        %v723 = vld [vmem:[%s491 + $0x17c] sm:$0xf]
        %v724 = vld [vmem:[%s560] sm:$0xf]
        %v725 = vld [vmem:[%s560 + $0x4] sm:$0xf]
        %v726 = vld [vmem:[%s560 + $0x8] sm:$0xf]
        %v727 = vld [vmem:[%s560 + $0xc] sm:$0xf]
        %v728 = vld [vmem:[%s560 + $0x10] sm:$0xf]
        %v729 = vld [vmem:[%s560 + $0x14] sm:$0xf]
        %v730 = vld [vmem:[%s560 + $0x18] sm:$0xf]
        %v731 = vld [vmem:[%s560 + $0x1c] sm:$0xf]
        %v732 = vld [vmem:[%s560 + $0x20] sm:$0xf]
        %v733 = vld [vmem:[%s560 + $0x24] sm:$0xf]
        %v734 = vld [vmem:[%s560 + $0x28] sm:$0xf]
        %v735 = vld [vmem:[%s560 + $0x2c] sm:$0xf]
        %v736 = vld [vmem:[%s560 + $0x30] sm:$0xf]
        %v737 = vld [vmem:[%s560 + $0x34] sm:$0xf]
        %v738 = vld [vmem:[%s560 + $0x38] sm:$0xf]
        %v739 = vld [vmem:[%s560 + $0x3c] sm:$0xf]
        %v740 = vld [vmem:[%s560 + $0x40] sm:$0xf]
        %v741 = vld [vmem:[%s560 + $0x44] sm:$0xf]
        %v742 = vld [vmem:[%s560 + $0x48] sm:$0xf]
        %v743 = vld [vmem:[%s560 + $0x4c] sm:$0xf]
        %v744 = vld [vmem:[%s560 + $0x50] sm:$0xf]
        %v745 = vld [vmem:[%s560 + $0x54] sm:$0xf]
        %v746 = vld [vmem:[%s560 + $0x58] sm:$0xf]
        %v747 = vld [vmem:[%s560 + $0x5c] sm:$0xf]
        %v748 = vld [vmem:[%s560 + $0x60] sm:$0xf]
        %v749 = vld [vmem:[%s560 + $0x64] sm:$0xf]
        %v750 = vld [vmem:[%s560 + $0x68] sm:$0xf]
        %v751 = vld [vmem:[%s560 + $0x6c] sm:$0xf]
        %v752 = vld [vmem:[%s560 + $0x70] sm:$0xf]
        %v753 = vld [vmem:[%s560 + $0x74] sm:$0xf]
        %v754 = vld [vmem:[%s560 + $0x78] sm:$0xf]
        %v755 = vld [vmem:[%s560 + $0x7c] sm:$0xf]
        %v756 = vld [vmem:[%s560 + $0x80] sm:$0xf]
        %v757 = vld [vmem:[%s560 + $0x84] sm:$0xf]
        %v758 = vld [vmem:[%s560 + $0x88] sm:$0xf]
        %v759 = vld [vmem:[%s560 + $0x8c] sm:$0xf]
        %v760 = vld [vmem:[%s560 + $0x90] sm:$0xf]
        %v761 = vld [vmem:[%s560 + $0x94] sm:$0xf]
        %v762 = vld [vmem:[%s560 + $0x98] sm:$0xf]
        %v763 = vld [vmem:[%s560 + $0x9c] sm:$0xf]
        %v764 = vld [vmem:[%s560 + $0xa0] sm:$0xf]
        %v765 = vld [vmem:[%s560 + $0xa4] sm:$0xf]
        %v766 = vld [vmem:[%s560 + $0xa8] sm:$0xf]
        %v767 = vld [vmem:[%s560 + $0xac] sm:$0xf]
        %v768 = vld [vmem:[%s560 + $0xb0] sm:$0xf]
        %v769 = vld [vmem:[%s560 + $0xb4] sm:$0xf]
        %v770 = vld [vmem:[%s560 + $0xb8] sm:$0xf]
        %v771 = vld [vmem:[%s560 + $0xbc] sm:$0xf]
        %v836 = vunpack.c.l.b16 %v660
        %v837 = vunpack.c.h.b16 %v660
        %v838 = vunpack.c.l.b16 %v661
        %v839 = vunpack.c.l.b16 %v662
        %v840 = vunpack.c.h.b16 %v662
        %v841 = vunpack.c.l.b16 %v663
        %v842 = vunpack.c.l.b16 %v664
        %v843 = vunpack.c.h.b16 %v664
        %v844 = vunpack.c.l.b16 %v665
        %v845 = vunpack.c.l.b16 %v666
        %v846 = vunpack.c.h.b16 %v666
        %v847 = vunpack.c.l.b16 %v667
        %v848 = vunpack.c.l.b16 %v668
        %v849 = vunpack.c.h.b16 %v668
        %v850 = vunpack.c.l.b16 %v669
        %v851 = vunpack.c.l.b16 %v670
        %v852 = vunpack.c.h.b16 %v670
        %v853 = vunpack.c.l.b16 %v671
        %v854 = vunpack.c.l.b16 %v672
        %v855 = vunpack.c.h.b16 %v672
        %v856 = vunpack.c.l.b16 %v673
        %v857 = vunpack.c.l.b16 %v674
        %v858 = vunpack.c.h.b16 %v674
        %v859 = vunpack.c.l.b16 %v675
        %v860 = vunpack.c.l.b16 %v676
        %v861 = vunpack.c.h.b16 %v676
        %v862 = vunpack.c.l.b16 %v677
        %v863 = vunpack.c.l.b16 %v678
        %v864 = vunpack.c.h.b16 %v678
        %v865 = vunpack.c.l.b16 %v679
        %v866 = vunpack.c.l.b16 %v680
        %v867 = vunpack.c.h.b16 %v680
        %v868 = vunpack.c.l.b16 %v681
        %v869 = vunpack.c.l.b16 %v682
        %v870 = vunpack.c.h.b16 %v682
        %v871 = vunpack.c.l.b16 %v683
        %v872 = vunpack.c.l.b16 %v684
        %v873 = vunpack.c.h.b16 %v684
        %v874 = vunpack.c.l.b16 %v685
        %v875 = vunpack.c.l.b16 %v686
        %v876 = vunpack.c.h.b16 %v686
        %v877 = vunpack.c.l.b16 %v687
        %v878 = vunpack.c.l.b16 %v688
        %v879 = vunpack.c.h.b16 %v688
        %v880 = vunpack.c.l.b16 %v689
        %v881 = vunpack.c.l.b16 %v690
        %v882 = vunpack.c.h.b16 %v690
        %v883 = vunpack.c.l.b16 %v691
        %v884 = vunpack.c.l.b16 %v692
        %v885 = vunpack.c.h.b16 %v692
        %v886 = vunpack.c.l.b16 %v693
        %v887 = vunpack.c.l.b16 %v694
        %v888 = vunpack.c.h.b16 %v694
        %v889 = vunpack.c.l.b16 %v695
        %v890 = vunpack.c.l.b16 %v696
        %v891 = vunpack.c.h.b16 %v696
        %v892 = vunpack.c.l.b16 %v697
        %v893 = vunpack.c.l.b16 %v698
        %v894 = vunpack.c.h.b16 %v698
        %v895 = vunpack.c.l.b16 %v699
        %v896 = vunpack.c.l.b16 %v700
        %v897 = vunpack.c.h.b16 %v700
        %v898 = vunpack.c.l.b16 %v701
        %v899 = vunpack.c.l.b16 %v702
        %v900 = vunpack.c.h.b16 %v702
        %v901 = vunpack.c.l.b16 %v703
        %v902 = vunpack.c.l.b16 %v704
        %v903 = vunpack.c.h.b16 %v704
        %v904 = vunpack.c.l.b16 %v705
        %v905 = vunpack.c.l.b16 %v706
        %v906 = vunpack.c.h.b16 %v706
        %v907 = vunpack.c.l.b16 %v707
        %v908 = vunpack.c.l.b16 %v708
        %v909 = vunpack.c.h.b16 %v708
        %v910 = vunpack.c.l.b16 %v709
        %v911 = vunpack.c.l.b16 %v710
        %v912 = vunpack.c.h.b16 %v710
        %v913 = vunpack.c.l.b16 %v711
        %v914 = vunpack.c.l.b16 %v712
        %v915 = vunpack.c.h.b16 %v712
        %v916 = vunpack.c.l.b16 %v713
        %v917 = vunpack.c.l.b16 %v714
        %v918 = vunpack.c.h.b16 %v714
        %v919 = vunpack.c.l.b16 %v715
        %v920 = vunpack.c.l.b16 %v716
        %v921 = vunpack.c.h.b16 %v716
        %v922 = vunpack.c.l.b16 %v717
        %v923 = vunpack.c.l.b16 %v718
        %v924 = vunpack.c.h.b16 %v718
        %v925 = vunpack.c.l.b16 %v719
        %v926 = vunpack.c.l.b16 %v720
        %v927 = vunpack.c.h.b16 %v720
        %v928 = vunpack.c.l.b16 %v721
        %v929 = vunpack.c.l.b16 %v722
        %v930 = vunpack.c.h.b16 %v722
        %v931 = vunpack.c.l.b16 %v723
        %v932 = vpack.c.b16 %v839, %v836
        %v933 = vpack.c.b16 %v840, %v837
        %v934 = vpack.c.b16 %v841, %v838
        %v935 = vpack.c.b16 %v845, %v842
        %v936 = vpack.c.b16 %v846, %v843
        %v937 = vpack.c.b16 %v847, %v844
        %v938 = vpack.c.b16 %v851, %v848
        %v939 = vpack.c.b16 %v852, %v849
        %v940 = vpack.c.b16 %v853, %v850
        %v941 = vpack.c.b16 %v857, %v854
        %v942 = vpack.c.b16 %v858, %v855
        %v943 = vpack.c.b16 %v859, %v856
        %v944 = vpack.c.b16 %v863, %v860
        %v945 = vpack.c.b16 %v864, %v861
        %v946 = vpack.c.b16 %v865, %v862
        %v947 = vpack.c.b16 %v869, %v866
        %v948 = vpack.c.b16 %v870, %v867
        %v949 = vpack.c.b16 %v871, %v868
        %v950 = vpack.c.b16 %v875, %v872
        %v951 = vpack.c.b16 %v876, %v873
        %v952 = vpack.c.b16 %v877, %v874
        %v953 = vpack.c.b16 %v881, %v878
        %v954 = vpack.c.b16 %v882, %v879
        %v955 = vpack.c.b16 %v883, %v880
        %v956 = vpack.c.b16 %v887, %v884
        %v957 = vpack.c.b16 %v888, %v885
        %v958 = vpack.c.b16 %v889, %v886
        %v959 = vpack.c.b16 %v893, %v890
        %v960 = vpack.c.b16 %v894, %v891
        %v961 = vpack.c.b16 %v895, %v892
        %v962 = vpack.c.b16 %v899, %v896
        %v963 = vpack.c.b16 %v900, %v897
        %v964 = vpack.c.b16 %v901, %v898
        %v965 = vpack.c.b16 %v905, %v902
        %v966 = vpack.c.b16 %v906, %v903
        %v967 = vpack.c.b16 %v907, %v904
        %v968 = vpack.c.b16 %v911, %v908
        %v969 = vpack.c.b16 %v912, %v909
        %v970 = vpack.c.b16 %v913, %v910
        %v971 = vpack.c.b16 %v917, %v914
        %v972 = vpack.c.b16 %v918, %v915
        %v973 = vpack.c.b16 %v919, %v916
        %v974 = vpack.c.b16 %v923, %v920
        %v975 = vpack.c.b16 %v924, %v921
        %v976 = vpack.c.b16 %v925, %v922
        %v977 = vpack.c.b16 %v929, %v926
        %v978 = vpack.c.b16 %v930, %v927
        %v979 = vpack.c.b16 %v931, %v928
        %v1076 = vunpack.c.l.b16 %v724
        %v1077 = vunpack.c.l.b16 %v725
        %v1078 = vunpack.c.l.b16 %v726
        %v1079 = vunpack.c.l.b16 %v727
        %v1080 = vunpack.c.l.b16 %v728
        %v1081 = vunpack.c.l.b16 %v729
        %v1082 = vunpack.c.l.b16 %v730
        %v1083 = vunpack.c.l.b16 %v731
        %v1084 = vunpack.c.l.b16 %v732
        %v1085 = vunpack.c.l.b16 %v733
        %v1086 = vunpack.c.l.b16 %v734
        %v1087 = vunpack.c.l.b16 %v735
        %v1088 = vunpack.c.l.b16 %v736
        %v1089 = vunpack.c.l.b16 %v737
        %v1090 = vunpack.c.l.b16 %v738
        %v1091 = vunpack.c.l.b16 %v739
        %v1092 = vunpack.c.l.b16 %v740
        %v1093 = vunpack.c.l.b16 %v741
        %v1094 = vunpack.c.l.b16 %v742
        %v1095 = vunpack.c.l.b16 %v743
        %v1096 = vunpack.c.l.b16 %v744
        %v1097 = vunpack.c.l.b16 %v745
        %v1098 = vunpack.c.l.b16 %v746
        %v1099 = vunpack.c.l.b16 %v747
        %v1100 = vunpack.c.l.b16 %v748
        %v1101 = vunpack.c.l.b16 %v749
        %v1102 = vunpack.c.l.b16 %v750
        %v1103 = vunpack.c.l.b16 %v751
        %v1104 = vunpack.c.l.b16 %v752
        %v1105 = vunpack.c.l.b16 %v753
        %v1106 = vunpack.c.l.b16 %v754
        %v1107 = vunpack.c.l.b16 %v755
        %v1108 = vunpack.c.l.b16 %v756
        %v1109 = vunpack.c.l.b16 %v757
        %v1110 = vunpack.c.l.b16 %v758
        %v1111 = vunpack.c.l.b16 %v759
        %v1112 = vunpack.c.l.b16 %v760
        %v1113 = vunpack.c.l.b16 %v761
        %v1114 = vunpack.c.l.b16 %v762
        %v1115 = vunpack.c.l.b16 %v763
        %v1116 = vunpack.c.l.b16 %v764
        %v1117 = vunpack.c.l.b16 %v765
        %v1118 = vunpack.c.l.b16 %v766
        %v1119 = vunpack.c.l.b16 %v767
        %v1120 = vunpack.c.l.b16 %v768
        %v1121 = vunpack.c.l.b16 %v769
        %v1122 = vunpack.c.l.b16 %v770
        %v1123 = vunpack.c.l.b16 %v771
        %v1124 = vpack.c.b16 %v1077, %v1076
        %v1125 = vpack.c.b16 %v1079, %v1078
        %v1126 = vpack.c.b16 %v1081, %v1080
        %v1127 = vpack.c.b16 %v1083, %v1082
        %v1128 = vpack.c.b16 %v1085, %v1084
        %v1129 = vpack.c.b16 %v1087, %v1086
        %v1130 = vpack.c.b16 %v1089, %v1088
        %v1131 = vpack.c.b16 %v1091, %v1090
        %v1132 = vpack.c.b16 %v1093, %v1092
        %v1133 = vpack.c.b16 %v1095, %v1094
        %v1134 = vpack.c.b16 %v1097, %v1096
        %v1135 = vpack.c.b16 %v1099, %v1098
        %v1136 = vpack.c.b16 %v1101, %v1100
        %v1137 = vpack.c.b16 %v1103, %v1102
        %v1138 = vpack.c.b16 %v1105, %v1104
        %v1139 = vpack.c.b16 %v1107, %v1106
        %v1140 = vpack.c.b16 %v1109, %v1108
        %v1141 = vpack.c.b16 %v1111, %v1110
        %v1142 = vpack.c.b16 %v1113, %v1112
        %v1143 = vpack.c.b16 %v1115, %v1114
        %v1144 = vpack.c.b16 %v1117, %v1116
        %v1145 = vpack.c.b16 %v1119, %v1118
        %v1146 = vpack.c.b16 %v1121, %v1120
        %v1147 = vpack.c.b16 %v1123, %v1122
        %1172 = vmatpush.bf16.msra.mxu0 %v1131
        %1173 = vmatpush.bf16.msra.mxu0 %v1130
        %1174 = vmatpush.bf16.msra.mxu0 %v1129
        %1175 = vmatpush.bf16.msra.mxu0 %v1128
        %1176 = vmatpush.bf16.msra.mxu0 %v1127
        %1177 = vmatpush.bf16.msra.mxu0 %v1126
        %1178 = vmatpush.bf16.msra.mxu0 %v1125
        %1179 = vmatpush.bf16.msra.mxu0 %v1124
        %1180 = vmatmul.bf16.gmra.mxu0 %v932
        %v1181 = vpop.f32.mrf.mxu0
        %v1182 = vadd.f32 0.0, %v1181
        %v1183 = vpop.f32.mrf.mxu0
        %v1184 = vadd.f32 0.0, %v1183
        %1185 = vmatmul.bf16.gmra.mxu0 %v935
        %v1186 = vpop.f32.mrf.mxu0
        %v1187 = vadd.f32 0.0, %v1186
        %v1188 = vpop.f32.mrf.mxu0
        %v1189 = vadd.f32 0.0, %v1188
        %1190 = vmatmul.bf16.gmra.mxu0 %v938
        %v1191 = vpop.f32.mrf.mxu0
        %v1192 = vadd.f32 0.0, %v1191
        %v1193 = vpop.f32.mrf.mxu0
        %v1194 = vadd.f32 0.0, %v1193
        %1195 = vmatmul.bf16.gmra.mxu0 %v941
        %v1196 = vpop.f32.mrf.mxu0
        %v1197 = vadd.f32 0.0, %v1196
        %v1198 = vpop.f32.mrf.mxu0
        %v1199 = vadd.f32 0.0, %v1198
        %1200 = vmatmul.bf16.gmra.mxu0 %v944
        %v1201 = vpop.f32.mrf.mxu0
        %v1202 = vadd.f32 0.0, %v1201
        %v1203 = vpop.f32.mrf.mxu0
        %v1204 = vadd.f32 0.0, %v1203
        %1205 = vmatmul.bf16.gmra.mxu0 %v947
        %v1206 = vpop.f32.mrf.mxu0
        %v1207 = vadd.f32 0.0, %v1206
        %v1208 = vpop.f32.mrf.mxu0
        %v1209 = vadd.f32 0.0, %v1208
        %1210 = vmatmul.bf16.gmra.mxu0 %v950
        %v1211 = vpop.f32.mrf.mxu0
        %v1212 = vadd.f32 0.0, %v1211
        %v1213 = vpop.f32.mrf.mxu0
        %v1214 = vadd.f32 0.0, %v1213
        %1215 = vmatmul.bf16.gmra.mxu0 %v953
        %v1216 = vpop.f32.mrf.mxu0
        %v1217 = vadd.f32 0.0, %v1216
        %v1218 = vpop.f32.mrf.mxu0
        %v1219 = vadd.f32 0.0, %v1218
        %1220 = vmatmul.bf16.gmra.mxu0 %v956
        %v1221 = vpop.f32.mrf.mxu0
        %v1222 = vadd.f32 0.0, %v1221
        %v1223 = vpop.f32.mrf.mxu0
        %v1224 = vadd.f32 0.0, %v1223
        %1225 = vmatmul.bf16.gmra.mxu0 %v959
        %v1226 = vpop.f32.mrf.mxu0
        %v1227 = vadd.f32 0.0, %v1226
        %v1228 = vpop.f32.mrf.mxu0
        %v1229 = vadd.f32 0.0, %v1228
        %1230 = vmatmul.bf16.gmra.mxu0 %v962
        %v1231 = vpop.f32.mrf.mxu0
        %v1232 = vadd.f32 0.0, %v1231
        %v1233 = vpop.f32.mrf.mxu0
        %v1234 = vadd.f32 0.0, %v1233
        %1235 = vmatmul.bf16.gmra.mxu0 %v965
        %v1236 = vpop.f32.mrf.mxu0
        %v1237 = vadd.f32 0.0, %v1236
        %v1238 = vpop.f32.mrf.mxu0
        %v1239 = vadd.f32 0.0, %v1238
        %1240 = vmatmul.bf16.gmra.mxu0 %v968
        %v1241 = vpop.f32.mrf.mxu0
        %v1242 = vadd.f32 0.0, %v1241
        %v1243 = vpop.f32.mrf.mxu0
        %v1244 = vadd.f32 0.0, %v1243
        %1245 = vmatmul.bf16.gmra.mxu0 %v971
        %v1246 = vpop.f32.mrf.mxu0
        %v1247 = vadd.f32 0.0, %v1246
        %v1248 = vpop.f32.mrf.mxu0
        %v1249 = vadd.f32 0.0, %v1248
        %1250 = vmatmul.bf16.gmra.mxu0 %v974
        %v1251 = vpop.f32.mrf.mxu0
        %v1252 = vadd.f32 0.0, %v1251
        %v1253 = vpop.f32.mrf.mxu0
        %v1254 = vadd.f32 0.0, %v1253
        %1255 = vmatmul.bf16.gmra.mxu0 %v977
        %v1256 = vpop.f32.mrf.mxu0
        %v1257 = vadd.f32 0.0, %v1256
        %v1258 = vpop.f32.mrf.mxu0
        %v1259 = vadd.f32 0.0, %v1258
        %1260 = vdwg.mxu0
        %1261 = vmatpush.bf16.msra.mxu0 %v1139
        %1262 = vmatpush.bf16.msra.mxu0 %v1138
        %1263 = vmatpush.bf16.msra.mxu0 %v1137
        %1264 = vmatpush.bf16.msra.mxu0 %v1136
        %1265 = vmatpush.bf16.msra.mxu0 %v1135
        %1266 = vmatpush.bf16.msra.mxu0 %v1134
        %1267 = vmatpush.bf16.msra.mxu0 %v1133
        %1268 = vmatpush.bf16.msra.mxu0 %v1132
        %1269 = vmatmul.bf16.gmra.mxu0 %v933
        %v1270 = vpop.f32.mrf.mxu0
        %v1271 = vadd.f32 %v1182, %v1270
        %v1272 = vpop.f32.mrf.mxu0
        %v1273 = vadd.f32 %v1184, %v1272
        %1274 = vmatmul.bf16.gmra.mxu0 %v936
        %v1275 = vpop.f32.mrf.mxu0
        %v1276 = vadd.f32 %v1187, %v1275
        %v1277 = vpop.f32.mrf.mxu0
        %v1278 = vadd.f32 %v1189, %v1277
        %1279 = vmatmul.bf16.gmra.mxu0 %v939
        %v1280 = vpop.f32.mrf.mxu0
        %v1281 = vadd.f32 %v1192, %v1280
        %v1282 = vpop.f32.mrf.mxu0
        %v1283 = vadd.f32 %v1194, %v1282
        %1284 = vmatmul.bf16.gmra.mxu0 %v942
        %v1285 = vpop.f32.mrf.mxu0
        %v1286 = vadd.f32 %v1197, %v1285
        %v1287 = vpop.f32.mrf.mxu0
        %v1288 = vadd.f32 %v1199, %v1287
        %1289 = vmatmul.bf16.gmra.mxu0 %v945
        %v1290 = vpop.f32.mrf.mxu0
        %v1291 = vadd.f32 %v1202, %v1290
        %v1292 = vpop.f32.mrf.mxu0
        %v1293 = vadd.f32 %v1204, %v1292
        %1294 = vmatmul.bf16.gmra.mxu0 %v948
        %v1295 = vpop.f32.mrf.mxu0
        %v1296 = vadd.f32 %v1207, %v1295
        %v1297 = vpop.f32.mrf.mxu0
        %v1298 = vadd.f32 %v1209, %v1297
        %1299 = vmatmul.bf16.gmra.mxu0 %v951
        %v1300 = vpop.f32.mrf.mxu0
        %v1301 = vadd.f32 %v1212, %v1300
        %v1302 = vpop.f32.mrf.mxu0
        %v1303 = vadd.f32 %v1214, %v1302
        %1304 = vmatmul.bf16.gmra.mxu0 %v954
        %v1305 = vpop.f32.mrf.mxu0
        %v1306 = vadd.f32 %v1217, %v1305
        %v1307 = vpop.f32.mrf.mxu0
        %v1308 = vadd.f32 %v1219, %v1307
        %1309 = vmatmul.bf16.gmra.mxu0 %v957
        %v1310 = vpop.f32.mrf.mxu0
        %v1311 = vadd.f32 %v1222, %v1310
        %v1312 = vpop.f32.mrf.mxu0
        %v1313 = vadd.f32 %v1224, %v1312
        %1314 = vmatmul.bf16.gmra.mxu0 %v960
        %v1315 = vpop.f32.mrf.mxu0
        %v1316 = vadd.f32 %v1227, %v1315
        %v1317 = vpop.f32.mrf.mxu0
        %v1318 = vadd.f32 %v1229, %v1317
        %1319 = vmatmul.bf16.gmra.mxu0 %v963
        %v1320 = vpop.f32.mrf.mxu0
        %v1321 = vadd.f32 %v1232, %v1320
        %v1322 = vpop.f32.mrf.mxu0
        %v1323 = vadd.f32 %v1234, %v1322
        %1324 = vmatmul.bf16.gmra.mxu0 %v966
        %v1325 = vpop.f32.mrf.mxu0
        %v1326 = vadd.f32 %v1237, %v1325
        %v1327 = vpop.f32.mrf.mxu0
        %v1328 = vadd.f32 %v1239, %v1327
        %1329 = vmatmul.bf16.gmra.mxu0 %v969
        %v1330 = vpop.f32.mrf.mxu0
        %v1331 = vadd.f32 %v1242, %v1330
        %v1332 = vpop.f32.mrf.mxu0
        %v1333 = vadd.f32 %v1244, %v1332
        %1334 = vmatmul.bf16.gmra.mxu0 %v972
        %v1335 = vpop.f32.mrf.mxu0
        %v1336 = vadd.f32 %v1247, %v1335
        %v1337 = vpop.f32.mrf.mxu0
        %v1338 = vadd.f32 %v1249, %v1337
        %1339 = vmatmul.bf16.gmra.mxu0 %v975
        %v1340 = vpop.f32.mrf.mxu0
        %v1341 = vadd.f32 %v1252, %v1340
        %v1342 = vpop.f32.mrf.mxu0
        %v1343 = vadd.f32 %v1254, %v1342
        %1344 = vmatmul.bf16.gmra.mxu0 %v978
        %v1345 = vpop.f32.mrf.mxu0
        %v1346 = vadd.f32 %v1257, %v1345
        %v1347 = vpop.f32.mrf.mxu0
        %v1348 = vadd.f32 %v1259, %v1347
        %1349 = vdwg.mxu0
        %1350 = vmatpush.bf16.msra.mxu0 %v1147
        %1351 = vmatpush.bf16.msra.mxu0 %v1146
        %1352 = vmatpush.bf16.msra.mxu0 %v1145
        %1353 = vmatpush.bf16.msra.mxu0 %v1144
        %1354 = vmatpush.bf16.msra.mxu0 %v1143
        %1355 = vmatpush.bf16.msra.mxu0 %v1142
        %1356 = vmatpush.bf16.msra.mxu0 %v1141
        %1357 = vmatpush.bf16.msra.mxu0 %v1140
        %1358 = vmatmul.bf16.gmra.mxu0 %v934
        %v1359 = vpop.f32.mrf.mxu0
        %v1360 = vadd.f32 %v1271, %v1359
        %v1361 = vpop.f32.mrf.mxu0
        %v1362 = vadd.f32 %v1273, %v1361
        %1363 = vmatmul.bf16.gmra.mxu0 %v937
        %v1364 = vpop.f32.mrf.mxu0
        %v1365 = vadd.f32 %v1276, %v1364
        %v1366 = vpop.f32.mrf.mxu0
        %v1367 = vadd.f32 %v1278, %v1366
        %1368 = vmatmul.bf16.gmra.mxu0 %v940
        %v1369 = vpop.f32.mrf.mxu0
        %v1370 = vadd.f32 %v1281, %v1369
        %v1371 = vpop.f32.mrf.mxu0
        %v1372 = vadd.f32 %v1283, %v1371
        %1373 = vmatmul.bf16.gmra.mxu0 %v943
        %v1374 = vpop.f32.mrf.mxu0
        %v1375 = vadd.f32 %v1286, %v1374
        %v1376 = vpop.f32.mrf.mxu0
        %v1377 = vadd.f32 %v1288, %v1376
        %1378 = vmatmul.bf16.gmra.mxu0 %v946
        %v1379 = vpop.f32.mrf.mxu0
        %v1380 = vadd.f32 %v1291, %v1379
        %v1381 = vpop.f32.mrf.mxu0
        %v1382 = vadd.f32 %v1293, %v1381
        %1383 = vmatmul.bf16.gmra.mxu0 %v949
        %v1384 = vpop.f32.mrf.mxu0
        %v1385 = vadd.f32 %v1296, %v1384
        %v1386 = vpop.f32.mrf.mxu0
        %v1387 = vadd.f32 %v1298, %v1386
        %1388 = vmatmul.bf16.gmra.mxu0 %v952
        %v1389 = vpop.f32.mrf.mxu0
        %v1390 = vadd.f32 %v1301, %v1389
        %v1391 = vpop.f32.mrf.mxu0
        %v1392 = vadd.f32 %v1303, %v1391
        %1393 = vmatmul.bf16.gmra.mxu0 %v955
        %v1394 = vpop.f32.mrf.mxu0
        %v1395 = vadd.f32 %v1306, %v1394
        %v1396 = vpop.f32.mrf.mxu0
        %v1397 = vadd.f32 %v1308, %v1396
        %1398 = vmatmul.bf16.gmra.mxu0 %v958
        %v1399 = vpop.f32.mrf.mxu0
        %v1400 = vadd.f32 %v1311, %v1399
        %v1401 = vpop.f32.mrf.mxu0
        %v1402 = vadd.f32 %v1313, %v1401
        %1403 = vmatmul.bf16.gmra.mxu0 %v961
        %v1404 = vpop.f32.mrf.mxu0
        %v1405 = vadd.f32 %v1316, %v1404
        %v1406 = vpop.f32.mrf.mxu0
        %v1407 = vadd.f32 %v1318, %v1406
        %1408 = vmatmul.bf16.gmra.mxu0 %v964
        %v1409 = vpop.f32.mrf.mxu0
        %v1410 = vadd.f32 %v1321, %v1409
        %v1411 = vpop.f32.mrf.mxu0
        %v1412 = vadd.f32 %v1323, %v1411
        %1413 = vmatmul.bf16.gmra.mxu0 %v967
        %v1414 = vpop.f32.mrf.mxu0
        %v1415 = vadd.f32 %v1326, %v1414
        %v1416 = vpop.f32.mrf.mxu0
        %v1417 = vadd.f32 %v1328, %v1416
        %1418 = vmatmul.bf16.gmra.mxu0 %v970
        %v1419 = vpop.f32.mrf.mxu0
        %v1420 = vadd.f32 %v1331, %v1419
        %v1421 = vpop.f32.mrf.mxu0
        %v1422 = vadd.f32 %v1333, %v1421
        %1423 = vmatmul.bf16.gmra.mxu0 %v973
        %v1424 = vpop.f32.mrf.mxu0
        %v1425 = vadd.f32 %v1336, %v1424
        %v1426 = vpop.f32.mrf.mxu0
        %v1427 = vadd.f32 %v1338, %v1426
        %1428 = vmatmul.bf16.gmra.mxu0 %v976
        %v1429 = vpop.f32.mrf.mxu0
        %v1430 = vadd.f32 %v1341, %v1429
        %v1431 = vpop.f32.mrf.mxu0
        %v1432 = vadd.f32 %v1343, %v1431
        %1433 = vmatmul.bf16.gmra.mxu0 %v979
        %v1434 = vpop.f32.mrf.mxu0
        %v1435 = vadd.f32 %v1346, %v1434
        %v1436 = vpop.f32.mrf.mxu0
        %v1437 = vadd.f32 %v1348, %v1436
        %1438 = vdwg.mxu0
        %v1439 = vadd.f32 %v628, %v1360
        %v1440 = vadd.f32 %v629, %v1362
        %v1441 = vadd.f32 %v630, %v1365
        %v1442 = vadd.f32 %v631, %v1367
        %v1443 = vadd.f32 %v632, %v1370
        %v1444 = vadd.f32 %v633, %v1372
        %v1445 = vadd.f32 %v634, %v1375
        %v1446 = vadd.f32 %v635, %v1377
        %v1447 = vadd.f32 %v636, %v1380
        %v1448 = vadd.f32 %v637, %v1382
        %v1449 = vadd.f32 %v638, %v1385
        %v1450 = vadd.f32 %v639, %v1387
        %v1451 = vadd.f32 %v640, %v1390
        %v1452 = vadd.f32 %v641, %v1392
        %v1453 = vadd.f32 %v642, %v1395
        %v1454 = vadd.f32 %v643, %v1397
        %v1455 = vadd.f32 %v644, %v1400
        %v1456 = vadd.f32 %v645, %v1402
        %v1457 = vadd.f32 %v646, %v1405
        %v1458 = vadd.f32 %v647, %v1407
        %v1459 = vadd.f32 %v648, %v1410
        %v1460 = vadd.f32 %v649, %v1412
        %v1461 = vadd.f32 %v650, %v1415
        %v1462 = vadd.f32 %v651, %v1417
        %v1463 = vadd.f32 %v652, %v1420
        %v1464 = vadd.f32 %v653, %v1422
        %v1465 = vadd.f32 %v654, %v1425
        %v1466 = vadd.f32 %v655, %v1427
        %v1467 = vadd.f32 %v656, %v1430
        %v1468 = vadd.f32 %v657, %v1432
        %v1469 = vadd.f32 %v658, %v1435
        %v1470 = vadd.f32 %v659, %v1437
        %1471 = vst [vmem:[#allocation2] sm:$0xff] %v1439
        %1472 = vst [vmem:[#allocation2 + $0x8] sm:$0xff] %v1440
        %1473 = vst [vmem:[#allocation2 + $0x10] sm:$0xff] %v1441
        %1474 = vst [vmem:[#allocation2 + $0x18] sm:$0xff] %v1442
        %1475 = vst [vmem:[#allocation2 + $0x20] sm:$0xff] %v1443
        %1476 = vst [vmem:[#allocation2 + $0x28] sm:$0xff] %v1444
        %1477 = vst [vmem:[#allocation2 + $0x30] sm:$0xff] %v1445
        %1478 = vst [vmem:[#allocation2 + $0x38] sm:$0xff] %v1446
        %1479 = vst [vmem:[#allocation2 + $0x40] sm:$0xff] %v1447
        %1480 = vst [vmem:[#allocation2 + $0x48] sm:$0xff] %v1448
        %1481 = vst [vmem:[#allocation2 + $0x50] sm:$0xff] %v1449
        %1482 = vst [vmem:[#allocation2 + $0x58] sm:$0xff] %v1450
        %1483 = vst [vmem:[#allocation2 + $0x60] sm:$0xff] %v1451
        %1484 = vst [vmem:[#allocation2 + $0x68] sm:$0xff] %v1452
        %1485 = vst [vmem:[#allocation2 + $0x70] sm:$0xff] %v1453
        %1486 = vst [vmem:[#allocation2 + $0x78] sm:$0xff] %v1454
        %1487 = vst [vmem:[#allocation2 + $0x80] sm:$0xff] %v1455
        %1488 = vst [vmem:[#allocation2 + $0x88] sm:$0xff] %v1456
        %1489 = vst [vmem:[#allocation2 + $0x90] sm:$0xff] %v1457
        %1490 = vst [vmem:[#allocation2 + $0x98] sm:$0xff] %v1458
        %1491 = vst [vmem:[#allocation2 + $0xa0] sm:$0xff] %v1459
        %1492 = vst [vmem:[#allocation2 + $0xa8] sm:$0xff] %v1460
        %1493 = vst [vmem:[#allocation2 + $0xb0] sm:$0xff] %v1461
        %1494 = vst [vmem:[#allocation2 + $0xb8] sm:$0xff] %v1462
        %1495 = vst [vmem:[#allocation2 + $0xc0] sm:$0xff] %v1463
        %1496 = vst [vmem:[#allocation2 + $0xc8] sm:$0xff] %v1464
        %1497 = vst [vmem:[#allocation2 + $0xd0] sm:$0xff] %v1465
        %1498 = vst [vmem:[#allocation2 + $0xd8] sm:$0xff] %v1466
        %1499 = vst [vmem:[#allocation2 + $0xe0] sm:$0xff] %v1467
        %1500 = vst [vmem:[#allocation2 + $0xe8] sm:$0xff] %v1468
        %1501 = vst [vmem:[#allocation2 + $0xf0] sm:$0xff] %v1469
        %1502 = vst [vmem:[#allocation2 + $0xf8] sm:$0xff] %v1470
        %p1503 = scmp.eq.s32.totalorder %s25, 2
        // Predicated region
        $region79: #{_lambda_.12} parent=69 // pred_check
          %p1504 = pneg %p1503
        $region80: #{_lambda_.12} parent=69 // pred_check_branch
          %1506 = sbr.rel (%p1504) target = $region82
        $region81: #{_lambda_.12} parent=69 // pred_region
          %v1507 = vld [vmem:[#allocation2] sm:$0xff]
          %v1508 = vld [vmem:[#allocation2 + $0x8] sm:$0xff]
          %v1509 = vld [vmem:[#allocation2 + $0x10] sm:$0xff]
          %v1510 = vld [vmem:[#allocation2 + $0x18] sm:$0xff]
          %v1511 = vld [vmem:[#allocation2 + $0x20] sm:$0xff]
          %v1512 = vld [vmem:[#allocation2 + $0x28] sm:$0xff]
          %v1513 = vld [vmem:[#allocation2 + $0x30] sm:$0xff]
          %v1514 = vld [vmem:[#allocation2 + $0x38] sm:$0xff]
          %v1515 = vld [vmem:[#allocation2 + $0x40] sm:$0xff]
          %v1516 = vld [vmem:[#allocation2 + $0x48] sm:$0xff]
          %v1517 = vld [vmem:[#allocation2 + $0x50] sm:$0xff]
          %v1518 = vld [vmem:[#allocation2 + $0x58] sm:$0xff]
          %v1519 = vld [vmem:[#allocation2 + $0x60] sm:$0xff]
          %v1520 = vld [vmem:[#allocation2 + $0x68] sm:$0xff]
          %v1521 = vld [vmem:[#allocation2 + $0x70] sm:$0xff]
          %v1522 = vld [vmem:[#allocation2 + $0x78] sm:$0xff]
          %v1523 = vld [vmem:[#allocation2 + $0x80] sm:$0xff]
          %v1524 = vld [vmem:[#allocation2 + $0x88] sm:$0xff]
          %v1525 = vld [vmem:[#allocation2 + $0x90] sm:$0xff]
          %v1526 = vld [vmem:[#allocation2 + $0x98] sm:$0xff]
          %v1527 = vld [vmem:[#allocation2 + $0xa0] sm:$0xff]
          %v1528 = vld [vmem:[#allocation2 + $0xa8] sm:$0xff]
          %v1529 = vld [vmem:[#allocation2 + $0xb0] sm:$0xff]
          %v1530 = vld [vmem:[#allocation2 + $0xb8] sm:$0xff]
          %v1531 = vld [vmem:[#allocation2 + $0xc0] sm:$0xff]
          %v1532 = vld [vmem:[#allocation2 + $0xc8] sm:$0xff]
          %v1533 = vld [vmem:[#allocation2 + $0xd0] sm:$0xff]
          %v1534 = vld [vmem:[#allocation2 + $0xd8] sm:$0xff]
          %v1535 = vld [vmem:[#allocation2 + $0xe0] sm:$0xff]
          %v1536 = vld [vmem:[#allocation2 + $0xe8] sm:$0xff]
          %v1537 = vld [vmem:[#allocation2 + $0xf0] sm:$0xff]
          %v1538 = vld [vmem:[#allocation2 + $0xf8] sm:$0xff]
          %v1539 = vld [vmem:[%s581] sm:$0xff]
          %v1540 = vld [vmem:[%s581 + $0x8] sm:$0xff]
          %v1541 = vld [vmem:[%s581 + $0x10] sm:$0xff]
          %v1542 = vld [vmem:[%s581 + $0x18] sm:$0xff]
          %v1543 = vld [vmem:[%s581 + $0x20] sm:$0xff]
          %v1544 = vld [vmem:[%s581 + $0x28] sm:$0xff]
          %v1545 = vld [vmem:[%s581 + $0x30] sm:$0xff]
          %v1546 = vld [vmem:[%s581 + $0x38] sm:$0xff]
          %v1547 = vld [vmem:[%s581 + $0x40] sm:$0xff]
          %v1548 = vld [vmem:[%s581 + $0x48] sm:$0xff]
          %v1549 = vld [vmem:[%s581 + $0x50] sm:$0xff]
          %v1550 = vld [vmem:[%s581 + $0x58] sm:$0xff]
          %v1551 = vld [vmem:[%s581 + $0x60] sm:$0xff]
          %v1552 = vld [vmem:[%s581 + $0x68] sm:$0xff]
          %v1553 = vld [vmem:[%s581 + $0x70] sm:$0xff]
          %v1554 = vld [vmem:[%s581 + $0x78] sm:$0xff]
          %v1555 = vld [vmem:[%s581 + $0x80] sm:$0xff]
          %v1556 = vld [vmem:[%s581 + $0x88] sm:$0xff]
          %v1557 = vld [vmem:[%s581 + $0x90] sm:$0xff]
          %v1558 = vld [vmem:[%s581 + $0x98] sm:$0xff]
          %v1559 = vld [vmem:[%s581 + $0xa0] sm:$0xff]
          %v1560 = vld [vmem:[%s581 + $0xa8] sm:$0xff]
          %v1561 = vld [vmem:[%s581 + $0xb0] sm:$0xff]
          %v1562 = vld [vmem:[%s581 + $0xb8] sm:$0xff]
          %v1563 = vld [vmem:[%s581 + $0xc0] sm:$0xff]
          %v1564 = vld [vmem:[%s581 + $0xc8] sm:$0xff]
          %v1565 = vld [vmem:[%s581 + $0xd0] sm:$0xff]
          %v1566 = vld [vmem:[%s581 + $0xd8] sm:$0xff]
          %v1567 = vld [vmem:[%s581 + $0xe0] sm:$0xff]
          %v1568 = vld [vmem:[%s581 + $0xe8] sm:$0xff]
          %v1569 = vld [vmem:[%s581 + $0xf0] sm:$0xff]
          %v1570 = vld [vmem:[%s581 + $0xf8] sm:$0xff]
          %v1571 = vadd.f32 %v1507, %v1539
          %v1572 = vadd.f32 %v1508, %v1540
          %v1573 = vadd.f32 %v1509, %v1541
          %v1574 = vadd.f32 %v1510, %v1542
          %v1575 = vadd.f32 %v1511, %v1543
          %v1576 = vadd.f32 %v1512, %v1544
          %v1577 = vadd.f32 %v1513, %v1545
          %v1578 = vadd.f32 %v1514, %v1546
          %v1579 = vadd.f32 %v1515, %v1547
          %v1580 = vadd.f32 %v1516, %v1548
          %v1581 = vadd.f32 %v1517, %v1549
          %v1582 = vadd.f32 %v1518, %v1550
          %v1583 = vadd.f32 %v1519, %v1551
          %v1584 = vadd.f32 %v1520, %v1552
          %v1585 = vadd.f32 %v1521, %v1553
          %v1586 = vadd.f32 %v1522, %v1554
          %v1587 = vadd.f32 %v1523, %v1555
          %v1588 = vadd.f32 %v1524, %v1556
          %v1589 = vadd.f32 %v1525, %v1557
          %v1590 = vadd.f32 %v1526, %v1558
          %v1591 = vadd.f32 %v1527, %v1559
          %v1592 = vadd.f32 %v1528, %v1560
          %v1593 = vadd.f32 %v1529, %v1561
          %v1594 = vadd.f32 %v1530, %v1562
          %v1595 = vadd.f32 %v1531, %v1563
          %v1596 = vadd.f32 %v1532, %v1564
          %v1597 = vadd.f32 %v1533, %v1565
          %v1598 = vadd.f32 %v1534, %v1566
          %v1599 = vadd.f32 %v1535, %v1567
          %v1600 = vadd.f32 %v1536, %v1568
          %v1601 = vadd.f32 %v1537, %v1569
          %v1602 = vadd.f32 %v1538, %v1570
          %v1603 = vld [vmem:[%s564] sm:$0x1]
          %v1605 = vperm.slane %v1603, 0
          %v1607 = vmul.f32 %v1571, %v1605
          %v1608 = vmul.f32 %v1572, %v1605
          %v1609 = vmul.f32 %v1573, %v1605
          %v1610 = vmul.f32 %v1574, %v1605
          %v1611 = vmul.f32 %v1575, %v1605
          %v1612 = vmul.f32 %v1576, %v1605
          %v1613 = vmul.f32 %v1577, %v1605
          %v1614 = vmul.f32 %v1578, %v1605
          %v1615 = vmul.f32 %v1579, %v1605
          %v1616 = vmul.f32 %v1580, %v1605
          %v1617 = vmul.f32 %v1581, %v1605
          %v1618 = vmul.f32 %v1582, %v1605
          %v1619 = vmul.f32 %v1583, %v1605
          %v1620 = vmul.f32 %v1584, %v1605
          %v1621 = vmul.f32 %v1585, %v1605
          %v1622 = vmul.f32 %v1586, %v1605
          %v1623 = vmul.f32 %v1587, %v1605
          %v1624 = vmul.f32 %v1588, %v1605
          %v1625 = vmul.f32 %v1589, %v1605
          %v1626 = vmul.f32 %v1590, %v1605
          %v1627 = vmul.f32 %v1591, %v1605
          %v1628 = vmul.f32 %v1592, %v1605
          %v1629 = vmul.f32 %v1593, %v1605
          %v1630 = vmul.f32 %v1594, %v1605
          %v1631 = vmul.f32 %v1595, %v1605
          %v1632 = vmul.f32 %v1596, %v1605
          %v1633 = vmul.f32 %v1597, %v1605
          %v1634 = vmul.f32 %v1598, %v1605
          %v1635 = vmul.f32 %v1599, %v1605
          %v1636 = vmul.f32 %v1600, %v1605
          %v1637 = vmul.f32 %v1601, %v1605
          %v1638 = vmul.f32 %v1602, %v1605
          %v1639 = vld [vmem:[%s567] sm:$0x1]
          %v1641 = vperm.slane %v1639, 0
          %v1643 = vadd.f32 %v1607, %v1641
          %v1644 = vadd.f32 %v1608, %v1641
          %v1645 = vadd.f32 %v1609, %v1641
          %v1646 = vadd.f32 %v1610, %v1641
          %v1647 = vadd.f32 %v1611, %v1641
          %v1648 = vadd.f32 %v1612, %v1641
          %v1649 = vadd.f32 %v1613, %v1641
          %v1650 = vadd.f32 %v1614, %v1641
          %v1651 = vadd.f32 %v1615, %v1641
          %v1652 = vadd.f32 %v1616, %v1641
          %v1653 = vadd.f32 %v1617, %v1641
          %v1654 = vadd.f32 %v1618, %v1641
          %v1655 = vadd.f32 %v1619, %v1641
          %v1656 = vadd.f32 %v1620, %v1641
          %v1657 = vadd.f32 %v1621, %v1641
          %v1658 = vadd.f32 %v1622, %v1641
          %v1659 = vadd.f32 %v1623, %v1641
          %v1660 = vadd.f32 %v1624, %v1641
          %v1661 = vadd.f32 %v1625, %v1641
          %v1662 = vadd.f32 %v1626, %v1641
          %v1663 = vadd.f32 %v1627, %v1641
          %v1664 = vadd.f32 %v1628, %v1641
          %v1665 = vadd.f32 %v1629, %v1641
          %v1666 = vadd.f32 %v1630, %v1641
          %v1667 = vadd.f32 %v1631, %v1641
          %v1668 = vadd.f32 %v1632, %v1641
          %v1669 = vadd.f32 %v1633, %v1641
          %v1670 = vadd.f32 %v1634, %v1641
          %v1671 = vadd.f32 %v1635, %v1641
          %v1672 = vadd.f32 %v1636, %v1641
          %v1673 = vadd.f32 %v1637, %v1641
          %v1674 = vadd.f32 %v1638, %v1641
          %v1675 = vld [vmem:[%s570] sm:$0x1]
          %v1677 = vperm.slane %v1675, 0
          %v1679 = vmul.f32 %v1643, %v1677
          %v1680 = vmul.f32 %v1644, %v1677
          %v1681 = vmul.f32 %v1645, %v1677
          %v1682 = vmul.f32 %v1646, %v1677
          %v1683 = vmul.f32 %v1647, %v1677
          %v1684 = vmul.f32 %v1648, %v1677
          %v1685 = vmul.f32 %v1649, %v1677
          %v1686 = vmul.f32 %v1650, %v1677
          %v1687 = vmul.f32 %v1651, %v1677
          %v1688 = vmul.f32 %v1652, %v1677
          %v1689 = vmul.f32 %v1653, %v1677
          %v1690 = vmul.f32 %v1654, %v1677
          %v1691 = vmul.f32 %v1655, %v1677
          %v1692 = vmul.f32 %v1656, %v1677
          %v1693 = vmul.f32 %v1657, %v1677
          %v1694 = vmul.f32 %v1658, %v1677
          %v1695 = vmul.f32 %v1659, %v1677
          %v1696 = vmul.f32 %v1660, %v1677
          %v1697 = vmul.f32 %v1661, %v1677
          %v1698 = vmul.f32 %v1662, %v1677
          %v1699 = vmul.f32 %v1663, %v1677
          %v1700 = vmul.f32 %v1664, %v1677
          %v1701 = vmul.f32 %v1665, %v1677
          %v1702 = vmul.f32 %v1666, %v1677
          %v1703 = vmul.f32 %v1667, %v1677
          %v1704 = vmul.f32 %v1668, %v1677
          %v1705 = vmul.f32 %v1669, %v1677
          %v1706 = vmul.f32 %v1670, %v1677
          %v1707 = vmul.f32 %v1671, %v1677
          %v1708 = vmul.f32 %v1672, %v1677
          %v1709 = vmul.f32 %v1673, %v1677
          %v1710 = vmul.f32 %v1674, %v1677
          %v1711 = vld [vmem:[%s573] sm:$0x1]
          %v1713 = vperm.slane %v1711, 0
          %v1715 = vadd.f32 %v1679, %v1713
          %v1716 = vadd.f32 %v1680, %v1713
          %v1717 = vadd.f32 %v1681, %v1713
          %v1718 = vadd.f32 %v1682, %v1713
          %v1719 = vadd.f32 %v1683, %v1713
          %v1720 = vadd.f32 %v1684, %v1713
          %v1721 = vadd.f32 %v1685, %v1713
          %v1722 = vadd.f32 %v1686, %v1713
          %v1723 = vadd.f32 %v1687, %v1713
          %v1724 = vadd.f32 %v1688, %v1713
          %v1725 = vadd.f32 %v1689, %v1713
          %v1726 = vadd.f32 %v1690, %v1713
          %v1727 = vadd.f32 %v1691, %v1713
          %v1728 = vadd.f32 %v1692, %v1713
          %v1729 = vadd.f32 %v1693, %v1713
          %v1730 = vadd.f32 %v1694, %v1713
          %v1731 = vadd.f32 %v1695, %v1713
          %v1732 = vadd.f32 %v1696, %v1713
          %v1733 = vadd.f32 %v1697, %v1713
          %v1734 = vadd.f32 %v1698, %v1713
          %v1735 = vadd.f32 %v1699, %v1713
          %v1736 = vadd.f32 %v1700, %v1713
          %v1737 = vadd.f32 %v1701, %v1713
          %v1738 = vadd.f32 %v1702, %v1713
          %v1739 = vadd.f32 %v1703, %v1713
          %v1740 = vadd.f32 %v1704, %v1713
          %v1741 = vadd.f32 %v1705, %v1713
          %v1742 = vadd.f32 %v1706, %v1713
          %v1743 = vadd.f32 %v1707, %v1713
          %v1744 = vadd.f32 %v1708, %v1713
          %v1745 = vadd.f32 %v1709, %v1713
          %v1746 = vadd.f32 %v1710, %v1713
          %v1747 = vmax.f32 %v1715, 0.0
          %v1748 = vmax.f32 %v1716, 0.0
          %v1749 = vmax.f32 %v1717, 0.0
          %v1750 = vmax.f32 %v1718, 0.0
          %v1751 = vmax.f32 %v1719, 0.0
          %v1752 = vmax.f32 %v1720, 0.0
          %v1753 = vmax.f32 %v1721, 0.0
          %v1754 = vmax.f32 %v1722, 0.0
          %v1755 = vmax.f32 %v1723, 0.0
          %v1756 = vmax.f32 %v1724, 0.0
          %v1757 = vmax.f32 %v1725, 0.0
          %v1758 = vmax.f32 %v1726, 0.0
          %v1759 = vmax.f32 %v1727, 0.0
          %v1760 = vmax.f32 %v1728, 0.0
          %v1761 = vmax.f32 %v1729, 0.0
          %v1762 = vmax.f32 %v1730, 0.0
          %v1763 = vmax.f32 %v1731, 0.0
          %v1764 = vmax.f32 %v1732, 0.0
          %v1765 = vmax.f32 %v1733, 0.0
          %v1766 = vmax.f32 %v1734, 0.0
          %v1767 = vmax.f32 %v1735, 0.0
          %v1768 = vmax.f32 %v1736, 0.0
          %v1769 = vmax.f32 %v1737, 0.0
          %v1770 = vmax.f32 %v1738, 0.0
          %v1771 = vmax.f32 %v1739, 0.0
          %v1772 = vmax.f32 %v1740, 0.0
          %v1773 = vmax.f32 %v1741, 0.0
          %v1774 = vmax.f32 %v1742, 0.0
          %v1775 = vmax.f32 %v1743, 0.0
          %v1776 = vmax.f32 %v1744, 0.0
          %v1777 = vmax.f32 %v1745, 0.0
          %v1778 = vmax.f32 %v1746, 0.0
          %v1779 = vpack.c.bf16 %v1747, %v1747
          %v1780 = vpack.c.bf16 %v1748, %v1748
          %v1781 = vpack.c.bf16 %v1749, %v1749
          %v1782 = vpack.c.bf16 %v1750, %v1750
          %v1783 = vpack.c.bf16 %v1751, %v1751
          %v1784 = vpack.c.bf16 %v1752, %v1752
          %v1785 = vpack.c.bf16 %v1753, %v1753
          %v1786 = vpack.c.bf16 %v1754, %v1754
          %v1787 = vpack.c.bf16 %v1755, %v1755
          %v1788 = vpack.c.bf16 %v1756, %v1756
          %v1789 = vpack.c.bf16 %v1757, %v1757
          %v1790 = vpack.c.bf16 %v1758, %v1758
          %v1791 = vpack.c.bf16 %v1759, %v1759
          %v1792 = vpack.c.bf16 %v1760, %v1760
          %v1793 = vpack.c.bf16 %v1761, %v1761
          %v1794 = vpack.c.bf16 %v1762, %v1762
          %v1795 = vpack.c.bf16 %v1763, %v1763
          %v1796 = vpack.c.bf16 %v1764, %v1764
          %v1797 = vpack.c.bf16 %v1765, %v1765
          %v1798 = vpack.c.bf16 %v1766, %v1766
          %v1799 = vpack.c.bf16 %v1767, %v1767
          %v1800 = vpack.c.bf16 %v1768, %v1768
          %v1801 = vpack.c.bf16 %v1769, %v1769
          %v1802 = vpack.c.bf16 %v1770, %v1770
          %v1803 = vpack.c.bf16 %v1771, %v1771
          %v1804 = vpack.c.bf16 %v1772, %v1772
          %v1805 = vpack.c.bf16 %v1773, %v1773
          %v1806 = vpack.c.bf16 %v1774, %v1774
          %v1807 = vpack.c.bf16 %v1775, %v1775
          %v1808 = vpack.c.bf16 %v1776, %v1776
          %v1809 = vpack.c.bf16 %v1777, %v1777
          %v1810 = vpack.c.bf16 %v1778, %v1778
          %1811 = vst [vmem:[%s590] sm:$0xf] %v1779
          %1812 = vst [vmem:[%s590 + $0x4] sm:$0xf] %v1780
          %1813 = vst [vmem:[%s590 + $0x8] sm:$0xf] %v1781
          %1814 = vst [vmem:[%s590 + $0xc] sm:$0xf] %v1782
          %1815 = vst [vmem:[%s590 + $0x10] sm:$0xf] %v1783
          %1816 = vst [vmem:[%s590 + $0x14] sm:$0xf] %v1784
          %1817 = vst [vmem:[%s590 + $0x18] sm:$0xf] %v1785
          %1818 = vst [vmem:[%s590 + $0x1c] sm:$0xf] %v1786
          %1819 = vst [vmem:[%s590 + $0x20] sm:$0xf] %v1787
          %1820 = vst [vmem:[%s590 + $0x24] sm:$0xf] %v1788
          %1821 = vst [vmem:[%s590 + $0x28] sm:$0xf] %v1789
          %1822 = vst [vmem:[%s590 + $0x2c] sm:$0xf] %v1790
          %1823 = vst [vmem:[%s590 + $0x30] sm:$0xf] %v1791
          %1824 = vst [vmem:[%s590 + $0x34] sm:$0xf] %v1792
          %1825 = vst [vmem:[%s590 + $0x38] sm:$0xf] %v1793
          %1826 = vst [vmem:[%s590 + $0x3c] sm:$0xf] %v1794
          %1827 = vst [vmem:[%s590 + $0x40] sm:$0xf] %v1795
          %1828 = vst [vmem:[%s590 + $0x44] sm:$0xf] %v1796
          %1829 = vst [vmem:[%s590 + $0x48] sm:$0xf] %v1797
          %1830 = vst [vmem:[%s590 + $0x4c] sm:$0xf] %v1798
          %1831 = vst [vmem:[%s590 + $0x50] sm:$0xf] %v1799
          %1832 = vst [vmem:[%s590 + $0x54] sm:$0xf] %v1800
          %1833 = vst [vmem:[%s590 + $0x58] sm:$0xf] %v1801
          %1834 = vst [vmem:[%s590 + $0x5c] sm:$0xf] %v1802
          %1835 = vst [vmem:[%s590 + $0x60] sm:$0xf] %v1803
          %1836 = vst [vmem:[%s590 + $0x64] sm:$0xf] %v1804
          %1837 = vst [vmem:[%s590 + $0x68] sm:$0xf] %v1805
          %1838 = vst [vmem:[%s590 + $0x6c] sm:$0xf] %v1806
          %1839 = vst [vmem:[%s590 + $0x70] sm:$0xf] %v1807
          %1840 = vst [vmem:[%s590 + $0x74] sm:$0xf] %v1808
          %1841 = vst [vmem:[%s590 + $0x78] sm:$0xf] %v1809
          %1842 = vst [vmem:[%s590 + $0x7c] sm:$0xf] %v1810
        $region82: #{_lambda_.12} parent=69 // pred_fallthru
          _
        %s1843 = smul.u32 32, %s23
        %p1844 = scmp.lt.s32.totalorder %s1843, 63
        %s1845 = scalar_select %p1844, %s1843, 63
        %p1846 = scmp.lt.s32.totalorder %s24, 0
        %s1847 = scalar_select %p1846, %s24, 0
        %s1848 = sadd.s32 %s1847, %s1845
        %s1849 = smul.addr %s1848, 4
        %s1850 = scalar_lea.vmem %s7, %s1849
        // Predicated region
        $region83: #{_lambda_.12} parent=69 // pred_check
          %p1851 = pneg %p245
        $region84: #{_lambda_.12} parent=69 // pred_check_branch
          %1853 = sbr.rel (%p1851) target = $region86
        $region85: #{_lambda_.12} parent=69 // pred_region
          %s1854 = smul.u32 32, %s23
        $region86: #{_lambda_.12} parent=69 // pred_fallthru
          _
      $region70: #{_lambda_.12} parent=5 // pred_fallthru
        _
      %p1855 = scmp.le.s32.totalorder 2, %s13
      // Predicated region
      $region87: #{_lambda_.12} parent=5 // pred_check
        %p1856 = pneg %p1855
      $region88: #{_lambda_.12} parent=5 // pred_check_branch
        %1858 = sbr.rel (%p1856) target = $region90
      $region89: #{_lambda_.12} parent=5 // pred_region
        %s1859 = ssub.s32 %s13, 2
        // Predicated region
        $region91: #{_lambda_.12} parent=89 // pred_check
          %p1860 = pneg %p251
        $region92: #{_lambda_.12} parent=89 // pred_check_branch
          %1862 = sbr.rel (%p1860) target = $region94
        $region93: #{_lambda_.12} parent=89 // pred_region
          %s1863 = smul.u32 32, %s26
          %p1864 = scmp.lt.s32.totalorder %s1863, 63
          %s1865 = scalar_select %p1864, %s1863, 63
          %p1866 = scmp.lt.s32.totalorder %s27, 0
          %s1867 = scalar_select %p1866, %s27, 0
          %s1868 = sadd.s32 %s1867, %s1865
          %s1869 = smul.addr %s1868, 4
          %s1870 = scalar_lea.vmem %s7, %s1869
        $region94: #{_lambda_.12} parent=89 // pred_fallthru
          _
      $region90: #{_lambda_.12} parent=5 // pred_fallthru
        _
    $region6: #{_lambda_.12} parent=1 // loop_footer
      %s17 = sadd.s32 1, %s13
    $region7: #{_lambda_.12} parent=1 // loop_footer_branch
      %12 = sbr.rel target = $region3
    $region8: #{_lambda_.12} parent=1 // loop_exit
      _

// kernel: _lambda_.13
$region0: #{_lambda_.13}
  #allocation0 [shape = 'u32[]', space=smem, size = 0x4, offset = 0x4, fixed_abs, tag = 'smem constant byte address 0x4 - core index']
  #allocation1 [shape = 'u32[72,128]{1,0:T(1,128)}', space=vmem, size = 0x9000, scoped, tag = 'internal scratch']
  #allocation2 [shape = 'f32[128,128]{1,0:T(8,128)}', space=vmem, size = 0x10000, scoped, tag = 'scratch operand']
  %s0 = inlined_call_operand.vmem [shape: bf16[128,128], index: 0, kind: input, shape index: {}]
  %s1 = inlined_call_operand.vmem [shape: bf16[128,128], index: 1, kind: input, shape index: {}]
  %s2 = inlined_call_operand.vmem [shape: f32[1,128], index: 2, kind: input, shape index: {}]
  %s3 = inlined_call_operand.vmem [shape: f32[1,128], index: 3, kind: input, shape index: {}]
  %s4 = inlined_call_operand.vmem [shape: f32[128,128], index: 4, kind: output, shape index: {}]
  %s5 = sld [smem:[#allocation0]]
  $region34: #{_lambda_.13} parent=0
    _
  %s7 = ssub.s32 1, %s5
  %s8 = scalar_select 0, %s7, %s5
  // Predicated region
  $region2: #{_lambda_.13} parent=0 // pred_check
    _
  $region3: #{_lambda_.13} parent=0 // pred_check_branch
    %10 = sbr.rel (0) target = $region5
  $region4: #{_lambda_.13} parent=0 // pred_region
    _
  $region5: #{_lambda_.13} parent=0 // pred_fallthru
    _
  // Predicated region
  $region6: #{_lambda_.13} parent=0 // pred_check
    _
  $region7: #{_lambda_.13} parent=0 // pred_check_branch
    %12 = sbr.rel (0) target = $region9
  $region8: #{_lambda_.13} parent=0 // pred_region
    _
  $region9: #{_lambda_.13} parent=0 // pred_fallthru
    _
  // Predicated region
  $region10: #{_lambda_.13} parent=0 // pred_check
    _
  $region11: #{_lambda_.13} parent=0 // pred_check_branch
    %14 = sbr.rel (0) target = $region13
  $region12: #{_lambda_.13} parent=0 // pred_region
    _
  $region13: #{_lambda_.13} parent=0 // pred_fallthru
    _
  // Predicated region
  $region14: #{_lambda_.13} parent=0 // pred_check
    _
  $region15: #{_lambda_.13} parent=0 // pred_check_branch
    %16 = sbr.rel (0) target = $region17
  $region16: #{_lambda_.13} parent=0 // pred_region
    _
  $region17: #{_lambda_.13} parent=0 // pred_fallthru
    _
  %p17 = scmp.eq.s32.totalorder 0, 0
  // Predicated region
  $region18: #{_lambda_.13} parent=0 // pred_check
    %p18 = pneg %p17
  $region19: #{_lambda_.13} parent=0 // pred_check_branch
    %20 = sbr.rel (%p18) target = $region21
  $region20: #{_lambda_.13} parent=0 // pred_region
    %21 = vst [vmem:[#allocation2] sm:$0xff] 0.0
    %22 = vst [vmem:[#allocation2 + $0x8] sm:$0xff] 0.0
    %23 = vst [vmem:[#allocation2 + $0x10] sm:$0xff] 0.0
    %24 = vst [vmem:[#allocation2 + $0x18] sm:$0xff] 0.0
    %25 = vst [vmem:[#allocation2 + $0x20] sm:$0xff] 0.0
    %26 = vst [vmem:[#allocation2 + $0x28] sm:$0xff] 0.0
    %27 = vst [vmem:[#allocation2 + $0x30] sm:$0xff] 0.0
    %28 = vst [vmem:[#allocation2 + $0x38] sm:$0xff] 0.0
    %29 = vst [vmem:[#allocation2 + $0x40] sm:$0xff] 0.0
    %30 = vst [vmem:[#allocation2 + $0x48] sm:$0xff] 0.0
    %31 = vst [vmem:[#allocation2 + $0x50] sm:$0xff] 0.0
    %32 = vst [vmem:[#allocation2 + $0x58] sm:$0xff] 0.0
    %33 = vst [vmem:[#allocation2 + $0x60] sm:$0xff] 0.0
    %34 = vst [vmem:[#allocation2 + $0x68] sm:$0xff] 0.0
    %35 = vst [vmem:[#allocation2 + $0x70] sm:$0xff] 0.0
    %36 = vst [vmem:[#allocation2 + $0x78] sm:$0xff] 0.0
  $region21: #{_lambda_.13} parent=0 // pred_fallthru
    _
  %v37 = vld [vmem:[#allocation2] sm:$0xff]
  %v38 = vld [vmem:[#allocation2 + $0x8] sm:$0xff]
  %v39 = vld [vmem:[#allocation2 + $0x10] sm:$0xff]
  %v40 = vld [vmem:[#allocation2 + $0x18] sm:$0xff]
  %v41 = vld [vmem:[#allocation2 + $0x20] sm:$0xff]
  %v42 = vld [vmem:[#allocation2 + $0x28] sm:$0xff]
  %v43 = vld [vmem:[#allocation2 + $0x30] sm:$0xff]
  %v44 = vld [vmem:[#allocation2 + $0x38] sm:$0xff]
  %v45 = vld [vmem:[#allocation2 + $0x40] sm:$0xff]
  %v46 = vld [vmem:[#allocation2 + $0x48] sm:$0xff]
  %v47 = vld [vmem:[#allocation2 + $0x50] sm:$0xff]
  %v48 = vld [vmem:[#allocation2 + $0x58] sm:$0xff]
  %v49 = vld [vmem:[#allocation2 + $0x60] sm:$0xff]
  %v50 = vld [vmem:[#allocation2 + $0x68] sm:$0xff]
  %v51 = vld [vmem:[#allocation2 + $0x70] sm:$0xff]
  %v52 = vld [vmem:[#allocation2 + $0x78] sm:$0xff]
  %v53 = vld [vmem:[%s0] sm:$0xf]
  %v54 = vld [vmem:[%s0 + $0x4] sm:$0xf]
  %v55 = vld [vmem:[%s0 + $0x8] sm:$0xf]
  %v56 = vld [vmem:[%s0 + $0xc] sm:$0xf]
  %v57 = vld [vmem:[%s0 + $0x10] sm:$0xf]
  %v58 = vld [vmem:[%s0 + $0x14] sm:$0xf]
  %v59 = vld [vmem:[%s0 + $0x18] sm:$0xf]
  %v60 = vld [vmem:[%s0 + $0x1c] sm:$0xf]
  %v61 = vld [vmem:[%s0 + $0x20] sm:$0xf]
  %v62 = vld [vmem:[%s0 + $0x24] sm:$0xf]
  %v63 = vld [vmem:[%s0 + $0x28] sm:$0xf]
  %v64 = vld [vmem:[%s0 + $0x2c] sm:$0xf]
  %v65 = vld [vmem:[%s0 + $0x30] sm:$0xf]
  %v66 = vld [vmem:[%s0 + $0x34] sm:$0xf]
  %v67 = vld [vmem:[%s0 + $0x38] sm:$0xf]
  %v68 = vld [vmem:[%s0 + $0x3c] sm:$0xf]
  %v69 = vld [vmem:[%s1] sm:$0xf]
  %v70 = vld [vmem:[%s1 + $0x4] sm:$0xf]
  %v71 = vld [vmem:[%s1 + $0x8] sm:$0xf]
  %v72 = vld [vmem:[%s1 + $0xc] sm:$0xf]
  %v73 = vld [vmem:[%s1 + $0x10] sm:$0xf]
  %v74 = vld [vmem:[%s1 + $0x14] sm:$0xf]
  %v75 = vld [vmem:[%s1 + $0x18] sm:$0xf]
  %v76 = vld [vmem:[%s1 + $0x1c] sm:$0xf]
  %v77 = vld [vmem:[%s1 + $0x20] sm:$0xf]
  %v78 = vld [vmem:[%s1 + $0x24] sm:$0xf]
  %v79 = vld [vmem:[%s1 + $0x28] sm:$0xf]
  %v80 = vld [vmem:[%s1 + $0x2c] sm:$0xf]
  %v81 = vld [vmem:[%s1 + $0x30] sm:$0xf]
  %v82 = vld [vmem:[%s1 + $0x34] sm:$0xf]
  %v83 = vld [vmem:[%s1 + $0x38] sm:$0xf]
  %v84 = vld [vmem:[%s1 + $0x3c] sm:$0xf]
  %v101 = vunpack.c.l.b16 %v53
  %v102 = vunpack.c.l.b16 %v54
  %v103 = vunpack.c.l.b16 %v55
  %v104 = vunpack.c.l.b16 %v56
  %v105 = vunpack.c.l.b16 %v57
  %v106 = vunpack.c.l.b16 %v58
  %v107 = vunpack.c.l.b16 %v59
  %v108 = vunpack.c.l.b16 %v60
  %v109 = vunpack.c.l.b16 %v61
  %v110 = vunpack.c.l.b16 %v62
  %v111 = vunpack.c.l.b16 %v63
  %v112 = vunpack.c.l.b16 %v64
  %v113 = vunpack.c.l.b16 %v65
  %v114 = vunpack.c.l.b16 %v66
  %v115 = vunpack.c.l.b16 %v67
  %v116 = vunpack.c.l.b16 %v68
  %v117 = vpack.c.b16 %v102, %v101
  %v118 = vpack.c.b16 %v104, %v103
  %v119 = vpack.c.b16 %v106, %v105
  %v120 = vpack.c.b16 %v108, %v107
  %v121 = vpack.c.b16 %v110, %v109
  %v122 = vpack.c.b16 %v112, %v111
  %v123 = vpack.c.b16 %v114, %v113
  %v124 = vpack.c.b16 %v116, %v115
  %v149 = vunpack.c.l.b16 %v69
  %v150 = vunpack.c.l.b16 %v70
  %v151 = vunpack.c.l.b16 %v71
  %v152 = vunpack.c.l.b16 %v72
  %v153 = vunpack.c.l.b16 %v73
  %v154 = vunpack.c.l.b16 %v74
  %v155 = vunpack.c.l.b16 %v75
  %v156 = vunpack.c.l.b16 %v76
  %v157 = vunpack.c.l.b16 %v77
  %v158 = vunpack.c.l.b16 %v78
  %v159 = vunpack.c.l.b16 %v79
  %v160 = vunpack.c.l.b16 %v80
  %v161 = vunpack.c.l.b16 %v81
  %v162 = vunpack.c.l.b16 %v82
  %v163 = vunpack.c.l.b16 %v83
  %v164 = vunpack.c.l.b16 %v84
  %v165 = vpack.c.b16 %v150, %v149
  %v166 = vpack.c.b16 %v152, %v151
  %v167 = vpack.c.b16 %v154, %v153
  %v168 = vpack.c.b16 %v156, %v155
  %v169 = vpack.c.b16 %v158, %v157
  %v170 = vpack.c.b16 %v160, %v159
  %v171 = vpack.c.b16 %v162, %v161
  %v172 = vpack.c.b16 %v164, %v163
  %181 = vmatpush.bf16.msra.mxu0 %v172
  %182 = vmatpush.bf16.msra.mxu0 %v171
  %183 = vmatpush.bf16.msra.mxu0 %v170
  %184 = vmatpush.bf16.msra.mxu0 %v169
  %185 = vmatpush.bf16.msra.mxu0 %v168
  %186 = vmatpush.bf16.msra.mxu0 %v167
  %187 = vmatpush.bf16.msra.mxu0 %v166
  %188 = vmatpush.bf16.msra.mxu0 %v165
  %189 = vmatmul.bf16.gmra.mxu0 %v117
  %v190 = vpop.f32.mrf.mxu0
  %v191 = vadd.f32 0.0, %v190
  %v192 = vpop.f32.mrf.mxu0
  %v193 = vadd.f32 0.0, %v192
  %194 = vmatmul.bf16.gmra.mxu0 %v118
  %v195 = vpop.f32.mrf.mxu0
  %v196 = vadd.f32 0.0, %v195
  %v197 = vpop.f32.mrf.mxu0
  %v198 = vadd.f32 0.0, %v197
  %199 = vmatmul.bf16.gmra.mxu0 %v119
  %v200 = vpop.f32.mrf.mxu0
  %v201 = vadd.f32 0.0, %v200
  %v202 = vpop.f32.mrf.mxu0
  %v203 = vadd.f32 0.0, %v202
  %204 = vmatmul.bf16.gmra.mxu0 %v120
  %v205 = vpop.f32.mrf.mxu0
  %v206 = vadd.f32 0.0, %v205
  %v207 = vpop.f32.mrf.mxu0
  %v208 = vadd.f32 0.0, %v207
  %209 = vmatmul.bf16.gmra.mxu0 %v121
  %v210 = vpop.f32.mrf.mxu0
  %v211 = vadd.f32 0.0, %v210
  %v212 = vpop.f32.mrf.mxu0
  %v213 = vadd.f32 0.0, %v212
  %214 = vmatmul.bf16.gmra.mxu0 %v122
  %v215 = vpop.f32.mrf.mxu0
  %v216 = vadd.f32 0.0, %v215
  %v217 = vpop.f32.mrf.mxu0
  %v218 = vadd.f32 0.0, %v217
  %219 = vmatmul.bf16.gmra.mxu0 %v123
  %v220 = vpop.f32.mrf.mxu0
  %v221 = vadd.f32 0.0, %v220
  %v222 = vpop.f32.mrf.mxu0
  %v223 = vadd.f32 0.0, %v222
  %224 = vmatmul.bf16.gmra.mxu0 %v124
  %v225 = vpop.f32.mrf.mxu0
  %v226 = vadd.f32 0.0, %v225
  %v227 = vpop.f32.mrf.mxu0
  %v228 = vadd.f32 0.0, %v227
  %229 = vdwg.mxu0
  %v230 = vadd.f32 %v37, %v191
  %v231 = vadd.f32 %v38, %v193
  %v232 = vadd.f32 %v39, %v196
  %v233 = vadd.f32 %v40, %v198
  %v234 = vadd.f32 %v41, %v201
  %v235 = vadd.f32 %v42, %v203
  %v236 = vadd.f32 %v43, %v206
  %v237 = vadd.f32 %v44, %v208
  %v238 = vadd.f32 %v45, %v211
  %v239 = vadd.f32 %v46, %v213
  %v240 = vadd.f32 %v47, %v216
  %v241 = vadd.f32 %v48, %v218
  %v242 = vadd.f32 %v49, %v221
  %v243 = vadd.f32 %v50, %v223
  %v244 = vadd.f32 %v51, %v226
  %v245 = vadd.f32 %v52, %v228
  %246 = vst [vmem:[#allocation2] sm:$0xff] %v230
  %247 = vst [vmem:[#allocation2 + $0x8] sm:$0xff] %v231
  %248 = vst [vmem:[#allocation2 + $0x10] sm:$0xff] %v232
  %249 = vst [vmem:[#allocation2 + $0x18] sm:$0xff] %v233
  %250 = vst [vmem:[#allocation2 + $0x20] sm:$0xff] %v234
  %251 = vst [vmem:[#allocation2 + $0x28] sm:$0xff] %v235
  %252 = vst [vmem:[#allocation2 + $0x30] sm:$0xff] %v236
  %253 = vst [vmem:[#allocation2 + $0x38] sm:$0xff] %v237
  %254 = vst [vmem:[#allocation2 + $0x40] sm:$0xff] %v238
  %255 = vst [vmem:[#allocation2 + $0x48] sm:$0xff] %v239
  %256 = vst [vmem:[#allocation2 + $0x50] sm:$0xff] %v240
  %257 = vst [vmem:[#allocation2 + $0x58] sm:$0xff] %v241
  %258 = vst [vmem:[#allocation2 + $0x60] sm:$0xff] %v242
  %259 = vst [vmem:[#allocation2 + $0x68] sm:$0xff] %v243
  %260 = vst [vmem:[#allocation2 + $0x70] sm:$0xff] %v244
  %261 = vst [vmem:[#allocation2 + $0x78] sm:$0xff] %v245
  // Predicated region
  $region22: #{_lambda_.13} parent=0 // pred_check
    %p262 = pneg %p17
  $region23: #{_lambda_.13} parent=0 // pred_check_branch
    %264 = sbr.rel (%p262) target = $region25
  $region24: #{_lambda_.13} parent=0 // pred_region
    %v265 = vld [vmem:[#allocation2] sm:$0xff]
    %v266 = vld [vmem:[#allocation2 + $0x8] sm:$0xff]
    %v267 = vld [vmem:[#allocation2 + $0x10] sm:$0xff]
    %v268 = vld [vmem:[#allocation2 + $0x18] sm:$0xff]
    %v269 = vld [vmem:[#allocation2 + $0x20] sm:$0xff]
    %v270 = vld [vmem:[#allocation2 + $0x28] sm:$0xff]
    %v271 = vld [vmem:[#allocation2 + $0x30] sm:$0xff]
    %v272 = vld [vmem:[#allocation2 + $0x38] sm:$0xff]
    %v273 = vld [vmem:[#allocation2 + $0x40] sm:$0xff]
    %v274 = vld [vmem:[#allocation2 + $0x48] sm:$0xff]
    %v275 = vld [vmem:[#allocation2 + $0x50] sm:$0xff]
    %v276 = vld [vmem:[#allocation2 + $0x58] sm:$0xff]
    %v277 = vld [vmem:[#allocation2 + $0x60] sm:$0xff]
    %v278 = vld [vmem:[#allocation2 + $0x68] sm:$0xff]
    %v279 = vld [vmem:[#allocation2 + $0x70] sm:$0xff]
    %v280 = vld [vmem:[#allocation2 + $0x78] sm:$0xff]
    %v281 = vld [vmem:[%s2] sm:$0x1]
    %v283 = vperm.slane %v281, 0
    %v285 = vmul.f32 %v265, %v283
    %v286 = vmul.f32 %v266, %v283
    %v287 = vmul.f32 %v267, %v283
    %v288 = vmul.f32 %v268, %v283
    %v289 = vmul.f32 %v269, %v283
    %v290 = vmul.f32 %v270, %v283
    %v291 = vmul.f32 %v271, %v283
    %v292 = vmul.f32 %v272, %v283
    %v293 = vmul.f32 %v273, %v283
    %v294 = vmul.f32 %v274, %v283
    %v295 = vmul.f32 %v275, %v283
    %v296 = vmul.f32 %v276, %v283
    %v297 = vmul.f32 %v277, %v283
    %v298 = vmul.f32 %v278, %v283
    %v299 = vmul.f32 %v279, %v283
    %v300 = vmul.f32 %v280, %v283
    %v301 = vld [vmem:[%s3] sm:$0x1]
    %v303 = vperm.slane %v301, 0
    %v305 = vadd.f32 %v285, %v303
    %v306 = vadd.f32 %v286, %v303
    %v307 = vadd.f32 %v287, %v303
    %v308 = vadd.f32 %v288, %v303
    %v309 = vadd.f32 %v289, %v303
    %v310 = vadd.f32 %v290, %v303
    %v311 = vadd.f32 %v291, %v303
    %v312 = vadd.f32 %v292, %v303
    %v313 = vadd.f32 %v293, %v303
    %v314 = vadd.f32 %v294, %v303
    %v315 = vadd.f32 %v295, %v303
    %v316 = vadd.f32 %v296, %v303
    %v317 = vadd.f32 %v297, %v303
    %v318 = vadd.f32 %v298, %v303
    %v319 = vadd.f32 %v299, %v303
    %v320 = vadd.f32 %v300, %v303
    %321 = vst [vmem:[%s4] sm:$0xff] %v305
    %322 = vst [vmem:[%s4 + $0x8] sm:$0xff] %v306
    %323 = vst [vmem:[%s4 + $0x10] sm:$0xff] %v307
    %324 = vst [vmem:[%s4 + $0x18] sm:$0xff] %v308
    %325 = vst [vmem:[%s4 + $0x20] sm:$0xff] %v309
    %326 = vst [vmem:[%s4 + $0x28] sm:$0xff] %v310
    %327 = vst [vmem:[%s4 + $0x30] sm:$0xff] %v311
    %328 = vst [vmem:[%s4 + $0x38] sm:$0xff] %v312
    %329 = vst [vmem:[%s4 + $0x40] sm:$0xff] %v313
    %330 = vst [vmem:[%s4 + $0x48] sm:$0xff] %v314
    %331 = vst [vmem:[%s4 + $0x50] sm:$0xff] %v315
    %332 = vst [vmem:[%s4 + $0x58] sm:$0xff] %v316
    %333 = vst [vmem:[%s4 + $0x60] sm:$0xff] %v317
    %334 = vst [vmem:[%s4 + $0x68] sm:$0xff] %v318
    %335 = vst [vmem:[%s4 + $0x70] sm:$0xff] %v319
    %336 = vst [vmem:[%s4 + $0x78] sm:$0xff] %v320
  $region25: #{_lambda_.13} parent=0 // pred_fallthru
    _
  // Predicated region
  $region26: #{_lambda_.13} parent=0 // pred_check
    _
  $region27: #{_lambda_.13} parent=0 // pred_check_branch
    %338 = sbr.rel (0) target = $region29
  $region28: #{_lambda_.13} parent=0 // pred_region
    _
  $region29: #{_lambda_.13} parent=0 // pred_fallthru
    _
  // Predicated region
  $region30: #{_lambda_.13} parent=0 // pred_check
    _
  $region31: #{_lambda_.13} parent=0 // pred_check_branch
    %340 = sbr.rel (0) target = $region33
  $region32: #{_lambda_.13} parent=0 // pred_region
    _
  $region33: #{_lambda_.13} parent=0 // pred_fallthru
    _

// kernel: _lambda_.14
$region0: #{_lambda_.14}
  #allocation0 [shape = 'u32[]', space=smem, size = 0x4, offset = 0x4, fixed_abs, tag = 'smem constant byte address 0x4 - core index']
  #allocation1 [shape = 'u32[72,128]{1,0:T(1,128)}', space=vmem, size = 0x9000, scoped, tag = 'internal scratch']
  #allocation2 [shape = 'f32[128,128]{1,0:T(8,128)}', space=vmem, size = 0x10000, scoped, tag = 'scratch operand']
  %s0 = inlined_call_operand.vmem [shape: bf16[128,1152], index: 0, kind: input, shape index: {}]
  %s1 = inlined_call_operand.vmem [shape: bf16[1152,128], index: 1, kind: input, shape index: {}]
  %s2 = inlined_call_operand.vmem [shape: f32[1,128], index: 2, kind: input, shape index: {}]
  %s3 = inlined_call_operand.vmem [shape: f32[1,128], index: 3, kind: input, shape index: {}]
  %s4 = inlined_call_operand.vmem [shape: bf16[128,128], index: 4, kind: output, shape index: {}]
  %s5 = sld [smem:[#allocation0]]
  $region83: #{_lambda_.14} parent=0
    _
  %s7 = ssub.s32 1, %s5
  %s8 = scalar_select 0, %s7, %s5
  $region1: #{_lambda_.14} parent=0
    #allocation3 [shape = 'u8[196608]{0}', space=vmem, size = 0x30000, scoped, tag = 'input window, operand 0']
    loop: start=0, step=1, limit=5
    $region2: #{_lambda_.14} parent=1 // loop_pre_header
      _
    $region3: #{_lambda_.14} parent=1 // loop_header
      %s10 = sphi 0, %s14
      %p11 = scmp.ge.s32.totalorder %s10, 5
      %s17 = sphi 0, %s36
      %s18 = sphi 0, %s32
      %s19 = sphi 0, %s28
      %s20 = sphi 0, %s17
      %s21 = sphi 0, %s18
      %s22 = sphi 0, %s19
      %s23 = sphi 0, %s20
      %s24 = sphi 0, %s21
      %s25 = sphi 0, %s22
      %s41 = sphi 0, %s43
      %s44 = sphi 0, %s41
      %s45 = sphi 0, %s44
      %s61 = sphi 0, %s45
      %s69 = sphi 0, %s71
      %s72 = sphi 0, %s69
      %s73 = sphi 0, %s72
      %s89 = sphi 0, %s73
      %s95 = sphi 0, %s97
      %s98 = sphi 0, %s95
      %s99 = sphi 0, %s98
      %s115 = sphi 0, %s99
      %s121 = sphi 0, %s123
      %s124 = sphi 0, %s121
      %s125 = sphi 0, %s124
      %s141 = sphi 0, %s125
      %s149 = sphi 0, %s151
      %s152 = sphi 0, %s149
      %s153 = sphi 0, %s152
      %s169 = sphi 0, %s153
    $region4: #{_lambda_.14} parent=1 // loop_header_branch
      %13 = sbr.rel (%p11) target = $region8
    $region5: #{_lambda_.14} parent=1 // loop_body
      %s15 = ssub.s32 %s10, 1
      %s16 = ssub.s32 %s10, 2
      %s26 = sadd.s32 1, %s19
      %p27 = scmp.ge.s32.totalorder %s26, 3
      %s28 = scalar_select %p27, 0, %s26
      %s29 = sadd.s32 1, %s18
      %s30 = scalar_select %p27, %s29, %s18
      %p31 = scmp.ge.s32.totalorder %s30, 1
      %s32 = scalar_select %p31, 0, %s30
      %s33 = sadd.s32 1, %s17
      %s34 = scalar_select %p31, %s33, %s17
      %p35 = scmp.ge.s32.totalorder %s34, 1
      %s36 = scalar_select %p35, 0, %s34
      %s37 = ssub.s32 %s17, %s36
      %s38 = ssub.s32 %s19, %s28
      %s39 = sor.u32 %s37, %s38
      %p40 = scmp.eq.s32.totalorder %s39, 0
      %s42 = sadd.s32 %s41, 1
      %s43 = scalar_select %p40, %s41, %s42
      %p46 = pneg %p40
      %p47 = scmp.eq.s32.totalorder %s10, 2
      %p48 = por %p46, %p47
      %p49 = scmp.ne.s32.totalorder %s41, %s44
      %p50 = scmp.eq.s32.totalorder %s10, 0
      %p51 = por %p49, %p50
      %p52 = scmp.ne.s32.totalorder %s41, %s44
      %p53 = scmp.eq.s32.totalorder %s15, 2
      %p54 = por %p52, %p53
      %p55 = scmp.ne.s32.totalorder %s44, %s45
      %p56 = scmp.eq.s32.totalorder %s15, 0
      %p57 = por %p55, %p56
      %p58 = scmp.ne.s32.totalorder %s44, %s45
      %p59 = scmp.eq.s32.totalorder %s16, 2
      %p60 = por %p58, %p59
      %p62 = scmp.ne.s32.totalorder %s45, %s61
      %p63 = scmp.eq.s32.totalorder %s16, 0
      %p64 = por %p62, %p63
      %s65 = ssub.s32 %s19, %s28
      %s66 = ssub.s32 %s18, %s32
      %s67 = sor.u32 %s65, %s66
      %p68 = scmp.eq.s32.totalorder %s67, 0
      %s70 = sadd.s32 %s69, 1
      %s71 = scalar_select %p68, %s69, %s70
      %p74 = pneg %p68
      %p75 = scmp.eq.s32.totalorder %s10, 2
      %p76 = por %p74, %p75
      %p77 = scmp.ne.s32.totalorder %s69, %s72
      %p78 = scmp.eq.s32.totalorder %s10, 0
      %p79 = por %p77, %p78
      %p80 = scmp.ne.s32.totalorder %s69, %s72
      %p81 = scmp.eq.s32.totalorder %s15, 2
      %p82 = por %p80, %p81
      %p83 = scmp.ne.s32.totalorder %s72, %s73
      %p84 = scmp.eq.s32.totalorder %s15, 0
      %p85 = por %p83, %p84
      %p86 = scmp.ne.s32.totalorder %s72, %s73
      %p87 = scmp.eq.s32.totalorder %s16, 2
      %p88 = por %p86, %p87
      %p90 = scmp.ne.s32.totalorder %s73, %s89
      %p91 = scmp.eq.s32.totalorder %s16, 0
      %p92 = por %p90, %p91
      %s93 = ssub.s32 %s18, %s32
      %p94 = scmp.eq.s32.totalorder %s93, 0
      %s96 = sadd.s32 %s95, 1
      %s97 = scalar_select %p94, %s95, %s96
      %p100 = pneg %p94
      %p101 = scmp.eq.s32.totalorder %s10, 2
      %p102 = por %p100, %p101
      %p103 = scmp.ne.s32.totalorder %s95, %s98
      %p104 = scmp.eq.s32.totalorder %s10, 0
      %p105 = por %p103, %p104
      %p106 = scmp.ne.s32.totalorder %s95, %s98
      %p107 = scmp.eq.s32.totalorder %s15, 2
      %p108 = por %p106, %p107
      %p109 = scmp.ne.s32.totalorder %s98, %s99
      %p110 = scmp.eq.s32.totalorder %s15, 0
      %p111 = por %p109, %p110
      %p112 = scmp.ne.s32.totalorder %s98, %s99
      %p113 = scmp.eq.s32.totalorder %s16, 2
      %p114 = por %p112, %p113
      %p116 = scmp.ne.s32.totalorder %s99, %s115
      %p117 = scmp.eq.s32.totalorder %s16, 0
      %p118 = por %p116, %p117
      %s119 = ssub.s32 %s18, %s32
      %p120 = scmp.eq.s32.totalorder %s119, 0
      %s122 = sadd.s32 %s121, 1
      %s123 = scalar_select %p120, %s121, %s122
      %p126 = pneg %p120
      %p127 = scmp.eq.s32.totalorder %s10, 2
      %p128 = por %p126, %p127
      %p129 = scmp.ne.s32.totalorder %s121, %s124
      %p130 = scmp.eq.s32.totalorder %s10, 0
      %p131 = por %p129, %p130
      %p132 = scmp.ne.s32.totalorder %s121, %s124
      %p133 = scmp.eq.s32.totalorder %s15, 2
      %p134 = por %p132, %p133
      %p135 = scmp.ne.s32.totalorder %s124, %s125
      %p136 = scmp.eq.s32.totalorder %s15, 0
      %p137 = por %p135, %p136
      %p138 = scmp.ne.s32.totalorder %s124, %s125
      %p139 = scmp.eq.s32.totalorder %s16, 2
      %p140 = por %p138, %p139
      %p142 = scmp.ne.s32.totalorder %s125, %s141
      %p143 = scmp.eq.s32.totalorder %s16, 0
      %p144 = por %p142, %p143
      %s145 = ssub.s32 %s17, %s36
      %s146 = ssub.s32 %s18, %s32
      %s147 = sor.u32 %s145, %s146
      %p148 = scmp.eq.s32.totalorder %s147, 0
      %s150 = sadd.s32 %s149, 1
      %s151 = scalar_select %p148, %s149, %s150
      %p154 = pneg %p148
      %p155 = scmp.eq.s32.totalorder %s10, 2
      %p156 = por %p154, %p155
      %p157 = scmp.ne.s32.totalorder %s149, %s152
      %p158 = scmp.eq.s32.totalorder %s10, 0
      %p159 = por %p157, %p158
      %p160 = scmp.ne.s32.totalorder %s149, %s152
      %p161 = scmp.eq.s32.totalorder %s15, 2
      %p162 = por %p160, %p161
      %p163 = scmp.ne.s32.totalorder %s152, %s153
      %p164 = scmp.eq.s32.totalorder %s15, 0
      %p165 = por %p163, %p164
      %p166 = scmp.ne.s32.totalorder %s152, %s153
      %p167 = scmp.eq.s32.totalorder %s16, 2
      %p168 = por %p166, %p167
      %p170 = scmp.ne.s32.totalorder %s153, %s169
      %p171 = scmp.eq.s32.totalorder %s16, 0
      %p172 = por %p170, %p171
      %p173 = scmp.le.s32.totalorder 1, %s10
      %p174 = scmp.lt.s32.totalorder %s10, 4
      %p175 = pnand %p173, %p174
      %p176 = pneg %p175
      // Predicated region
      $region9: #{_lambda_.14} parent=5 // pred_check
        _
      $region10: #{_lambda_.14} parent=5 // pred_check_branch
        %178 = sbr.rel (%p175) target = $region12
      $region11: #{_lambda_.14} parent=5 // pred_region
        %s179 = ssub.s32 %s10, 1
        // Predicated region
        $region13: #{_lambda_.14} parent=11 // pred_check
          %p180 = pneg %p111
        $region14: #{_lambda_.14} parent=11 // pred_check_branch
          %182 = sbr.rel (%p180) target = $region16
        $region15: #{_lambda_.14} parent=11 // pred_region
          %p183 = scmp.lt.s32.totalorder %s21, 0
          %s184 = scalar_select %p183, %s21, 0
          %s185 = scalar_lea.vmem %s2, %s184
        $region16: #{_lambda_.14} parent=11 // pred_fallthru
          _
        // Predicated region
        $region17: #{_lambda_.14} parent=11 // pred_check
          %p186 = pneg %p137
        $region18: #{_lambda_.14} parent=11 // pred_check_branch
          %188 = sbr.rel (%p186) target = $region20
        $region19: #{_lambda_.14} parent=11 // pred_region
          %p189 = scmp.lt.s32.totalorder %s21, 0
          %s190 = scalar_select %p189, %s21, 0
          %s191 = scalar_lea.vmem %s3, %s190
        $region20: #{_lambda_.14} parent=11 // pred_fallthru
          _
      $region12: #{_lambda_.14} parent=5 // pred_fallthru
        _
      %p192 = scmp.lt.s32.totalorder %s10, 3
      // Predicated region
      $region21: #{_lambda_.14} parent=5 // pred_check
        %p193 = pneg %p192
      $region22: #{_lambda_.14} parent=5 // pred_check_branch
        %195 = sbr.rel (%p193) target = $region24
      $region23: #{_lambda_.14} parent=5 // pred_region
        // Predicated region
        $region25: #{_lambda_.14} parent=23 // pred_check
          %p196 = pneg %p51
        $region26: #{_lambda_.14} parent=23 // pred_check_branch
          %198 = sbr.rel (%p196) target = $region28
        $region27: #{_lambda_.14} parent=23 // pred_region
          %s199 = sand.u32 %s41, 1
          %s200 = sand.u32 %s41, 1
          %s201 = smul.addr %s200, 192
          %s202 = scalar_lea.vmem [#allocation3], %s201
          %s203 = smul.u32 16, %s17
          %s204 = smul.u32 3, %s19
          %s205 = smul.addr %s203, 9
          %s206 = sadd.s32 %s204, %s205
          %s207 = smul.addr %s206, 4
          %s208 = scalar_lea.vmem %s0, %s207
          // Predicated region
          $region29: #{_lambda_.14} parent=27 // pred_check
            _
          $region30: #{_lambda_.14} parent=27 // pred_check_branch
            %210 = sbr.rel (0) target = $region32
          $region31: #{_lambda_.14} parent=27 // pred_region
            // Predicated region
            $region33: #{_lambda_.14} parent=31 // pred_check
              _
            $region34: #{_lambda_.14} parent=31 // pred_check_branch
              %212 = sbr.rel (0) target = $region36
            $region35: #{_lambda_.14} parent=31 // pred_region
              %s213 = scalar_lea.vmem %s208, 8
              %s214 = scalar_lea.vmem %s202, 8 [#allocation3]
              loop: start=0, step=1, limit=1
              $region37: #{_lambda_.14} parent=35 // loop_pre_header
                _
              $region38: #{_lambda_.14} parent=35 // loop_header
                %s216 = sphi 0, %s220
                %p217 = scmp.ge.s32.totalorder %s216, 1
                %s221 = sphi %s208, %s208
                %s222 = sphi %s202, %s202
              $region39: #{_lambda_.14} parent=35 // loop_header_branch
                %219 = sbr.rel (%p217) target = $region43
              $region40: #{_lambda_.14} parent=35 // loop_body
                %v223 = vld [vmem:[%s221] sm:$0xff]
                %224 = vst [vmem:[%s222] sm:$0xff] %v223
                %v225 = vld [vmem:[%s221 + $0x24] sm:$0xff]
                %226 = vst [vmem:[%s222 + $0xc] sm:$0xff] %v225
                %v227 = vld [vmem:[%s221 + $0x48] sm:$0xff]
                %228 = vst [vmem:[%s222 + $0x18] sm:$0xff] %v227
                %v229 = vld [vmem:[%s221 + $0x6c] sm:$0xff]
                %230 = vst [vmem:[%s222 + $0x24] sm:$0xff] %v229
                %v231 = vld [vmem:[%s221 + $0x90] sm:$0xff]
                %232 = vst [vmem:[%s222 + $0x30] sm:$0xff] %v231
                %v233 = vld [vmem:[%s221 + $0xb4] sm:$0xff]
                %234 = vst [vmem:[%s222 + $0x3c] sm:$0xff] %v233
                %v235 = vld [vmem:[%s221 + $0xd8] sm:$0xff]
                %236 = vst [vmem:[%s222 + $0x48] sm:$0xff] %v235
                %v237 = vld [vmem:[%s221 + $0xfc] sm:$0xff]
                %238 = vst [vmem:[%s222 + $0x54] sm:$0xff] %v237
                %v239 = vld [vmem:[%s221 + $0x120] sm:$0xff]
                %240 = vst [vmem:[%s222 + $0x60] sm:$0xff] %v239
                %v241 = vld [vmem:[%s221 + $0x144] sm:$0xff]
                %242 = vst [vmem:[%s222 + $0x6c] sm:$0xff] %v241
                %v243 = vld [vmem:[%s221 + $0x168] sm:$0xff]
                %244 = vst [vmem:[%s222 + $0x78] sm:$0xff] %v243
                %v245 = vld [vmem:[%s221 + $0x18c] sm:$0xff]
                %246 = vst [vmem:[%s222 + $0x84] sm:$0xff] %v245
                %v247 = vld [vmem:[%s221 + $0x1b0] sm:$0xff]
                %248 = vst [vmem:[%s222 + $0x90] sm:$0xff] %v247
                %v249 = vld [vmem:[%s221 + $0x1d4] sm:$0xff]
                %250 = vst [vmem:[%s222 + $0x9c] sm:$0xff] %v249
                %v251 = vld [vmem:[%s221 + $0x1f8] sm:$0xff]
                %252 = vst [vmem:[%s222 + $0xa8] sm:$0xff] %v251
                %v253 = vld [vmem:[%s221 + $0x21c] sm:$0xff]
                %254 = vst [vmem:[%s222 + $0xb4] sm:$0xff] %v253
              $region41: #{_lambda_.14} parent=35 // loop_footer
                %s220 = sadd.s32 1, %s216
              $region42: #{_lambda_.14} parent=35 // loop_footer_branch
                %215 = sbr.rel target = $region38
              $region43: #{_lambda_.14} parent=35 // loop_exit
                _
              %s256 = ssub.s32 16, 1
              loop: start=0, step=1, limit=1
              $region44: #{_lambda_.14} parent=35 // loop_pre_header
                _
              $region45: #{_lambda_.14} parent=35 // loop_header
                %s258 = sphi 0, %s262
                %p259 = scmp.ge.s32.totalorder %s258, 1
                %s263 = sphi %s213, %s213
                %s264 = sphi %s214, %s214
              $region46: #{_lambda_.14} parent=35 // loop_header_branch
                %261 = sbr.rel (%p259) target = $region50
              $region47: #{_lambda_.14} parent=35 // loop_body
                %v265 = vld [vmem:[%s263] sm:%s256]
                %266 = vst [vmem:[%s264] sm:%s256] %v265
                %v267 = vld [vmem:[%s263 + $0x24] sm:%s256]
                %268 = vst [vmem:[%s264 + $0xc] sm:%s256] %v267
                %v269 = vld [vmem:[%s263 + $0x48] sm:%s256]
                %270 = vst [vmem:[%s264 + $0x18] sm:%s256] %v269
                %v271 = vld [vmem:[%s263 + $0x6c] sm:%s256]
                %272 = vst [vmem:[%s264 + $0x24] sm:%s256] %v271
                %v273 = vld [vmem:[%s263 + $0x90] sm:%s256]
                %274 = vst [vmem:[%s264 + $0x30] sm:%s256] %v273
                %v275 = vld [vmem:[%s263 + $0xb4] sm:%s256]
                %276 = vst [vmem:[%s264 + $0x3c] sm:%s256] %v275
                %v277 = vld [vmem:[%s263 + $0xd8] sm:%s256]
                %278 = vst [vmem:[%s264 + $0x48] sm:%s256] %v277
                %v279 = vld [vmem:[%s263 + $0xfc] sm:%s256]
                %280 = vst [vmem:[%s264 + $0x54] sm:%s256] %v279
                %v281 = vld [vmem:[%s263 + $0x120] sm:%s256]
                %282 = vst [vmem:[%s264 + $0x60] sm:%s256] %v281
                %v283 = vld [vmem:[%s263 + $0x144] sm:%s256]
                %284 = vst [vmem:[%s264 + $0x6c] sm:%s256] %v283
                %v285 = vld [vmem:[%s263 + $0x168] sm:%s256]
                %286 = vst [vmem:[%s264 + $0x78] sm:%s256] %v285
                %v287 = vld [vmem:[%s263 + $0x18c] sm:%s256]
                %288 = vst [vmem:[%s264 + $0x84] sm:%s256] %v287
                %v289 = vld [vmem:[%s263 + $0x1b0] sm:%s256]
                %290 = vst [vmem:[%s264 + $0x90] sm:%s256] %v289
                %v291 = vld [vmem:[%s263 + $0x1d4] sm:%s256]
                %292 = vst [vmem:[%s264 + $0x9c] sm:%s256] %v291
                %v293 = vld [vmem:[%s263 + $0x1f8] sm:%s256]
                %294 = vst [vmem:[%s264 + $0xa8] sm:%s256] %v293
                %v295 = vld [vmem:[%s263 + $0x21c] sm:%s256]
                %296 = vst [vmem:[%s264 + $0xb4] sm:%s256] %v295
              $region48: #{_lambda_.14} parent=35 // loop_footer
                %s262 = sadd.s32 1, %s258
              $region49: #{_lambda_.14} parent=35 // loop_footer_branch
                %257 = sbr.rel target = $region45
              $region50: #{_lambda_.14} parent=35 // loop_exit
                _
            $region36: #{_lambda_.14} parent=31 // pred_fallthru
              _
          $region32: #{_lambda_.14} parent=27 // pred_fallthru
            _
          %297 = vnop
        $region28: #{_lambda_.14} parent=23 // pred_fallthru
          _
        // Predicated region
        $region51: #{_lambda_.14} parent=23 // pred_check
          %p298 = pneg %p79
        $region52: #{_lambda_.14} parent=23 // pred_check_branch
          %300 = sbr.rel (%p298) target = $region54
        $region53: #{_lambda_.14} parent=23 // pred_region
          %s301 = smul.u32 48, %s19
          %p302 = scmp.lt.s32.totalorder %s301, 143
          %s303 = scalar_select %p302, %s301, 143
          %p304 = scmp.lt.s32.totalorder %s18, 0
          %s305 = scalar_select %p304, %s18, 0
          %s306 = sadd.s32 %s305, %s303
          %s307 = smul.addr %s306, 4
          %s308 = scalar_lea.vmem %s1, %s307
          %s309 = smul.u32 48, %s19
        $region54: #{_lambda_.14} parent=23 // pred_fallthru
          _
      $region24: #{_lambda_.14} parent=5 // pred_fallthru
        _
      %p310 = scmp.le.s32.totalorder 1, %s10
      %p311 = scmp.lt.s32.totalorder %s10, 4
      %p312 = pnand %p310, %p311
      %p313 = pneg %p312
      // Predicated region
      $region55: #{_lambda_.14} parent=5 // pred_check
        _
      $region56: #{_lambda_.14} parent=5 // pred_check_branch
        %315 = sbr.rel (%p312) target = $region58
      $region57: #{_lambda_.14} parent=5 // pred_region
        %s316 = ssub.s32 %s10, 1
        %s317 = sand.u32 %s44, 1
        %s318 = sand.u32 %s44, 1
        %s319 = smul.addr %s318, 192
        %s320 = scalar_lea.vmem [#allocation3], %s319
        // Predicated region
        $region59: #{_lambda_.14} parent=57 // pred_check
          %p321 = pneg %p57
        $region60: #{_lambda_.14} parent=57 // pred_check_branch
          %323 = sbr.rel (%p321) target = $region62
        $region61: #{_lambda_.14} parent=57 // pred_region
          _
        $region62: #{_lambda_.14} parent=57 // pred_fallthru
          _
        %s324 = sand.u32 %s44, 1
        %s325 = sand.u32 %s44, 1
        %s326 = smul.addr %s325, 192
        %s327 = scalar_lea.vmem [#allocation3], %s326
        %p328 = pneg %p57
        %p329 = pneg %p54
        %s330 = smul.u32 48, %s22
        %p331 = scmp.lt.s32.totalorder %s330, 143
        %s332 = scalar_select %p331, %s330, 143
        %p333 = scmp.lt.s32.totalorder %s21, 0
        %s334 = scalar_select %p333, %s21, 0
        %s335 = sadd.s32 %s334, %s332
        %s336 = smul.addr %s335, 4
        %s337 = scalar_lea.vmem %s1, %s336
        %p338 = pneg %p85
        %p339 = pneg %p82
        %p340 = scmp.lt.s32.totalorder %s21, 0
        %s341 = scalar_select %p340, %s21, 0
        %s342 = scalar_lea.vmem %s2, %s341
        %p343 = pneg %p111
        %p344 = pneg %p108
        %p345 = scmp.lt.s32.totalorder %s21, 0
        %s346 = scalar_select %p345, %s21, 0
        %s347 = scalar_lea.vmem %s3, %s346
        %p348 = pneg %p137
        %p349 = pneg %p134
        %p350 = pneg %p165
        %p351 = pneg %p162
        %s352 = smul.u32 16, %s20
        %p353 = scmp.lt.s32.totalorder %s352, 15
        %s354 = scalar_select %p353, %s352, 15
        %p355 = scmp.lt.s32.totalorder %s21, 0
        %s356 = scalar_select %p355, %s21, 0
        %s357 = sadd.s32 %s356, %s354
        %s358 = smul.addr %s357, 4
        %s359 = scalar_lea.vmem %s4, %s358
        %s360 = smul.u32 16, %s20
        %s361 = smul.u32 3, %s22
        %s362 = smul.u32 48, %s22
        %p363 = scmp.lt.s32.totalorder %s362, 143
        %s364 = scalar_select %p363, %s362, 143
        %p365 = scmp.lt.s32.totalorder %s21, 0
        %s366 = scalar_select %p365, %s21, 0
        %s367 = sadd.s32 %s366, %s364
        %s368 = smul.addr %s367, 4
        %s369 = scalar_lea.vmem %s1, %s368
        %s370 = smul.u32 48, %s22
        %p371 = scmp.lt.s32.totalorder %s21, 0
        %s372 = scalar_select %p371, %s21, 0
        %s373 = scalar_lea.vmem %s2, %s372
        %p374 = scmp.lt.s32.totalorder %s21, 0
        %s375 = scalar_select %p374, %s21, 0
        %s376 = scalar_lea.vmem %s3, %s375
        %s377 = smul.u32 16, %s20
        %p378 = scmp.lt.s32.totalorder %s377, 15
        %s379 = scalar_select %p378, %s377, 15
        %p380 = scmp.lt.s32.totalorder %s21, 0
        %s381 = scalar_select %p380, %s21, 0
        %s382 = sadd.s32 %s381, %s379
        %s383 = smul.addr %s382, 4
        %s384 = scalar_lea.vmem %s4, %s383
        %s385 = smul.u32 16, %s20
        %p386 = scmp.eq.s32.totalorder %s22, 0
        // Predicated region
        $region63: #{_lambda_.14} parent=57 // pred_check
          %p387 = pneg %p386
        $region64: #{_lambda_.14} parent=57 // pred_check_branch
          %389 = sbr.rel (%p387) target = $region66
        $region65: #{_lambda_.14} parent=57 // pred_region
          %390 = vst [vmem:[#allocation2] sm:$0xff] 0.0
          %391 = vst [vmem:[#allocation2 + $0x8] sm:$0xff] 0.0
          %392 = vst [vmem:[#allocation2 + $0x10] sm:$0xff] 0.0
          %393 = vst [vmem:[#allocation2 + $0x18] sm:$0xff] 0.0
          %394 = vst [vmem:[#allocation2 + $0x20] sm:$0xff] 0.0
          %395 = vst [vmem:[#allocation2 + $0x28] sm:$0xff] 0.0
          %396 = vst [vmem:[#allocation2 + $0x30] sm:$0xff] 0.0
          %397 = vst [vmem:[#allocation2 + $0x38] sm:$0xff] 0.0
          %398 = vst [vmem:[#allocation2 + $0x40] sm:$0xff] 0.0
          %399 = vst [vmem:[#allocation2 + $0x48] sm:$0xff] 0.0
          %400 = vst [vmem:[#allocation2 + $0x50] sm:$0xff] 0.0
          %401 = vst [vmem:[#allocation2 + $0x58] sm:$0xff] 0.0
          %402 = vst [vmem:[#allocation2 + $0x60] sm:$0xff] 0.0
          %403 = vst [vmem:[#allocation2 + $0x68] sm:$0xff] 0.0
          %404 = vst [vmem:[#allocation2 + $0x70] sm:$0xff] 0.0
          %405 = vst [vmem:[#allocation2 + $0x78] sm:$0xff] 0.0
        $region66: #{_lambda_.14} parent=57 // pred_fallthru
          _
        %v406 = vld [vmem:[#allocation2] sm:$0xff]
        %v407 = vld [vmem:[#allocation2 + $0x8] sm:$0xff]
        %v408 = vld [vmem:[#allocation2 + $0x10] sm:$0xff]
        %v409 = vld [vmem:[#allocation2 + $0x18] sm:$0xff]
        %v410 = vld [vmem:[#allocation2 + $0x20] sm:$0xff]
        %v411 = vld [vmem:[#allocation2 + $0x28] sm:$0xff]
        %v412 = vld [vmem:[#allocation2 + $0x30] sm:$0xff]
        %v413 = vld [vmem:[#allocation2 + $0x38] sm:$0xff]
        %v414 = vld [vmem:[#allocation2 + $0x40] sm:$0xff]
        %v415 = vld [vmem:[#allocation2 + $0x48] sm:$0xff]
        %v416 = vld [vmem:[#allocation2 + $0x50] sm:$0xff]
        %v417 = vld [vmem:[#allocation2 + $0x58] sm:$0xff]
        %v418 = vld [vmem:[#allocation2 + $0x60] sm:$0xff]
        %v419 = vld [vmem:[#allocation2 + $0x68] sm:$0xff]
        %v420 = vld [vmem:[#allocation2 + $0x70] sm:$0xff]
        %v421 = vld [vmem:[#allocation2 + $0x78] sm:$0xff]
        %v422 = vld [vmem:[%s320] sm:$0xff]
        %v423 = vld [vmem:[%s320 + $0x8] sm:$0xf]
        %v424 = vld [vmem:[%s320 + $0xc] sm:$0xff]
        %v425 = vld [vmem:[%s320 + $0x14] sm:$0xf]
        %v426 = vld [vmem:[%s320 + $0x18] sm:$0xff]
        %v427 = vld [vmem:[%s320 + $0x20] sm:$0xf]
        %v428 = vld [vmem:[%s320 + $0x24] sm:$0xff]
        %v429 = vld [vmem:[%s320 + $0x2c] sm:$0xf]
        %v430 = vld [vmem:[%s320 + $0x30] sm:$0xff]
        %v431 = vld [vmem:[%s320 + $0x38] sm:$0xf]
        %v432 = vld [vmem:[%s320 + $0x3c] sm:$0xff]
        %v433 = vld [vmem:[%s320 + $0x44] sm:$0xf]
        %v434 = vld [vmem:[%s320 + $0x48] sm:$0xff]
        %v435 = vld [vmem:[%s320 + $0x50] sm:$0xf]
        %v436 = vld [vmem:[%s320 + $0x54] sm:$0xff]
        %v437 = vld [vmem:[%s320 + $0x5c] sm:$0xf]
        %v438 = vld [vmem:[%s320 + $0x60] sm:$0xff]
        %v439 = vld [vmem:[%s320 + $0x68] sm:$0xf]
        %v440 = vld [vmem:[%s320 + $0x6c] sm:$0xff]
        %v441 = vld [vmem:[%s320 + $0x74] sm:$0xf]
        %v442 = vld [vmem:[%s320 + $0x78] sm:$0xff]
        %v443 = vld [vmem:[%s320 + $0x80] sm:$0xf]
        %v444 = vld [vmem:[%s320 + $0x84] sm:$0xff]
        %v445 = vld [vmem:[%s320 + $0x8c] sm:$0xf]
        %v446 = vld [vmem:[%s320 + $0x90] sm:$0xff]
        %v447 = vld [vmem:[%s320 + $0x98] sm:$0xf]
        %v448 = vld [vmem:[%s320 + $0x9c] sm:$0xff]
        %v449 = vld [vmem:[%s320 + $0xa4] sm:$0xf]
        %v450 = vld [vmem:[%s320 + $0xa8] sm:$0xff]
        %v451 = vld [vmem:[%s320 + $0xb0] sm:$0xf]
        %v452 = vld [vmem:[%s320 + $0xb4] sm:$0xff]
        %v453 = vld [vmem:[%s320 + $0xbc] sm:$0xf]
        %v454 = vld [vmem:[%s369] sm:$0xf]
        %v455 = vld [vmem:[%s369 + $0x4] sm:$0xf]
        %v456 = vld [vmem:[%s369 + $0x8] sm:$0xf]
        %v457 = vld [vmem:[%s369 + $0xc] sm:$0xf]
        %v458 = vld [vmem:[%s369 + $0x10] sm:$0xf]
        %v459 = vld [vmem:[%s369 + $0x14] sm:$0xf]
        %v460 = vld [vmem:[%s369 + $0x18] sm:$0xf]
        %v461 = vld [vmem:[%s369 + $0x1c] sm:$0xf]
        %v462 = vld [vmem:[%s369 + $0x20] sm:$0xf]
        %v463 = vld [vmem:[%s369 + $0x24] sm:$0xf]
        %v464 = vld [vmem:[%s369 + $0x28] sm:$0xf]
        %v465 = vld [vmem:[%s369 + $0x2c] sm:$0xf]
        %v466 = vld [vmem:[%s369 + $0x30] sm:$0xf]
        %v467 = vld [vmem:[%s369 + $0x34] sm:$0xf]
        %v468 = vld [vmem:[%s369 + $0x38] sm:$0xf]
        %v469 = vld [vmem:[%s369 + $0x3c] sm:$0xf]
        %v470 = vld [vmem:[%s369 + $0x40] sm:$0xf]
        %v471 = vld [vmem:[%s369 + $0x44] sm:$0xf]
        %v472 = vld [vmem:[%s369 + $0x48] sm:$0xf]
        %v473 = vld [vmem:[%s369 + $0x4c] sm:$0xf]
        %v474 = vld [vmem:[%s369 + $0x50] sm:$0xf]
        %v475 = vld [vmem:[%s369 + $0x54] sm:$0xf]
        %v476 = vld [vmem:[%s369 + $0x58] sm:$0xf]
        %v477 = vld [vmem:[%s369 + $0x5c] sm:$0xf]
        %v478 = vld [vmem:[%s369 + $0x60] sm:$0xf]
        %v479 = vld [vmem:[%s369 + $0x64] sm:$0xf]
        %v480 = vld [vmem:[%s369 + $0x68] sm:$0xf]
        %v481 = vld [vmem:[%s369 + $0x6c] sm:$0xf]
        %v482 = vld [vmem:[%s369 + $0x70] sm:$0xf]
        %v483 = vld [vmem:[%s369 + $0x74] sm:$0xf]
        %v484 = vld [vmem:[%s369 + $0x78] sm:$0xf]
        %v485 = vld [vmem:[%s369 + $0x7c] sm:$0xf]
        %v486 = vld [vmem:[%s369 + $0x80] sm:$0xf]
        %v487 = vld [vmem:[%s369 + $0x84] sm:$0xf]
        %v488 = vld [vmem:[%s369 + $0x88] sm:$0xf]
        %v489 = vld [vmem:[%s369 + $0x8c] sm:$0xf]
        %v490 = vld [vmem:[%s369 + $0x90] sm:$0xf]
        %v491 = vld [vmem:[%s369 + $0x94] sm:$0xf]
        %v492 = vld [vmem:[%s369 + $0x98] sm:$0xf]
        %v493 = vld [vmem:[%s369 + $0x9c] sm:$0xf]
        %v494 = vld [vmem:[%s369 + $0xa0] sm:$0xf]
        %v495 = vld [vmem:[%s369 + $0xa4] sm:$0xf]
        %v496 = vld [vmem:[%s369 + $0xa8] sm:$0xf]
        %v497 = vld [vmem:[%s369 + $0xac] sm:$0xf]
        %v498 = vld [vmem:[%s369 + $0xb0] sm:$0xf]
        %v499 = vld [vmem:[%s369 + $0xb4] sm:$0xf]
        %v500 = vld [vmem:[%s369 + $0xb8] sm:$0xf]
        %v501 = vld [vmem:[%s369 + $0xbc] sm:$0xf]
        %v534 = vunpack.c.l.b16 %v422
        %v535 = vunpack.c.h.b16 %v422
        %v536 = vunpack.c.l.b16 %v423
        %v537 = vunpack.c.l.b16 %v424
        %v538 = vunpack.c.h.b16 %v424
        %v539 = vunpack.c.l.b16 %v425
        %v540 = vunpack.c.l.b16 %v426
        %v541 = vunpack.c.h.b16 %v426
        %v542 = vunpack.c.l.b16 %v427
        %v543 = vunpack.c.l.b16 %v428
        %v544 = vunpack.c.h.b16 %v428
        %v545 = vunpack.c.l.b16 %v429
        %v546 = vunpack.c.l.b16 %v430
        %v547 = vunpack.c.h.b16 %v430
        %v548 = vunpack.c.l.b16 %v431
        %v549 = vunpack.c.l.b16 %v432
        %v550 = vunpack.c.h.b16 %v432
        %v551 = vunpack.c.l.b16 %v433
        %v552 = vunpack.c.l.b16 %v434
        %v553 = vunpack.c.h.b16 %v434
        %v554 = vunpack.c.l.b16 %v435
        %v555 = vunpack.c.l.b16 %v436
        %v556 = vunpack.c.h.b16 %v436
        %v557 = vunpack.c.l.b16 %v437
        %v558 = vunpack.c.l.b16 %v438
        %v559 = vunpack.c.h.b16 %v438
        %v560 = vunpack.c.l.b16 %v439
        %v561 = vunpack.c.l.b16 %v440
        %v562 = vunpack.c.h.b16 %v440
        %v563 = vunpack.c.l.b16 %v441
        %v564 = vunpack.c.l.b16 %v442
        %v565 = vunpack.c.h.b16 %v442
        %v566 = vunpack.c.l.b16 %v443
        %v567 = vunpack.c.l.b16 %v444
        %v568 = vunpack.c.h.b16 %v444
        %v569 = vunpack.c.l.b16 %v445
        %v570 = vunpack.c.l.b16 %v446
        %v571 = vunpack.c.h.b16 %v446
        %v572 = vunpack.c.l.b16 %v447
        %v573 = vunpack.c.l.b16 %v448
        %v574 = vunpack.c.h.b16 %v448
        %v575 = vunpack.c.l.b16 %v449
        %v576 = vunpack.c.l.b16 %v450
        %v577 = vunpack.c.h.b16 %v450
        %v578 = vunpack.c.l.b16 %v451
        %v579 = vunpack.c.l.b16 %v452
        %v580 = vunpack.c.h.b16 %v452
        %v581 = vunpack.c.l.b16 %v453
        %v582 = vpack.c.b16 %v537, %v534
        %v583 = vpack.c.b16 %v538, %v535
        %v584 = vpack.c.b16 %v539, %v536
        %v585 = vpack.c.b16 %v543, %v540
        %v586 = vpack.c.b16 %v544, %v541
        %v587 = vpack.c.b16 %v545, %v542
        %v588 = vpack.c.b16 %v549, %v546
        %v589 = vpack.c.b16 %v550, %v547
        %v590 = vpack.c.b16 %v551, %v548
        %v591 = vpack.c.b16 %v555, %v552
        %v592 = vpack.c.b16 %v556, %v553
        %v593 = vpack.c.b16 %v557, %v554
        %v594 = vpack.c.b16 %v561, %v558
        %v595 = vpack.c.b16 %v562, %v559
        %v596 = vpack.c.b16 %v563, %v560
        %v597 = vpack.c.b16 %v567, %v564
        %v598 = vpack.c.b16 %v568, %v565
        %v599 = vpack.c.b16 %v569, %v566
        %v600 = vpack.c.b16 %v573, %v570
        %v601 = vpack.c.b16 %v574, %v571
        %v602 = vpack.c.b16 %v575, %v572
        %v603 = vpack.c.b16 %v579, %v576
        %v604 = vpack.c.b16 %v580, %v577
        %v605 = vpack.c.b16 %v581, %v578
        %v678 = vunpack.c.l.b16 %v454
        %v679 = vunpack.c.l.b16 %v455
        %v680 = vunpack.c.l.b16 %v456
        %v681 = vunpack.c.l.b16 %v457
        %v682 = vunpack.c.l.b16 %v458
        %v683 = vunpack.c.l.b16 %v459
        %v684 = vunpack.c.l.b16 %v460
        %v685 = vunpack.c.l.b16 %v461
        %v686 = vunpack.c.l.b16 %v462
        %v687 = vunpack.c.l.b16 %v463
        %v688 = vunpack.c.l.b16 %v464
        %v689 = vunpack.c.l.b16 %v465
        %v690 = vunpack.c.l.b16 %v466
        %v691 = vunpack.c.l.b16 %v467
        %v692 = vunpack.c.l.b16 %v468
        %v693 = vunpack.c.l.b16 %v469
        %v694 = vunpack.c.l.b16 %v470
        %v695 = vunpack.c.l.b16 %v471
        %v696 = vunpack.c.l.b16 %v472
        %v697 = vunpack.c.l.b16 %v473
        %v698 = vunpack.c.l.b16 %v474
        %v699 = vunpack.c.l.b16 %v475
        %v700 = vunpack.c.l.b16 %v476
        %v701 = vunpack.c.l.b16 %v477
        %v702 = vunpack.c.l.b16 %v478
        %v703 = vunpack.c.l.b16 %v479
        %v704 = vunpack.c.l.b16 %v480
        %v705 = vunpack.c.l.b16 %v481
        %v706 = vunpack.c.l.b16 %v482
        %v707 = vunpack.c.l.b16 %v483
        %v708 = vunpack.c.l.b16 %v484
        %v709 = vunpack.c.l.b16 %v485
        %v710 = vunpack.c.l.b16 %v486
        %v711 = vunpack.c.l.b16 %v487
        %v712 = vunpack.c.l.b16 %v488
        %v713 = vunpack.c.l.b16 %v489
        %v714 = vunpack.c.l.b16 %v490
        %v715 = vunpack.c.l.b16 %v491
        %v716 = vunpack.c.l.b16 %v492
        %v717 = vunpack.c.l.b16 %v493
        %v718 = vunpack.c.l.b16 %v494
        %v719 = vunpack.c.l.b16 %v495
        %v720 = vunpack.c.l.b16 %v496
        %v721 = vunpack.c.l.b16 %v497
        %v722 = vunpack.c.l.b16 %v498
        %v723 = vunpack.c.l.b16 %v499
        %v724 = vunpack.c.l.b16 %v500
        %v725 = vunpack.c.l.b16 %v501
        %v726 = vpack.c.b16 %v679, %v678
        %v727 = vpack.c.b16 %v681, %v680
        %v728 = vpack.c.b16 %v683, %v682
        %v729 = vpack.c.b16 %v685, %v684
        %v730 = vpack.c.b16 %v687, %v686
        %v731 = vpack.c.b16 %v689, %v688
        %v732 = vpack.c.b16 %v691, %v690
        %v733 = vpack.c.b16 %v693, %v692
        %v734 = vpack.c.b16 %v695, %v694
        %v735 = vpack.c.b16 %v697, %v696
        %v736 = vpack.c.b16 %v699, %v698
        %v737 = vpack.c.b16 %v701, %v700
        %v738 = vpack.c.b16 %v703, %v702
        %v739 = vpack.c.b16 %v705, %v704
        %v740 = vpack.c.b16 %v707, %v706
        %v741 = vpack.c.b16 %v709, %v708
        %v742 = vpack.c.b16 %v711, %v710
        %v743 = vpack.c.b16 %v713, %v712
        %v744 = vpack.c.b16 %v715, %v714
        %v745 = vpack.c.b16 %v717, %v716
        %v746 = vpack.c.b16 %v719, %v718
        %v747 = vpack.c.b16 %v721, %v720
        %v748 = vpack.c.b16 %v723, %v722
        %v749 = vpack.c.b16 %v725, %v724
        %774 = vmatpush.bf16.msra.mxu0 %v733
        %775 = vmatpush.bf16.msra.mxu0 %v732
        %776 = vmatpush.bf16.msra.mxu0 %v731
        %777 = vmatpush.bf16.msra.mxu0 %v730
        %778 = vmatpush.bf16.msra.mxu0 %v729
        %779 = vmatpush.bf16.msra.mxu0 %v728
        %780 = vmatpush.bf16.msra.mxu0 %v727
        %781 = vmatpush.bf16.msra.mxu0 %v726
        %782 = vmatmul.bf16.gmra.mxu0 %v582
        %v783 = vpop.f32.mrf.mxu0
        %v784 = vadd.f32 0.0, %v783
        %v785 = vpop.f32.mrf.mxu0
        %v786 = vadd.f32 0.0, %v785
        %787 = vmatmul.bf16.gmra.mxu0 %v585
        %v788 = vpop.f32.mrf.mxu0
        %v789 = vadd.f32 0.0, %v788
        %v790 = vpop.f32.mrf.mxu0
        %v791 = vadd.f32 0.0, %v790
        %792 = vmatmul.bf16.gmra.mxu0 %v588
        %v793 = vpop.f32.mrf.mxu0
        %v794 = vadd.f32 0.0, %v793
        %v795 = vpop.f32.mrf.mxu0
        %v796 = vadd.f32 0.0, %v795
        %797 = vmatmul.bf16.gmra.mxu0 %v591
        %v798 = vpop.f32.mrf.mxu0
        %v799 = vadd.f32 0.0, %v798
        %v800 = vpop.f32.mrf.mxu0
        %v801 = vadd.f32 0.0, %v800
        %802 = vmatmul.bf16.gmra.mxu0 %v594
        %v803 = vpop.f32.mrf.mxu0
        %v804 = vadd.f32 0.0, %v803
        %v805 = vpop.f32.mrf.mxu0
        %v806 = vadd.f32 0.0, %v805
        %807 = vmatmul.bf16.gmra.mxu0 %v597
        %v808 = vpop.f32.mrf.mxu0
        %v809 = vadd.f32 0.0, %v808
        %v810 = vpop.f32.mrf.mxu0
        %v811 = vadd.f32 0.0, %v810
        %812 = vmatmul.bf16.gmra.mxu0 %v600
        %v813 = vpop.f32.mrf.mxu0
        %v814 = vadd.f32 0.0, %v813
        %v815 = vpop.f32.mrf.mxu0
        %v816 = vadd.f32 0.0, %v815
        %817 = vmatmul.bf16.gmra.mxu0 %v603
        %v818 = vpop.f32.mrf.mxu0
        %v819 = vadd.f32 0.0, %v818
        %v820 = vpop.f32.mrf.mxu0
        %v821 = vadd.f32 0.0, %v820
        %822 = vdwg.mxu0
        %823 = vmatpush.bf16.msra.mxu0 %v741
        %824 = vmatpush.bf16.msra.mxu0 %v740
        %825 = vmatpush.bf16.msra.mxu0 %v739
        %826 = vmatpush.bf16.msra.mxu0 %v738
        %827 = vmatpush.bf16.msra.mxu0 %v737
        %828 = vmatpush.bf16.msra.mxu0 %v736
        %829 = vmatpush.bf16.msra.mxu0 %v735
        %830 = vmatpush.bf16.msra.mxu0 %v734
        %831 = vmatmul.bf16.gmra.mxu0 %v583
        %v832 = vpop.f32.mrf.mxu0
        %v833 = vadd.f32 %v784, %v832
        %v834 = vpop.f32.mrf.mxu0
        %v835 = vadd.f32 %v786, %v834
        %836 = vmatmul.bf16.gmra.mxu0 %v586
        %v837 = vpop.f32.mrf.mxu0
        %v838 = vadd.f32 %v789, %v837
        %v839 = vpop.f32.mrf.mxu0
        %v840 = vadd.f32 %v791, %v839
        %841 = vmatmul.bf16.gmra.mxu0 %v589
        %v842 = vpop.f32.mrf.mxu0
        %v843 = vadd.f32 %v794, %v842
        %v844 = vpop.f32.mrf.mxu0
        %v845 = vadd.f32 %v796, %v844
        %846 = vmatmul.bf16.gmra.mxu0 %v592
        %v847 = vpop.f32.mrf.mxu0
        %v848 = vadd.f32 %v799, %v847
        %v849 = vpop.f32.mrf.mxu0
        %v850 = vadd.f32 %v801, %v849
        %851 = vmatmul.bf16.gmra.mxu0 %v595
        %v852 = vpop.f32.mrf.mxu0
        %v853 = vadd.f32 %v804, %v852
        %v854 = vpop.f32.mrf.mxu0
        %v855 = vadd.f32 %v806, %v854
        %856 = vmatmul.bf16.gmra.mxu0 %v598
        %v857 = vpop.f32.mrf.mxu0
        %v858 = vadd.f32 %v809, %v857
        %v859 = vpop.f32.mrf.mxu0
        %v860 = vadd.f32 %v811, %v859
        %861 = vmatmul.bf16.gmra.mxu0 %v601
        %v862 = vpop.f32.mrf.mxu0
        %v863 = vadd.f32 %v814, %v862
        %v864 = vpop.f32.mrf.mxu0
        %v865 = vadd.f32 %v816, %v864
        %866 = vmatmul.bf16.gmra.mxu0 %v604
        %v867 = vpop.f32.mrf.mxu0
        %v868 = vadd.f32 %v819, %v867
        %v869 = vpop.f32.mrf.mxu0
        %v870 = vadd.f32 %v821, %v869
        %871 = vdwg.mxu0
        %872 = vmatpush.bf16.msra.mxu0 %v749
        %873 = vmatpush.bf16.msra.mxu0 %v748
        %874 = vmatpush.bf16.msra.mxu0 %v747
        %875 = vmatpush.bf16.msra.mxu0 %v746
        %876 = vmatpush.bf16.msra.mxu0 %v745
        %877 = vmatpush.bf16.msra.mxu0 %v744
        %878 = vmatpush.bf16.msra.mxu0 %v743
        %879 = vmatpush.bf16.msra.mxu0 %v742
        %880 = vmatmul.bf16.gmra.mxu0 %v584
        %v881 = vpop.f32.mrf.mxu0
        %v882 = vadd.f32 %v833, %v881
        %v883 = vpop.f32.mrf.mxu0
        %v884 = vadd.f32 %v835, %v883
        %885 = vmatmul.bf16.gmra.mxu0 %v587
        %v886 = vpop.f32.mrf.mxu0
        %v887 = vadd.f32 %v838, %v886
        %v888 = vpop.f32.mrf.mxu0
        %v889 = vadd.f32 %v840, %v888
        %890 = vmatmul.bf16.gmra.mxu0 %v590
        %v891 = vpop.f32.mrf.mxu0
        %v892 = vadd.f32 %v843, %v891
        %v893 = vpop.f32.mrf.mxu0
        %v894 = vadd.f32 %v845, %v893
        %895 = vmatmul.bf16.gmra.mxu0 %v593
        %v896 = vpop.f32.mrf.mxu0
        %v897 = vadd.f32 %v848, %v896
        %v898 = vpop.f32.mrf.mxu0
        %v899 = vadd.f32 %v850, %v898
        %900 = vmatmul.bf16.gmra.mxu0 %v596
        %v901 = vpop.f32.mrf.mxu0
        %v902 = vadd.f32 %v853, %v901
        %v903 = vpop.f32.mrf.mxu0
        %v904 = vadd.f32 %v855, %v903
        %905 = vmatmul.bf16.gmra.mxu0 %v599
        %v906 = vpop.f32.mrf.mxu0
        %v907 = vadd.f32 %v858, %v906
        %v908 = vpop.f32.mrf.mxu0
        %v909 = vadd.f32 %v860, %v908
        %910 = vmatmul.bf16.gmra.mxu0 %v602
        %v911 = vpop.f32.mrf.mxu0
        %v912 = vadd.f32 %v863, %v911
        %v913 = vpop.f32.mrf.mxu0
        %v914 = vadd.f32 %v865, %v913
        %915 = vmatmul.bf16.gmra.mxu0 %v605
        %v916 = vpop.f32.mrf.mxu0
        %v917 = vadd.f32 %v868, %v916
        %v918 = vpop.f32.mrf.mxu0
        %v919 = vadd.f32 %v870, %v918
        %920 = vdwg.mxu0
        %v921 = vadd.f32 %v406, %v882
        %v922 = vadd.f32 %v407, %v884
        %v923 = vadd.f32 %v408, %v887
        %v924 = vadd.f32 %v409, %v889
        %v925 = vadd.f32 %v410, %v892
        %v926 = vadd.f32 %v411, %v894
        %v927 = vadd.f32 %v412, %v897
        %v928 = vadd.f32 %v413, %v899
        %v929 = vadd.f32 %v414, %v902
        %v930 = vadd.f32 %v415, %v904
        %v931 = vadd.f32 %v416, %v907
        %v932 = vadd.f32 %v417, %v909
        %v933 = vadd.f32 %v418, %v912
        %v934 = vadd.f32 %v419, %v914
        %v935 = vadd.f32 %v420, %v917
        %v936 = vadd.f32 %v421, %v919
        %937 = vst [vmem:[#allocation2] sm:$0xff] %v921
        %938 = vst [vmem:[#allocation2 + $0x8] sm:$0xff] %v922
        %939 = vst [vmem:[#allocation2 + $0x10] sm:$0xff] %v923
        %940 = vst [vmem:[#allocation2 + $0x18] sm:$0xff] %v924
        %941 = vst [vmem:[#allocation2 + $0x20] sm:$0xff] %v925
        %942 = vst [vmem:[#allocation2 + $0x28] sm:$0xff] %v926
        %943 = vst [vmem:[#allocation2 + $0x30] sm:$0xff] %v927
        %944 = vst [vmem:[#allocation2 + $0x38] sm:$0xff] %v928
        %945 = vst [vmem:[#allocation2 + $0x40] sm:$0xff] %v929
        %946 = vst [vmem:[#allocation2 + $0x48] sm:$0xff] %v930
        %947 = vst [vmem:[#allocation2 + $0x50] sm:$0xff] %v931
        %948 = vst [vmem:[#allocation2 + $0x58] sm:$0xff] %v932
        %949 = vst [vmem:[#allocation2 + $0x60] sm:$0xff] %v933
        %950 = vst [vmem:[#allocation2 + $0x68] sm:$0xff] %v934
        %951 = vst [vmem:[#allocation2 + $0x70] sm:$0xff] %v935
        %952 = vst [vmem:[#allocation2 + $0x78] sm:$0xff] %v936
        %p953 = scmp.eq.s32.totalorder %s22, 2
        // Predicated region
        $region67: #{_lambda_.14} parent=57 // pred_check
          %p954 = pneg %p953
        $region68: #{_lambda_.14} parent=57 // pred_check_branch
          %956 = sbr.rel (%p954) target = $region70
        $region69: #{_lambda_.14} parent=57 // pred_region
          %v957 = vld [vmem:[#allocation2] sm:$0xff]
          %v958 = vld [vmem:[#allocation2 + $0x8] sm:$0xff]
          %v959 = vld [vmem:[#allocation2 + $0x10] sm:$0xff]
          %v960 = vld [vmem:[#allocation2 + $0x18] sm:$0xff]
          %v961 = vld [vmem:[#allocation2 + $0x20] sm:$0xff]
          %v962 = vld [vmem:[#allocation2 + $0x28] sm:$0xff]
          %v963 = vld [vmem:[#allocation2 + $0x30] sm:$0xff]
          %v964 = vld [vmem:[#allocation2 + $0x38] sm:$0xff]
          %v965 = vld [vmem:[#allocation2 + $0x40] sm:$0xff]
          %v966 = vld [vmem:[#allocation2 + $0x48] sm:$0xff]
          %v967 = vld [vmem:[#allocation2 + $0x50] sm:$0xff]
          %v968 = vld [vmem:[#allocation2 + $0x58] sm:$0xff]
          %v969 = vld [vmem:[#allocation2 + $0x60] sm:$0xff]
          %v970 = vld [vmem:[#allocation2 + $0x68] sm:$0xff]
          %v971 = vld [vmem:[#allocation2 + $0x70] sm:$0xff]
          %v972 = vld [vmem:[#allocation2 + $0x78] sm:$0xff]
          %v973 = vld [vmem:[%s373] sm:$0x1]
          %v975 = vperm.slane %v973, 0
          %v977 = vmul.f32 %v957, %v975
          %v978 = vmul.f32 %v958, %v975
          %v979 = vmul.f32 %v959, %v975
          %v980 = vmul.f32 %v960, %v975
          %v981 = vmul.f32 %v961, %v975
          %v982 = vmul.f32 %v962, %v975
          %v983 = vmul.f32 %v963, %v975
          %v984 = vmul.f32 %v964, %v975
          %v985 = vmul.f32 %v965, %v975
          %v986 = vmul.f32 %v966, %v975
          %v987 = vmul.f32 %v967, %v975
          %v988 = vmul.f32 %v968, %v975
          %v989 = vmul.f32 %v969, %v975
          %v990 = vmul.f32 %v970, %v975
          %v991 = vmul.f32 %v971, %v975
          %v992 = vmul.f32 %v972, %v975
          %v993 = vld [vmem:[%s376] sm:$0x1]
          %v995 = vperm.slane %v993, 0
          %v997 = vadd.f32 %v977, %v995
          %v998 = vadd.f32 %v978, %v995
          %v999 = vadd.f32 %v979, %v995
          %v1000 = vadd.f32 %v980, %v995
          %v1001 = vadd.f32 %v981, %v995
          %v1002 = vadd.f32 %v982, %v995
          %v1003 = vadd.f32 %v983, %v995
          %v1004 = vadd.f32 %v984, %v995
          %v1005 = vadd.f32 %v985, %v995
          %v1006 = vadd.f32 %v986, %v995
          %v1007 = vadd.f32 %v987, %v995
          %v1008 = vadd.f32 %v988, %v995
          %v1009 = vadd.f32 %v989, %v995
          %v1010 = vadd.f32 %v990, %v995
          %v1011 = vadd.f32 %v991, %v995
          %v1012 = vadd.f32 %v992, %v995
          %v1013 = vmax.f32 %v997, 0.0
          %v1014 = vmax.f32 %v998, 0.0
          %v1015 = vmax.f32 %v999, 0.0
          %v1016 = vmax.f32 %v1000, 0.0
          %v1017 = vmax.f32 %v1001, 0.0
          %v1018 = vmax.f32 %v1002, 0.0
          %v1019 = vmax.f32 %v1003, 0.0
          %v1020 = vmax.f32 %v1004, 0.0
          %v1021 = vmax.f32 %v1005, 0.0
          %v1022 = vmax.f32 %v1006, 0.0
          %v1023 = vmax.f32 %v1007, 0.0
          %v1024 = vmax.f32 %v1008, 0.0
          %v1025 = vmax.f32 %v1009, 0.0
          %v1026 = vmax.f32 %v1010, 0.0
          %v1027 = vmax.f32 %v1011, 0.0
          %v1028 = vmax.f32 %v1012, 0.0
          %v1029 = vpack.c.bf16 %v1013, %v1013
          %v1030 = vpack.c.bf16 %v1014, %v1014
          %v1031 = vpack.c.bf16 %v1015, %v1015
          %v1032 = vpack.c.bf16 %v1016, %v1016
          %v1033 = vpack.c.bf16 %v1017, %v1017
          %v1034 = vpack.c.bf16 %v1018, %v1018
          %v1035 = vpack.c.bf16 %v1019, %v1019
          %v1036 = vpack.c.bf16 %v1020, %v1020
          %v1037 = vpack.c.bf16 %v1021, %v1021
          %v1038 = vpack.c.bf16 %v1022, %v1022
          %v1039 = vpack.c.bf16 %v1023, %v1023
          %v1040 = vpack.c.bf16 %v1024, %v1024
          %v1041 = vpack.c.bf16 %v1025, %v1025
          %v1042 = vpack.c.bf16 %v1026, %v1026
          %v1043 = vpack.c.bf16 %v1027, %v1027
          %v1044 = vpack.c.bf16 %v1028, %v1028
          %1045 = vst [vmem:[%s384] sm:$0xf] %v1029
          %1046 = vst [vmem:[%s384 + $0x4] sm:$0xf] %v1030
          %1047 = vst [vmem:[%s384 + $0x8] sm:$0xf] %v1031
          %1048 = vst [vmem:[%s384 + $0xc] sm:$0xf] %v1032
          %1049 = vst [vmem:[%s384 + $0x10] sm:$0xf] %v1033
          %1050 = vst [vmem:[%s384 + $0x14] sm:$0xf] %v1034
          %1051 = vst [vmem:[%s384 + $0x18] sm:$0xf] %v1035
          %1052 = vst [vmem:[%s384 + $0x1c] sm:$0xf] %v1036
          %1053 = vst [vmem:[%s384 + $0x20] sm:$0xf] %v1037
          %1054 = vst [vmem:[%s384 + $0x24] sm:$0xf] %v1038
          %1055 = vst [vmem:[%s384 + $0x28] sm:$0xf] %v1039
          %1056 = vst [vmem:[%s384 + $0x2c] sm:$0xf] %v1040
          %1057 = vst [vmem:[%s384 + $0x30] sm:$0xf] %v1041
          %1058 = vst [vmem:[%s384 + $0x34] sm:$0xf] %v1042
          %1059 = vst [vmem:[%s384 + $0x38] sm:$0xf] %v1043
          %1060 = vst [vmem:[%s384 + $0x3c] sm:$0xf] %v1044
        $region70: #{_lambda_.14} parent=57 // pred_fallthru
          _
        %s1061 = smul.u32 16, %s20
        %p1062 = scmp.lt.s32.totalorder %s1061, 15
        %s1063 = scalar_select %p1062, %s1061, 15
        %p1064 = scmp.lt.s32.totalorder %s21, 0
        %s1065 = scalar_select %p1064, %s21, 0
        %s1066 = sadd.s32 %s1065, %s1063
        %s1067 = smul.addr %s1066, 4
        %s1068 = scalar_lea.vmem %s4, %s1067
        // Predicated region
        $region71: #{_lambda_.14} parent=57 // pred_check
          %p1069 = pneg %p162
        $region72: #{_lambda_.14} parent=57 // pred_check_branch
          %1071 = sbr.rel (%p1069) target = $region74
        $region73: #{_lambda_.14} parent=57 // pred_region
          %s1072 = smul.u32 16, %s20
        $region74: #{_lambda_.14} parent=57 // pred_fallthru
          _
        // Predicated region
        $region75: #{_lambda_.14} parent=57 // pred_check
          %p1073 = pneg %p162
        $region76: #{_lambda_.14} parent=57 // pred_check_branch
          %1075 = sbr.rel (%p1073) target = $region78
        $region77: #{_lambda_.14} parent=57 // pred_region
          %s1076 = smul.u32 16, %s20
          %p1077 = scmp.lt.s32.totalorder %s1076, 15
          %s1078 = scalar_select %p1077, %s1076, 15
          %p1079 = scmp.lt.s32.totalorder %s21, 0
          %s1080 = scalar_select %p1079, %s21, 0
          %s1081 = sadd.s32 %s1080, %s1078
          %s1082 = smul.addr %s1081, 4
          %s1083 = scalar_lea.vmem %s4, %s1082
        $region78: #{_lambda_.14} parent=57 // pred_fallthru
          _
      $region58: #{_lambda_.14} parent=5 // pred_fallthru
        _
      %p1084 = scmp.le.s32.totalorder 2, %s10
      // Predicated region
      $region79: #{_lambda_.14} parent=5 // pred_check
        %p1085 = pneg %p1084
      $region80: #{_lambda_.14} parent=5 // pred_check_branch
        %1087 = sbr.rel (%p1085) target = $region82
      $region81: #{_lambda_.14} parent=5 // pred_region
        %s1088 = ssub.s32 %s10, 2
      $region82: #{_lambda_.14} parent=5 // pred_fallthru
        _
    $region6: #{_lambda_.14} parent=1 // loop_footer
      %s14 = sadd.s32 1, %s10
    $region7: #{_lambda_.14} parent=1 // loop_footer_branch
      %9 = sbr.rel target = $region3
    $region8: #{_lambda_.14} parent=1 // loop_exit
      _

// kernel: _lambda_.16
$region0: #{_lambda_.16}
  #allocation0 [shape = 'u32[]', space=smem, size = 0x4, offset = 0x4, fixed_abs, tag = 'smem constant byte address 0x4 - core index']
  #allocation1 [shape = 'u32[72,128]{1,0:T(1,128)}', space=vmem, size = 0x9000, scoped, tag = 'internal scratch']
  #allocation2 [shape = 'f32[32,128]{1,0:T(8,128)}', space=vmem, size = 0x4000, scoped, tag = 'scratch operand']
  %s0 = inlined_call_operand.vmem [shape: bf16[32,128], index: 0, kind: input, shape index: {}]
  %s1 = inlined_call_operand.vmem [shape: bf16[128,128], index: 1, kind: input, shape index: {}]
  %s2 = inlined_call_operand.vmem [shape: f32[1,128], index: 2, kind: input, shape index: {}]
  %s3 = inlined_call_operand.vmem [shape: f32[1,128], index: 3, kind: input, shape index: {}]
  %s4 = inlined_call_operand.vmem [shape: f32[32,128], index: 4, kind: output, shape index: {}]
  %s5 = sld [smem:[#allocation0]]
  $region34: #{_lambda_.16} parent=0
    _
  %s7 = ssub.s32 1, %s5
  %s8 = scalar_select 0, %s7, %s5
  // Predicated region
  $region2: #{_lambda_.16} parent=0 // pred_check
    _
  $region3: #{_lambda_.16} parent=0 // pred_check_branch
    %10 = sbr.rel (0) target = $region5
  $region4: #{_lambda_.16} parent=0 // pred_region
    _
  $region5: #{_lambda_.16} parent=0 // pred_fallthru
    _
  // Predicated region
  $region6: #{_lambda_.16} parent=0 // pred_check
    _
  $region7: #{_lambda_.16} parent=0 // pred_check_branch
    %12 = sbr.rel (0) target = $region9
  $region8: #{_lambda_.16} parent=0 // pred_region
    _
  $region9: #{_lambda_.16} parent=0 // pred_fallthru
    _
  // Predicated region
  $region10: #{_lambda_.16} parent=0 // pred_check
    _
  $region11: #{_lambda_.16} parent=0 // pred_check_branch
    %14 = sbr.rel (0) target = $region13
  $region12: #{_lambda_.16} parent=0 // pred_region
    _
  $region13: #{_lambda_.16} parent=0 // pred_fallthru
    _
  // Predicated region
  $region14: #{_lambda_.16} parent=0 // pred_check
    _
  $region15: #{_lambda_.16} parent=0 // pred_check_branch
    %16 = sbr.rel (0) target = $region17
  $region16: #{_lambda_.16} parent=0 // pred_region
    _
  $region17: #{_lambda_.16} parent=0 // pred_fallthru
    _
  %p17 = scmp.eq.s32.totalorder 0, 0
  // Predicated region
  $region18: #{_lambda_.16} parent=0 // pred_check
    %p18 = pneg %p17
  $region19: #{_lambda_.16} parent=0 // pred_check_branch
    %20 = sbr.rel (%p18) target = $region21
  $region20: #{_lambda_.16} parent=0 // pred_region
    %21 = vst [vmem:[#allocation2] sm:$0xff] 0.0
    %22 = vst [vmem:[#allocation2 + $0x8] sm:$0xff] 0.0
    %23 = vst [vmem:[#allocation2 + $0x10] sm:$0xff] 0.0
    %24 = vst [vmem:[#allocation2 + $0x18] sm:$0xff] 0.0
  $region21: #{_lambda_.16} parent=0 // pred_fallthru
    _
  %v25 = vld [vmem:[#allocation2] sm:$0xff]
  %v26 = vld [vmem:[#allocation2 + $0x8] sm:$0xff]
  %v27 = vld [vmem:[#allocation2 + $0x10] sm:$0xff]
  %v28 = vld [vmem:[#allocation2 + $0x18] sm:$0xff]
  %v29 = vld [vmem:[%s0] sm:$0xf]
  %v30 = vld [vmem:[%s0 + $0x4] sm:$0xf]
  %v31 = vld [vmem:[%s0 + $0x8] sm:$0xf]
  %v32 = vld [vmem:[%s0 + $0xc] sm:$0xf]
  %v33 = vld [vmem:[%s1] sm:$0xf]
  %v34 = vld [vmem:[%s1 + $0x4] sm:$0xf]
  %v35 = vld [vmem:[%s1 + $0x8] sm:$0xf]
  %v36 = vld [vmem:[%s1 + $0xc] sm:$0xf]
  %v37 = vld [vmem:[%s1 + $0x10] sm:$0xf]
  %v38 = vld [vmem:[%s1 + $0x14] sm:$0xf]
  %v39 = vld [vmem:[%s1 + $0x18] sm:$0xf]
  %v40 = vld [vmem:[%s1 + $0x1c] sm:$0xf]
  %v41 = vld [vmem:[%s1 + $0x20] sm:$0xf]
  %v42 = vld [vmem:[%s1 + $0x24] sm:$0xf]
  %v43 = vld [vmem:[%s1 + $0x28] sm:$0xf]
  %v44 = vld [vmem:[%s1 + $0x2c] sm:$0xf]
  %v45 = vld [vmem:[%s1 + $0x30] sm:$0xf]
  %v46 = vld [vmem:[%s1 + $0x34] sm:$0xf]
  %v47 = vld [vmem:[%s1 + $0x38] sm:$0xf]
  %v48 = vld [vmem:[%s1 + $0x3c] sm:$0xf]
  %v53 = vunpack.c.l.b16 %v29
  %v54 = vunpack.c.l.b16 %v30
  %v55 = vunpack.c.l.b16 %v31
  %v56 = vunpack.c.l.b16 %v32
  %v57 = vpack.c.b16 %v54, %v53
  %v58 = vpack.c.b16 %v56, %v55
  %v77 = vunpack.c.l.b16 %v33
  %v78 = vunpack.c.l.b16 %v34
  %v79 = vunpack.c.l.b16 %v35
  %v80 = vunpack.c.l.b16 %v36
  %v81 = vunpack.c.l.b16 %v37
  %v82 = vunpack.c.l.b16 %v38
  %v83 = vunpack.c.l.b16 %v39
  %v84 = vunpack.c.l.b16 %v40
  %v85 = vunpack.c.l.b16 %v41
  %v86 = vunpack.c.l.b16 %v42
  %v87 = vunpack.c.l.b16 %v43
  %v88 = vunpack.c.l.b16 %v44
  %v89 = vunpack.c.l.b16 %v45
  %v90 = vunpack.c.l.b16 %v46
  %v91 = vunpack.c.l.b16 %v47
  %v92 = vunpack.c.l.b16 %v48
  %v93 = vpack.c.b16 %v78, %v77
  %v94 = vpack.c.b16 %v80, %v79
  %v95 = vpack.c.b16 %v82, %v81
  %v96 = vpack.c.b16 %v84, %v83
  %v97 = vpack.c.b16 %v86, %v85
  %v98 = vpack.c.b16 %v88, %v87
  %v99 = vpack.c.b16 %v90, %v89
  %v100 = vpack.c.b16 %v92, %v91
  %109 = vmatpush.bf16.msra.mxu0 %v100
  %110 = vmatpush.bf16.msra.mxu0 %v99
  %111 = vmatpush.bf16.msra.mxu0 %v98
  %112 = vmatpush.bf16.msra.mxu0 %v97
  %113 = vmatpush.bf16.msra.mxu0 %v96
  %114 = vmatpush.bf16.msra.mxu0 %v95
  %115 = vmatpush.bf16.msra.mxu0 %v94
  %116 = vmatpush.bf16.msra.mxu0 %v93
  %117 = vmatmul.bf16.gmra.mxu0 %v57
  %v118 = vpop.f32.mrf.mxu0
  %v119 = vadd.f32 0.0, %v118
  %v120 = vpop.f32.mrf.mxu0
  %v121 = vadd.f32 0.0, %v120
  %122 = vmatmul.bf16.gmra.mxu0 %v58
  %v123 = vpop.f32.mrf.mxu0
  %v124 = vadd.f32 0.0, %v123
  %v125 = vpop.f32.mrf.mxu0
  %v126 = vadd.f32 0.0, %v125
  %127 = vdwg.mxu0
  %v128 = vadd.f32 %v25, %v119
  %v129 = vadd.f32 %v26, %v121
  %v130 = vadd.f32 %v27, %v124
  %v131 = vadd.f32 %v28, %v126
  %132 = vst [vmem:[#allocation2] sm:$0xff] %v128
  %133 = vst [vmem:[#allocation2 + $0x8] sm:$0xff] %v129
  %134 = vst [vmem:[#allocation2 + $0x10] sm:$0xff] %v130
  %135 = vst [vmem:[#allocation2 + $0x18] sm:$0xff] %v131
  // Predicated region
  $region22: #{_lambda_.16} parent=0 // pred_check
    %p136 = pneg %p17
  $region23: #{_lambda_.16} parent=0 // pred_check_branch
    %138 = sbr.rel (%p136) target = $region25
  $region24: #{_lambda_.16} parent=0 // pred_region
    %v139 = vld [vmem:[#allocation2] sm:$0xff]
    %v140 = vld [vmem:[#allocation2 + $0x8] sm:$0xff]
    %v141 = vld [vmem:[#allocation2 + $0x10] sm:$0xff]
    %v142 = vld [vmem:[#allocation2 + $0x18] sm:$0xff]
    %v143 = vld [vmem:[%s2] sm:$0x1]
    %v145 = vperm.slane %v143, 0
    %v147 = vmul.f32 %v139, %v145
    %v148 = vmul.f32 %v140, %v145
    %v149 = vmul.f32 %v141, %v145
    %v150 = vmul.f32 %v142, %v145
    %v151 = vld [vmem:[%s3] sm:$0x1]
    %v153 = vperm.slane %v151, 0
    %v155 = vadd.f32 %v147, %v153
    %v156 = vadd.f32 %v148, %v153
    %v157 = vadd.f32 %v149, %v153
    %v158 = vadd.f32 %v150, %v153
    %159 = vst [vmem:[%s4] sm:$0xff] %v155
    %160 = vst [vmem:[%s4 + $0x8] sm:$0xff] %v156
    %161 = vst [vmem:[%s4 + $0x10] sm:$0xff] %v157
    %162 = vst [vmem:[%s4 + $0x18] sm:$0xff] %v158
  $region25: #{_lambda_.16} parent=0 // pred_fallthru
    _
  // Predicated region
  $region26: #{_lambda_.16} parent=0 // pred_check
    _
  $region27: #{_lambda_.16} parent=0 // pred_check_branch
    %164 = sbr.rel (0) target = $region29
  $region28: #{_lambda_.16} parent=0 // pred_region
    _
  $region29: #{_lambda_.16} parent=0 // pred_fallthru
    _
  // Predicated region
  $region30: #{_lambda_.16} parent=0 // pred_check
    _
  $region31: #{_lambda_.16} parent=0 // pred_check_branch
    %166 = sbr.rel (0) target = $region33
  $region32: #{_lambda_.16} parent=0 // pred_region
    _
  $region33: #{_lambda_.16} parent=0 // pred_fallthru
    _

// kernel: _lambda_.15
$region0: #{_lambda_.15}
  #allocation0 [shape = 'u32[]', space=smem, size = 0x4, offset = 0x4, fixed_abs, tag = 'smem constant byte address 0x4 - core index']
  #allocation1 [shape = 'u32[72,128]{1,0:T(1,128)}', space=vmem, size = 0x9000, scoped, tag = 'internal scratch']
  #allocation2 [shape = 'f32[128,128]{1,0:T(8,128)}', space=vmem, size = 0x10000, scoped, tag = 'scratch operand']
  %s0 = inlined_call_operand.vmem [shape: bf16[128,1152], index: 0, kind: input, shape index: {}]
  %s1 = inlined_call_operand.vmem [shape: bf16[1152,128], index: 1, kind: input, shape index: {}]
  %s2 = inlined_call_operand.vmem [shape: f32[1,128], index: 2, kind: input, shape index: {}]
  %s3 = inlined_call_operand.vmem [shape: f32[1,128], index: 3, kind: input, shape index: {}, may-alias: {3,5}]
  %s4 = inlined_call_operand.vmem [shape: f32[1,128], index: 4, kind: input, shape index: {}]
  %s5 = inlined_call_operand.vmem [shape: f32[1,128], index: 5, kind: input, shape index: {}, may-alias: {3,5}]
  %s6 = inlined_call_operand.vmem [shape: f32[128,128], index: 6, kind: input, shape index: {}]
  %s7 = inlined_call_operand.vmem [shape: bf16[128,128], index: 7, kind: output, shape index: {}]
  %s8 = sld [smem:[#allocation0]]
  $region95: #{_lambda_.15} parent=0
    _
  %s10 = ssub.s32 1, %s8
  %s11 = scalar_select 0, %s10, %s8
  $region1: #{_lambda_.15} parent=0
    #allocation3 [shape = 'u8[196608]{0}', space=vmem, size = 0x30000, scoped, tag = 'input window, operand 0']
    loop: start=0, step=1, limit=5
    $region2: #{_lambda_.15} parent=1 // loop_pre_header
      _
    $region3: #{_lambda_.15} parent=1 // loop_header
      %s13 = sphi 0, %s17
      %p14 = scmp.ge.s32.totalorder %s13, 5
      %s20 = sphi 0, %s39
      %s21 = sphi 0, %s35
      %s22 = sphi 0, %s31
      %s23 = sphi 0, %s20
      %s24 = sphi 0, %s21
      %s25 = sphi 0, %s22
      %s26 = sphi 0, %s23
      %s27 = sphi 0, %s24
      %s28 = sphi 0, %s25
      %s44 = sphi 0, %s46
      %s47 = sphi 0, %s44
      %s48 = sphi 0, %s47
      %s64 = sphi 0, %s48
      %s72 = sphi 0, %s74
      %s75 = sphi 0, %s72
      %s76 = sphi 0, %s75
      %s92 = sphi 0, %s76
      %s98 = sphi 0, %s100
      %s101 = sphi 0, %s98
      %s102 = sphi 0, %s101
      %s118 = sphi 0, %s102
      %s124 = sphi 0, %s126
      %s127 = sphi 0, %s124
      %s128 = sphi 0, %s127
      %s144 = sphi 0, %s128
      %s150 = sphi 0, %s152
      %s153 = sphi 0, %s150
      %s154 = sphi 0, %s153
      %s170 = sphi 0, %s154
      %s176 = sphi 0, %s178
      %s179 = sphi 0, %s176
      %s180 = sphi 0, %s179
      %s196 = sphi 0, %s180
      %s204 = sphi 0, %s206
      %s207 = sphi 0, %s204
      %s208 = sphi 0, %s207
      %s224 = sphi 0, %s208
      %s232 = sphi 0, %s234
      %s235 = sphi 0, %s232
      %s236 = sphi 0, %s235
      %s252 = sphi 0, %s236
    $region4: #{_lambda_.15} parent=1 // loop_header_branch
      %16 = sbr.rel (%p14) target = $region8
    $region5: #{_lambda_.15} parent=1 // loop_body
      %s18 = ssub.s32 %s13, 1
      %s19 = ssub.s32 %s13, 2
      %s29 = sadd.s32 1, %s22
      %p30 = scmp.ge.s32.totalorder %s29, 3
      %s31 = scalar_select %p30, 0, %s29
      %s32 = sadd.s32 1, %s21
      %s33 = scalar_select %p30, %s32, %s21
      %p34 = scmp.ge.s32.totalorder %s33, 1
      %s35 = scalar_select %p34, 0, %s33
      %s36 = sadd.s32 1, %s20
      %s37 = scalar_select %p34, %s36, %s20
      %p38 = scmp.ge.s32.totalorder %s37, 1
      %s39 = scalar_select %p38, 0, %s37
      %s40 = ssub.s32 %s20, %s39
      %s41 = ssub.s32 %s22, %s31
      %s42 = sor.u32 %s40, %s41
      %p43 = scmp.eq.s32.totalorder %s42, 0
      %s45 = sadd.s32 %s44, 1
      %s46 = scalar_select %p43, %s44, %s45
      %p49 = pneg %p43
      %p50 = scmp.eq.s32.totalorder %s13, 2
      %p51 = por %p49, %p50
      %p52 = scmp.ne.s32.totalorder %s44, %s47
      %p53 = scmp.eq.s32.totalorder %s13, 0
      %p54 = por %p52, %p53
      %p55 = scmp.ne.s32.totalorder %s44, %s47
      %p56 = scmp.eq.s32.totalorder %s18, 2
      %p57 = por %p55, %p56
      %p58 = scmp.ne.s32.totalorder %s47, %s48
      %p59 = scmp.eq.s32.totalorder %s18, 0
      %p60 = por %p58, %p59
      %p61 = scmp.ne.s32.totalorder %s47, %s48
      %p62 = scmp.eq.s32.totalorder %s19, 2
      %p63 = por %p61, %p62
      %p65 = scmp.ne.s32.totalorder %s48, %s64
      %p66 = scmp.eq.s32.totalorder %s19, 0
      %p67 = por %p65, %p66
      %s68 = ssub.s32 %s22, %s31
      %s69 = ssub.s32 %s21, %s35
      %s70 = sor.u32 %s68, %s69
      %p71 = scmp.eq.s32.totalorder %s70, 0
      %s73 = sadd.s32 %s72, 1
      %s74 = scalar_select %p71, %s72, %s73
      %p77 = pneg %p71
      %p78 = scmp.eq.s32.totalorder %s13, 2
      %p79 = por %p77, %p78
      %p80 = scmp.ne.s32.totalorder %s72, %s75
      %p81 = scmp.eq.s32.totalorder %s13, 0
      %p82 = por %p80, %p81
      %p83 = scmp.ne.s32.totalorder %s72, %s75
      %p84 = scmp.eq.s32.totalorder %s18, 2
      %p85 = por %p83, %p84
      %p86 = scmp.ne.s32.totalorder %s75, %s76
      %p87 = scmp.eq.s32.totalorder %s18, 0
      %p88 = por %p86, %p87
      %p89 = scmp.ne.s32.totalorder %s75, %s76
      %p90 = scmp.eq.s32.totalorder %s19, 2
      %p91 = por %p89, %p90
      %p93 = scmp.ne.s32.totalorder %s76, %s92
      %p94 = scmp.eq.s32.totalorder %s19, 0
      %p95 = por %p93, %p94
      %s96 = ssub.s32 %s21, %s35
      %p97 = scmp.eq.s32.totalorder %s96, 0
      %s99 = sadd.s32 %s98, 1
      %s100 = scalar_select %p97, %s98, %s99
      %p103 = pneg %p97
      %p104 = scmp.eq.s32.totalorder %s13, 2
      %p105 = por %p103, %p104
      %p106 = scmp.ne.s32.totalorder %s98, %s101
      %p107 = scmp.eq.s32.totalorder %s13, 0
      %p108 = por %p106, %p107
      %p109 = scmp.ne.s32.totalorder %s98, %s101
      %p110 = scmp.eq.s32.totalorder %s18, 2
      %p111 = por %p109, %p110
      %p112 = scmp.ne.s32.totalorder %s101, %s102
      %p113 = scmp.eq.s32.totalorder %s18, 0
      %p114 = por %p112, %p113
      %p115 = scmp.ne.s32.totalorder %s101, %s102
      %p116 = scmp.eq.s32.totalorder %s19, 2
      %p117 = por %p115, %p116
      %p119 = scmp.ne.s32.totalorder %s102, %s118
      %p120 = scmp.eq.s32.totalorder %s19, 0
      %p121 = por %p119, %p120
      %s122 = ssub.s32 %s21, %s35
      %p123 = scmp.eq.s32.totalorder %s122, 0
      %s125 = sadd.s32 %s124, 1
      %s126 = scalar_select %p123, %s124, %s125
      %p129 = pneg %p123
      %p130 = scmp.eq.s32.totalorder %s13, 2
      %p131 = por %p129, %p130
      %p132 = scmp.ne.s32.totalorder %s124, %s127
      %p133 = scmp.eq.s32.totalorder %s13, 0
      %p134 = por %p132, %p133
      %p135 = scmp.ne.s32.totalorder %s124, %s127
      %p136 = scmp.eq.s32.totalorder %s18, 2
      %p137 = por %p135, %p136
      %p138 = scmp.ne.s32.totalorder %s127, %s128
      %p139 = scmp.eq.s32.totalorder %s18, 0
      %p140 = por %p138, %p139
      %p141 = scmp.ne.s32.totalorder %s127, %s128
      %p142 = scmp.eq.s32.totalorder %s19, 2
      %p143 = por %p141, %p142
      %p145 = scmp.ne.s32.totalorder %s128, %s144
      %p146 = scmp.eq.s32.totalorder %s19, 0
      %p147 = por %p145, %p146
      %s148 = ssub.s32 %s21, %s35
      %p149 = scmp.eq.s32.totalorder %s148, 0
      %s151 = sadd.s32 %s150, 1
      %s152 = scalar_select %p149, %s150, %s151
      %p155 = pneg %p149
      %p156 = scmp.eq.s32.totalorder %s13, 2
      %p157 = por %p155, %p156
      %p158 = scmp.ne.s32.totalorder %s150, %s153
      %p159 = scmp.eq.s32.totalorder %s13, 0
      %p160 = por %p158, %p159
      %p161 = scmp.ne.s32.totalorder %s150, %s153
      %p162 = scmp.eq.s32.totalorder %s18, 2
      %p163 = por %p161, %p162
      %p164 = scmp.ne.s32.totalorder %s153, %s154
      %p165 = scmp.eq.s32.totalorder %s18, 0
      %p166 = por %p164, %p165
      %p167 = scmp.ne.s32.totalorder %s153, %s154
      %p168 = scmp.eq.s32.totalorder %s19, 2
      %p169 = por %p167, %p168
      %p171 = scmp.ne.s32.totalorder %s154, %s170
      %p172 = scmp.eq.s32.totalorder %s19, 0
      %p173 = por %p171, %p172
      %s174 = ssub.s32 %s21, %s35
      %p175 = scmp.eq.s32.totalorder %s174, 0
      %s177 = sadd.s32 %s176, 1
      %s178 = scalar_select %p175, %s176, %s177
      %p181 = pneg %p175
      %p182 = scmp.eq.s32.totalorder %s13, 2
      %p183 = por %p181, %p182
      %p184 = scmp.ne.s32.totalorder %s176, %s179
      %p185 = scmp.eq.s32.totalorder %s13, 0
      %p186 = por %p184, %p185
      %p187 = scmp.ne.s32.totalorder %s176, %s179
      %p188 = scmp.eq.s32.totalorder %s18, 2
      %p189 = por %p187, %p188
      %p190 = scmp.ne.s32.totalorder %s179, %s180
      %p191 = scmp.eq.s32.totalorder %s18, 0
      %p192 = por %p190, %p191
      %p193 = scmp.ne.s32.totalorder %s179, %s180
      %p194 = scmp.eq.s32.totalorder %s19, 2
      %p195 = por %p193, %p194
      %p197 = scmp.ne.s32.totalorder %s180, %s196
      %p198 = scmp.eq.s32.totalorder %s19, 0
      %p199 = por %p197, %p198
      %s200 = ssub.s32 %s20, %s39
      %s201 = ssub.s32 %s21, %s35
      %s202 = sor.u32 %s200, %s201
      %p203 = scmp.eq.s32.totalorder %s202, 0
      %s205 = sadd.s32 %s204, 1
      %s206 = scalar_select %p203, %s204, %s205
      %p209 = pneg %p203
      %p210 = scmp.eq.s32.totalorder %s13, 2
      %p211 = por %p209, %p210
      %p212 = scmp.ne.s32.totalorder %s204, %s207
      %p213 = scmp.eq.s32.totalorder %s13, 0
      %p214 = por %p212, %p213
      %p215 = scmp.ne.s32.totalorder %s204, %s207
      %p216 = scmp.eq.s32.totalorder %s18, 2
      %p217 = por %p215, %p216
      %p218 = scmp.ne.s32.totalorder %s207, %s208
      %p219 = scmp.eq.s32.totalorder %s18, 0
      %p220 = por %p218, %p219
      %p221 = scmp.ne.s32.totalorder %s207, %s208
      %p222 = scmp.eq.s32.totalorder %s19, 2
      %p223 = por %p221, %p222
      %p225 = scmp.ne.s32.totalorder %s208, %s224
      %p226 = scmp.eq.s32.totalorder %s19, 0
      %p227 = por %p225, %p226
      %s228 = ssub.s32 %s20, %s39
      %s229 = ssub.s32 %s21, %s35
      %s230 = sor.u32 %s228, %s229
      %p231 = scmp.eq.s32.totalorder %s230, 0
      %s233 = sadd.s32 %s232, 1
      %s234 = scalar_select %p231, %s232, %s233
      %p237 = pneg %p231
      %p238 = scmp.eq.s32.totalorder %s13, 2
      %p239 = por %p237, %p238
      %p240 = scmp.ne.s32.totalorder %s232, %s235
      %p241 = scmp.eq.s32.totalorder %s13, 0
      %p242 = por %p240, %p241
      %p243 = scmp.ne.s32.totalorder %s232, %s235
      %p244 = scmp.eq.s32.totalorder %s18, 2
      %p245 = por %p243, %p244
      %p246 = scmp.ne.s32.totalorder %s235, %s236
      %p247 = scmp.eq.s32.totalorder %s18, 0
      %p248 = por %p246, %p247
      %p249 = scmp.ne.s32.totalorder %s235, %s236
      %p250 = scmp.eq.s32.totalorder %s19, 2
      %p251 = por %p249, %p250
      %p253 = scmp.ne.s32.totalorder %s236, %s252
      %p254 = scmp.eq.s32.totalorder %s19, 0
      %p255 = por %p253, %p254
      %p256 = scmp.le.s32.totalorder 1, %s13
      %p257 = scmp.lt.s32.totalorder %s13, 4
      %p258 = pnand %p256, %p257
      %p259 = pneg %p258
      // Predicated region
      $region9: #{_lambda_.15} parent=5 // pred_check
        _
      $region10: #{_lambda_.15} parent=5 // pred_check_branch
        %261 = sbr.rel (%p258) target = $region12
      $region11: #{_lambda_.15} parent=5 // pred_region
        %s262 = ssub.s32 %s13, 1
        // Predicated region
        $region13: #{_lambda_.15} parent=11 // pred_check
          %p263 = pneg %p114
        $region14: #{_lambda_.15} parent=11 // pred_check_branch
          %265 = sbr.rel (%p263) target = $region16
        $region15: #{_lambda_.15} parent=11 // pred_region
          %p266 = scmp.lt.s32.totalorder %s24, 0
          %s267 = scalar_select %p266, %s24, 0
          %s268 = scalar_lea.vmem %s2, %s267
        $region16: #{_lambda_.15} parent=11 // pred_fallthru
          _
        // Predicated region
        $region17: #{_lambda_.15} parent=11 // pred_check
          %p269 = pneg %p140
        $region18: #{_lambda_.15} parent=11 // pred_check_branch
          %271 = sbr.rel (%p269) target = $region20
        $region19: #{_lambda_.15} parent=11 // pred_region
          %p272 = scmp.lt.s32.totalorder %s24, 0
          %s273 = scalar_select %p272, %s24, 0
          %s274 = scalar_lea.vmem %s3, %s273
        $region20: #{_lambda_.15} parent=11 // pred_fallthru
          _
        // Predicated region
        $region21: #{_lambda_.15} parent=11 // pred_check
          %p275 = pneg %p166
        $region22: #{_lambda_.15} parent=11 // pred_check_branch
          %277 = sbr.rel (%p275) target = $region24
        $region23: #{_lambda_.15} parent=11 // pred_region
          %p278 = scmp.lt.s32.totalorder %s24, 0
          %s279 = scalar_select %p278, %s24, 0
          %s280 = scalar_lea.vmem %s4, %s279
        $region24: #{_lambda_.15} parent=11 // pred_fallthru
          _
        // Predicated region
        $region25: #{_lambda_.15} parent=11 // pred_check
          %p281 = pneg %p192
        $region26: #{_lambda_.15} parent=11 // pred_check_branch
          %283 = sbr.rel (%p281) target = $region28
        $region27: #{_lambda_.15} parent=11 // pred_region
          %p284 = scmp.lt.s32.totalorder %s24, 0
          %s285 = scalar_select %p284, %s24, 0
          %s286 = scalar_lea.vmem %s5, %s285
        $region28: #{_lambda_.15} parent=11 // pred_fallthru
          _
        // Predicated region
        $region29: #{_lambda_.15} parent=11 // pred_check
          %p287 = pneg %p220
        $region30: #{_lambda_.15} parent=11 // pred_check_branch
          %289 = sbr.rel (%p287) target = $region32
        $region31: #{_lambda_.15} parent=11 // pred_region
          %s290 = smul.u32 16, %s23
          %p291 = scmp.lt.s32.totalorder %s290, 15
          %s292 = scalar_select %p291, %s290, 15
          %p293 = scmp.lt.s32.totalorder %s24, 0
          %s294 = scalar_select %p293, %s24, 0
          %s295 = sadd.s32 %s294, %s292
          %s296 = smul.addr %s295, 8
          %s297 = scalar_lea.vmem %s6, %s296
          %s298 = smul.u32 16, %s23
        $region32: #{_lambda_.15} parent=11 // pred_fallthru
          _
      $region12: #{_lambda_.15} parent=5 // pred_fallthru
        _
      %p299 = scmp.lt.s32.totalorder %s13, 3
      // Predicated region
      $region33: #{_lambda_.15} parent=5 // pred_check
        %p300 = pneg %p299
      $region34: #{_lambda_.15} parent=5 // pred_check_branch
        %302 = sbr.rel (%p300) target = $region36
      $region35: #{_lambda_.15} parent=5 // pred_region
        // Predicated region
        $region37: #{_lambda_.15} parent=35 // pred_check
          %p303 = pneg %p54
        $region38: #{_lambda_.15} parent=35 // pred_check_branch
          %305 = sbr.rel (%p303) target = $region40
        $region39: #{_lambda_.15} parent=35 // pred_region
          %s306 = sand.u32 %s44, 1
          %s307 = sand.u32 %s44, 1
          %s308 = smul.addr %s307, 192
          %s309 = scalar_lea.vmem [#allocation3], %s308
          %s310 = smul.u32 16, %s20
          %s311 = smul.u32 3, %s22
          %s312 = smul.addr %s310, 9
          %s313 = sadd.s32 %s311, %s312
          %s314 = smul.addr %s313, 4
          %s315 = scalar_lea.vmem %s0, %s314
          // Predicated region
          $region41: #{_lambda_.15} parent=39 // pred_check
            _
          $region42: #{_lambda_.15} parent=39 // pred_check_branch
            %317 = sbr.rel (0) target = $region44
          $region43: #{_lambda_.15} parent=39 // pred_region
            // Predicated region
            $region45: #{_lambda_.15} parent=43 // pred_check
              _
            $region46: #{_lambda_.15} parent=43 // pred_check_branch
              %319 = sbr.rel (0) target = $region48
            $region47: #{_lambda_.15} parent=43 // pred_region
              %s320 = scalar_lea.vmem %s315, 8
              %s321 = scalar_lea.vmem %s309, 8 [#allocation3]
              loop: start=0, step=1, limit=1
              $region49: #{_lambda_.15} parent=47 // loop_pre_header
                _
              $region50: #{_lambda_.15} parent=47 // loop_header
                %s323 = sphi 0, %s327
                %p324 = scmp.ge.s32.totalorder %s323, 1
                %s328 = sphi %s315, %s315
                %s329 = sphi %s309, %s309
              $region51: #{_lambda_.15} parent=47 // loop_header_branch
                %326 = sbr.rel (%p324) target = $region55
              $region52: #{_lambda_.15} parent=47 // loop_body
                %v330 = vld [vmem:[%s328] sm:$0xff]
                %331 = vst [vmem:[%s329] sm:$0xff] %v330
                %v332 = vld [vmem:[%s328 + $0x24] sm:$0xff]
                %333 = vst [vmem:[%s329 + $0xc] sm:$0xff] %v332
                %v334 = vld [vmem:[%s328 + $0x48] sm:$0xff]
                %335 = vst [vmem:[%s329 + $0x18] sm:$0xff] %v334
                %v336 = vld [vmem:[%s328 + $0x6c] sm:$0xff]
                %337 = vst [vmem:[%s329 + $0x24] sm:$0xff] %v336
                %v338 = vld [vmem:[%s328 + $0x90] sm:$0xff]
                %339 = vst [vmem:[%s329 + $0x30] sm:$0xff] %v338
                %v340 = vld [vmem:[%s328 + $0xb4] sm:$0xff]
                %341 = vst [vmem:[%s329 + $0x3c] sm:$0xff] %v340
                %v342 = vld [vmem:[%s328 + $0xd8] sm:$0xff]
                %343 = vst [vmem:[%s329 + $0x48] sm:$0xff] %v342
                %v344 = vld [vmem:[%s328 + $0xfc] sm:$0xff]
                %345 = vst [vmem:[%s329 + $0x54] sm:$0xff] %v344
                %v346 = vld [vmem:[%s328 + $0x120] sm:$0xff]
                %347 = vst [vmem:[%s329 + $0x60] sm:$0xff] %v346
                %v348 = vld [vmem:[%s328 + $0x144] sm:$0xff]
                %349 = vst [vmem:[%s329 + $0x6c] sm:$0xff] %v348
                %v350 = vld [vmem:[%s328 + $0x168] sm:$0xff]
                %351 = vst [vmem:[%s329 + $0x78] sm:$0xff] %v350
                %v352 = vld [vmem:[%s328 + $0x18c] sm:$0xff]
                %353 = vst [vmem:[%s329 + $0x84] sm:$0xff] %v352
                %v354 = vld [vmem:[%s328 + $0x1b0] sm:$0xff]
                %355 = vst [vmem:[%s329 + $0x90] sm:$0xff] %v354
                %v356 = vld [vmem:[%s328 + $0x1d4] sm:$0xff]
                %357 = vst [vmem:[%s329 + $0x9c] sm:$0xff] %v356
                %v358 = vld [vmem:[%s328 + $0x1f8] sm:$0xff]
                %359 = vst [vmem:[%s329 + $0xa8] sm:$0xff] %v358
                %v360 = vld [vmem:[%s328 + $0x21c] sm:$0xff]
                %361 = vst [vmem:[%s329 + $0xb4] sm:$0xff] %v360
              $region53: #{_lambda_.15} parent=47 // loop_footer
                %s327 = sadd.s32 1, %s323
              $region54: #{_lambda_.15} parent=47 // loop_footer_branch
                %322 = sbr.rel target = $region50
              $region55: #{_lambda_.15} parent=47 // loop_exit
                _
              %s363 = ssub.s32 16, 1
              loop: start=0, step=1, limit=1
              $region56: #{_lambda_.15} parent=47 // loop_pre_header
                _
              $region57: #{_lambda_.15} parent=47 // loop_header
                %s365 = sphi 0, %s369
                %p366 = scmp.ge.s32.totalorder %s365, 1
                %s370 = sphi %s320, %s320
                %s371 = sphi %s321, %s321
              $region58: #{_lambda_.15} parent=47 // loop_header_branch
                %368 = sbr.rel (%p366) target = $region62
              $region59: #{_lambda_.15} parent=47 // loop_body
                %v372 = vld [vmem:[%s370] sm:%s363]
                %373 = vst [vmem:[%s371] sm:%s363] %v372
                %v374 = vld [vmem:[%s370 + $0x24] sm:%s363]
                %375 = vst [vmem:[%s371 + $0xc] sm:%s363] %v374
                %v376 = vld [vmem:[%s370 + $0x48] sm:%s363]
                %377 = vst [vmem:[%s371 + $0x18] sm:%s363] %v376
                %v378 = vld [vmem:[%s370 + $0x6c] sm:%s363]
                %379 = vst [vmem:[%s371 + $0x24] sm:%s363] %v378
                %v380 = vld [vmem:[%s370 + $0x90] sm:%s363]
                %381 = vst [vmem:[%s371 + $0x30] sm:%s363] %v380
                %v382 = vld [vmem:[%s370 + $0xb4] sm:%s363]
                %383 = vst [vmem:[%s371 + $0x3c] sm:%s363] %v382
                %v384 = vld [vmem:[%s370 + $0xd8] sm:%s363]
                %385 = vst [vmem:[%s371 + $0x48] sm:%s363] %v384
                %v386 = vld [vmem:[%s370 + $0xfc] sm:%s363]
                %387 = vst [vmem:[%s371 + $0x54] sm:%s363] %v386
                %v388 = vld [vmem:[%s370 + $0x120] sm:%s363]
                %389 = vst [vmem:[%s371 + $0x60] sm:%s363] %v388
                %v390 = vld [vmem:[%s370 + $0x144] sm:%s363]
                %391 = vst [vmem:[%s371 + $0x6c] sm:%s363] %v390
                %v392 = vld [vmem:[%s370 + $0x168] sm:%s363]
                %393 = vst [vmem:[%s371 + $0x78] sm:%s363] %v392
                %v394 = vld [vmem:[%s370 + $0x18c] sm:%s363]
                %395 = vst [vmem:[%s371 + $0x84] sm:%s363] %v394
                %v396 = vld [vmem:[%s370 + $0x1b0] sm:%s363]
                %397 = vst [vmem:[%s371 + $0x90] sm:%s363] %v396
                %v398 = vld [vmem:[%s370 + $0x1d4] sm:%s363]
                %399 = vst [vmem:[%s371 + $0x9c] sm:%s363] %v398
                %v400 = vld [vmem:[%s370 + $0x1f8] sm:%s363]
                %401 = vst [vmem:[%s371 + $0xa8] sm:%s363] %v400
                %v402 = vld [vmem:[%s370 + $0x21c] sm:%s363]
                %403 = vst [vmem:[%s371 + $0xb4] sm:%s363] %v402
              $region60: #{_lambda_.15} parent=47 // loop_footer
                %s369 = sadd.s32 1, %s365
              $region61: #{_lambda_.15} parent=47 // loop_footer_branch
                %364 = sbr.rel target = $region57
              $region62: #{_lambda_.15} parent=47 // loop_exit
                _
            $region48: #{_lambda_.15} parent=43 // pred_fallthru
              _
          $region44: #{_lambda_.15} parent=39 // pred_fallthru
            _
          %404 = vnop
        $region40: #{_lambda_.15} parent=35 // pred_fallthru
          _
        // Predicated region
        $region63: #{_lambda_.15} parent=35 // pred_check
          %p405 = pneg %p82
        $region64: #{_lambda_.15} parent=35 // pred_check_branch
          %407 = sbr.rel (%p405) target = $region66
        $region65: #{_lambda_.15} parent=35 // pred_region
          %s408 = smul.u32 48, %s22
          %p409 = scmp.lt.s32.totalorder %s408, 143
          %s410 = scalar_select %p409, %s408, 143
          %p411 = scmp.lt.s32.totalorder %s21, 0
          %s412 = scalar_select %p411, %s21, 0
          %s413 = sadd.s32 %s412, %s410
          %s414 = smul.addr %s413, 4
          %s415 = scalar_lea.vmem %s1, %s414
          %s416 = smul.u32 48, %s22
        $region66: #{_lambda_.15} parent=35 // pred_fallthru
          _
      $region36: #{_lambda_.15} parent=5 // pred_fallthru
        _
      %p417 = scmp.le.s32.totalorder 1, %s13
      %p418 = scmp.lt.s32.totalorder %s13, 4
      %p419 = pnand %p417, %p418
      %p420 = pneg %p419
      // Predicated region
      $region67: #{_lambda_.15} parent=5 // pred_check
        _
      $region68: #{_lambda_.15} parent=5 // pred_check_branch
        %422 = sbr.rel (%p419) target = $region70
      $region69: #{_lambda_.15} parent=5 // pred_region
        %s423 = ssub.s32 %s13, 1
        %s424 = sand.u32 %s47, 1
        %s425 = sand.u32 %s47, 1
        %s426 = smul.addr %s425, 192
        %s427 = scalar_lea.vmem [#allocation3], %s426
        // Predicated region
        $region71: #{_lambda_.15} parent=69 // pred_check
          %p428 = pneg %p60
        $region72: #{_lambda_.15} parent=69 // pred_check_branch
          %430 = sbr.rel (%p428) target = $region74
        $region73: #{_lambda_.15} parent=69 // pred_region
          _
        $region74: #{_lambda_.15} parent=69 // pred_fallthru
          _
        %s431 = sand.u32 %s47, 1
        %s432 = sand.u32 %s47, 1
        %s433 = smul.addr %s432, 192
        %s434 = scalar_lea.vmem [#allocation3], %s433
        %p435 = pneg %p60
        %p436 = pneg %p57
        %s437 = smul.u32 48, %s25
        %p438 = scmp.lt.s32.totalorder %s437, 143
        %s439 = scalar_select %p438, %s437, 143
        %p440 = scmp.lt.s32.totalorder %s24, 0
        %s441 = scalar_select %p440, %s24, 0
        %s442 = sadd.s32 %s441, %s439
        %s443 = smul.addr %s442, 4
        %s444 = scalar_lea.vmem %s1, %s443
        %p445 = pneg %p88
        %p446 = pneg %p85
        %p447 = scmp.lt.s32.totalorder %s24, 0
        %s448 = scalar_select %p447, %s24, 0
        %s449 = scalar_lea.vmem %s2, %s448
        %p450 = pneg %p114
        %p451 = pneg %p111
        %p452 = scmp.lt.s32.totalorder %s24, 0
        %s453 = scalar_select %p452, %s24, 0
        %s454 = scalar_lea.vmem %s3, %s453
        %p455 = pneg %p140
        %p456 = pneg %p137
        %p457 = scmp.lt.s32.totalorder %s24, 0
        %s458 = scalar_select %p457, %s24, 0
        %s459 = scalar_lea.vmem %s4, %s458
        %p460 = pneg %p166
        %p461 = pneg %p163
        %p462 = scmp.lt.s32.totalorder %s24, 0
        %s463 = scalar_select %p462, %s24, 0
        %s464 = scalar_lea.vmem %s5, %s463
        %p465 = pneg %p192
        %p466 = pneg %p189
        %s467 = smul.u32 16, %s23
        %p468 = scmp.lt.s32.totalorder %s467, 15
        %s469 = scalar_select %p468, %s467, 15
        %p470 = scmp.lt.s32.totalorder %s24, 0
        %s471 = scalar_select %p470, %s24, 0
        %s472 = sadd.s32 %s471, %s469
        %s473 = smul.addr %s472, 8
        %s474 = scalar_lea.vmem %s6, %s473
        %p475 = pneg %p220
        %p476 = pneg %p217
        %p477 = pneg %p248
        %p478 = pneg %p245
        %s479 = smul.u32 16, %s23
        %p480 = scmp.lt.s32.totalorder %s479, 15
        %s481 = scalar_select %p480, %s479, 15
        %p482 = scmp.lt.s32.totalorder %s24, 0
        %s483 = scalar_select %p482, %s24, 0
        %s484 = sadd.s32 %s483, %s481
        %s485 = smul.addr %s484, 4
        %s486 = scalar_lea.vmem %s7, %s485
        %s487 = smul.u32 16, %s23
        %s488 = smul.u32 3, %s25
        %s489 = smul.u32 48, %s25
        %p490 = scmp.lt.s32.totalorder %s489, 143
        %s491 = scalar_select %p490, %s489, 143
        %p492 = scmp.lt.s32.totalorder %s24, 0
        %s493 = scalar_select %p492, %s24, 0
        %s494 = sadd.s32 %s493, %s491
        %s495 = smul.addr %s494, 4
        %s496 = scalar_lea.vmem %s1, %s495
        %s497 = smul.u32 48, %s25
        %p498 = scmp.lt.s32.totalorder %s24, 0
        %s499 = scalar_select %p498, %s24, 0
        %s500 = scalar_lea.vmem %s2, %s499
        %p501 = scmp.lt.s32.totalorder %s24, 0
        %s502 = scalar_select %p501, %s24, 0
        %s503 = scalar_lea.vmem %s3, %s502
        %p504 = scmp.lt.s32.totalorder %s24, 0
        %s505 = scalar_select %p504, %s24, 0
        %s506 = scalar_lea.vmem %s4, %s505
        %p507 = scmp.lt.s32.totalorder %s24, 0
        %s508 = scalar_select %p507, %s24, 0
        %s509 = scalar_lea.vmem %s5, %s508
        %s510 = smul.u32 16, %s23
        %p511 = scmp.lt.s32.totalorder %s510, 15
        %s512 = scalar_select %p511, %s510, 15
        %p513 = scmp.lt.s32.totalorder %s24, 0
        %s514 = scalar_select %p513, %s24, 0
        %s515 = sadd.s32 %s514, %s512
        %s516 = smul.addr %s515, 8
        %s517 = scalar_lea.vmem %s6, %s516
        %s518 = smul.u32 16, %s23
        %s519 = smul.u32 16, %s23
        %p520 = scmp.lt.s32.totalorder %s519, 15
        %s521 = scalar_select %p520, %s519, 15
        %p522 = scmp.lt.s32.totalorder %s24, 0
        %s523 = scalar_select %p522, %s24, 0
        %s524 = sadd.s32 %s523, %s521
        %s525 = smul.addr %s524, 4
        %s526 = scalar_lea.vmem %s7, %s525
        %s527 = smul.u32 16, %s23
        %p528 = scmp.eq.s32.totalorder %s25, 0
        // Predicated region
        $region75: #{_lambda_.15} parent=69 // pred_check
          %p529 = pneg %p528
        $region76: #{_lambda_.15} parent=69 // pred_check_branch
          %531 = sbr.rel (%p529) target = $region78
        $region77: #{_lambda_.15} parent=69 // pred_region
          %532 = vst [vmem:[#allocation2] sm:$0xff] 0.0
          %533 = vst [vmem:[#allocation2 + $0x8] sm:$0xff] 0.0
          %534 = vst [vmem:[#allocation2 + $0x10] sm:$0xff] 0.0
          %535 = vst [vmem:[#allocation2 + $0x18] sm:$0xff] 0.0
          %536 = vst [vmem:[#allocation2 + $0x20] sm:$0xff] 0.0
          %537 = vst [vmem:[#allocation2 + $0x28] sm:$0xff] 0.0
          %538 = vst [vmem:[#allocation2 + $0x30] sm:$0xff] 0.0
          %539 = vst [vmem:[#allocation2 + $0x38] sm:$0xff] 0.0
          %540 = vst [vmem:[#allocation2 + $0x40] sm:$0xff] 0.0
          %541 = vst [vmem:[#allocation2 + $0x48] sm:$0xff] 0.0
          %542 = vst [vmem:[#allocation2 + $0x50] sm:$0xff] 0.0
          %543 = vst [vmem:[#allocation2 + $0x58] sm:$0xff] 0.0
          %544 = vst [vmem:[#allocation2 + $0x60] sm:$0xff] 0.0
          %545 = vst [vmem:[#allocation2 + $0x68] sm:$0xff] 0.0
          %546 = vst [vmem:[#allocation2 + $0x70] sm:$0xff] 0.0
          %547 = vst [vmem:[#allocation2 + $0x78] sm:$0xff] 0.0
        $region78: #{_lambda_.15} parent=69 // pred_fallthru
          _
        %v548 = vld [vmem:[#allocation2] sm:$0xff]
        %v549 = vld [vmem:[#allocation2 + $0x8] sm:$0xff]
        %v550 = vld [vmem:[#allocation2 + $0x10] sm:$0xff]
        %v551 = vld [vmem:[#allocation2 + $0x18] sm:$0xff]
        %v552 = vld [vmem:[#allocation2 + $0x20] sm:$0xff]
        %v553 = vld [vmem:[#allocation2 + $0x28] sm:$0xff]
        %v554 = vld [vmem:[#allocation2 + $0x30] sm:$0xff]
        %v555 = vld [vmem:[#allocation2 + $0x38] sm:$0xff]
        %v556 = vld [vmem:[#allocation2 + $0x40] sm:$0xff]
        %v557 = vld [vmem:[#allocation2 + $0x48] sm:$0xff]
        %v558 = vld [vmem:[#allocation2 + $0x50] sm:$0xff]
        %v559 = vld [vmem:[#allocation2 + $0x58] sm:$0xff]
        %v560 = vld [vmem:[#allocation2 + $0x60] sm:$0xff]
        %v561 = vld [vmem:[#allocation2 + $0x68] sm:$0xff]
        %v562 = vld [vmem:[#allocation2 + $0x70] sm:$0xff]
        %v563 = vld [vmem:[#allocation2 + $0x78] sm:$0xff]
        %v564 = vld [vmem:[%s427] sm:$0xff]
        %v565 = vld [vmem:[%s427 + $0x8] sm:$0xf]
        %v566 = vld [vmem:[%s427 + $0xc] sm:$0xff]
        %v567 = vld [vmem:[%s427 + $0x14] sm:$0xf]
        %v568 = vld [vmem:[%s427 + $0x18] sm:$0xff]
        %v569 = vld [vmem:[%s427 + $0x20] sm:$0xf]
        %v570 = vld [vmem:[%s427 + $0x24] sm:$0xff]
        %v571 = vld [vmem:[%s427 + $0x2c] sm:$0xf]
        %v572 = vld [vmem:[%s427 + $0x30] sm:$0xff]
        %v573 = vld [vmem:[%s427 + $0x38] sm:$0xf]
        %v574 = vld [vmem:[%s427 + $0x3c] sm:$0xff]
        %v575 = vld [vmem:[%s427 + $0x44] sm:$0xf]
        %v576 = vld [vmem:[%s427 + $0x48] sm:$0xff]
        %v577 = vld [vmem:[%s427 + $0x50] sm:$0xf]
        %v578 = vld [vmem:[%s427 + $0x54] sm:$0xff]
        %v579 = vld [vmem:[%s427 + $0x5c] sm:$0xf]
        %v580 = vld [vmem:[%s427 + $0x60] sm:$0xff]
        %v581 = vld [vmem:[%s427 + $0x68] sm:$0xf]
        %v582 = vld [vmem:[%s427 + $0x6c] sm:$0xff]
        %v583 = vld [vmem:[%s427 + $0x74] sm:$0xf]
        %v584 = vld [vmem:[%s427 + $0x78] sm:$0xff]
        %v585 = vld [vmem:[%s427 + $0x80] sm:$0xf]
        %v586 = vld [vmem:[%s427 + $0x84] sm:$0xff]
        %v587 = vld [vmem:[%s427 + $0x8c] sm:$0xf]
        %v588 = vld [vmem:[%s427 + $0x90] sm:$0xff]
        %v589 = vld [vmem:[%s427 + $0x98] sm:$0xf]
        %v590 = vld [vmem:[%s427 + $0x9c] sm:$0xff]
        %v591 = vld [vmem:[%s427 + $0xa4] sm:$0xf]
        %v592 = vld [vmem:[%s427 + $0xa8] sm:$0xff]
        %v593 = vld [vmem:[%s427 + $0xb0] sm:$0xf]
        %v594 = vld [vmem:[%s427 + $0xb4] sm:$0xff]
        %v595 = vld [vmem:[%s427 + $0xbc] sm:$0xf]
        %v596 = vld [vmem:[%s496] sm:$0xf]
        %v597 = vld [vmem:[%s496 + $0x4] sm:$0xf]
        %v598 = vld [vmem:[%s496 + $0x8] sm:$0xf]
        %v599 = vld [vmem:[%s496 + $0xc] sm:$0xf]
        %v600 = vld [vmem:[%s496 + $0x10] sm:$0xf]
        %v601 = vld [vmem:[%s496 + $0x14] sm:$0xf]
        %v602 = vld [vmem:[%s496 + $0x18] sm:$0xf]
        %v603 = vld [vmem:[%s496 + $0x1c] sm:$0xf]
        %v604 = vld [vmem:[%s496 + $0x20] sm:$0xf]
        %v605 = vld [vmem:[%s496 + $0x24] sm:$0xf]
        %v606 = vld [vmem:[%s496 + $0x28] sm:$0xf]
        %v607 = vld [vmem:[%s496 + $0x2c] sm:$0xf]
        %v608 = vld [vmem:[%s496 + $0x30] sm:$0xf]
        %v609 = vld [vmem:[%s496 + $0x34] sm:$0xf]
        %v610 = vld [vmem:[%s496 + $0x38] sm:$0xf]
        %v611 = vld [vmem:[%s496 + $0x3c] sm:$0xf]
        %v612 = vld [vmem:[%s496 + $0x40] sm:$0xf]
        %v613 = vld [vmem:[%s496 + $0x44] sm:$0xf]
        %v614 = vld [vmem:[%s496 + $0x48] sm:$0xf]
        %v615 = vld [vmem:[%s496 + $0x4c] sm:$0xf]
        %v616 = vld [vmem:[%s496 + $0x50] sm:$0xf]
        %v617 = vld [vmem:[%s496 + $0x54] sm:$0xf]
        %v618 = vld [vmem:[%s496 + $0x58] sm:$0xf]
        %v619 = vld [vmem:[%s496 + $0x5c] sm:$0xf]
        %v620 = vld [vmem:[%s496 + $0x60] sm:$0xf]
        %v621 = vld [vmem:[%s496 + $0x64] sm:$0xf]
        %v622 = vld [vmem:[%s496 + $0x68] sm:$0xf]
        %v623 = vld [vmem:[%s496 + $0x6c] sm:$0xf]
        %v624 = vld [vmem:[%s496 + $0x70] sm:$0xf]
        %v625 = vld [vmem:[%s496 + $0x74] sm:$0xf]
        %v626 = vld [vmem:[%s496 + $0x78] sm:$0xf]
        %v627 = vld [vmem:[%s496 + $0x7c] sm:$0xf]
        %v628 = vld [vmem:[%s496 + $0x80] sm:$0xf]
        %v629 = vld [vmem:[%s496 + $0x84] sm:$0xf]
        %v630 = vld [vmem:[%s496 + $0x88] sm:$0xf]
        %v631 = vld [vmem:[%s496 + $0x8c] sm:$0xf]
        %v632 = vld [vmem:[%s496 + $0x90] sm:$0xf]
        %v633 = vld [vmem:[%s496 + $0x94] sm:$0xf]
        %v634 = vld [vmem:[%s496 + $0x98] sm:$0xf]
        %v635 = vld [vmem:[%s496 + $0x9c] sm:$0xf]
        %v636 = vld [vmem:[%s496 + $0xa0] sm:$0xf]
        %v637 = vld [vmem:[%s496 + $0xa4] sm:$0xf]
        %v638 = vld [vmem:[%s496 + $0xa8] sm:$0xf]
        %v639 = vld [vmem:[%s496 + $0xac] sm:$0xf]
        %v640 = vld [vmem:[%s496 + $0xb0] sm:$0xf]
        %v641 = vld [vmem:[%s496 + $0xb4] sm:$0xf]
        %v642 = vld [vmem:[%s496 + $0xb8] sm:$0xf]
        %v643 = vld [vmem:[%s496 + $0xbc] sm:$0xf]
        %v676 = vunpack.c.l.b16 %v564
        %v677 = vunpack.c.h.b16 %v564
        %v678 = vunpack.c.l.b16 %v565
        %v679 = vunpack.c.l.b16 %v566
        %v680 = vunpack.c.h.b16 %v566
        %v681 = vunpack.c.l.b16 %v567
        %v682 = vunpack.c.l.b16 %v568
        %v683 = vunpack.c.h.b16 %v568
        %v684 = vunpack.c.l.b16 %v569
        %v685 = vunpack.c.l.b16 %v570
        %v686 = vunpack.c.h.b16 %v570
        %v687 = vunpack.c.l.b16 %v571
        %v688 = vunpack.c.l.b16 %v572
        %v689 = vunpack.c.h.b16 %v572
        %v690 = vunpack.c.l.b16 %v573
        %v691 = vunpack.c.l.b16 %v574
        %v692 = vunpack.c.h.b16 %v574
        %v693 = vunpack.c.l.b16 %v575
        %v694 = vunpack.c.l.b16 %v576
        %v695 = vunpack.c.h.b16 %v576
        %v696 = vunpack.c.l.b16 %v577
        %v697 = vunpack.c.l.b16 %v578
        %v698 = vunpack.c.h.b16 %v578
        %v699 = vunpack.c.l.b16 %v579
        %v700 = vunpack.c.l.b16 %v580
        %v701 = vunpack.c.h.b16 %v580
        %v702 = vunpack.c.l.b16 %v581
        %v703 = vunpack.c.l.b16 %v582
        %v704 = vunpack.c.h.b16 %v582
        %v705 = vunpack.c.l.b16 %v583
        %v706 = vunpack.c.l.b16 %v584
        %v707 = vunpack.c.h.b16 %v584
        %v708 = vunpack.c.l.b16 %v585
        %v709 = vunpack.c.l.b16 %v586
        %v710 = vunpack.c.h.b16 %v586
        %v711 = vunpack.c.l.b16 %v587
        %v712 = vunpack.c.l.b16 %v588
        %v713 = vunpack.c.h.b16 %v588
        %v714 = vunpack.c.l.b16 %v589
        %v715 = vunpack.c.l.b16 %v590
        %v716 = vunpack.c.h.b16 %v590
        %v717 = vunpack.c.l.b16 %v591
        %v718 = vunpack.c.l.b16 %v592
        %v719 = vunpack.c.h.b16 %v592
        %v720 = vunpack.c.l.b16 %v593
        %v721 = vunpack.c.l.b16 %v594
        %v722 = vunpack.c.h.b16 %v594
        %v723 = vunpack.c.l.b16 %v595
        %v724 = vpack.c.b16 %v679, %v676
        %v725 = vpack.c.b16 %v680, %v677
        %v726 = vpack.c.b16 %v681, %v678
        %v727 = vpack.c.b16 %v685, %v682
        %v728 = vpack.c.b16 %v686, %v683
        %v729 = vpack.c.b16 %v687, %v684
        %v730 = vpack.c.b16 %v691, %v688
        %v731 = vpack.c.b16 %v692, %v689
        %v732 = vpack.c.b16 %v693, %v690
        %v733 = vpack.c.b16 %v697, %v694
        %v734 = vpack.c.b16 %v698, %v695
        %v735 = vpack.c.b16 %v699, %v696
        %v736 = vpack.c.b16 %v703, %v700
        %v737 = vpack.c.b16 %v704, %v701
        %v738 = vpack.c.b16 %v705, %v702
        %v739 = vpack.c.b16 %v709, %v706
        %v740 = vpack.c.b16 %v710, %v707
        %v741 = vpack.c.b16 %v711, %v708
        %v742 = vpack.c.b16 %v715, %v712
        %v743 = vpack.c.b16 %v716, %v713
        %v744 = vpack.c.b16 %v717, %v714
        %v745 = vpack.c.b16 %v721, %v718
        %v746 = vpack.c.b16 %v722, %v719
        %v747 = vpack.c.b16 %v723, %v720
        %v820 = vunpack.c.l.b16 %v596
        %v821 = vunpack.c.l.b16 %v597
        %v822 = vunpack.c.l.b16 %v598
        %v823 = vunpack.c.l.b16 %v599
        %v824 = vunpack.c.l.b16 %v600
        %v825 = vunpack.c.l.b16 %v601
        %v826 = vunpack.c.l.b16 %v602
        %v827 = vunpack.c.l.b16 %v603
        %v828 = vunpack.c.l.b16 %v604
        %v829 = vunpack.c.l.b16 %v605
        %v830 = vunpack.c.l.b16 %v606
        %v831 = vunpack.c.l.b16 %v607
        %v832 = vunpack.c.l.b16 %v608
        %v833 = vunpack.c.l.b16 %v609
        %v834 = vunpack.c.l.b16 %v610
        %v835 = vunpack.c.l.b16 %v611
        %v836 = vunpack.c.l.b16 %v612
        %v837 = vunpack.c.l.b16 %v613
        %v838 = vunpack.c.l.b16 %v614
        %v839 = vunpack.c.l.b16 %v615
        %v840 = vunpack.c.l.b16 %v616
        %v841 = vunpack.c.l.b16 %v617
        %v842 = vunpack.c.l.b16 %v618
        %v843 = vunpack.c.l.b16 %v619
        %v844 = vunpack.c.l.b16 %v620
        %v845 = vunpack.c.l.b16 %v621
        %v846 = vunpack.c.l.b16 %v622
        %v847 = vunpack.c.l.b16 %v623
        %v848 = vunpack.c.l.b16 %v624
        %v849 = vunpack.c.l.b16 %v625
        %v850 = vunpack.c.l.b16 %v626
        %v851 = vunpack.c.l.b16 %v627
        %v852 = vunpack.c.l.b16 %v628
        %v853 = vunpack.c.l.b16 %v629
        %v854 = vunpack.c.l.b16 %v630
        %v855 = vunpack.c.l.b16 %v631
        %v856 = vunpack.c.l.b16 %v632
        %v857 = vunpack.c.l.b16 %v633
        %v858 = vunpack.c.l.b16 %v634
        %v859 = vunpack.c.l.b16 %v635
        %v860 = vunpack.c.l.b16 %v636
        %v861 = vunpack.c.l.b16 %v637
        %v862 = vunpack.c.l.b16 %v638
        %v863 = vunpack.c.l.b16 %v639
        %v864 = vunpack.c.l.b16 %v640
        %v865 = vunpack.c.l.b16 %v641
        %v866 = vunpack.c.l.b16 %v642
        %v867 = vunpack.c.l.b16 %v643
        %v868 = vpack.c.b16 %v821, %v820
        %v869 = vpack.c.b16 %v823, %v822
        %v870 = vpack.c.b16 %v825, %v824
        %v871 = vpack.c.b16 %v827, %v826
        %v872 = vpack.c.b16 %v829, %v828
        %v873 = vpack.c.b16 %v831, %v830
        %v874 = vpack.c.b16 %v833, %v832
        %v875 = vpack.c.b16 %v835, %v834
        %v876 = vpack.c.b16 %v837, %v836
        %v877 = vpack.c.b16 %v839, %v838
        %v878 = vpack.c.b16 %v841, %v840
        %v879 = vpack.c.b16 %v843, %v842
        %v880 = vpack.c.b16 %v845, %v844
        %v881 = vpack.c.b16 %v847, %v846
        %v882 = vpack.c.b16 %v849, %v848
        %v883 = vpack.c.b16 %v851, %v850
        %v884 = vpack.c.b16 %v853, %v852
        %v885 = vpack.c.b16 %v855, %v854
        %v886 = vpack.c.b16 %v857, %v856
        %v887 = vpack.c.b16 %v859, %v858
        %v888 = vpack.c.b16 %v861, %v860
        %v889 = vpack.c.b16 %v863, %v862
        %v890 = vpack.c.b16 %v865, %v864
        %v891 = vpack.c.b16 %v867, %v866
        %916 = vmatpush.bf16.msra.mxu0 %v875
        %917 = vmatpush.bf16.msra.mxu0 %v874
        %918 = vmatpush.bf16.msra.mxu0 %v873
        %919 = vmatpush.bf16.msra.mxu0 %v872
        %920 = vmatpush.bf16.msra.mxu0 %v871
        %921 = vmatpush.bf16.msra.mxu0 %v870
        %922 = vmatpush.bf16.msra.mxu0 %v869
        %923 = vmatpush.bf16.msra.mxu0 %v868
        %924 = vmatmul.bf16.gmra.mxu0 %v724
        %v925 = vpop.f32.mrf.mxu0
        %v926 = vadd.f32 0.0, %v925
        %v927 = vpop.f32.mrf.mxu0
        %v928 = vadd.f32 0.0, %v927
        %929 = vmatmul.bf16.gmra.mxu0 %v727
        %v930 = vpop.f32.mrf.mxu0
        %v931 = vadd.f32 0.0, %v930
        %v932 = vpop.f32.mrf.mxu0
        %v933 = vadd.f32 0.0, %v932
        %934 = vmatmul.bf16.gmra.mxu0 %v730
        %v935 = vpop.f32.mrf.mxu0
        %v936 = vadd.f32 0.0, %v935
        %v937 = vpop.f32.mrf.mxu0
        %v938 = vadd.f32 0.0, %v937
        %939 = vmatmul.bf16.gmra.mxu0 %v733
        %v940 = vpop.f32.mrf.mxu0
        %v941 = vadd.f32 0.0, %v940
        %v942 = vpop.f32.mrf.mxu0
        %v943 = vadd.f32 0.0, %v942
        %944 = vmatmul.bf16.gmra.mxu0 %v736
        %v945 = vpop.f32.mrf.mxu0
        %v946 = vadd.f32 0.0, %v945
        %v947 = vpop.f32.mrf.mxu0
        %v948 = vadd.f32 0.0, %v947
        %949 = vmatmul.bf16.gmra.mxu0 %v739
        %v950 = vpop.f32.mrf.mxu0
        %v951 = vadd.f32 0.0, %v950
        %v952 = vpop.f32.mrf.mxu0
        %v953 = vadd.f32 0.0, %v952
        %954 = vmatmul.bf16.gmra.mxu0 %v742
        %v955 = vpop.f32.mrf.mxu0
        %v956 = vadd.f32 0.0, %v955
        %v957 = vpop.f32.mrf.mxu0
        %v958 = vadd.f32 0.0, %v957
        %959 = vmatmul.bf16.gmra.mxu0 %v745
        %v960 = vpop.f32.mrf.mxu0
        %v961 = vadd.f32 0.0, %v960
        %v962 = vpop.f32.mrf.mxu0
        %v963 = vadd.f32 0.0, %v962
        %964 = vdwg.mxu0
        %965 = vmatpush.bf16.msra.mxu0 %v883
        %966 = vmatpush.bf16.msra.mxu0 %v882
        %967 = vmatpush.bf16.msra.mxu0 %v881
        %968 = vmatpush.bf16.msra.mxu0 %v880
        %969 = vmatpush.bf16.msra.mxu0 %v879
        %970 = vmatpush.bf16.msra.mxu0 %v878
        %971 = vmatpush.bf16.msra.mxu0 %v877
        %972 = vmatpush.bf16.msra.mxu0 %v876
        %973 = vmatmul.bf16.gmra.mxu0 %v725
        %v974 = vpop.f32.mrf.mxu0
        %v975 = vadd.f32 %v926, %v974
        %v976 = vpop.f32.mrf.mxu0
        %v977 = vadd.f32 %v928, %v976
        %978 = vmatmul.bf16.gmra.mxu0 %v728
        %v979 = vpop.f32.mrf.mxu0
        %v980 = vadd.f32 %v931, %v979
        %v981 = vpop.f32.mrf.mxu0
        %v982 = vadd.f32 %v933, %v981
        %983 = vmatmul.bf16.gmra.mxu0 %v731
        %v984 = vpop.f32.mrf.mxu0
        %v985 = vadd.f32 %v936, %v984
        %v986 = vpop.f32.mrf.mxu0
        %v987 = vadd.f32 %v938, %v986
        %988 = vmatmul.bf16.gmra.mxu0 %v734
        %v989 = vpop.f32.mrf.mxu0
        %v990 = vadd.f32 %v941, %v989
        %v991 = vpop.f32.mrf.mxu0
        %v992 = vadd.f32 %v943, %v991
        %993 = vmatmul.bf16.gmra.mxu0 %v737
        %v994 = vpop.f32.mrf.mxu0
        %v995 = vadd.f32 %v946, %v994
        %v996 = vpop.f32.mrf.mxu0
        %v997 = vadd.f32 %v948, %v996
        %998 = vmatmul.bf16.gmra.mxu0 %v740
        %v999 = vpop.f32.mrf.mxu0
        %v1000 = vadd.f32 %v951, %v999
        %v1001 = vpop.f32.mrf.mxu0
        %v1002 = vadd.f32 %v953, %v1001
        %1003 = vmatmul.bf16.gmra.mxu0 %v743
        %v1004 = vpop.f32.mrf.mxu0
        %v1005 = vadd.f32 %v956, %v1004
        %v1006 = vpop.f32.mrf.mxu0
        %v1007 = vadd.f32 %v958, %v1006
        %1008 = vmatmul.bf16.gmra.mxu0 %v746
        %v1009 = vpop.f32.mrf.mxu0
        %v1010 = vadd.f32 %v961, %v1009
        %v1011 = vpop.f32.mrf.mxu0
        %v1012 = vadd.f32 %v963, %v1011
        %1013 = vdwg.mxu0
        %1014 = vmatpush.bf16.msra.mxu0 %v891
        %1015 = vmatpush.bf16.msra.mxu0 %v890
        %1016 = vmatpush.bf16.msra.mxu0 %v889
        %1017 = vmatpush.bf16.msra.mxu0 %v888
        %1018 = vmatpush.bf16.msra.mxu0 %v887
        %1019 = vmatpush.bf16.msra.mxu0 %v886
        %1020 = vmatpush.bf16.msra.mxu0 %v885
        %1021 = vmatpush.bf16.msra.mxu0 %v884
        %1022 = vmatmul.bf16.gmra.mxu0 %v726
        %v1023 = vpop.f32.mrf.mxu0
        %v1024 = vadd.f32 %v975, %v1023
        %v1025 = vpop.f32.mrf.mxu0
        %v1026 = vadd.f32 %v977, %v1025
        %1027 = vmatmul.bf16.gmra.mxu0 %v729
        %v1028 = vpop.f32.mrf.mxu0
        %v1029 = vadd.f32 %v980, %v1028
        %v1030 = vpop.f32.mrf.mxu0
        %v1031 = vadd.f32 %v982, %v1030
        %1032 = vmatmul.bf16.gmra.mxu0 %v732
        %v1033 = vpop.f32.mrf.mxu0
        %v1034 = vadd.f32 %v985, %v1033
        %v1035 = vpop.f32.mrf.mxu0
        %v1036 = vadd.f32 %v987, %v1035
        %1037 = vmatmul.bf16.gmra.mxu0 %v735
        %v1038 = vpop.f32.mrf.mxu0
        %v1039 = vadd.f32 %v990, %v1038
        %v1040 = vpop.f32.mrf.mxu0
        %v1041 = vadd.f32 %v992, %v1040
        %1042 = vmatmul.bf16.gmra.mxu0 %v738
        %v1043 = vpop.f32.mrf.mxu0
        %v1044 = vadd.f32 %v995, %v1043
        %v1045 = vpop.f32.mrf.mxu0
        %v1046 = vadd.f32 %v997, %v1045
        %1047 = vmatmul.bf16.gmra.mxu0 %v741
        %v1048 = vpop.f32.mrf.mxu0
        %v1049 = vadd.f32 %v1000, %v1048
        %v1050 = vpop.f32.mrf.mxu0
        %v1051 = vadd.f32 %v1002, %v1050
        %1052 = vmatmul.bf16.gmra.mxu0 %v744
        %v1053 = vpop.f32.mrf.mxu0
        %v1054 = vadd.f32 %v1005, %v1053
        %v1055 = vpop.f32.mrf.mxu0
        %v1056 = vadd.f32 %v1007, %v1055
        %1057 = vmatmul.bf16.gmra.mxu0 %v747
        %v1058 = vpop.f32.mrf.mxu0
        %v1059 = vadd.f32 %v1010, %v1058
        %v1060 = vpop.f32.mrf.mxu0
        %v1061 = vadd.f32 %v1012, %v1060
        %1062 = vdwg.mxu0
        %v1063 = vadd.f32 %v548, %v1024
        %v1064 = vadd.f32 %v549, %v1026
        %v1065 = vadd.f32 %v550, %v1029
        %v1066 = vadd.f32 %v551, %v1031
        %v1067 = vadd.f32 %v552, %v1034
        %v1068 = vadd.f32 %v553, %v1036
        %v1069 = vadd.f32 %v554, %v1039
        %v1070 = vadd.f32 %v555, %v1041
        %v1071 = vadd.f32 %v556, %v1044
        %v1072 = vadd.f32 %v557, %v1046
        %v1073 = vadd.f32 %v558, %v1049
        %v1074 = vadd.f32 %v559, %v1051
        %v1075 = vadd.f32 %v560, %v1054
        %v1076 = vadd.f32 %v561, %v1056
        %v1077 = vadd.f32 %v562, %v1059
        %v1078 = vadd.f32 %v563, %v1061
        %1079 = vst [vmem:[#allocation2] sm:$0xff] %v1063
        %1080 = vst [vmem:[#allocation2 + $0x8] sm:$0xff] %v1064
        %1081 = vst [vmem:[#allocation2 + $0x10] sm:$0xff] %v1065
        %1082 = vst [vmem:[#allocation2 + $0x18] sm:$0xff] %v1066
        %1083 = vst [vmem:[#allocation2 + $0x20] sm:$0xff] %v1067
        %1084 = vst [vmem:[#allocation2 + $0x28] sm:$0xff] %v1068
        %1085 = vst [vmem:[#allocation2 + $0x30] sm:$0xff] %v1069
        %1086 = vst [vmem:[#allocation2 + $0x38] sm:$0xff] %v1070
        %1087 = vst [vmem:[#allocation2 + $0x40] sm:$0xff] %v1071
        %1088 = vst [vmem:[#allocation2 + $0x48] sm:$0xff] %v1072
        %1089 = vst [vmem:[#allocation2 + $0x50] sm:$0xff] %v1073
        %1090 = vst [vmem:[#allocation2 + $0x58] sm:$0xff] %v1074
        %1091 = vst [vmem:[#allocation2 + $0x60] sm:$0xff] %v1075
        %1092 = vst [vmem:[#allocation2 + $0x68] sm:$0xff] %v1076
        %1093 = vst [vmem:[#allocation2 + $0x70] sm:$0xff] %v1077
        %1094 = vst [vmem:[#allocation2 + $0x78] sm:$0xff] %v1078
        %p1095 = scmp.eq.s32.totalorder %s25, 2
        // Predicated region
        $region79: #{_lambda_.15} parent=69 // pred_check
          %p1096 = pneg %p1095
        $region80: #{_lambda_.15} parent=69 // pred_check_branch
          %1098 = sbr.rel (%p1096) target = $region82
        $region81: #{_lambda_.15} parent=69 // pred_region
          %v1099 = vld [vmem:[#allocation2] sm:$0xff]
          %v1100 = vld [vmem:[#allocation2 + $0x8] sm:$0xff]
          %v1101 = vld [vmem:[#allocation2 + $0x10] sm:$0xff]
          %v1102 = vld [vmem:[#allocation2 + $0x18] sm:$0xff]
          %v1103 = vld [vmem:[#allocation2 + $0x20] sm:$0xff]
          %v1104 = vld [vmem:[#allocation2 + $0x28] sm:$0xff]
          %v1105 = vld [vmem:[#allocation2 + $0x30] sm:$0xff]
          %v1106 = vld [vmem:[#allocation2 + $0x38] sm:$0xff]
          %v1107 = vld [vmem:[#allocation2 + $0x40] sm:$0xff]
          %v1108 = vld [vmem:[#allocation2 + $0x48] sm:$0xff]
          %v1109 = vld [vmem:[#allocation2 + $0x50] sm:$0xff]
          %v1110 = vld [vmem:[#allocation2 + $0x58] sm:$0xff]
          %v1111 = vld [vmem:[#allocation2 + $0x60] sm:$0xff]
          %v1112 = vld [vmem:[#allocation2 + $0x68] sm:$0xff]
          %v1113 = vld [vmem:[#allocation2 + $0x70] sm:$0xff]
          %v1114 = vld [vmem:[#allocation2 + $0x78] sm:$0xff]
          %v1115 = vld [vmem:[%s517] sm:$0xff]
          %v1116 = vld [vmem:[%s517 + $0x8] sm:$0xff]
          %v1117 = vld [vmem:[%s517 + $0x10] sm:$0xff]
          %v1118 = vld [vmem:[%s517 + $0x18] sm:$0xff]
          %v1119 = vld [vmem:[%s517 + $0x20] sm:$0xff]
          %v1120 = vld [vmem:[%s517 + $0x28] sm:$0xff]
          %v1121 = vld [vmem:[%s517 + $0x30] sm:$0xff]
          %v1122 = vld [vmem:[%s517 + $0x38] sm:$0xff]
          %v1123 = vld [vmem:[%s517 + $0x40] sm:$0xff]
          %v1124 = vld [vmem:[%s517 + $0x48] sm:$0xff]
          %v1125 = vld [vmem:[%s517 + $0x50] sm:$0xff]
          %v1126 = vld [vmem:[%s517 + $0x58] sm:$0xff]
          %v1127 = vld [vmem:[%s517 + $0x60] sm:$0xff]
          %v1128 = vld [vmem:[%s517 + $0x68] sm:$0xff]
          %v1129 = vld [vmem:[%s517 + $0x70] sm:$0xff]
          %v1130 = vld [vmem:[%s517 + $0x78] sm:$0xff]
          %v1131 = vadd.f32 %v1099, %v1115
          %v1132 = vadd.f32 %v1100, %v1116
          %v1133 = vadd.f32 %v1101, %v1117
          %v1134 = vadd.f32 %v1102, %v1118
          %v1135 = vadd.f32 %v1103, %v1119
          %v1136 = vadd.f32 %v1104, %v1120
          %v1137 = vadd.f32 %v1105, %v1121
          %v1138 = vadd.f32 %v1106, %v1122
          %v1139 = vadd.f32 %v1107, %v1123
          %v1140 = vadd.f32 %v1108, %v1124
          %v1141 = vadd.f32 %v1109, %v1125
          %v1142 = vadd.f32 %v1110, %v1126
          %v1143 = vadd.f32 %v1111, %v1127
          %v1144 = vadd.f32 %v1112, %v1128
          %v1145 = vadd.f32 %v1113, %v1129
          %v1146 = vadd.f32 %v1114, %v1130
          %v1147 = vld [vmem:[%s500] sm:$0x1]
          %v1149 = vperm.slane %v1147, 0
          %v1151 = vmul.f32 %v1131, %v1149
          %v1152 = vmul.f32 %v1132, %v1149
          %v1153 = vmul.f32 %v1133, %v1149
          %v1154 = vmul.f32 %v1134, %v1149
          %v1155 = vmul.f32 %v1135, %v1149
          %v1156 = vmul.f32 %v1136, %v1149
          %v1157 = vmul.f32 %v1137, %v1149
          %v1158 = vmul.f32 %v1138, %v1149
          %v1159 = vmul.f32 %v1139, %v1149
          %v1160 = vmul.f32 %v1140, %v1149
          %v1161 = vmul.f32 %v1141, %v1149
          %v1162 = vmul.f32 %v1142, %v1149
          %v1163 = vmul.f32 %v1143, %v1149
          %v1164 = vmul.f32 %v1144, %v1149
          %v1165 = vmul.f32 %v1145, %v1149
          %v1166 = vmul.f32 %v1146, %v1149
          %v1167 = vld [vmem:[%s503] sm:$0x1]
          %v1169 = vperm.slane %v1167, 0
          %v1171 = vadd.f32 %v1151, %v1169
          %v1172 = vadd.f32 %v1152, %v1169
          %v1173 = vadd.f32 %v1153, %v1169
          %v1174 = vadd.f32 %v1154, %v1169
          %v1175 = vadd.f32 %v1155, %v1169
          %v1176 = vadd.f32 %v1156, %v1169
          %v1177 = vadd.f32 %v1157, %v1169
          %v1178 = vadd.f32 %v1158, %v1169
          %v1179 = vadd.f32 %v1159, %v1169
          %v1180 = vadd.f32 %v1160, %v1169
          %v1181 = vadd.f32 %v1161, %v1169
          %v1182 = vadd.f32 %v1162, %v1169
          %v1183 = vadd.f32 %v1163, %v1169
          %v1184 = vadd.f32 %v1164, %v1169
          %v1185 = vadd.f32 %v1165, %v1169
          %v1186 = vadd.f32 %v1166, %v1169
          %v1187 = vld [vmem:[%s506] sm:$0x1]
          %v1189 = vperm.slane %v1187, 0
          %v1191 = vmul.f32 %v1171, %v1189
          %v1192 = vmul.f32 %v1172, %v1189
          %v1193 = vmul.f32 %v1173, %v1189
          %v1194 = vmul.f32 %v1174, %v1189
          %v1195 = vmul.f32 %v1175, %v1189
          %v1196 = vmul.f32 %v1176, %v1189
          %v1197 = vmul.f32 %v1177, %v1189
          %v1198 = vmul.f32 %v1178, %v1189
          %v1199 = vmul.f32 %v1179, %v1189
          %v1200 = vmul.f32 %v1180, %v1189
          %v1201 = vmul.f32 %v1181, %v1189
          %v1202 = vmul.f32 %v1182, %v1189
          %v1203 = vmul.f32 %v1183, %v1189
          %v1204 = vmul.f32 %v1184, %v1189
          %v1205 = vmul.f32 %v1185, %v1189
          %v1206 = vmul.f32 %v1186, %v1189
          %v1207 = vld [vmem:[%s509] sm:$0x1]
          %v1209 = vperm.slane %v1207, 0
          %v1211 = vadd.f32 %v1191, %v1209
          %v1212 = vadd.f32 %v1192, %v1209
          %v1213 = vadd.f32 %v1193, %v1209
          %v1214 = vadd.f32 %v1194, %v1209
          %v1215 = vadd.f32 %v1195, %v1209
          %v1216 = vadd.f32 %v1196, %v1209
          %v1217 = vadd.f32 %v1197, %v1209
          %v1218 = vadd.f32 %v1198, %v1209
          %v1219 = vadd.f32 %v1199, %v1209
          %v1220 = vadd.f32 %v1200, %v1209
          %v1221 = vadd.f32 %v1201, %v1209
          %v1222 = vadd.f32 %v1202, %v1209
          %v1223 = vadd.f32 %v1203, %v1209
          %v1224 = vadd.f32 %v1204, %v1209
          %v1225 = vadd.f32 %v1205, %v1209
          %v1226 = vadd.f32 %v1206, %v1209
          %v1227 = vmax.f32 %v1211, 0.0
          %v1228 = vmax.f32 %v1212, 0.0
          %v1229 = vmax.f32 %v1213, 0.0
          %v1230 = vmax.f32 %v1214, 0.0
          %v1231 = vmax.f32 %v1215, 0.0
          %v1232 = vmax.f32 %v1216, 0.0
          %v1233 = vmax.f32 %v1217, 0.0
          %v1234 = vmax.f32 %v1218, 0.0
          %v1235 = vmax.f32 %v1219, 0.0
          %v1236 = vmax.f32 %v1220, 0.0
          %v1237 = vmax.f32 %v1221, 0.0
          %v1238 = vmax.f32 %v1222, 0.0
          %v1239 = vmax.f32 %v1223, 0.0
          %v1240 = vmax.f32 %v1224, 0.0
          %v1241 = vmax.f32 %v1225, 0.0
          %v1242 = vmax.f32 %v1226, 0.0
          %v1243 = vpack.c.bf16 %v1227, %v1227
          %v1244 = vpack.c.bf16 %v1228, %v1228
          %v1245 = vpack.c.bf16 %v1229, %v1229
          %v1246 = vpack.c.bf16 %v1230, %v1230
          %v1247 = vpack.c.bf16 %v1231, %v1231
          %v1248 = vpack.c.bf16 %v1232, %v1232
          %v1249 = vpack.c.bf16 %v1233, %v1233
          %v1250 = vpack.c.bf16 %v1234, %v1234
          %v1251 = vpack.c.bf16 %v1235, %v1235
          %v1252 = vpack.c.bf16 %v1236, %v1236
          %v1253 = vpack.c.bf16 %v1237, %v1237
          %v1254 = vpack.c.bf16 %v1238, %v1238
          %v1255 = vpack.c.bf16 %v1239, %v1239
          %v1256 = vpack.c.bf16 %v1240, %v1240
          %v1257 = vpack.c.bf16 %v1241, %v1241
          %v1258 = vpack.c.bf16 %v1242, %v1242
          %1259 = vst [vmem:[%s526] sm:$0xf] %v1243
          %1260 = vst [vmem:[%s526 + $0x4] sm:$0xf] %v1244
          %1261 = vst [vmem:[%s526 + $0x8] sm:$0xf] %v1245
          %1262 = vst [vmem:[%s526 + $0xc] sm:$0xf] %v1246
          %1263 = vst [vmem:[%s526 + $0x10] sm:$0xf] %v1247
          %1264 = vst [vmem:[%s526 + $0x14] sm:$0xf] %v1248
          %1265 = vst [vmem:[%s526 + $0x18] sm:$0xf] %v1249
          %1266 = vst [vmem:[%s526 + $0x1c] sm:$0xf] %v1250
          %1267 = vst [vmem:[%s526 + $0x20] sm:$0xf] %v1251
          %1268 = vst [vmem:[%s526 + $0x24] sm:$0xf] %v1252
          %1269 = vst [vmem:[%s526 + $0x28] sm:$0xf] %v1253
          %1270 = vst [vmem:[%s526 + $0x2c] sm:$0xf] %v1254
          %1271 = vst [vmem:[%s526 + $0x30] sm:$0xf] %v1255
          %1272 = vst [vmem:[%s526 + $0x34] sm:$0xf] %v1256
          %1273 = vst [vmem:[%s526 + $0x38] sm:$0xf] %v1257
          %1274 = vst [vmem:[%s526 + $0x3c] sm:$0xf] %v1258
        $region82: #{_lambda_.15} parent=69 // pred_fallthru
          _
        %s1275 = smul.u32 16, %s23
        %p1276 = scmp.lt.s32.totalorder %s1275, 15
        %s1277 = scalar_select %p1276, %s1275, 15
        %p1278 = scmp.lt.s32.totalorder %s24, 0
        %s1279 = scalar_select %p1278, %s24, 0
        %s1280 = sadd.s32 %s1279, %s1277
        %s1281 = smul.addr %s1280, 4
        %s1282 = scalar_lea.vmem %s7, %s1281
        // Predicated region
        $region83: #{_lambda_.15} parent=69 // pred_check
          %p1283 = pneg %p245
        $region84: #{_lambda_.15} parent=69 // pred_check_branch
          %1285 = sbr.rel (%p1283) target = $region86
        $region85: #{_lambda_.15} parent=69 // pred_region
          %s1286 = smul.u32 16, %s23
        $region86: #{_lambda_.15} parent=69 // pred_fallthru
          _
        // Predicated region
        $region87: #{_lambda_.15} parent=69 // pred_check
          %p1287 = pneg %p245
        $region88: #{_lambda_.15} parent=69 // pred_check_branch
          %1289 = sbr.rel (%p1287) target = $region90
        $region89: #{_lambda_.15} parent=69 // pred_region
          %s1290 = smul.u32 16, %s23
          %p1291 = scmp.lt.s32.totalorder %s1290, 15
          %s1292 = scalar_select %p1291, %s1290, 15
          %p1293 = scmp.lt.s32.totalorder %s24, 0
          %s1294 = scalar_select %p1293, %s24, 0
          %s1295 = sadd.s32 %s1294, %s1292
          %s1296 = smul.addr %s1295, 4
          %s1297 = scalar_lea.vmem %s7, %s1296
        $region90: #{_lambda_.15} parent=69 // pred_fallthru
          _
      $region70: #{_lambda_.15} parent=5 // pred_fallthru
        _
      %p1298 = scmp.le.s32.totalorder 2, %s13
      // Predicated region
      $region91: #{_lambda_.15} parent=5 // pred_check
        %p1299 = pneg %p1298
      $region92: #{_lambda_.15} parent=5 // pred_check_branch
        %1301 = sbr.rel (%p1299) target = $region94
      $region93: #{_lambda_.15} parent=5 // pred_region
        %s1302 = ssub.s32 %s13, 2
      $region94: #{_lambda_.15} parent=5 // pred_fallthru
        _
    $region6: #{_lambda_.15} parent=1 // loop_footer
      %s17 = sadd.s32 1, %s13
    $region7: #{_lambda_.15} parent=1 // loop_footer_branch
      %12 = sbr.rel target = $region3
    $region8: #{_lambda_.15} parent=1 // loop_exit
      _

// kernel: _lambda_.17
$region0: #{_lambda_.17}
  #allocation0 [shape = 'u32[]', space=smem, size = 0x4, offset = 0x4, fixed_abs, tag = 'smem constant byte address 0x4 - core index']
  #allocation1 [shape = 'u32[72,128]{1,0:T(1,128)}', space=vmem, size = 0x9000, scoped, tag = 'internal scratch']
  #allocation2 [shape = 'f32[32,128]{1,0:T(8,128)}', space=vmem, size = 0x4000, scoped, tag = 'scratch operand']
  %s0 = inlined_call_operand.vmem [shape: bf16[32,1152], index: 0, kind: input, shape index: {}]
  %s1 = inlined_call_operand.vmem [shape: bf16[1152,128], index: 1, kind: input, shape index: {}]
  %s2 = inlined_call_operand.vmem [shape: f32[1,128], index: 2, kind: input, shape index: {}]
  %s3 = inlined_call_operand.vmem [shape: f32[1,128], index: 3, kind: input, shape index: {}]
  %s4 = inlined_call_operand.vmem [shape: bf16[32,128], index: 4, kind: output, shape index: {}]
  %s5 = sld [smem:[#allocation0]]
  $region83: #{_lambda_.17} parent=0
    _
  %s7 = ssub.s32 1, %s5
  %s8 = scalar_select 0, %s7, %s5
  $region1: #{_lambda_.17} parent=0
    #allocation3 [shape = 'u8[49152]{0}', space=vmem, size = 0xc000, scoped, tag = 'input window, operand 0']
    loop: start=0, step=1, limit=5
    $region2: #{_lambda_.17} parent=1 // loop_pre_header
      _
    $region3: #{_lambda_.17} parent=1 // loop_header
      %s10 = sphi 0, %s14
      %p11 = scmp.ge.s32.totalorder %s10, 5
      %s17 = sphi 0, %s36
      %s18 = sphi 0, %s32
      %s19 = sphi 0, %s28
      %s20 = sphi 0, %s17
      %s21 = sphi 0, %s18
      %s22 = sphi 0, %s19
      %s23 = sphi 0, %s20
      %s24 = sphi 0, %s21
      %s25 = sphi 0, %s22
      %s41 = sphi 0, %s43
      %s44 = sphi 0, %s41
      %s45 = sphi 0, %s44
      %s61 = sphi 0, %s45
      %s69 = sphi 0, %s71
      %s72 = sphi 0, %s69
      %s73 = sphi 0, %s72
      %s89 = sphi 0, %s73
      %s95 = sphi 0, %s97
      %s98 = sphi 0, %s95
      %s99 = sphi 0, %s98
      %s115 = sphi 0, %s99
      %s121 = sphi 0, %s123
      %s124 = sphi 0, %s121
      %s125 = sphi 0, %s124
      %s141 = sphi 0, %s125
      %s149 = sphi 0, %s151
      %s152 = sphi 0, %s149
      %s153 = sphi 0, %s152
      %s169 = sphi 0, %s153
    $region4: #{_lambda_.17} parent=1 // loop_header_branch
      %13 = sbr.rel (%p11) target = $region8
    $region5: #{_lambda_.17} parent=1 // loop_body
      %s15 = ssub.s32 %s10, 1
      %s16 = ssub.s32 %s10, 2
      %s26 = sadd.s32 1, %s19
      %p27 = scmp.ge.s32.totalorder %s26, 3
      %s28 = scalar_select %p27, 0, %s26
      %s29 = sadd.s32 1, %s18
      %s30 = scalar_select %p27, %s29, %s18
      %p31 = scmp.ge.s32.totalorder %s30, 1
      %s32 = scalar_select %p31, 0, %s30
      %s33 = sadd.s32 1, %s17
      %s34 = scalar_select %p31, %s33, %s17
      %p35 = scmp.ge.s32.totalorder %s34, 1
      %s36 = scalar_select %p35, 0, %s34
      %s37 = ssub.s32 %s17, %s36
      %s38 = ssub.s32 %s19, %s28
      %s39 = sor.u32 %s37, %s38
      %p40 = scmp.eq.s32.totalorder %s39, 0
      %s42 = sadd.s32 %s41, 1
      %s43 = scalar_select %p40, %s41, %s42
      %p46 = pneg %p40
      %p47 = scmp.eq.s32.totalorder %s10, 2
      %p48 = por %p46, %p47
      %p49 = scmp.ne.s32.totalorder %s41, %s44
      %p50 = scmp.eq.s32.totalorder %s10, 0
      %p51 = por %p49, %p50
      %p52 = scmp.ne.s32.totalorder %s41, %s44
      %p53 = scmp.eq.s32.totalorder %s15, 2
      %p54 = por %p52, %p53
      %p55 = scmp.ne.s32.totalorder %s44, %s45
      %p56 = scmp.eq.s32.totalorder %s15, 0
      %p57 = por %p55, %p56
      %p58 = scmp.ne.s32.totalorder %s44, %s45
      %p59 = scmp.eq.s32.totalorder %s16, 2
      %p60 = por %p58, %p59
      %p62 = scmp.ne.s32.totalorder %s45, %s61
      %p63 = scmp.eq.s32.totalorder %s16, 0
      %p64 = por %p62, %p63
      %s65 = ssub.s32 %s19, %s28
      %s66 = ssub.s32 %s18, %s32
      %s67 = sor.u32 %s65, %s66
      %p68 = scmp.eq.s32.totalorder %s67, 0
      %s70 = sadd.s32 %s69, 1
      %s71 = scalar_select %p68, %s69, %s70
      %p74 = pneg %p68
      %p75 = scmp.eq.s32.totalorder %s10, 2
      %p76 = por %p74, %p75
      %p77 = scmp.ne.s32.totalorder %s69, %s72
      %p78 = scmp.eq.s32.totalorder %s10, 0
      %p79 = por %p77, %p78
      %p80 = scmp.ne.s32.totalorder %s69, %s72
      %p81 = scmp.eq.s32.totalorder %s15, 2
      %p82 = por %p80, %p81
      %p83 = scmp.ne.s32.totalorder %s72, %s73
      %p84 = scmp.eq.s32.totalorder %s15, 0
      %p85 = por %p83, %p84
      %p86 = scmp.ne.s32.totalorder %s72, %s73
      %p87 = scmp.eq.s32.totalorder %s16, 2
      %p88 = por %p86, %p87
      %p90 = scmp.ne.s32.totalorder %s73, %s89
      %p91 = scmp.eq.s32.totalorder %s16, 0
      %p92 = por %p90, %p91
      %s93 = ssub.s32 %s18, %s32
      %p94 = scmp.eq.s32.totalorder %s93, 0
      %s96 = sadd.s32 %s95, 1
      %s97 = scalar_select %p94, %s95, %s96
      %p100 = pneg %p94
      %p101 = scmp.eq.s32.totalorder %s10, 2
      %p102 = por %p100, %p101
      %p103 = scmp.ne.s32.totalorder %s95, %s98
      %p104 = scmp.eq.s32.totalorder %s10, 0
      %p105 = por %p103, %p104
      %p106 = scmp.ne.s32.totalorder %s95, %s98
      %p107 = scmp.eq.s32.totalorder %s15, 2
      %p108 = por %p106, %p107
      %p109 = scmp.ne.s32.totalorder %s98, %s99
      %p110 = scmp.eq.s32.totalorder %s15, 0
      %p111 = por %p109, %p110
      %p112 = scmp.ne.s32.totalorder %s98, %s99
      %p113 = scmp.eq.s32.totalorder %s16, 2
      %p114 = por %p112, %p113
      %p116 = scmp.ne.s32.totalorder %s99, %s115
      %p117 = scmp.eq.s32.totalorder %s16, 0
      %p118 = por %p116, %p117
      %s119 = ssub.s32 %s18, %s32
      %p120 = scmp.eq.s32.totalorder %s119, 0
      %s122 = sadd.s32 %s121, 1
      %s123 = scalar_select %p120, %s121, %s122
      %p126 = pneg %p120
      %p127 = scmp.eq.s32.totalorder %s10, 2
      %p128 = por %p126, %p127
      %p129 = scmp.ne.s32.totalorder %s121, %s124
      %p130 = scmp.eq.s32.totalorder %s10, 0
      %p131 = por %p129, %p130
      %p132 = scmp.ne.s32.totalorder %s121, %s124
      %p133 = scmp.eq.s32.totalorder %s15, 2
      %p134 = por %p132, %p133
      %p135 = scmp.ne.s32.totalorder %s124, %s125
      %p136 = scmp.eq.s32.totalorder %s15, 0
      %p137 = por %p135, %p136
      %p138 = scmp.ne.s32.totalorder %s124, %s125
      %p139 = scmp.eq.s32.totalorder %s16, 2
      %p140 = por %p138, %p139
      %p142 = scmp.ne.s32.totalorder %s125, %s141
      %p143 = scmp.eq.s32.totalorder %s16, 0
      %p144 = por %p142, %p143
      %s145 = ssub.s32 %s17, %s36
      %s146 = ssub.s32 %s18, %s32
      %s147 = sor.u32 %s145, %s146
      %p148 = scmp.eq.s32.totalorder %s147, 0
      %s150 = sadd.s32 %s149, 1
      %s151 = scalar_select %p148, %s149, %s150
      %p154 = pneg %p148
      %p155 = scmp.eq.s32.totalorder %s10, 2
      %p156 = por %p154, %p155
      %p157 = scmp.ne.s32.totalorder %s149, %s152
      %p158 = scmp.eq.s32.totalorder %s10, 0
      %p159 = por %p157, %p158
      %p160 = scmp.ne.s32.totalorder %s149, %s152
      %p161 = scmp.eq.s32.totalorder %s15, 2
      %p162 = por %p160, %p161
      %p163 = scmp.ne.s32.totalorder %s152, %s153
      %p164 = scmp.eq.s32.totalorder %s15, 0
      %p165 = por %p163, %p164
      %p166 = scmp.ne.s32.totalorder %s152, %s153
      %p167 = scmp.eq.s32.totalorder %s16, 2
      %p168 = por %p166, %p167
      %p170 = scmp.ne.s32.totalorder %s153, %s169
      %p171 = scmp.eq.s32.totalorder %s16, 0
      %p172 = por %p170, %p171
      %p173 = scmp.le.s32.totalorder 1, %s10
      %p174 = scmp.lt.s32.totalorder %s10, 4
      %p175 = pnand %p173, %p174
      %p176 = pneg %p175
      // Predicated region
      $region9: #{_lambda_.17} parent=5 // pred_check
        _
      $region10: #{_lambda_.17} parent=5 // pred_check_branch
        %178 = sbr.rel (%p175) target = $region12
      $region11: #{_lambda_.17} parent=5 // pred_region
        %s179 = ssub.s32 %s10, 1
        // Predicated region
        $region13: #{_lambda_.17} parent=11 // pred_check
          %p180 = pneg %p111
        $region14: #{_lambda_.17} parent=11 // pred_check_branch
          %182 = sbr.rel (%p180) target = $region16
        $region15: #{_lambda_.17} parent=11 // pred_region
          %p183 = scmp.lt.s32.totalorder %s21, 0
          %s184 = scalar_select %p183, %s21, 0
          %s185 = scalar_lea.vmem %s2, %s184
        $region16: #{_lambda_.17} parent=11 // pred_fallthru
          _
        // Predicated region
        $region17: #{_lambda_.17} parent=11 // pred_check
          %p186 = pneg %p137
        $region18: #{_lambda_.17} parent=11 // pred_check_branch
          %188 = sbr.rel (%p186) target = $region20
        $region19: #{_lambda_.17} parent=11 // pred_region
          %p189 = scmp.lt.s32.totalorder %s21, 0
          %s190 = scalar_select %p189, %s21, 0
          %s191 = scalar_lea.vmem %s3, %s190
        $region20: #{_lambda_.17} parent=11 // pred_fallthru
          _
      $region12: #{_lambda_.17} parent=5 // pred_fallthru
        _
      %p192 = scmp.lt.s32.totalorder %s10, 3
      // Predicated region
      $region21: #{_lambda_.17} parent=5 // pred_check
        %p193 = pneg %p192
      $region22: #{_lambda_.17} parent=5 // pred_check_branch
        %195 = sbr.rel (%p193) target = $region24
      $region23: #{_lambda_.17} parent=5 // pred_region
        // Predicated region
        $region25: #{_lambda_.17} parent=23 // pred_check
          %p196 = pneg %p51
        $region26: #{_lambda_.17} parent=23 // pred_check_branch
          %198 = sbr.rel (%p196) target = $region28
        $region27: #{_lambda_.17} parent=23 // pred_region
          %s199 = sand.u32 %s41, 1
          %s200 = sand.u32 %s41, 1
          %s201 = smul.addr %s200, 48
          %s202 = scalar_lea.vmem [#allocation3], %s201
          %s203 = smul.u32 4, %s17
          %s204 = smul.u32 3, %s19
          %s205 = smul.addr %s203, 9
          %s206 = sadd.s32 %s204, %s205
          %s207 = smul.addr %s206, 4
          %s208 = scalar_lea.vmem %s0, %s207
          // Predicated region
          $region29: #{_lambda_.17} parent=27 // pred_check
            _
          $region30: #{_lambda_.17} parent=27 // pred_check_branch
            %210 = sbr.rel (0) target = $region32
          $region31: #{_lambda_.17} parent=27 // pred_region
            // Predicated region
            $region33: #{_lambda_.17} parent=31 // pred_check
              _
            $region34: #{_lambda_.17} parent=31 // pred_check_branch
              %212 = sbr.rel (0) target = $region36
            $region35: #{_lambda_.17} parent=31 // pred_region
              %s213 = scalar_lea.vmem %s208, 8
              %s214 = scalar_lea.vmem %s202, 8 [#allocation3]
              loop: start=0, step=1, limit=1
              $region37: #{_lambda_.17} parent=35 // loop_pre_header
                _
              $region38: #{_lambda_.17} parent=35 // loop_header
                %s216 = sphi 0, %s220
                %p217 = scmp.ge.s32.totalorder %s216, 1
                %s221 = sphi %s208, %s208
                %s222 = sphi %s202, %s202
              $region39: #{_lambda_.17} parent=35 // loop_header_branch
                %219 = sbr.rel (%p217) target = $region43
              $region40: #{_lambda_.17} parent=35 // loop_body
                %v223 = vld [vmem:[%s221] sm:$0xff]
                %224 = vst [vmem:[%s222] sm:$0xff] %v223
                %v225 = vld [vmem:[%s221 + $0x24] sm:$0xff]
                %226 = vst [vmem:[%s222 + $0xc] sm:$0xff] %v225
                %v227 = vld [vmem:[%s221 + $0x48] sm:$0xff]
                %228 = vst [vmem:[%s222 + $0x18] sm:$0xff] %v227
                %v229 = vld [vmem:[%s221 + $0x6c] sm:$0xff]
                %230 = vst [vmem:[%s222 + $0x24] sm:$0xff] %v229
              $region41: #{_lambda_.17} parent=35 // loop_footer
                %s220 = sadd.s32 1, %s216
              $region42: #{_lambda_.17} parent=35 // loop_footer_branch
                %215 = sbr.rel target = $region38
              $region43: #{_lambda_.17} parent=35 // loop_exit
                _
              %s232 = ssub.s32 16, 1
              loop: start=0, step=1, limit=1
              $region44: #{_lambda_.17} parent=35 // loop_pre_header
                _
              $region45: #{_lambda_.17} parent=35 // loop_header
                %s234 = sphi 0, %s238
                %p235 = scmp.ge.s32.totalorder %s234, 1
                %s239 = sphi %s213, %s213
                %s240 = sphi %s214, %s214
              $region46: #{_lambda_.17} parent=35 // loop_header_branch
                %237 = sbr.rel (%p235) target = $region50
              $region47: #{_lambda_.17} parent=35 // loop_body
                %v241 = vld [vmem:[%s239] sm:%s232]
                %242 = vst [vmem:[%s240] sm:%s232] %v241
                %v243 = vld [vmem:[%s239 + $0x24] sm:%s232]
                %244 = vst [vmem:[%s240 + $0xc] sm:%s232] %v243
                %v245 = vld [vmem:[%s239 + $0x48] sm:%s232]
                %246 = vst [vmem:[%s240 + $0x18] sm:%s232] %v245
                %v247 = vld [vmem:[%s239 + $0x6c] sm:%s232]
                %248 = vst [vmem:[%s240 + $0x24] sm:%s232] %v247
              $region48: #{_lambda_.17} parent=35 // loop_footer
                %s238 = sadd.s32 1, %s234
              $region49: #{_lambda_.17} parent=35 // loop_footer_branch
                %233 = sbr.rel target = $region45
              $region50: #{_lambda_.17} parent=35 // loop_exit
                _
            $region36: #{_lambda_.17} parent=31 // pred_fallthru
              _
          $region32: #{_lambda_.17} parent=27 // pred_fallthru
            _
          %249 = vnop
        $region28: #{_lambda_.17} parent=23 // pred_fallthru
          _
        // Predicated region
        $region51: #{_lambda_.17} parent=23 // pred_check
          %p250 = pneg %p79
        $region52: #{_lambda_.17} parent=23 // pred_check_branch
          %252 = sbr.rel (%p250) target = $region54
        $region53: #{_lambda_.17} parent=23 // pred_region
          %s253 = smul.u32 48, %s19
          %p254 = scmp.lt.s32.totalorder %s253, 143
          %s255 = scalar_select %p254, %s253, 143
          %p256 = scmp.lt.s32.totalorder %s18, 0
          %s257 = scalar_select %p256, %s18, 0
          %s258 = sadd.s32 %s257, %s255
          %s259 = smul.addr %s258, 4
          %s260 = scalar_lea.vmem %s1, %s259
          %s261 = smul.u32 48, %s19
        $region54: #{_lambda_.17} parent=23 // pred_fallthru
          _
      $region24: #{_lambda_.17} parent=5 // pred_fallthru
        _
      %p262 = scmp.le.s32.totalorder 1, %s10
      %p263 = scmp.lt.s32.totalorder %s10, 4
      %p264 = pnand %p262, %p263
      %p265 = pneg %p264
      // Predicated region
      $region55: #{_lambda_.17} parent=5 // pred_check
        _
      $region56: #{_lambda_.17} parent=5 // pred_check_branch
        %267 = sbr.rel (%p264) target = $region58
      $region57: #{_lambda_.17} parent=5 // pred_region
        %s268 = ssub.s32 %s10, 1
        %s269 = sand.u32 %s44, 1
        %s270 = sand.u32 %s44, 1
        %s271 = smul.addr %s270, 48
        %s272 = scalar_lea.vmem [#allocation3], %s271
        // Predicated region
        $region59: #{_lambda_.17} parent=57 // pred_check
          %p273 = pneg %p57
        $region60: #{_lambda_.17} parent=57 // pred_check_branch
          %275 = sbr.rel (%p273) target = $region62
        $region61: #{_lambda_.17} parent=57 // pred_region
          _
        $region62: #{_lambda_.17} parent=57 // pred_fallthru
          _
        %s276 = sand.u32 %s44, 1
        %s277 = sand.u32 %s44, 1
        %s278 = smul.addr %s277, 48
        %s279 = scalar_lea.vmem [#allocation3], %s278
        %p280 = pneg %p57
        %p281 = pneg %p54
        %s282 = smul.u32 48, %s22
        %p283 = scmp.lt.s32.totalorder %s282, 143
        %s284 = scalar_select %p283, %s282, 143
        %p285 = scmp.lt.s32.totalorder %s21, 0
        %s286 = scalar_select %p285, %s21, 0
        %s287 = sadd.s32 %s286, %s284
        %s288 = smul.addr %s287, 4
        %s289 = scalar_lea.vmem %s1, %s288
        %p290 = pneg %p85
        %p291 = pneg %p82
        %p292 = scmp.lt.s32.totalorder %s21, 0
        %s293 = scalar_select %p292, %s21, 0
        %s294 = scalar_lea.vmem %s2, %s293
        %p295 = pneg %p111
        %p296 = pneg %p108
        %p297 = scmp.lt.s32.totalorder %s21, 0
        %s298 = scalar_select %p297, %s21, 0
        %s299 = scalar_lea.vmem %s3, %s298
        %p300 = pneg %p137
        %p301 = pneg %p134
        %p302 = pneg %p165
        %p303 = pneg %p162
        %s304 = smul.u32 4, %s20
        %p305 = scmp.lt.s32.totalorder %s304, 3
        %s306 = scalar_select %p305, %s304, 3
        %p307 = scmp.lt.s32.totalorder %s21, 0
        %s308 = scalar_select %p307, %s21, 0
        %s309 = sadd.s32 %s308, %s306
        %s310 = smul.addr %s309, 4
        %s311 = scalar_lea.vmem %s4, %s310
        %s312 = smul.u32 4, %s20
        %s313 = smul.u32 3, %s22
        %s314 = smul.u32 48, %s22
        %p315 = scmp.lt.s32.totalorder %s314, 143
        %s316 = scalar_select %p315, %s314, 143
        %p317 = scmp.lt.s32.totalorder %s21, 0
        %s318 = scalar_select %p317, %s21, 0
        %s319 = sadd.s32 %s318, %s316
        %s320 = smul.addr %s319, 4
        %s321 = scalar_lea.vmem %s1, %s320
        %s322 = smul.u32 48, %s22
        %p323 = scmp.lt.s32.totalorder %s21, 0
        %s324 = scalar_select %p323, %s21, 0
        %s325 = scalar_lea.vmem %s2, %s324
        %p326 = scmp.lt.s32.totalorder %s21, 0
        %s327 = scalar_select %p326, %s21, 0
        %s328 = scalar_lea.vmem %s3, %s327
        %s329 = smul.u32 4, %s20
        %p330 = scmp.lt.s32.totalorder %s329, 3
        %s331 = scalar_select %p330, %s329, 3
        %p332 = scmp.lt.s32.totalorder %s21, 0
        %s333 = scalar_select %p332, %s21, 0
        %s334 = sadd.s32 %s333, %s331
        %s335 = smul.addr %s334, 4
        %s336 = scalar_lea.vmem %s4, %s335
        %s337 = smul.u32 4, %s20
        %p338 = scmp.eq.s32.totalorder %s22, 0
        // Predicated region
        $region63: #{_lambda_.17} parent=57 // pred_check
          %p339 = pneg %p338
        $region64: #{_lambda_.17} parent=57 // pred_check_branch
          %341 = sbr.rel (%p339) target = $region66
        $region65: #{_lambda_.17} parent=57 // pred_region
          %342 = vst [vmem:[#allocation2] sm:$0xff] 0.0
          %343 = vst [vmem:[#allocation2 + $0x8] sm:$0xff] 0.0
          %344 = vst [vmem:[#allocation2 + $0x10] sm:$0xff] 0.0
          %345 = vst [vmem:[#allocation2 + $0x18] sm:$0xff] 0.0
        $region66: #{_lambda_.17} parent=57 // pred_fallthru
          _
        %v346 = vld [vmem:[#allocation2] sm:$0xff]
        %v347 = vld [vmem:[#allocation2 + $0x8] sm:$0xff]
        %v348 = vld [vmem:[#allocation2 + $0x10] sm:$0xff]
        %v349 = vld [vmem:[#allocation2 + $0x18] sm:$0xff]
        %v350 = vld [vmem:[%s272] sm:$0xff]
        %v351 = vld [vmem:[%s272 + $0x8] sm:$0xf]
        %v352 = vld [vmem:[%s272 + $0xc] sm:$0xff]
        %v353 = vld [vmem:[%s272 + $0x14] sm:$0xf]
        %v354 = vld [vmem:[%s272 + $0x18] sm:$0xff]
        %v355 = vld [vmem:[%s272 + $0x20] sm:$0xf]
        %v356 = vld [vmem:[%s272 + $0x24] sm:$0xff]
        %v357 = vld [vmem:[%s272 + $0x2c] sm:$0xf]
        %v358 = vld [vmem:[%s321] sm:$0xf]
        %v359 = vld [vmem:[%s321 + $0x4] sm:$0xf]
        %v360 = vld [vmem:[%s321 + $0x8] sm:$0xf]
        %v361 = vld [vmem:[%s321 + $0xc] sm:$0xf]
        %v362 = vld [vmem:[%s321 + $0x10] sm:$0xf]
        %v363 = vld [vmem:[%s321 + $0x14] sm:$0xf]
        %v364 = vld [vmem:[%s321 + $0x18] sm:$0xf]
        %v365 = vld [vmem:[%s321 + $0x1c] sm:$0xf]
        %v366 = vld [vmem:[%s321 + $0x20] sm:$0xf]
        %v367 = vld [vmem:[%s321 + $0x24] sm:$0xf]
        %v368 = vld [vmem:[%s321 + $0x28] sm:$0xf]
        %v369 = vld [vmem:[%s321 + $0x2c] sm:$0xf]
        %v370 = vld [vmem:[%s321 + $0x30] sm:$0xf]
        %v371 = vld [vmem:[%s321 + $0x34] sm:$0xf]
        %v372 = vld [vmem:[%s321 + $0x38] sm:$0xf]
        %v373 = vld [vmem:[%s321 + $0x3c] sm:$0xf]
        %v374 = vld [vmem:[%s321 + $0x40] sm:$0xf]
        %v375 = vld [vmem:[%s321 + $0x44] sm:$0xf]
        %v376 = vld [vmem:[%s321 + $0x48] sm:$0xf]
        %v377 = vld [vmem:[%s321 + $0x4c] sm:$0xf]
        %v378 = vld [vmem:[%s321 + $0x50] sm:$0xf]
        %v379 = vld [vmem:[%s321 + $0x54] sm:$0xf]
        %v380 = vld [vmem:[%s321 + $0x58] sm:$0xf]
        %v381 = vld [vmem:[%s321 + $0x5c] sm:$0xf]
        %v382 = vld [vmem:[%s321 + $0x60] sm:$0xf]
        %v383 = vld [vmem:[%s321 + $0x64] sm:$0xf]
        %v384 = vld [vmem:[%s321 + $0x68] sm:$0xf]
        %v385 = vld [vmem:[%s321 + $0x6c] sm:$0xf]
        %v386 = vld [vmem:[%s321 + $0x70] sm:$0xf]
        %v387 = vld [vmem:[%s321 + $0x74] sm:$0xf]
        %v388 = vld [vmem:[%s321 + $0x78] sm:$0xf]
        %v389 = vld [vmem:[%s321 + $0x7c] sm:$0xf]
        %v390 = vld [vmem:[%s321 + $0x80] sm:$0xf]
        %v391 = vld [vmem:[%s321 + $0x84] sm:$0xf]
        %v392 = vld [vmem:[%s321 + $0x88] sm:$0xf]
        %v393 = vld [vmem:[%s321 + $0x8c] sm:$0xf]
        %v394 = vld [vmem:[%s321 + $0x90] sm:$0xf]
        %v395 = vld [vmem:[%s321 + $0x94] sm:$0xf]
        %v396 = vld [vmem:[%s321 + $0x98] sm:$0xf]
        %v397 = vld [vmem:[%s321 + $0x9c] sm:$0xf]
        %v398 = vld [vmem:[%s321 + $0xa0] sm:$0xf]
        %v399 = vld [vmem:[%s321 + $0xa4] sm:$0xf]
        %v400 = vld [vmem:[%s321 + $0xa8] sm:$0xf]
        %v401 = vld [vmem:[%s321 + $0xac] sm:$0xf]
        %v402 = vld [vmem:[%s321 + $0xb0] sm:$0xf]
        %v403 = vld [vmem:[%s321 + $0xb4] sm:$0xf]
        %v404 = vld [vmem:[%s321 + $0xb8] sm:$0xf]
        %v405 = vld [vmem:[%s321 + $0xbc] sm:$0xf]
        %v414 = vunpack.c.l.b16 %v350
        %v415 = vunpack.c.h.b16 %v350
        %v416 = vunpack.c.l.b16 %v351
        %v417 = vunpack.c.l.b16 %v352
        %v418 = vunpack.c.h.b16 %v352
        %v419 = vunpack.c.l.b16 %v353
        %v420 = vunpack.c.l.b16 %v354
        %v421 = vunpack.c.h.b16 %v354
        %v422 = vunpack.c.l.b16 %v355
        %v423 = vunpack.c.l.b16 %v356
        %v424 = vunpack.c.h.b16 %v356
        %v425 = vunpack.c.l.b16 %v357
        %v426 = vpack.c.b16 %v417, %v414
        %v427 = vpack.c.b16 %v418, %v415
        %v428 = vpack.c.b16 %v419, %v416
        %v429 = vpack.c.b16 %v423, %v420
        %v430 = vpack.c.b16 %v424, %v421
        %v431 = vpack.c.b16 %v425, %v422
        %v486 = vunpack.c.l.b16 %v358
        %v487 = vunpack.c.l.b16 %v359
        %v488 = vunpack.c.l.b16 %v360
        %v489 = vunpack.c.l.b16 %v361
        %v490 = vunpack.c.l.b16 %v362
        %v491 = vunpack.c.l.b16 %v363
        %v492 = vunpack.c.l.b16 %v364
        %v493 = vunpack.c.l.b16 %v365
        %v494 = vunpack.c.l.b16 %v366
        %v495 = vunpack.c.l.b16 %v367
        %v496 = vunpack.c.l.b16 %v368
        %v497 = vunpack.c.l.b16 %v369
        %v498 = vunpack.c.l.b16 %v370
        %v499 = vunpack.c.l.b16 %v371
        %v500 = vunpack.c.l.b16 %v372
        %v501 = vunpack.c.l.b16 %v373
        %v502 = vunpack.c.l.b16 %v374
        %v503 = vunpack.c.l.b16 %v375
        %v504 = vunpack.c.l.b16 %v376
        %v505 = vunpack.c.l.b16 %v377
        %v506 = vunpack.c.l.b16 %v378
        %v507 = vunpack.c.l.b16 %v379
        %v508 = vunpack.c.l.b16 %v380
        %v509 = vunpack.c.l.b16 %v381
        %v510 = vunpack.c.l.b16 %v382
        %v511 = vunpack.c.l.b16 %v383
        %v512 = vunpack.c.l.b16 %v384
        %v513 = vunpack.c.l.b16 %v385
        %v514 = vunpack.c.l.b16 %v386
        %v515 = vunpack.c.l.b16 %v387
        %v516 = vunpack.c.l.b16 %v388
        %v517 = vunpack.c.l.b16 %v389
        %v518 = vunpack.c.l.b16 %v390
        %v519 = vunpack.c.l.b16 %v391
        %v520 = vunpack.c.l.b16 %v392
        %v521 = vunpack.c.l.b16 %v393
        %v522 = vunpack.c.l.b16 %v394
        %v523 = vunpack.c.l.b16 %v395
        %v524 = vunpack.c.l.b16 %v396
        %v525 = vunpack.c.l.b16 %v397
        %v526 = vunpack.c.l.b16 %v398
        %v527 = vunpack.c.l.b16 %v399
        %v528 = vunpack.c.l.b16 %v400
        %v529 = vunpack.c.l.b16 %v401
        %v530 = vunpack.c.l.b16 %v402
        %v531 = vunpack.c.l.b16 %v403
        %v532 = vunpack.c.l.b16 %v404
        %v533 = vunpack.c.l.b16 %v405
        %v534 = vpack.c.b16 %v487, %v486
        %v535 = vpack.c.b16 %v489, %v488
        %v536 = vpack.c.b16 %v491, %v490
        %v537 = vpack.c.b16 %v493, %v492
        %v538 = vpack.c.b16 %v495, %v494
        %v539 = vpack.c.b16 %v497, %v496
        %v540 = vpack.c.b16 %v499, %v498
        %v541 = vpack.c.b16 %v501, %v500
        %v542 = vpack.c.b16 %v503, %v502
        %v543 = vpack.c.b16 %v505, %v504
        %v544 = vpack.c.b16 %v507, %v506
        %v545 = vpack.c.b16 %v509, %v508
        %v546 = vpack.c.b16 %v511, %v510
        %v547 = vpack.c.b16 %v513, %v512
        %v548 = vpack.c.b16 %v515, %v514
        %v549 = vpack.c.b16 %v517, %v516
        %v550 = vpack.c.b16 %v519, %v518
        %v551 = vpack.c.b16 %v521, %v520
        %v552 = vpack.c.b16 %v523, %v522
        %v553 = vpack.c.b16 %v525, %v524
        %v554 = vpack.c.b16 %v527, %v526
        %v555 = vpack.c.b16 %v529, %v528
        %v556 = vpack.c.b16 %v531, %v530
        %v557 = vpack.c.b16 %v533, %v532
        %582 = vmatpush.bf16.msra.mxu0 %v541
        %583 = vmatpush.bf16.msra.mxu0 %v540
        %584 = vmatpush.bf16.msra.mxu0 %v539
        %585 = vmatpush.bf16.msra.mxu0 %v538
        %586 = vmatpush.bf16.msra.mxu0 %v537
        %587 = vmatpush.bf16.msra.mxu0 %v536
        %588 = vmatpush.bf16.msra.mxu0 %v535
        %589 = vmatpush.bf16.msra.mxu0 %v534
        %590 = vmatmul.bf16.gmra.mxu0 %v426
        %v591 = vpop.f32.mrf.mxu0
        %v592 = vadd.f32 0.0, %v591
        %v593 = vpop.f32.mrf.mxu0
        %v594 = vadd.f32 0.0, %v593
        %595 = vmatmul.bf16.gmra.mxu0 %v429
        %v596 = vpop.f32.mrf.mxu0
        %v597 = vadd.f32 0.0, %v596
        %v598 = vpop.f32.mrf.mxu0
        %v599 = vadd.f32 0.0, %v598
        %600 = vdwg.mxu0
        %601 = vmatpush.bf16.msra.mxu0 %v549
        %602 = vmatpush.bf16.msra.mxu0 %v548
        %603 = vmatpush.bf16.msra.mxu0 %v547
        %604 = vmatpush.bf16.msra.mxu0 %v546
        %605 = vmatpush.bf16.msra.mxu0 %v545
        %606 = vmatpush.bf16.msra.mxu0 %v544
        %607 = vmatpush.bf16.msra.mxu0 %v543
        %608 = vmatpush.bf16.msra.mxu0 %v542
        %609 = vmatmul.bf16.gmra.mxu0 %v427
        %v610 = vpop.f32.mrf.mxu0
        %v611 = vadd.f32 %v592, %v610
        %v612 = vpop.f32.mrf.mxu0
        %v613 = vadd.f32 %v594, %v612
        %614 = vmatmul.bf16.gmra.mxu0 %v430
        %v615 = vpop.f32.mrf.mxu0
        %v616 = vadd.f32 %v597, %v615
        %v617 = vpop.f32.mrf.mxu0
        %v618 = vadd.f32 %v599, %v617
        %619 = vdwg.mxu0
        %620 = vmatpush.bf16.msra.mxu0 %v557
        %621 = vmatpush.bf16.msra.mxu0 %v556
        %622 = vmatpush.bf16.msra.mxu0 %v555
        %623 = vmatpush.bf16.msra.mxu0 %v554
        %624 = vmatpush.bf16.msra.mxu0 %v553
        %625 = vmatpush.bf16.msra.mxu0 %v552
        %626 = vmatpush.bf16.msra.mxu0 %v551
        %627 = vmatpush.bf16.msra.mxu0 %v550
        %628 = vmatmul.bf16.gmra.mxu0 %v428
        %v629 = vpop.f32.mrf.mxu0
        %v630 = vadd.f32 %v611, %v629
        %v631 = vpop.f32.mrf.mxu0
        %v632 = vadd.f32 %v613, %v631
        %633 = vmatmul.bf16.gmra.mxu0 %v431
        %v634 = vpop.f32.mrf.mxu0
        %v635 = vadd.f32 %v616, %v634
        %v636 = vpop.f32.mrf.mxu0
        %v637 = vadd.f32 %v618, %v636
        %638 = vdwg.mxu0
        %v639 = vadd.f32 %v346, %v630
        %v640 = vadd.f32 %v347, %v632
        %v641 = vadd.f32 %v348, %v635
        %v642 = vadd.f32 %v349, %v637
        %643 = vst [vmem:[#allocation2] sm:$0xff] %v639
        %644 = vst [vmem:[#allocation2 + $0x8] sm:$0xff] %v640
        %645 = vst [vmem:[#allocation2 + $0x10] sm:$0xff] %v641
        %646 = vst [vmem:[#allocation2 + $0x18] sm:$0xff] %v642
        %p647 = scmp.eq.s32.totalorder %s22, 2
        // Predicated region
        $region67: #{_lambda_.17} parent=57 // pred_check
          %p648 = pneg %p647
        $region68: #{_lambda_.17} parent=57 // pred_check_branch
          %650 = sbr.rel (%p648) target = $region70
        $region69: #{_lambda_.17} parent=57 // pred_region
          %v651 = vld [vmem:[#allocation2] sm:$0xff]
          %v652 = vld [vmem:[#allocation2 + $0x8] sm:$0xff]
          %v653 = vld [vmem:[#allocation2 + $0x10] sm:$0xff]
          %v654 = vld [vmem:[#allocation2 + $0x18] sm:$0xff]
          %v655 = vld [vmem:[%s325] sm:$0x1]
          %v657 = vperm.slane %v655, 0
          %v659 = vmul.f32 %v651, %v657
          %v660 = vmul.f32 %v652, %v657
          %v661 = vmul.f32 %v653, %v657
          %v662 = vmul.f32 %v654, %v657
          %v663 = vld [vmem:[%s328] sm:$0x1]
          %v665 = vperm.slane %v663, 0
          %v667 = vadd.f32 %v659, %v665
          %v668 = vadd.f32 %v660, %v665
          %v669 = vadd.f32 %v661, %v665
          %v670 = vadd.f32 %v662, %v665
          %v671 = vmax.f32 %v667, 0.0
          %v672 = vmax.f32 %v668, 0.0
          %v673 = vmax.f32 %v669, 0.0
          %v674 = vmax.f32 %v670, 0.0
          %v675 = vpack.c.bf16 %v671, %v671
          %v676 = vpack.c.bf16 %v672, %v672
          %v677 = vpack.c.bf16 %v673, %v673
          %v678 = vpack.c.bf16 %v674, %v674
          %679 = vst [vmem:[%s336] sm:$0xf] %v675
          %680 = vst [vmem:[%s336 + $0x4] sm:$0xf] %v676
          %681 = vst [vmem:[%s336 + $0x8] sm:$0xf] %v677
          %682 = vst [vmem:[%s336 + $0xc] sm:$0xf] %v678
        $region70: #{_lambda_.17} parent=57 // pred_fallthru
          _
        %s683 = smul.u32 4, %s20
        %p684 = scmp.lt.s32.totalorder %s683, 3
        %s685 = scalar_select %p684, %s683, 3
        %p686 = scmp.lt.s32.totalorder %s21, 0
        %s687 = scalar_select %p686, %s21, 0
        %s688 = sadd.s32 %s687, %s685
        %s689 = smul.addr %s688, 4
        %s690 = scalar_lea.vmem %s4, %s689
        // Predicated region
        $region71: #{_lambda_.17} parent=57 // pred_check
          %p691 = pneg %p162
        $region72: #{_lambda_.17} parent=57 // pred_check_branch
          %693 = sbr.rel (%p691) target = $region74
        $region73: #{_lambda_.17} parent=57 // pred_region
          %s694 = smul.u32 4, %s20
        $region74: #{_lambda_.17} parent=57 // pred_fallthru
          _
        // Predicated region
        $region75: #{_lambda_.17} parent=57 // pred_check
          %p695 = pneg %p162
        $region76: #{_lambda_.17} parent=57 // pred_check_branch
          %697 = sbr.rel (%p695) target = $region78
        $region77: #{_lambda_.17} parent=57 // pred_region
          %s698 = smul.u32 4, %s20
          %p699 = scmp.lt.s32.totalorder %s698, 3
          %s700 = scalar_select %p699, %s698, 3
          %p701 = scmp.lt.s32.totalorder %s21, 0
          %s702 = scalar_select %p701, %s21, 0
          %s703 = sadd.s32 %s702, %s700
          %s704 = smul.addr %s703, 4
          %s705 = scalar_lea.vmem %s4, %s704
        $region78: #{_lambda_.17} parent=57 // pred_fallthru
          _
      $region58: #{_lambda_.17} parent=5 // pred_fallthru
        _
      %p706 = scmp.le.s32.totalorder 2, %s10
      // Predicated region
      $region79: #{_lambda_.17} parent=5 // pred_check
        %p707 = pneg %p706
      $region80: #{_lambda_.17} parent=5 // pred_check_branch
        %709 = sbr.rel (%p707) target = $region82
      $region81: #{_lambda_.17} parent=5 // pred_region
        %s710 = ssub.s32 %s10, 2
      $region82: #{_lambda_.17} parent=5 // pred_fallthru
        _
    $region6: #{_lambda_.17} parent=1 // loop_footer
      %s14 = sadd.s32 1, %s10
    $region7: #{_lambda_.17} parent=1 // loop_footer_branch
      %9 = sbr.rel target = $region3
    $region8: #{_lambda_.17} parent=1 // loop_exit
      _

// kernel: _lambda_.18
$region0: #{_lambda_.18}
  #allocation0 [shape = 'u32[]', space=smem, size = 0x4, offset = 0x4, fixed_abs, tag = 'smem constant byte address 0x4 - core index']
  #allocation1 [shape = 'u32[72,128]{1,0:T(1,128)}', space=vmem, size = 0x9000, scoped, tag = 'internal scratch']
  #allocation2 [shape = 'f32[32,128]{1,0:T(8,128)}', space=vmem, size = 0x4000, scoped, tag = 'scratch operand']
  %s0 = inlined_call_operand.vmem [shape: bf16[32,1152], index: 0, kind: input, shape index: {}]
  %s1 = inlined_call_operand.vmem [shape: bf16[1152,128], index: 1, kind: input, shape index: {}]
  %s2 = inlined_call_operand.vmem [shape: f32[1,128], index: 2, kind: input, shape index: {}]
  %s3 = inlined_call_operand.vmem [shape: f32[1,128], index: 3, kind: input, shape index: {}, may-alias: {3,5}]
  %s4 = inlined_call_operand.vmem [shape: f32[1,128], index: 4, kind: input, shape index: {}]
  %s5 = inlined_call_operand.vmem [shape: f32[1,128], index: 5, kind: input, shape index: {}, may-alias: {3,5}]
  %s6 = inlined_call_operand.vmem [shape: f32[32,128], index: 6, kind: input, shape index: {}]
  %s7 = inlined_call_operand.vmem [shape: f32[32,128], index: 7, kind: output, shape index: {}]
  %s8 = sld [smem:[#allocation0]]
  $region95: #{_lambda_.18} parent=0
    _
  %s10 = ssub.s32 1, %s8
  %s11 = scalar_select 0, %s10, %s8
  $region1: #{_lambda_.18} parent=0
    #allocation3 [shape = 'u8[49152]{0}', space=vmem, size = 0xc000, scoped, tag = 'input window, operand 0']
    loop: start=0, step=1, limit=5
    $region2: #{_lambda_.18} parent=1 // loop_pre_header
      _
    $region3: #{_lambda_.18} parent=1 // loop_header
      %s13 = sphi 0, %s17
      %p14 = scmp.ge.s32.totalorder %s13, 5
      %s20 = sphi 0, %s39
      %s21 = sphi 0, %s35
      %s22 = sphi 0, %s31
      %s23 = sphi 0, %s20
      %s24 = sphi 0, %s21
      %s25 = sphi 0, %s22
      %s26 = sphi 0, %s23
      %s27 = sphi 0, %s24
      %s28 = sphi 0, %s25
      %s44 = sphi 0, %s46
      %s47 = sphi 0, %s44
      %s48 = sphi 0, %s47
      %s64 = sphi 0, %s48
      %s72 = sphi 0, %s74
      %s75 = sphi 0, %s72
      %s76 = sphi 0, %s75
      %s92 = sphi 0, %s76
      %s98 = sphi 0, %s100
      %s101 = sphi 0, %s98
      %s102 = sphi 0, %s101
      %s118 = sphi 0, %s102
      %s124 = sphi 0, %s126
      %s127 = sphi 0, %s124
      %s128 = sphi 0, %s127
      %s144 = sphi 0, %s128
      %s150 = sphi 0, %s152
      %s153 = sphi 0, %s150
      %s154 = sphi 0, %s153
      %s170 = sphi 0, %s154
      %s176 = sphi 0, %s178
      %s179 = sphi 0, %s176
      %s180 = sphi 0, %s179
      %s196 = sphi 0, %s180
      %s204 = sphi 0, %s206
      %s207 = sphi 0, %s204
      %s208 = sphi 0, %s207
      %s224 = sphi 0, %s208
      %s232 = sphi 0, %s234
      %s235 = sphi 0, %s232
      %s236 = sphi 0, %s235
      %s252 = sphi 0, %s236
    $region4: #{_lambda_.18} parent=1 // loop_header_branch
      %16 = sbr.rel (%p14) target = $region8
    $region5: #{_lambda_.18} parent=1 // loop_body
      %s18 = ssub.s32 %s13, 1
      %s19 = ssub.s32 %s13, 2
      %s29 = sadd.s32 1, %s22
      %p30 = scmp.ge.s32.totalorder %s29, 3
      %s31 = scalar_select %p30, 0, %s29
      %s32 = sadd.s32 1, %s21
      %s33 = scalar_select %p30, %s32, %s21
      %p34 = scmp.ge.s32.totalorder %s33, 1
      %s35 = scalar_select %p34, 0, %s33
      %s36 = sadd.s32 1, %s20
      %s37 = scalar_select %p34, %s36, %s20
      %p38 = scmp.ge.s32.totalorder %s37, 1
      %s39 = scalar_select %p38, 0, %s37
      %s40 = ssub.s32 %s20, %s39
      %s41 = ssub.s32 %s22, %s31
      %s42 = sor.u32 %s40, %s41
      %p43 = scmp.eq.s32.totalorder %s42, 0
      %s45 = sadd.s32 %s44, 1
      %s46 = scalar_select %p43, %s44, %s45
      %p49 = pneg %p43
      %p50 = scmp.eq.s32.totalorder %s13, 2
      %p51 = por %p49, %p50
      %p52 = scmp.ne.s32.totalorder %s44, %s47
      %p53 = scmp.eq.s32.totalorder %s13, 0
      %p54 = por %p52, %p53
      %p55 = scmp.ne.s32.totalorder %s44, %s47
      %p56 = scmp.eq.s32.totalorder %s18, 2
      %p57 = por %p55, %p56
      %p58 = scmp.ne.s32.totalorder %s47, %s48
      %p59 = scmp.eq.s32.totalorder %s18, 0
      %p60 = por %p58, %p59
      %p61 = scmp.ne.s32.totalorder %s47, %s48
      %p62 = scmp.eq.s32.totalorder %s19, 2
      %p63 = por %p61, %p62
      %p65 = scmp.ne.s32.totalorder %s48, %s64
      %p66 = scmp.eq.s32.totalorder %s19, 0
      %p67 = por %p65, %p66
      %s68 = ssub.s32 %s22, %s31
      %s69 = ssub.s32 %s21, %s35
      %s70 = sor.u32 %s68, %s69
      %p71 = scmp.eq.s32.totalorder %s70, 0
      %s73 = sadd.s32 %s72, 1
      %s74 = scalar_select %p71, %s72, %s73
      %p77 = pneg %p71
      %p78 = scmp.eq.s32.totalorder %s13, 2
      %p79 = por %p77, %p78
      %p80 = scmp.ne.s32.totalorder %s72, %s75
      %p81 = scmp.eq.s32.totalorder %s13, 0
      %p82 = por %p80, %p81
      %p83 = scmp.ne.s32.totalorder %s72, %s75
      %p84 = scmp.eq.s32.totalorder %s18, 2
      %p85 = por %p83, %p84
      %p86 = scmp.ne.s32.totalorder %s75, %s76
      %p87 = scmp.eq.s32.totalorder %s18, 0
      %p88 = por %p86, %p87
      %p89 = scmp.ne.s32.totalorder %s75, %s76
      %p90 = scmp.eq.s32.totalorder %s19, 2
      %p91 = por %p89, %p90
      %p93 = scmp.ne.s32.totalorder %s76, %s92
      %p94 = scmp.eq.s32.totalorder %s19, 0
      %p95 = por %p93, %p94
      %s96 = ssub.s32 %s21, %s35
      %p97 = scmp.eq.s32.totalorder %s96, 0
      %s99 = sadd.s32 %s98, 1
      %s100 = scalar_select %p97, %s98, %s99
      %p103 = pneg %p97
      %p104 = scmp.eq.s32.totalorder %s13, 2
      %p105 = por %p103, %p104
      %p106 = scmp.ne.s32.totalorder %s98, %s101
      %p107 = scmp.eq.s32.totalorder %s13, 0
      %p108 = por %p106, %p107
      %p109 = scmp.ne.s32.totalorder %s98, %s101
      %p110 = scmp.eq.s32.totalorder %s18, 2
      %p111 = por %p109, %p110
      %p112 = scmp.ne.s32.totalorder %s101, %s102
      %p113 = scmp.eq.s32.totalorder %s18, 0
      %p114 = por %p112, %p113
      %p115 = scmp.ne.s32.totalorder %s101, %s102
      %p116 = scmp.eq.s32.totalorder %s19, 2
      %p117 = por %p115, %p116
      %p119 = scmp.ne.s32.totalorder %s102, %s118
      %p120 = scmp.eq.s32.totalorder %s19, 0
      %p121 = por %p119, %p120
      %s122 = ssub.s32 %s21, %s35
      %p123 = scmp.eq.s32.totalorder %s122, 0
      %s125 = sadd.s32 %s124, 1
      %s126 = scalar_select %p123, %s124, %s125
      %p129 = pneg %p123
      %p130 = scmp.eq.s32.totalorder %s13, 2
      %p131 = por %p129, %p130
      %p132 = scmp.ne.s32.totalorder %s124, %s127
      %p133 = scmp.eq.s32.totalorder %s13, 0
      %p134 = por %p132, %p133
      %p135 = scmp.ne.s32.totalorder %s124, %s127
      %p136 = scmp.eq.s32.totalorder %s18, 2
      %p137 = por %p135, %p136
      %p138 = scmp.ne.s32.totalorder %s127, %s128
      %p139 = scmp.eq.s32.totalorder %s18, 0
      %p140 = por %p138, %p139
      %p141 = scmp.ne.s32.totalorder %s127, %s128
      %p142 = scmp.eq.s32.totalorder %s19, 2
      %p143 = por %p141, %p142
      %p145 = scmp.ne.s32.totalorder %s128, %s144
      %p146 = scmp.eq.s32.totalorder %s19, 0
      %p147 = por %p145, %p146
      %s148 = ssub.s32 %s21, %s35
      %p149 = scmp.eq.s32.totalorder %s148, 0
      %s151 = sadd.s32 %s150, 1
      %s152 = scalar_select %p149, %s150, %s151
      %p155 = pneg %p149
      %p156 = scmp.eq.s32.totalorder %s13, 2
      %p157 = por %p155, %p156
      %p158 = scmp.ne.s32.totalorder %s150, %s153
      %p159 = scmp.eq.s32.totalorder %s13, 0
      %p160 = por %p158, %p159
      %p161 = scmp.ne.s32.totalorder %s150, %s153
      %p162 = scmp.eq.s32.totalorder %s18, 2
      %p163 = por %p161, %p162
      %p164 = scmp.ne.s32.totalorder %s153, %s154
      %p165 = scmp.eq.s32.totalorder %s18, 0
      %p166 = por %p164, %p165
      %p167 = scmp.ne.s32.totalorder %s153, %s154
      %p168 = scmp.eq.s32.totalorder %s19, 2
      %p169 = por %p167, %p168
      %p171 = scmp.ne.s32.totalorder %s154, %s170
      %p172 = scmp.eq.s32.totalorder %s19, 0
      %p173 = por %p171, %p172
      %s174 = ssub.s32 %s21, %s35
      %p175 = scmp.eq.s32.totalorder %s174, 0
      %s177 = sadd.s32 %s176, 1
      %s178 = scalar_select %p175, %s176, %s177
      %p181 = pneg %p175
      %p182 = scmp.eq.s32.totalorder %s13, 2
      %p183 = por %p181, %p182
      %p184 = scmp.ne.s32.totalorder %s176, %s179
      %p185 = scmp.eq.s32.totalorder %s13, 0
      %p186 = por %p184, %p185
      %p187 = scmp.ne.s32.totalorder %s176, %s179
      %p188 = scmp.eq.s32.totalorder %s18, 2
      %p189 = por %p187, %p188
      %p190 = scmp.ne.s32.totalorder %s179, %s180
      %p191 = scmp.eq.s32.totalorder %s18, 0
      %p192 = por %p190, %p191
      %p193 = scmp.ne.s32.totalorder %s179, %s180
      %p194 = scmp.eq.s32.totalorder %s19, 2
      %p195 = por %p193, %p194
      %p197 = scmp.ne.s32.totalorder %s180, %s196
      %p198 = scmp.eq.s32.totalorder %s19, 0
      %p199 = por %p197, %p198
      %s200 = ssub.s32 %s20, %s39
      %s201 = ssub.s32 %s21, %s35
      %s202 = sor.u32 %s200, %s201
      %p203 = scmp.eq.s32.totalorder %s202, 0
      %s205 = sadd.s32 %s204, 1
      %s206 = scalar_select %p203, %s204, %s205
      %p209 = pneg %p203
      %p210 = scmp.eq.s32.totalorder %s13, 2
      %p211 = por %p209, %p210
      %p212 = scmp.ne.s32.totalorder %s204, %s207
      %p213 = scmp.eq.s32.totalorder %s13, 0
      %p214 = por %p212, %p213
      %p215 = scmp.ne.s32.totalorder %s204, %s207
      %p216 = scmp.eq.s32.totalorder %s18, 2
      %p217 = por %p215, %p216
      %p218 = scmp.ne.s32.totalorder %s207, %s208
      %p219 = scmp.eq.s32.totalorder %s18, 0
      %p220 = por %p218, %p219
      %p221 = scmp.ne.s32.totalorder %s207, %s208
      %p222 = scmp.eq.s32.totalorder %s19, 2
      %p223 = por %p221, %p222
      %p225 = scmp.ne.s32.totalorder %s208, %s224
      %p226 = scmp.eq.s32.totalorder %s19, 0
      %p227 = por %p225, %p226
      %s228 = ssub.s32 %s20, %s39
      %s229 = ssub.s32 %s21, %s35
      %s230 = sor.u32 %s228, %s229
      %p231 = scmp.eq.s32.totalorder %s230, 0
      %s233 = sadd.s32 %s232, 1
      %s234 = scalar_select %p231, %s232, %s233
      %p237 = pneg %p231
      %p238 = scmp.eq.s32.totalorder %s13, 2
      %p239 = por %p237, %p238
      %p240 = scmp.ne.s32.totalorder %s232, %s235
      %p241 = scmp.eq.s32.totalorder %s13, 0
      %p242 = por %p240, %p241
      %p243 = scmp.ne.s32.totalorder %s232, %s235
      %p244 = scmp.eq.s32.totalorder %s18, 2
      %p245 = por %p243, %p244
      %p246 = scmp.ne.s32.totalorder %s235, %s236
      %p247 = scmp.eq.s32.totalorder %s18, 0
      %p248 = por %p246, %p247
      %p249 = scmp.ne.s32.totalorder %s235, %s236
      %p250 = scmp.eq.s32.totalorder %s19, 2
      %p251 = por %p249, %p250
      %p253 = scmp.ne.s32.totalorder %s236, %s252
      %p254 = scmp.eq.s32.totalorder %s19, 0
      %p255 = por %p253, %p254
      %p256 = scmp.le.s32.totalorder 1, %s13
      %p257 = scmp.lt.s32.totalorder %s13, 4
      %p258 = pnand %p256, %p257
      %p259 = pneg %p258
      // Predicated region
      $region9: #{_lambda_.18} parent=5 // pred_check
        _
      $region10: #{_lambda_.18} parent=5 // pred_check_branch
        %261 = sbr.rel (%p258) target = $region12
      $region11: #{_lambda_.18} parent=5 // pred_region
        %s262 = ssub.s32 %s13, 1
        // Predicated region
        $region13: #{_lambda_.18} parent=11 // pred_check
          %p263 = pneg %p114
        $region14: #{_lambda_.18} parent=11 // pred_check_branch
          %265 = sbr.rel (%p263) target = $region16
        $region15: #{_lambda_.18} parent=11 // pred_region
          %p266 = scmp.lt.s32.totalorder %s24, 0
          %s267 = scalar_select %p266, %s24, 0
          %s268 = scalar_lea.vmem %s2, %s267
        $region16: #{_lambda_.18} parent=11 // pred_fallthru
          _
        // Predicated region
        $region17: #{_lambda_.18} parent=11 // pred_check
          %p269 = pneg %p140
        $region18: #{_lambda_.18} parent=11 // pred_check_branch
          %271 = sbr.rel (%p269) target = $region20
        $region19: #{_lambda_.18} parent=11 // pred_region
          %p272 = scmp.lt.s32.totalorder %s24, 0
          %s273 = scalar_select %p272, %s24, 0
          %s274 = scalar_lea.vmem %s3, %s273
        $region20: #{_lambda_.18} parent=11 // pred_fallthru
          _
        // Predicated region
        $region21: #{_lambda_.18} parent=11 // pred_check
          %p275 = pneg %p166
        $region22: #{_lambda_.18} parent=11 // pred_check_branch
          %277 = sbr.rel (%p275) target = $region24
        $region23: #{_lambda_.18} parent=11 // pred_region
          %p278 = scmp.lt.s32.totalorder %s24, 0
          %s279 = scalar_select %p278, %s24, 0
          %s280 = scalar_lea.vmem %s4, %s279
        $region24: #{_lambda_.18} parent=11 // pred_fallthru
          _
        // Predicated region
        $region25: #{_lambda_.18} parent=11 // pred_check
          %p281 = pneg %p192
        $region26: #{_lambda_.18} parent=11 // pred_check_branch
          %283 = sbr.rel (%p281) target = $region28
        $region27: #{_lambda_.18} parent=11 // pred_region
          %p284 = scmp.lt.s32.totalorder %s24, 0
          %s285 = scalar_select %p284, %s24, 0
          %s286 = scalar_lea.vmem %s5, %s285
        $region28: #{_lambda_.18} parent=11 // pred_fallthru
          _
        // Predicated region
        $region29: #{_lambda_.18} parent=11 // pred_check
          %p287 = pneg %p220
        $region30: #{_lambda_.18} parent=11 // pred_check_branch
          %289 = sbr.rel (%p287) target = $region32
        $region31: #{_lambda_.18} parent=11 // pred_region
          %s290 = smul.u32 4, %s23
          %p291 = scmp.lt.s32.totalorder %s290, 3
          %s292 = scalar_select %p291, %s290, 3
          %p293 = scmp.lt.s32.totalorder %s24, 0
          %s294 = scalar_select %p293, %s24, 0
          %s295 = sadd.s32 %s294, %s292
          %s296 = smul.addr %s295, 8
          %s297 = scalar_lea.vmem %s6, %s296
          %s298 = smul.u32 4, %s23
        $region32: #{_lambda_.18} parent=11 // pred_fallthru
          _
      $region12: #{_lambda_.18} parent=5 // pred_fallthru
        _
      %p299 = scmp.lt.s32.totalorder %s13, 3
      // Predicated region
      $region33: #{_lambda_.18} parent=5 // pred_check
        %p300 = pneg %p299
      $region34: #{_lambda_.18} parent=5 // pred_check_branch
        %302 = sbr.rel (%p300) target = $region36
      $region35: #{_lambda_.18} parent=5 // pred_region
        // Predicated region
        $region37: #{_lambda_.18} parent=35 // pred_check
          %p303 = pneg %p54
        $region38: #{_lambda_.18} parent=35 // pred_check_branch
          %305 = sbr.rel (%p303) target = $region40
        $region39: #{_lambda_.18} parent=35 // pred_region
          %s306 = sand.u32 %s44, 1
          %s307 = sand.u32 %s44, 1
          %s308 = smul.addr %s307, 48
          %s309 = scalar_lea.vmem [#allocation3], %s308
          %s310 = smul.u32 4, %s20
          %s311 = smul.u32 3, %s22
          %s312 = smul.addr %s310, 9
          %s313 = sadd.s32 %s311, %s312
          %s314 = smul.addr %s313, 4
          %s315 = scalar_lea.vmem %s0, %s314
          // Predicated region
          $region41: #{_lambda_.18} parent=39 // pred_check
            _
          $region42: #{_lambda_.18} parent=39 // pred_check_branch
            %317 = sbr.rel (0) target = $region44
          $region43: #{_lambda_.18} parent=39 // pred_region
            // Predicated region
            $region45: #{_lambda_.18} parent=43 // pred_check
              _
            $region46: #{_lambda_.18} parent=43 // pred_check_branch
              %319 = sbr.rel (0) target = $region48
            $region47: #{_lambda_.18} parent=43 // pred_region
              %s320 = scalar_lea.vmem %s315, 8
              %s321 = scalar_lea.vmem %s309, 8 [#allocation3]
              loop: start=0, step=1, limit=1
              $region49: #{_lambda_.18} parent=47 // loop_pre_header
                _
              $region50: #{_lambda_.18} parent=47 // loop_header
                %s323 = sphi 0, %s327
                %p324 = scmp.ge.s32.totalorder %s323, 1
                %s328 = sphi %s315, %s315
                %s329 = sphi %s309, %s309
              $region51: #{_lambda_.18} parent=47 // loop_header_branch
                %326 = sbr.rel (%p324) target = $region55
              $region52: #{_lambda_.18} parent=47 // loop_body
                %v330 = vld [vmem:[%s328] sm:$0xff]
                %331 = vst [vmem:[%s329] sm:$0xff] %v330
                %v332 = vld [vmem:[%s328 + $0x24] sm:$0xff]
                %333 = vst [vmem:[%s329 + $0xc] sm:$0xff] %v332
                %v334 = vld [vmem:[%s328 + $0x48] sm:$0xff]
                %335 = vst [vmem:[%s329 + $0x18] sm:$0xff] %v334
                %v336 = vld [vmem:[%s328 + $0x6c] sm:$0xff]
                %337 = vst [vmem:[%s329 + $0x24] sm:$0xff] %v336
              $region53: #{_lambda_.18} parent=47 // loop_footer
                %s327 = sadd.s32 1, %s323
              $region54: #{_lambda_.18} parent=47 // loop_footer_branch
                %322 = sbr.rel target = $region50
              $region55: #{_lambda_.18} parent=47 // loop_exit
                _
              %s339 = ssub.s32 16, 1
              loop: start=0, step=1, limit=1
              $region56: #{_lambda_.18} parent=47 // loop_pre_header
                _
              $region57: #{_lambda_.18} parent=47 // loop_header
                %s341 = sphi 0, %s345
                %p342 = scmp.ge.s32.totalorder %s341, 1
                %s346 = sphi %s320, %s320
                %s347 = sphi %s321, %s321
              $region58: #{_lambda_.18} parent=47 // loop_header_branch
                %344 = sbr.rel (%p342) target = $region62
              $region59: #{_lambda_.18} parent=47 // loop_body
                %v348 = vld [vmem:[%s346] sm:%s339]
                %349 = vst [vmem:[%s347] sm:%s339] %v348
                %v350 = vld [vmem:[%s346 + $0x24] sm:%s339]
                %351 = vst [vmem:[%s347 + $0xc] sm:%s339] %v350
                %v352 = vld [vmem:[%s346 + $0x48] sm:%s339]
                %353 = vst [vmem:[%s347 + $0x18] sm:%s339] %v352
                %v354 = vld [vmem:[%s346 + $0x6c] sm:%s339]
                %355 = vst [vmem:[%s347 + $0x24] sm:%s339] %v354
              $region60: #{_lambda_.18} parent=47 // loop_footer
                %s345 = sadd.s32 1, %s341
              $region61: #{_lambda_.18} parent=47 // loop_footer_branch
                %340 = sbr.rel target = $region57
              $region62: #{_lambda_.18} parent=47 // loop_exit
                _
            $region48: #{_lambda_.18} parent=43 // pred_fallthru
              _
          $region44: #{_lambda_.18} parent=39 // pred_fallthru
            _
          %356 = vnop
        $region40: #{_lambda_.18} parent=35 // pred_fallthru
          _
        // Predicated region
        $region63: #{_lambda_.18} parent=35 // pred_check
          %p357 = pneg %p82
        $region64: #{_lambda_.18} parent=35 // pred_check_branch
          %359 = sbr.rel (%p357) target = $region66
        $region65: #{_lambda_.18} parent=35 // pred_region
          %s360 = smul.u32 48, %s22
          %p361 = scmp.lt.s32.totalorder %s360, 143
          %s362 = scalar_select %p361, %s360, 143
          %p363 = scmp.lt.s32.totalorder %s21, 0
          %s364 = scalar_select %p363, %s21, 0
          %s365 = sadd.s32 %s364, %s362
          %s366 = smul.addr %s365, 4
          %s367 = scalar_lea.vmem %s1, %s366
          %s368 = smul.u32 48, %s22
        $region66: #{_lambda_.18} parent=35 // pred_fallthru
          _
      $region36: #{_lambda_.18} parent=5 // pred_fallthru
        _
      %p369 = scmp.le.s32.totalorder 1, %s13
      %p370 = scmp.lt.s32.totalorder %s13, 4
      %p371 = pnand %p369, %p370
      %p372 = pneg %p371
      // Predicated region
      $region67: #{_lambda_.18} parent=5 // pred_check
        _
      $region68: #{_lambda_.18} parent=5 // pred_check_branch
        %374 = sbr.rel (%p371) target = $region70
      $region69: #{_lambda_.18} parent=5 // pred_region
        %s375 = ssub.s32 %s13, 1
        %s376 = sand.u32 %s47, 1
        %s377 = sand.u32 %s47, 1
        %s378 = smul.addr %s377, 48
        %s379 = scalar_lea.vmem [#allocation3], %s378
        // Predicated region
        $region71: #{_lambda_.18} parent=69 // pred_check
          %p380 = pneg %p60
        $region72: #{_lambda_.18} parent=69 // pred_check_branch
          %382 = sbr.rel (%p380) target = $region74
        $region73: #{_lambda_.18} parent=69 // pred_region
          _
        $region74: #{_lambda_.18} parent=69 // pred_fallthru
          _
        %s383 = sand.u32 %s47, 1
        %s384 = sand.u32 %s47, 1
        %s385 = smul.addr %s384, 48
        %s386 = scalar_lea.vmem [#allocation3], %s385
        %p387 = pneg %p60
        %p388 = pneg %p57
        %s389 = smul.u32 48, %s25
        %p390 = scmp.lt.s32.totalorder %s389, 143
        %s391 = scalar_select %p390, %s389, 143
        %p392 = scmp.lt.s32.totalorder %s24, 0
        %s393 = scalar_select %p392, %s24, 0
        %s394 = sadd.s32 %s393, %s391
        %s395 = smul.addr %s394, 4
        %s396 = scalar_lea.vmem %s1, %s395
        %p397 = pneg %p88
        %p398 = pneg %p85
        %p399 = scmp.lt.s32.totalorder %s24, 0
        %s400 = scalar_select %p399, %s24, 0
        %s401 = scalar_lea.vmem %s2, %s400
        %p402 = pneg %p114
        %p403 = pneg %p111
        %p404 = scmp.lt.s32.totalorder %s24, 0
        %s405 = scalar_select %p404, %s24, 0
        %s406 = scalar_lea.vmem %s3, %s405
        %p407 = pneg %p140
        %p408 = pneg %p137
        %p409 = scmp.lt.s32.totalorder %s24, 0
        %s410 = scalar_select %p409, %s24, 0
        %s411 = scalar_lea.vmem %s4, %s410
        %p412 = pneg %p166
        %p413 = pneg %p163
        %p414 = scmp.lt.s32.totalorder %s24, 0
        %s415 = scalar_select %p414, %s24, 0
        %s416 = scalar_lea.vmem %s5, %s415
        %p417 = pneg %p192
        %p418 = pneg %p189
        %s419 = smul.u32 4, %s23
        %p420 = scmp.lt.s32.totalorder %s419, 3
        %s421 = scalar_select %p420, %s419, 3
        %p422 = scmp.lt.s32.totalorder %s24, 0
        %s423 = scalar_select %p422, %s24, 0
        %s424 = sadd.s32 %s423, %s421
        %s425 = smul.addr %s424, 8
        %s426 = scalar_lea.vmem %s6, %s425
        %p427 = pneg %p220
        %p428 = pneg %p217
        %p429 = pneg %p248
        %p430 = pneg %p245
        %s431 = smul.u32 4, %s23
        %p432 = scmp.lt.s32.totalorder %s431, 3
        %s433 = scalar_select %p432, %s431, 3
        %p434 = scmp.lt.s32.totalorder %s24, 0
        %s435 = scalar_select %p434, %s24, 0
        %s436 = sadd.s32 %s435, %s433
        %s437 = smul.addr %s436, 8
        %s438 = scalar_lea.vmem %s7, %s437
        %s439 = smul.u32 4, %s23
        %s440 = smul.u32 3, %s25
        %s441 = smul.u32 48, %s25
        %p442 = scmp.lt.s32.totalorder %s441, 143
        %s443 = scalar_select %p442, %s441, 143
        %p444 = scmp.lt.s32.totalorder %s24, 0
        %s445 = scalar_select %p444, %s24, 0
        %s446 = sadd.s32 %s445, %s443
        %s447 = smul.addr %s446, 4
        %s448 = scalar_lea.vmem %s1, %s447
        %s449 = smul.u32 48, %s25
        %p450 = scmp.lt.s32.totalorder %s24, 0
        %s451 = scalar_select %p450, %s24, 0
        %s452 = scalar_lea.vmem %s2, %s451
        %p453 = scmp.lt.s32.totalorder %s24, 0
        %s454 = scalar_select %p453, %s24, 0
        %s455 = scalar_lea.vmem %s3, %s454
        %p456 = scmp.lt.s32.totalorder %s24, 0
        %s457 = scalar_select %p456, %s24, 0
        %s458 = scalar_lea.vmem %s4, %s457
        %p459 = scmp.lt.s32.totalorder %s24, 0
        %s460 = scalar_select %p459, %s24, 0
        %s461 = scalar_lea.vmem %s5, %s460
        %s462 = smul.u32 4, %s23
        %p463 = scmp.lt.s32.totalorder %s462, 3
        %s464 = scalar_select %p463, %s462, 3
        %p465 = scmp.lt.s32.totalorder %s24, 0
        %s466 = scalar_select %p465, %s24, 0
        %s467 = sadd.s32 %s466, %s464
        %s468 = smul.addr %s467, 8
        %s469 = scalar_lea.vmem %s6, %s468
        %s470 = smul.u32 4, %s23
        %s471 = smul.u32 4, %s23
        %p472 = scmp.lt.s32.totalorder %s471, 3
        %s473 = scalar_select %p472, %s471, 3
        %p474 = scmp.lt.s32.totalorder %s24, 0
        %s475 = scalar_select %p474, %s24, 0
        %s476 = sadd.s32 %s475, %s473
        %s477 = smul.addr %s476, 8
        %s478 = scalar_lea.vmem %s7, %s477
        %s479 = smul.u32 4, %s23
        %p480 = scmp.eq.s32.totalorder %s25, 0
        // Predicated region
        $region75: #{_lambda_.18} parent=69 // pred_check
          %p481 = pneg %p480
        $region76: #{_lambda_.18} parent=69 // pred_check_branch
          %483 = sbr.rel (%p481) target = $region78
        $region77: #{_lambda_.18} parent=69 // pred_region
          %484 = vst [vmem:[#allocation2] sm:$0xff] 0.0
          %485 = vst [vmem:[#allocation2 + $0x8] sm:$0xff] 0.0
          %486 = vst [vmem:[#allocation2 + $0x10] sm:$0xff] 0.0
          %487 = vst [vmem:[#allocation2 + $0x18] sm:$0xff] 0.0
        $region78: #{_lambda_.18} parent=69 // pred_fallthru
          _
        %v488 = vld [vmem:[#allocation2] sm:$0xff]
        %v489 = vld [vmem:[#allocation2 + $0x8] sm:$0xff]
        %v490 = vld [vmem:[#allocation2 + $0x10] sm:$0xff]
        %v491 = vld [vmem:[#allocation2 + $0x18] sm:$0xff]
        %v492 = vld [vmem:[%s379] sm:$0xff]
        %v493 = vld [vmem:[%s379 + $0x8] sm:$0xf]
        %v494 = vld [vmem:[%s379 + $0xc] sm:$0xff]
        %v495 = vld [vmem:[%s379 + $0x14] sm:$0xf]
        %v496 = vld [vmem:[%s379 + $0x18] sm:$0xff]
        %v497 = vld [vmem:[%s379 + $0x20] sm:$0xf]
        %v498 = vld [vmem:[%s379 + $0x24] sm:$0xff]
        %v499 = vld [vmem:[%s379 + $0x2c] sm:$0xf]
        %v500 = vld [vmem:[%s448] sm:$0xf]
        %v501 = vld [vmem:[%s448 + $0x4] sm:$0xf]
        %v502 = vld [vmem:[%s448 + $0x8] sm:$0xf]
        %v503 = vld [vmem:[%s448 + $0xc] sm:$0xf]
        %v504 = vld [vmem:[%s448 + $0x10] sm:$0xf]
        %v505 = vld [vmem:[%s448 + $0x14] sm:$0xf]
        %v506 = vld [vmem:[%s448 + $0x18] sm:$0xf]
        %v507 = vld [vmem:[%s448 + $0x1c] sm:$0xf]
        %v508 = vld [vmem:[%s448 + $0x20] sm:$0xf]
        %v509 = vld [vmem:[%s448 + $0x24] sm:$0xf]
        %v510 = vld [vmem:[%s448 + $0x28] sm:$0xf]
        %v511 = vld [vmem:[%s448 + $0x2c] sm:$0xf]
        %v512 = vld [vmem:[%s448 + $0x30] sm:$0xf]
        %v513 = vld [vmem:[%s448 + $0x34] sm:$0xf]
        %v514 = vld [vmem:[%s448 + $0x38] sm:$0xf]
        %v515 = vld [vmem:[%s448 + $0x3c] sm:$0xf]
        %v516 = vld [vmem:[%s448 + $0x40] sm:$0xf]
        %v517 = vld [vmem:[%s448 + $0x44] sm:$0xf]
        %v518 = vld [vmem:[%s448 + $0x48] sm:$0xf]
        %v519 = vld [vmem:[%s448 + $0x4c] sm:$0xf]
        %v520 = vld [vmem:[%s448 + $0x50] sm:$0xf]
        %v521 = vld [vmem:[%s448 + $0x54] sm:$0xf]
        %v522 = vld [vmem:[%s448 + $0x58] sm:$0xf]
        %v523 = vld [vmem:[%s448 + $0x5c] sm:$0xf]
        %v524 = vld [vmem:[%s448 + $0x60] sm:$0xf]
        %v525 = vld [vmem:[%s448 + $0x64] sm:$0xf]
        %v526 = vld [vmem:[%s448 + $0x68] sm:$0xf]
        %v527 = vld [vmem:[%s448 + $0x6c] sm:$0xf]
        %v528 = vld [vmem:[%s448 + $0x70] sm:$0xf]
        %v529 = vld [vmem:[%s448 + $0x74] sm:$0xf]
        %v530 = vld [vmem:[%s448 + $0x78] sm:$0xf]
        %v531 = vld [vmem:[%s448 + $0x7c] sm:$0xf]
        %v532 = vld [vmem:[%s448 + $0x80] sm:$0xf]
        %v533 = vld [vmem:[%s448 + $0x84] sm:$0xf]
        %v534 = vld [vmem:[%s448 + $0x88] sm:$0xf]
        %v535 = vld [vmem:[%s448 + $0x8c] sm:$0xf]
        %v536 = vld [vmem:[%s448 + $0x90] sm:$0xf]
        %v537 = vld [vmem:[%s448 + $0x94] sm:$0xf]
        %v538 = vld [vmem:[%s448 + $0x98] sm:$0xf]
        %v539 = vld [vmem:[%s448 + $0x9c] sm:$0xf]
        %v540 = vld [vmem:[%s448 + $0xa0] sm:$0xf]
        %v541 = vld [vmem:[%s448 + $0xa4] sm:$0xf]
        %v542 = vld [vmem:[%s448 + $0xa8] sm:$0xf]
        %v543 = vld [vmem:[%s448 + $0xac] sm:$0xf]
        %v544 = vld [vmem:[%s448 + $0xb0] sm:$0xf]
        %v545 = vld [vmem:[%s448 + $0xb4] sm:$0xf]
        %v546 = vld [vmem:[%s448 + $0xb8] sm:$0xf]
        %v547 = vld [vmem:[%s448 + $0xbc] sm:$0xf]
        %v556 = vunpack.c.l.b16 %v492
        %v557 = vunpack.c.h.b16 %v492
        %v558 = vunpack.c.l.b16 %v493
        %v559 = vunpack.c.l.b16 %v494
        %v560 = vunpack.c.h.b16 %v494
        %v561 = vunpack.c.l.b16 %v495
        %v562 = vunpack.c.l.b16 %v496
        %v563 = vunpack.c.h.b16 %v496
        %v564 = vunpack.c.l.b16 %v497
        %v565 = vunpack.c.l.b16 %v498
        %v566 = vunpack.c.h.b16 %v498
        %v567 = vunpack.c.l.b16 %v499
        %v568 = vpack.c.b16 %v559, %v556
        %v569 = vpack.c.b16 %v560, %v557
        %v570 = vpack.c.b16 %v561, %v558
        %v571 = vpack.c.b16 %v565, %v562
        %v572 = vpack.c.b16 %v566, %v563
        %v573 = vpack.c.b16 %v567, %v564
        %v628 = vunpack.c.l.b16 %v500
        %v629 = vunpack.c.l.b16 %v501
        %v630 = vunpack.c.l.b16 %v502
        %v631 = vunpack.c.l.b16 %v503
        %v632 = vunpack.c.l.b16 %v504
        %v633 = vunpack.c.l.b16 %v505
        %v634 = vunpack.c.l.b16 %v506
        %v635 = vunpack.c.l.b16 %v507
        %v636 = vunpack.c.l.b16 %v508
        %v637 = vunpack.c.l.b16 %v509
        %v638 = vunpack.c.l.b16 %v510
        %v639 = vunpack.c.l.b16 %v511
        %v640 = vunpack.c.l.b16 %v512
        %v641 = vunpack.c.l.b16 %v513
        %v642 = vunpack.c.l.b16 %v514
        %v643 = vunpack.c.l.b16 %v515
        %v644 = vunpack.c.l.b16 %v516
        %v645 = vunpack.c.l.b16 %v517
        %v646 = vunpack.c.l.b16 %v518
        %v647 = vunpack.c.l.b16 %v519
        %v648 = vunpack.c.l.b16 %v520
        %v649 = vunpack.c.l.b16 %v521
        %v650 = vunpack.c.l.b16 %v522
        %v651 = vunpack.c.l.b16 %v523
        %v652 = vunpack.c.l.b16 %v524
        %v653 = vunpack.c.l.b16 %v525
        %v654 = vunpack.c.l.b16 %v526
        %v655 = vunpack.c.l.b16 %v527
        %v656 = vunpack.c.l.b16 %v528
        %v657 = vunpack.c.l.b16 %v529
        %v658 = vunpack.c.l.b16 %v530
        %v659 = vunpack.c.l.b16 %v531
        %v660 = vunpack.c.l.b16 %v532
        %v661 = vunpack.c.l.b16 %v533
        %v662 = vunpack.c.l.b16 %v534
        %v663 = vunpack.c.l.b16 %v535
        %v664 = vunpack.c.l.b16 %v536
        %v665 = vunpack.c.l.b16 %v537
        %v666 = vunpack.c.l.b16 %v538
        %v667 = vunpack.c.l.b16 %v539
        %v668 = vunpack.c.l.b16 %v540
        %v669 = vunpack.c.l.b16 %v541
        %v670 = vunpack.c.l.b16 %v542
        %v671 = vunpack.c.l.b16 %v543
        %v672 = vunpack.c.l.b16 %v544
        %v673 = vunpack.c.l.b16 %v545
        %v674 = vunpack.c.l.b16 %v546
        %v675 = vunpack.c.l.b16 %v547
        %v676 = vpack.c.b16 %v629, %v628
        %v677 = vpack.c.b16 %v631, %v630
        %v678 = vpack.c.b16 %v633, %v632
        %v679 = vpack.c.b16 %v635, %v634
        %v680 = vpack.c.b16 %v637, %v636
        %v681 = vpack.c.b16 %v639, %v638
        %v682 = vpack.c.b16 %v641, %v640
        %v683 = vpack.c.b16 %v643, %v642
        %v684 = vpack.c.b16 %v645, %v644
        %v685 = vpack.c.b16 %v647, %v646
        %v686 = vpack.c.b16 %v649, %v648
        %v687 = vpack.c.b16 %v651, %v650
        %v688 = vpack.c.b16 %v653, %v652
        %v689 = vpack.c.b16 %v655, %v654
        %v690 = vpack.c.b16 %v657, %v656
        %v691 = vpack.c.b16 %v659, %v658
        %v692 = vpack.c.b16 %v661, %v660
        %v693 = vpack.c.b16 %v663, %v662
        %v694 = vpack.c.b16 %v665, %v664
        %v695 = vpack.c.b16 %v667, %v666
        %v696 = vpack.c.b16 %v669, %v668
        %v697 = vpack.c.b16 %v671, %v670
        %v698 = vpack.c.b16 %v673, %v672
        %v699 = vpack.c.b16 %v675, %v674
        %724 = vmatpush.bf16.msra.mxu0 %v683
        %725 = vmatpush.bf16.msra.mxu0 %v682
        %726 = vmatpush.bf16.msra.mxu0 %v681
        %727 = vmatpush.bf16.msra.mxu0 %v680
        %728 = vmatpush.bf16.msra.mxu0 %v679
        %729 = vmatpush.bf16.msra.mxu0 %v678
        %730 = vmatpush.bf16.msra.mxu0 %v677
        %731 = vmatpush.bf16.msra.mxu0 %v676
        %732 = vmatmul.bf16.gmra.mxu0 %v568
        %v733 = vpop.f32.mrf.mxu0
        %v734 = vadd.f32 0.0, %v733
        %v735 = vpop.f32.mrf.mxu0
        %v736 = vadd.f32 0.0, %v735
        %737 = vmatmul.bf16.gmra.mxu0 %v571
        %v738 = vpop.f32.mrf.mxu0
        %v739 = vadd.f32 0.0, %v738
        %v740 = vpop.f32.mrf.mxu0
        %v741 = vadd.f32 0.0, %v740
        %742 = vdwg.mxu0
        %743 = vmatpush.bf16.msra.mxu0 %v691
        %744 = vmatpush.bf16.msra.mxu0 %v690
        %745 = vmatpush.bf16.msra.mxu0 %v689
        %746 = vmatpush.bf16.msra.mxu0 %v688
        %747 = vmatpush.bf16.msra.mxu0 %v687
        %748 = vmatpush.bf16.msra.mxu0 %v686
        %749 = vmatpush.bf16.msra.mxu0 %v685
        %750 = vmatpush.bf16.msra.mxu0 %v684
        %751 = vmatmul.bf16.gmra.mxu0 %v569
        %v752 = vpop.f32.mrf.mxu0
        %v753 = vadd.f32 %v734, %v752
        %v754 = vpop.f32.mrf.mxu0
        %v755 = vadd.f32 %v736, %v754
        %756 = vmatmul.bf16.gmra.mxu0 %v572
        %v757 = vpop.f32.mrf.mxu0
        %v758 = vadd.f32 %v739, %v757
        %v759 = vpop.f32.mrf.mxu0
        %v760 = vadd.f32 %v741, %v759
        %761 = vdwg.mxu0
        %762 = vmatpush.bf16.msra.mxu0 %v699
        %763 = vmatpush.bf16.msra.mxu0 %v698
        %764 = vmatpush.bf16.msra.mxu0 %v697
        %765 = vmatpush.bf16.msra.mxu0 %v696
        %766 = vmatpush.bf16.msra.mxu0 %v695
        %767 = vmatpush.bf16.msra.mxu0 %v694
        %768 = vmatpush.bf16.msra.mxu0 %v693
        %769 = vmatpush.bf16.msra.mxu0 %v692
        %770 = vmatmul.bf16.gmra.mxu0 %v570
        %v771 = vpop.f32.mrf.mxu0
        %v772 = vadd.f32 %v753, %v771
        %v773 = vpop.f32.mrf.mxu0
        %v774 = vadd.f32 %v755, %v773
        %775 = vmatmul.bf16.gmra.mxu0 %v573
        %v776 = vpop.f32.mrf.mxu0
        %v777 = vadd.f32 %v758, %v776
        %v778 = vpop.f32.mrf.mxu0
        %v779 = vadd.f32 %v760, %v778
        %780 = vdwg.mxu0
        %v781 = vadd.f32 %v488, %v772
        %v782 = vadd.f32 %v489, %v774
        %v783 = vadd.f32 %v490, %v777
        %v784 = vadd.f32 %v491, %v779
        %785 = vst [vmem:[#allocation2] sm:$0xff] %v781
        %786 = vst [vmem:[#allocation2 + $0x8] sm:$0xff] %v782
        %787 = vst [vmem:[#allocation2 + $0x10] sm:$0xff] %v783
        %788 = vst [vmem:[#allocation2 + $0x18] sm:$0xff] %v784
        %p789 = scmp.eq.s32.totalorder %s25, 2
        // Predicated region
        $region79: #{_lambda_.18} parent=69 // pred_check
          %p790 = pneg %p789
        $region80: #{_lambda_.18} parent=69 // pred_check_branch
          %792 = sbr.rel (%p790) target = $region82
        $region81: #{_lambda_.18} parent=69 // pred_region
          %v793 = vld [vmem:[#allocation2] sm:$0xff]
          %v794 = vld [vmem:[#allocation2 + $0x8] sm:$0xff]
          %v795 = vld [vmem:[#allocation2 + $0x10] sm:$0xff]
          %v796 = vld [vmem:[#allocation2 + $0x18] sm:$0xff]
          %v797 = vld [vmem:[%s469] sm:$0xff]
          %v798 = vld [vmem:[%s469 + $0x8] sm:$0xff]
          %v799 = vld [vmem:[%s469 + $0x10] sm:$0xff]
          %v800 = vld [vmem:[%s469 + $0x18] sm:$0xff]
          %v801 = vadd.f32 %v793, %v797
          %v802 = vadd.f32 %v794, %v798
          %v803 = vadd.f32 %v795, %v799
          %v804 = vadd.f32 %v796, %v800
          %v805 = vld [vmem:[%s452] sm:$0x1]
          %v807 = vperm.slane %v805, 0
          %v809 = vmul.f32 %v801, %v807
          %v810 = vmul.f32 %v802, %v807
          %v811 = vmul.f32 %v803, %v807
          %v812 = vmul.f32 %v804, %v807
          %v813 = vld [vmem:[%s455] sm:$0x1]
          %v815 = vperm.slane %v813, 0
          %v817 = vadd.f32 %v809, %v815
          %v818 = vadd.f32 %v810, %v815
          %v819 = vadd.f32 %v811, %v815
          %v820 = vadd.f32 %v812, %v815
          %v821 = vld [vmem:[%s458] sm:$0x1]
          %v823 = vperm.slane %v821, 0
          %v825 = vmul.f32 %v817, %v823
          %v826 = vmul.f32 %v818, %v823
          %v827 = vmul.f32 %v819, %v823
          %v828 = vmul.f32 %v820, %v823
          %v829 = vld [vmem:[%s461] sm:$0x1]
          %v831 = vperm.slane %v829, 0
          %v833 = vadd.f32 %v825, %v831
          %v834 = vadd.f32 %v826, %v831
          %v835 = vadd.f32 %v827, %v831
          %v836 = vadd.f32 %v828, %v831
          %v837 = vmax.f32 %v833, 0.0
          %v838 = vmax.f32 %v834, 0.0
          %v839 = vmax.f32 %v835, 0.0
          %v840 = vmax.f32 %v836, 0.0
          %841 = vst [vmem:[%s478] sm:$0xff] %v837
          %842 = vst [vmem:[%s478 + $0x8] sm:$0xff] %v838
          %843 = vst [vmem:[%s478 + $0x10] sm:$0xff] %v839
          %844 = vst [vmem:[%s478 + $0x18] sm:$0xff] %v840
        $region82: #{_lambda_.18} parent=69 // pred_fallthru
          _
        %s845 = smul.u32 4, %s23
        %p846 = scmp.lt.s32.totalorder %s845, 3
        %s847 = scalar_select %p846, %s845, 3
        %p848 = scmp.lt.s32.totalorder %s24, 0
        %s849 = scalar_select %p848, %s24, 0
        %s850 = sadd.s32 %s849, %s847
        %s851 = smul.addr %s850, 8
        %s852 = scalar_lea.vmem %s7, %s851
        // Predicated region
        $region83: #{_lambda_.18} parent=69 // pred_check
          %p853 = pneg %p245
        $region84: #{_lambda_.18} parent=69 // pred_check_branch
          %855 = sbr.rel (%p853) target = $region86
        $region85: #{_lambda_.18} parent=69 // pred_region
          %s856 = smul.u32 4, %s23
        $region86: #{_lambda_.18} parent=69 // pred_fallthru
          _
        // Predicated region
        $region87: #{_lambda_.18} parent=69 // pred_check
          %p857 = pneg %p245
        $region88: #{_lambda_.18} parent=69 // pred_check_branch
          %859 = sbr.rel (%p857) target = $region90
        $region89: #{_lambda_.18} parent=69 // pred_region
          %s860 = smul.u32 4, %s23
          %p861 = scmp.lt.s32.totalorder %s860, 3
          %s862 = scalar_select %p861, %s860, 3
          %p863 = scmp.lt.s32.totalorder %s24, 0
          %s864 = scalar_select %p863, %s24, 0
          %s865 = sadd.s32 %s864, %s862
          %s866 = smul.addr %s865, 8
          %s867 = scalar_lea.vmem %s7, %s866
        $region90: #{_lambda_.18} parent=69 // pred_fallthru
          _
      $region70: #{_lambda_.18} parent=5 // pred_fallthru
        _
      %p868 = scmp.le.s32.totalorder 2, %s13
      // Predicated region
      $region91: #{_lambda_.18} parent=5 // pred_check
        %p869 = pneg %p868
      $region92: #{_lambda_.18} parent=5 // pred_check_branch
        %871 = sbr.rel (%p869) target = $region94
      $region93: #{_lambda_.18} parent=5 // pred_region
        %s872 = ssub.s32 %s13, 2
      $region94: #{_lambda_.18} parent=5 // pred_fallthru
        _
    $region6: #{_lambda_.18} parent=1 // loop_footer
      %s17 = sadd.s32 1, %s13
    $region7: #{_lambda_.18} parent=1 // loop_footer_branch
      %12 = sbr.rel target = $region3
    $region8: #{_lambda_.18} parent=1 // loop_exit
      _

// kernel: _lambda_.19
$region0: #{_lambda_.19}
  #allocation0 [shape = 'u32[]', space=smem, size = 0x4, offset = 0x4, fixed_abs, tag = 'smem constant byte address 0x4 - core index']
  #allocation1 [shape = 'u32[72,128]{1,0:T(1,128)}', space=vmem, size = 0x9000, scoped, tag = 'internal scratch']
  %s0 = inlined_call_operand.vmem [shape: f32[2,16,128], index: 0, kind: input, shape index: {}]
  %s1 = inlined_call_operand.vmem [shape: f32[128,10], index: 1, kind: input, shape index: {}]
  %s2 = inlined_call_operand.vmem [shape: f32[1,10], index: 2, kind: input, shape index: {}]
  %s3 = inlined_call_operand.hbm [shape: f32[2,10], index: 3, kind: output, shape index: {}]
  %s4 = sld [smem:[#allocation0]]
  $region22: #{_lambda_.19} parent=0
    _
  %s6 = ssub.s32 1, %s4
  %s7 = scalar_select 0, %s6, %s4
  $region1: #{_lambda_.19} parent=0
    #allocation2 [shape = 'u8[1024]{0}', space=vmem, size = 0x400, scoped, tag = 'output window, operand 0, single buffered']
    #allocation3 [shape = 's32[1]{0}', space=sflag, size = 0x4, scoped, tag = 'scoped memory for _lambda_.19']
    %8 = vsyncpa [#allocation3], 0
    // Predicated region
    $region2: #{_lambda_.19} parent=1 // pred_check
      _
    $region3: #{_lambda_.19} parent=1 // pred_check_branch
      %10 = sbr.rel (0) target = $region5
    $region4: #{_lambda_.19} parent=1 // pred_region
      _
    $region5: #{_lambda_.19} parent=1 // pred_fallthru
      _
    // Predicated region
    $region6: #{_lambda_.19} parent=1 // pred_check
      _
    $region7: #{_lambda_.19} parent=1 // pred_check_branch
      %12 = sbr.rel (0) target = $region9
    $region8: #{_lambda_.19} parent=1 // pred_region
      _
    $region9: #{_lambda_.19} parent=1 // pred_fallthru
      _
    // Predicated region
    $region10: #{_lambda_.19} parent=1 // pred_check
      _
    $region11: #{_lambda_.19} parent=1 // pred_check_branch
      %14 = sbr.rel (0) target = $region13
    $region12: #{_lambda_.19} parent=1 // pred_region
      _
    $region13: #{_lambda_.19} parent=1 // pred_fallthru
      _
    %v15 = vld [vmem:[%s0] sm:$0xff]
    %v16 = vld [vmem:[%s0 + $0x8] sm:$0xff]
    %v17 = vld [vmem:[%s0 + $0x10] sm:$0xff]
    %v18 = vld [vmem:[%s0 + $0x18] sm:$0xff]
    %v19 = vadd.f32 %v15, %v16
    %v20 = vrot.slane %v19, 4
    %v21 = vadd.f32 %v19, %v20
    %v22 = vrot.slane %v21, 2
    %v23 = vadd.f32 %v21, %v22
    %v24 = vrot.slane %v23, 1
    %v25 = vadd.f32 %v23, %v24
    %v26 = vadd.f32 %v17, %v18
    %v27 = vrot.slane %v26, 4
    %v28 = vadd.f32 %v26, %v27
    %v29 = vrot.slane %v28, 2
    %v30 = vadd.f32 %v28, %v29
    %v31 = vrot.slane %v30, 1
    %v32 = vadd.f32 %v30, %v31
    %v33 = vrcp.pop 16.0
    %v34 = vmul.f32 16.0, %v33
    %v35 = vsub.f32 1.0, %v34
    %v36 = vmul.f32 %v33, %v35
    %v37 = vadd.f32 %v33, %v36
    %vm38 = vweird.f32 %v33
    %v39 = vsel %vm38, %v33, %v37
    %v40 = vmul.f32 %v25, %v39
    %v41 = vmul.f32 %v32, %v39
    %v42 = vld [vmem:[%s1] sm:$0xff]
    %v43 = vld [vmem:[%s1 + $0x8] sm:$0xff]
    %v44 = vld [vmem:[%s1 + $0x10] sm:$0xff]
    %v45 = vld [vmem:[%s1 + $0x18] sm:$0xff]
    %v46 = vld [vmem:[%s1 + $0x20] sm:$0xff]
    %v47 = vld [vmem:[%s1 + $0x28] sm:$0xff]
    %v48 = vld [vmem:[%s1 + $0x30] sm:$0xff]
    %v49 = vld [vmem:[%s1 + $0x38] sm:$0xff]
    %v50 = vld [vmem:[%s1 + $0x40] sm:$0xff]
    %v51 = vld [vmem:[%s1 + $0x48] sm:$0xff]
    %v52 = vld [vmem:[%s1 + $0x50] sm:$0xff]
    %v53 = vld [vmem:[%s1 + $0x58] sm:$0xff]
    %v54 = vld [vmem:[%s1 + $0x60] sm:$0xff]
    %v55 = vld [vmem:[%s1 + $0x68] sm:$0xff]
    %v56 = vld [vmem:[%s1 + $0x70] sm:$0xff]
    %v57 = vld [vmem:[%s1 + $0x78] sm:$0xff]
    %v58 = vld [vmem:[%s2] sm:$0x1]
    %v60 = vperm.slane %v58, 0
    %vm64 = vcmask 1041409
    %v65 = vsel %vm64, %v41, %v40
    %67 = vmatpush.msra.mxu0 %v57
    %68 = vmatpush.msra.mxu0 %v56
    %69 = vmatpush.msra.mxu0 %v55
    %70 = vmatpush.msra.mxu0 %v54
    %71 = vmatpush.msra.mxu0 %v53
    %72 = vmatpush.msra.mxu0 %v52
    %73 = vmatpush.msra.mxu0 %v51
    %74 = vmatpush.msra.mxu0 %v50
    %75 = vmatpush.msra.mxu0 %v49
    %76 = vmatpush.msra.mxu0 %v48
    %77 = vmatpush.msra.mxu0 %v47
    %78 = vmatpush.msra.mxu0 %v46
    %79 = vmatpush.msra.mxu0 %v45
    %80 = vmatpush.msra.mxu0 %v44
    %81 = vmatpush.msra.mxu0 %v43
    %82 = vmatpush.msra.mxu0 %v42
    %83 = vmatmul.f32.gmra.mxu0 %v65
    %v84 = vpop.f32.mrf.mxu0
    %v85 = vadd.f32 %v60, %v84
    %86 = vdwg.mxu0
    %vm87 = vcmask 74752
    %88 = vst.msk [vmem:[#allocation2] sm:$0x3] %vm87, %v85
    // Predicated region
    $region14: #{_lambda_.19} parent=1 // pred_check
      _
    $region15: #{_lambda_.19} parent=1 // pred_check_branch
      %90 = sbr.rel (0) target = $region17
    $region16: #{_lambda_.19} parent=1 // pred_region
      %92 = vsyncadd [#allocation3], 0
      %s94 = sshll.u32 [#allocation2], 4
      %s95 = int_to_ptr.vmem [resolvable:$true] %s94
      %s96 = sshll.u32 %s3, 4
      %s97 = int_to_ptr.hbm [resolvable:$true] %s96
      %99 = dma.vmem_to_hbm [thread:$0]  %s95, 32, %s97, [#allocation3]
    $region17: #{_lambda_.19} parent=1 // pred_fallthru
      _
    // Predicated region
    $region18: #{_lambda_.19} parent=1 // pred_check
      _
    $region19: #{_lambda_.19} parent=1 // pred_check_branch
      %101 = sbr.rel (0) target = $region21
    $region20: #{_lambda_.19} parent=1 // pred_region
      %103 = dma.done [#allocation3], 32
    $region21: #{_lambda_.19} parent=1 // pred_fallthru
      _
    %104 = vsyncpa [#allocation3], 1

</llo_original>
